<compile_context>
chip_gen: v7x
topology: tpu7x:2x2x1
jax: 0.10.0
libtpu: 0.0.40
codegen_flags: <defaults>
</compile_context>

<pallas_src>
import functools

import numpy as np

import jax
import jax.numpy as jnp
from jax import lax
from jax.experimental import pallas as pl
from jax.experimental.pallas import tpu as pltpu

_EPS = 1e-5
_LANE = 128
_VMEM_LIMIT = 32 * 1024 * 1024


def _round_up(x, m=_LANE):
    return ((x + m - 1) // m) * m


def _pick_tile_h(h):
    # Keep >= 2 row tiles when possible so the H grid axis (and halo handling)
    # is actually exercised.
    # TODO(synk): derive th from the per-chip VMEM budget for production shapes.
    cap = max(h // 2, 1) if h >= 16 else h
    for th in (64, 32, 16, 8, 4, 2, 1):
        if th <= cap and h % th == 0:
            return th
    return 1


# ----------------------------------------------------------------------------
# Kernel 1: conv1 (split-K over the two concat operands) + BN1 partial stats
# ----------------------------------------------------------------------------
def _conv1_stats_kernel(x2t_ref, x1t_ref, w1a_ref, w1b_ref, mid_ref, st_ref,
                        *, th, w):
    # x2t_ref/x1t_ref: (1, 1, th+2, w+2, C*_p) bf16 — overlapping halo'd row tiles
    # w1a/w1b        : (9, C*_p, Cmid_p)       bf16 — per-tap weights, K split over
    #                  the [x2, x1] concat operands (no lane-misaligned concat)
    # mid_ref        : (1, th, w, Cmid_p)      bf16 — raw (pre-BN) conv1 output
    # st_ref         : (1, 1, 2, Cmid_p)       f32  — per-tile [sum, sumsq]
    x2t = x2t_ref[0, 0]
    x1t = x1t_ref[0, 0]
    cmid_p = w1a_ref.shape[-1]
    m = th * w

    # Per-tap accumulating matmuls (no 9x im2col materialization).
    acc = jnp.zeros((m, cmid_p), jnp.float32)
    for dy in range(3):
        for dx in range(3):
            k = dy * 3 + dx
            p2 = x2t[dy:dy + th, dx:dx + w, :].reshape(m, -1)
            p1 = x1t[dy:dy + th, dx:dx + w, :].reshape(m, -1)
            acc = acc + jnp.dot(p2, w1a_ref[k], preferred_element_type=jnp.float32)
            acc = acc + jnp.dot(p1, w1b_ref[k], preferred_element_type=jnp.float32)

    mid_ref[...] = acc.reshape(1, th, w, cmid_p).astype(mid_ref.dtype)
    s = jnp.sum(acc, axis=0, keepdims=True)
    sq = jnp.sum(acc * acc, axis=0, keepdims=True)
    st_ref[...] = jnp.concatenate([s, sq], axis=0).reshape(1, 1, 2, cmid_p)


# ----------------------------------------------------------------------------
# Kernel 2: folded BN1 + ReLU fused with conv2, + BN2 partial stats
# ----------------------------------------------------------------------------
def _bn_relu_conv2_stats_kernel(midt_ref, s1_ref, b1_ref, w2_ref, out_ref,
                                st_ref, *, th, w, h):
    # midt_ref: (1, 1, th+2, w+2, Cmid_p) bf16 — halo'd raw conv1 tile (zero border)
    # s1/b1   : (1, 1, Cmid_p) f32 — folded BN1 scale/bias
    # w2_ref  : (9, Cmid_p, Cout_p) bf16
    # out_ref : (1, th, w, Cout_p) bf16 — raw (pre-BN) conv2 output
    # st_ref  : (1, 1, 2, Cout_p)  f32
    i = pl.program_id(1)

    raw = midt_ref[0, 0].astype(jnp.float32)                   # (th+2, w+2, Cmid_p)
    act = jnp.maximum(raw * s1_ref[...] + b1_ref[...], 0.0)    # single-FMA BN + ReLU

    # The conv2 zero halo must stay zero *after* BN+ReLU (relu(bias) != 0 in
    # general), so mask positions that fall on the image border. Interior halo
    # rows (tile overlap) are real activations and stay untouched.
    rows = lax.broadcasted_iota(jnp.int32, (th + 2, w + 2, 1), 0) + i * th
    cols = lax.broadcasted_iota(jnp.int32, (th + 2, w + 2, 1), 1)
    valid = (rows >= 1) & (rows <= h) & (cols >= 1) & (cols <= w)
    act = jnp.where(valid, act, 0.0).astype(jnp.bfloat16)

    cout_p = w2_ref.shape[-1]
    m = th * w
    acc = jnp.zeros((m, cout_p), jnp.float32)
    for dy in range(3):
        for dx in range(3):
            k = dy * 3 + dx
            p = act[dy:dy + th, dx:dx + w, :].reshape(m, -1)
            acc = acc + jnp.dot(p, w2_ref[k], preferred_element_type=jnp.float32)

    out_ref[...] = acc.reshape(1, th, w, cout_p).astype(out_ref.dtype)
    s = jnp.sum(acc, axis=0, keepdims=True)
    sq = jnp.sum(acc * acc, axis=0, keepdims=True)
    st_ref[...] = jnp.concatenate([s, sq], axis=0).reshape(1, 1, 2, cout_p)


# ----------------------------------------------------------------------------
# Kernel 3: folded BN2 + ReLU, lane-dense f32 output store
# ----------------------------------------------------------------------------
def _bn_relu_out_kernel(raw_ref, s2_ref, b2_ref, o_ref):
    y = raw_ref[...].astype(jnp.float32) * s2_ref[...] + b2_ref[...]
    o_ref[...] = jnp.maximum(y, 0.0)


# ----------------------------------------------------------------------------
# XLA-side helpers (prologue / stat reduction / tiling)
# ----------------------------------------------------------------------------
def _upsample_pad_matrix(in_size, out_size, pad_before, padded_size, halo=1):
    """Dense (padded_size + 2*halo, in_size) matrix implementing bilinear
    upsample (align_corners=True) -> F.pad placement -> 1-px conv halo."""
    mat = np.zeros((padded_size + 2 * halo, in_size), np.float32)
    for j in range(out_size):
        if out_size == 1 or in_size == 1:
            src = 0.0
        else:
            src = j * (in_size - 1) / (out_size - 1)
        i0 = min(max(int(np.floor(src)), 0), in_size - 1)
        i1 = min(i0 + 1, in_size - 1)
        f = src - i0
        r = halo + pad_before + j
        mat[r, i0] += 1.0 - f
        mat[r, i1] += f
    return jnp.asarray(mat)


def _fold_bn(stats, gamma_p, beta_p, count, eps=_EPS):
    """Per-tile [sum, sumsq] partials -> folded BN scale/bias (biased variance).

    Padded channels rely on gamma_p = beta_p = 0 so scale = bias = 0 and the
    padded lanes stay exactly zero through BN + ReLU — keep the zero padding."""
    s = jnp.sum(stats[:, :, 0, :], axis=(0, 1))
    sq = jnp.sum(stats[:, :, 1, :], axis=(0, 1))
    mean = s / count
    var = jnp.maximum(sq / count - mean * mean, 0.0)
    scale = gamma_p * lax.rsqrt(var + eps)
    bias = beta_p - mean * scale
    return scale.reshape(1, 1, -1), bias.reshape(1, 1, -1)


def _stack_row_tiles(x_pad, th):
    """(N, H+2, W+2, C) zero-halo-padded -> (N, HT, th+2, W+2, C) overlapping
    row tiles (halo rows duplicated) so plain Blocked BlockSpecs pipeline them."""
    h = x_pad.shape[1] - 2
    ht = h // th
    tiles = [lax.slice_in_dim(x_pad, i * th, i * th + th + 2, axis=1)
             for i in range(ht)]
    return jnp.stack(tiles, axis=1)


# ----------------------------------------------------------------------------
# One-time parameter preparation (hoisted out of the per-step forward)
# ----------------------------------------------------------------------------
def _pad_vec(v, cp):
    return jnp.zeros((cp,), jnp.float32).at[:v.shape[0]].set(v.astype(jnp.float32))


def _prep_conv_weight(w, cin_p, cout_p):
    """(3,3,cin,cout) -> per-tap (9, cin_p, cout_p) bf16, zero-padded channels."""
    kh, kw, cin, cout = w.shape
    wp = jnp.zeros((kh * kw, cin_p, cout_p), jnp.float32)
    wp = wp.at[:, :cin, :cout].set(w.reshape(kh * kw, cin, cout).astype(jnp.float32))
    return wp.astype(jnp.bfloat16)


def prepare_params(params, c1, c2):
    w1, w2 = params["w1"], params["w2"]
    cin, cmid = w1.shape[2], w1.shape[3]
    cout = w2.shape[3]
    assert cin == c1 + c2
    c1p, c2p = _round_up(c1), _round_up(c2)
    cmid_p, cout_p = _round_up(cmid), _round_up(cout)
    return {
        # torch.cat([x2, x1], dim=1): split w1's K dim so the kernel never
        # needs a lane-misaligned channel concat of the inputs.
        "w1a": _prep_conv_weight(w1[:, :, :c2, :], c2p, cmid_p),
        "w1b": _prep_conv_weight(w1[:, :, c2:, :], c1p, cmid_p),
        "w2": _prep_conv_weight(w2, cmid_p, cout_p),
        "gamma1": _pad_vec(params["gamma1"], cmid_p),
        "beta1": _pad_vec(params["beta1"], cmid_p),
        "gamma2": _pad_vec(params["gamma2"], cout_p),
        "beta2": _pad_vec(params["beta2"], cout_p),
    }


# ----------------------------------------------------------------------------
# DecoderBlock forward (is_doubleConv=True path)
# ----------------------------------------------------------------------------
def decoder_block_forward(x1_nchw, x2_nchw, prepared, *, cout):
    # NCHW -> NHWC (channels on the TPU lane axis inside the kernels).
    x1 = jnp.transpose(x1_nchw, (0, 2, 3, 1))
    x2 = jnp.transpose(x2_nchw, (0, 2, 3, 1))
    n, h1, w1_, c1 = x1.shape
    _, h, w, c2 = x2.shape

    diff_y, diff_x = h - 2 * h1, w - 2 * w1_
    # TODO(synk): support negative pads (cropping) like F.pad with negative args.
    assert diff_y >= 0 and diff_x >= 0, "x2 must be spatially >= upsampled x1"

    c1p, c2p = _round_up(c1), _round_up(c2)
    cmid_p = prepared["w1a"].shape[-1]
    cout_p = prepared["w2"].shape[-1]

    # Prologue: bilinear upsample (align_corners=True) + F.pad placement + 1-px
    # conv halo as two small separable matmuls; zero-pad channels to a lane
    # multiple (the two concat operands stay separate -> split-K conv1).
    ry = _upsample_pad_matrix(h1, 2 * h1, diff_y // 2, h)
    rx = _upsample_pad_matrix(w1_, 2 * w1_, diff_x // 2, w)
    x1p = jnp.einsum('hH,nHWc->nhWc', ry, x1)
    x1p = jnp.einsum('wW,nhWc->nhwc', rx, x1p)                 # (n, h+2, w+2, c1)
    x2p = jnp.pad(x2, ((0, 0), (1, 1), (1, 1), (0, 0)))        # (n, h+2, w+2, c2)
    x1p = jnp.pad(x1p, ((0, 0), (0, 0), (0, 0), (0, c1p - c1))).astype(jnp.bfloat16)
    x2p = jnp.pad(x2p, ((0, 0), (0, 0), (0, 0), (0, c2p - c2))).astype(jnp.bfloat16)

    th = _pick_tile_h(h)
    ht = h // th
    grid = (n, ht)
    count = float(n * h * w)
    m_total = n * h * w

    x1t = _stack_row_tiles(x1p, th)                            # (n, ht, th+2, w+2, c1p)
    x2t = _stack_row_tiles(x2p, th)

    cparams = pltpu.CompilerParams(
        dimension_semantics=("parallel", "parallel"),
        vmem_limit_bytes=_VMEM_LIMIT)

    # ---- stage 1: conv1 + BN1 partial stats ------------------------------
    cost1 = pl.CostEstimate(
        flops=2 * m_total * 9 * (c1p + c2p) * cmid_p,
        transcendentals=0,
        bytes_accessed=(x1t.size + x2t.size) * 2
        + (prepared["w1a"].size + prepared["w1b"].size) * 2
        + m_total * cmid_p * 2 + n * ht * 2 * cmid_p * 4)

    mid_raw, stats1 = pl.pallas_call(
        functools.partial(_conv1_stats_kernel, th=th, w=w),
        grid=grid,
        in_specs=[
            pl.BlockSpec((1, 1, th + 2, w + 2, c2p), lambda b, i: (b, i, 0, 0, 0)),
            pl.BlockSpec((1, 1, th + 2, w + 2, c1p), lambda b, i: (b, i, 0, 0, 0)),
            pl.BlockSpec((9, c2p, cmid_p), lambda b, i: (0, 0, 0)),
            pl.BlockSpec((9, c1p, cmid_p), lambda b, i: (0, 0, 0)),
        ],
        out_specs=[
            pl.BlockSpec((1, th, w, cmid_p), lambda b, i: (b, i, 0, 0)),
            pl.BlockSpec((1, 1, 2, cmid_p), lambda b, i: (b, i, 0, 0)),
        ],
        out_shape=(
            jax.ShapeDtypeStruct((n, h, w, cmid_p), jnp.bfloat16),
            jax.ShapeDtypeStruct((n, ht, 2, cmid_p), jnp.float32),
        ),
        compiler_params=cparams,
        cost_estimate=cost1,
    )(x2t, x1t, prepared["w1a"], prepared["w1b"])

    scale1, bias1 = _fold_bn(stats1, prepared["gamma1"], prepared["beta1"], count)

    # ---- stage 2: BN1+ReLU fused with conv2 + BN2 partial stats -----------
    mid_pad = jnp.pad(mid_raw, ((0, 0), (1, 1), (1, 1), (0, 0)))
    midt = _stack_row_tiles(mid_pad, th)                       # (n, ht, th+2, w+2, cmid_p)

    cost2 = pl.CostEstimate(
        flops=2 * m_total * 9 * cmid_p * cout_p,
        transcendentals=0,
        bytes_accessed=midt.size * 2 + prepared["w2"].size * 2
        + m_total * cout_p * 2 + n * ht * 2 * cout_p * 4)

    out_raw, stats2 = pl.pallas_call(
        functools.partial(_bn_relu_conv2_stats_kernel, th=th, w=w, h=h),
        grid=grid,
        in_specs=[
            pl.BlockSpec((1, 1, th + 2, w + 2, cmid_p), lambda b, i: (b, i, 0, 0, 0)),
            pl.BlockSpec((1, 1, cmid_p), lambda b, i: (0, 0, 0)),
            pl.BlockSpec((1, 1, cmid_p), lambda b, i: (0, 0, 0)),
            pl.BlockSpec((9, cmid_p, cout_p), lambda b, i: (0, 0, 0)),
        ],
        out_specs=[
            pl.BlockSpec((1, th, w, cout_p), lambda b, i: (b, i, 0, 0)),
            pl.BlockSpec((1, 1, 2, cout_p), lambda b, i: (b, i, 0, 0)),
        ],
        out_shape=(
            jax.ShapeDtypeStruct((n, h, w, cout_p), jnp.bfloat16),
            jax.ShapeDtypeStruct((n, ht, 2, cout_p), jnp.float32),
        ),
        compiler_params=cparams,
        cost_estimate=cost2,
    )(midt, scale1, bias1, prepared["w2"])

    scale2, bias2 = _fold_bn(stats2, prepared["gamma2"], prepared["beta2"], count)

    # ---- stage 3: BN2 + ReLU, lane-dense f32 store -------------------------
    cost3 = pl.CostEstimate(
        flops=3 * m_total * cout_p,
        transcendentals=0,
        bytes_accessed=m_total * cout_p * 6)

    out_full = pl.pallas_call(
        _bn_relu_out_kernel,
        grid=grid,
        in_specs=[
            pl.BlockSpec((1, th, w, cout_p), lambda b, i: (b, i, 0, 0)),
            pl.BlockSpec((1, 1, cout_p), lambda b, i: (0, 0, 0)),
            pl.BlockSpec((1, 1, cout_p), lambda b, i: (0, 0, 0)),
        ],
        out_specs=pl.BlockSpec((1, th, w, cout_p), lambda b, i: (b, i, 0, 0)),
        out_shape=jax.ShapeDtypeStruct((n, h, w, cout_p), jnp.float32),
        compiler_params=cparams,
        cost_estimate=cost3,
    )(out_raw, scale2, bias2)

    y = out_full[..., :cout]
    return jnp.transpose(y, (0, 3, 1, 2))                      # NHWC -> NCHW


def init_params(key, in_channels, out_channels):
    """Deterministic synthetic init. Conv weights stored as (3,3,Cin,Cout)."""
    mid_channels = in_channels // 2
    k1, k2 = jax.random.split(key)
    w1 = 0.1 * jax.random.normal(k1, (3, 3, in_channels, mid_channels), jnp.float32)
    w2 = 0.1 * jax.random.normal(k2, (3, 3, mid_channels, out_channels), jnp.float32)
    return {
        "w1": w1,
        "gamma1": jnp.ones((mid_channels,), jnp.float32),   # BN default init
        "beta1": jnp.zeros((mid_channels,), jnp.float32),
        "w2": w2,
        "gamma2": jnp.ones((out_channels,), jnp.float32),
        "beta2": jnp.zeros((out_channels,), jnp.float32),
    }


if __name__ == "__main__":
    key = jax.random.PRNGKey(0)
    k_x1, k_x2, k_p = jax.random.split(key, 3)

    # DecoderBlock(in_channels=8, out_channels=4):
    #   x1: (N=2, C=4, 8, 8)   -> upsampled to (2, 4, 16, 16)
    #   x2: (N=2, C=4, 16, 16)
    #   concat channels = 8 = in_channels, mid = 4, out = 4
    in_channels, out_channels = 8, 4
    x1 = jax.random.normal(k_x1, (2, 4, 8, 8), jnp.float32)     # NCHW
    x2 = jax.random.normal(k_x2, (2, 4, 16, 16), jnp.float32)   # NCHW

    params = init_params(k_p, in_channels, out_channels)
    prepared = prepare_params(params, c1=x1.shape[1], c2=x2.shape[1])

    fwd = jax.jit(functools.partial(decoder_block_forward, cout=out_channels))
    out = jax.block_until_ready(fwd(x1, x2, prepared))

    assert out.shape == (2, out_channels, 16, 16), out.shape
    assert bool(jnp.all(jnp.isfinite(out)))
    print("KERNEL_OK")
</pallas_src>

<mosaic_0001>
module attributes {stable_mosaic.version = 11 : i64} {
  func.func @_conv1_stats_kernel(%arg0: i32, %arg1: i32, %arg2: memref<1x1x10x18x128xbf16, #tpu.memory_space<vmem>>, %arg3: memref<1x1x10x18x128xbf16, #tpu.memory_space<vmem>>, %arg4: memref<9x128x128xbf16, #tpu.memory_space<vmem>>, %arg5: memref<9x128x128xbf16, #tpu.memory_space<vmem>>, %arg6: memref<1x8x16x128xbf16, #tpu.memory_space<vmem>>, %arg7: memref<1x1x2x128xf32, #tpu.memory_space<vmem>>) attributes {dimension_semantics = [#tpu.dimension_semantics<parallel>, #tpu.dimension_semantics<parallel>], iteration_bounds = array<i64: 2, 2>, scalar_prefetch = 0 : i64, scratch_operands = 0 : i64, tpu.core_type = #tpu.core_type<tc>, window_params = [{transform_indices = @transform_0, window_bounds = array<i64: 1, 1, 10, 18, 128>}, {transform_indices = @transform_1, window_bounds = array<i64: 1, 1, 10, 18, 128>}, {pipeline_mode = #tpu.pipeline_mode<synchronous>, transform_indices = @transform_2, window_bounds = array<i64: 9, 128, 128>}, {pipeline_mode = #tpu.pipeline_mode<synchronous>, transform_indices = @transform_3, window_bounds = array<i64: 9, 128, 128>}, {transform_indices = @transform_4, window_bounds = array<i64: 1, 8, 16, 128>}, {transform_indices = @transform_5, window_bounds = array<i64: 1, 1, 2, 128>}]} {
    %c0 = arith.constant 0 : index
    %c0_0 = arith.constant 0 : index
    %c0_1 = arith.constant 0 : index
    %c0_2 = arith.constant 0 : index
    %c0_3 = arith.constant 0 : index
    %0 = vector.load %arg2[%c0, %c0_0, %c0_1, %c0_2, %c0_3] : memref<1x1x10x18x128xbf16, #tpu.memory_space<vmem>>, vector<1x1x10x18x128xbf16>
    %1 = vector.shape_cast %0 : vector<1x1x10x18x128xbf16> to vector<10x18x128xbf16>
    %c0_4 = arith.constant 0 : index
    %c0_5 = arith.constant 0 : index
    %c0_6 = arith.constant 0 : index
    %c0_7 = arith.constant 0 : index
    %c0_8 = arith.constant 0 : index
    %2 = vector.load %arg3[%c0_4, %c0_5, %c0_6, %c0_7, %c0_8] : memref<1x1x10x18x128xbf16, #tpu.memory_space<vmem>>, vector<1x1x10x18x128xbf16>
    %3 = vector.shape_cast %2 : vector<1x1x10x18x128xbf16> to vector<10x18x128xbf16>
    %cst = arith.constant 0.000000e+00 : f32
    %4 = vector.broadcast %cst : f32 to vector<128x128xf32>
    %5 = vector.extract_strided_slice %1 {offsets = [0, 0, 0], sizes = [8, 16, 128], strides = [1, 1, 1]} : vector<10x18x128xbf16> to vector<8x16x128xbf16>
    %6 = vector.shape_cast %5 : vector<8x16x128xbf16> to vector<128x128xbf16>
    %7 = vector.extract_strided_slice %3 {offsets = [0, 0, 0], sizes = [8, 16, 128], strides = [1, 1, 1]} : vector<10x18x128xbf16> to vector<8x16x128xbf16>
    %8 = vector.shape_cast %7 : vector<8x16x128xbf16> to vector<128x128xbf16>
    %c0_9 = arith.constant 0 : index
    %c0_10 = arith.constant 0 : index
    %c0_11 = arith.constant 0 : index
    %9 = vector.load %arg4[%c0_9, %c0_10, %c0_11] : memref<9x128x128xbf16, #tpu.memory_space<vmem>>, vector<1x128x128xbf16>
    %10 = vector.shape_cast %9 : vector<1x128x128xbf16> to vector<128x128xbf16>
    %cst_12 = arith.constant dense<0.000000e+00> : vector<128x128xf32>
    %11 = tpu.matmul %6, %10, %cst_12 {dimension_numbers = #tpu.dot_dimension_numbers<[1], [0], [0], [1], [0, 0, 1, 1], [], []>} : vector<128x128xbf16>, vector<128x128xbf16>, vector<128x128xf32> -> vector<128x128xf32>
    %12 = arith.addf %4, %11 : vector<128x128xf32>
    %c0_13 = arith.constant 0 : index
    %c0_14 = arith.constant 0 : index
    %c0_15 = arith.constant 0 : index
    %13 = vector.load %arg5[%c0_13, %c0_14, %c0_15] : memref<9x128x128xbf16, #tpu.memory_space<vmem>>, vector<1x128x128xbf16>
    %14 = vector.shape_cast %13 : vector<1x128x128xbf16> to vector<128x128xbf16>
    %cst_16 = arith.constant dense<0.000000e+00> : vector<128x128xf32>
    %15 = tpu.matmul %8, %14, %cst_16 {dimension_numbers = #tpu.dot_dimension_numbers<[1], [0], [0], [1], [0, 0, 1, 1], [], []>} : vector<128x128xbf16>, vector<128x128xbf16>, vector<128x128xf32> -> vector<128x128xf32>
    %16 = arith.addf %12, %15 : vector<128x128xf32>
    %17 = vector.extract_strided_slice %1 {offsets = [0, 1, 0], sizes = [8, 16, 128], strides = [1, 1, 1]} : vector<10x18x128xbf16> to vector<8x16x128xbf16>
    %18 = vector.shape_cast %17 : vector<8x16x128xbf16> to vector<128x128xbf16>
    %19 = vector.extract_strided_slice %3 {offsets = [0, 1, 0], sizes = [8, 16, 128], strides = [1, 1, 1]} : vector<10x18x128xbf16> to vector<8x16x128xbf16>
    %20 = vector.shape_cast %19 : vector<8x16x128xbf16> to vector<128x128xbf16>
    %c1 = arith.constant 1 : index
    %c0_17 = arith.constant 0 : index
    %c0_18 = arith.constant 0 : index
    %21 = vector.load %arg4[%c1, %c0_17, %c0_18] : memref<9x128x128xbf16, #tpu.memory_space<vmem>>, vector<1x128x128xbf16>
    %22 = vector.shape_cast %21 : vector<1x128x128xbf16> to vector<128x128xbf16>
    %cst_19 = arith.constant dense<0.000000e+00> : vector<128x128xf32>
    %23 = tpu.matmul %18, %22, %cst_19 {dimension_numbers = #tpu.dot_dimension_numbers<[1], [0], [0], [1], [0, 0, 1, 1], [], []>} : vector<128x128xbf16>, vector<128x128xbf16>, vector<128x128xf32> -> vector<128x128xf32>
    %24 = arith.addf %16, %23 : vector<128x128xf32>
    %c1_20 = arith.constant 1 : index
    %c0_21 = arith.constant 0 : index
    %c0_22 = arith.constant 0 : index
    %25 = vector.load %arg5[%c1_20, %c0_21, %c0_22] : memref<9x128x128xbf16, #tpu.memory_space<vmem>>, vector<1x128x128xbf16>
    %26 = vector.shape_cast %25 : vector<1x128x128xbf16> to vector<128x128xbf16>
    %cst_23 = arith.constant dense<0.000000e+00> : vector<128x128xf32>
    %27 = tpu.matmul %20, %26, %cst_23 {dimension_numbers = #tpu.dot_dimension_numbers<[1], [0], [0], [1], [0, 0, 1, 1], [], []>} : vector<128x128xbf16>, vector<128x128xbf16>, vector<128x128xf32> -> vector<128x128xf32>
    %28 = arith.addf %24, %27 : vector<128x128xf32>
    %29 = vector.extract_strided_slice %1 {offsets = [0, 2, 0], sizes = [8, 16, 128], strides = [1, 1, 1]} : vector<10x18x128xbf16> to vector<8x16x128xbf16>
    %30 = vector.shape_cast %29 : vector<8x16x128xbf16> to vector<128x128xbf16>
    %31 = vector.extract_strided_slice %3 {offsets = [0, 2, 0], sizes = [8, 16, 128], strides = [1, 1, 1]} : vector<10x18x128xbf16> to vector<8x16x128xbf16>
    %32 = vector.shape_cast %31 : vector<8x16x128xbf16> to vector<128x128xbf16>
    %c2 = arith.constant 2 : index
    %c0_24 = arith.constant 0 : index
    %c0_25 = arith.constant 0 : index
    %33 = vector.load %arg4[%c2, %c0_24, %c0_25] : memref<9x128x128xbf16, #tpu.memory_space<vmem>>, vector<1x128x128xbf16>
    %34 = vector.shape_cast %33 : vector<1x128x128xbf16> to vector<128x128xbf16>
    %cst_26 = arith.constant dense<0.000000e+00> : vector<128x128xf32>
    %35 = tpu.matmul %30, %34, %cst_26 {dimension_numbers = #tpu.dot_dimension_numbers<[1], [0], [0], [1], [0, 0, 1, 1], [], []>} : vector<128x128xbf16>, vector<128x128xbf16>, vector<128x128xf32> -> vector<128x128xf32>
    %36 = arith.addf %28, %35 : vector<128x128xf32>
    %c2_27 = arith.constant 2 : index
    %c0_28 = arith.constant 0 : index
    %c0_29 = arith.constant 0 : index
    %37 = vector.load %arg5[%c2_27, %c0_28, %c0_29] : memref<9x128x128xbf16, #tpu.memory_space<vmem>>, vector<1x128x128xbf16>
    %38 = vector.shape_cast %37 : vector<1x128x128xbf16> to vector<128x128xbf16>
    %cst_30 = arith.constant dense<0.000000e+00> : vector<128x128xf32>
    %39 = tpu.matmul %32, %38, %cst_30 {dimension_numbers = #tpu.dot_dimension_numbers<[1], [0], [0], [1], [0, 0, 1, 1], [], []>} : vector<128x128xbf16>, vector<128x128xbf16>, vector<128x128xf32> -> vector<128x128xf32>
    %40 = arith.addf %36, %39 : vector<128x128xf32>
    %41 = vector.extract_strided_slice %1 {offsets = [1, 0, 0], sizes = [8, 16, 128], strides = [1, 1, 1]} : vector<10x18x128xbf16> to vector<8x16x128xbf16>
    %42 = vector.shape_cast %41 : vector<8x16x128xbf16> to vector<128x128xbf16>
    %43 = vector.extract_strided_slice %3 {offsets = [1, 0, 0], sizes = [8, 16, 128], strides = [1, 1, 1]} : vector<10x18x128xbf16> to vector<8x16x128xbf16>
    %44 = vector.shape_cast %43 : vector<8x16x128xbf16> to vector<128x128xbf16>
    %c3 = arith.constant 3 : index
    %c0_31 = arith.constant 0 : index
    %c0_32 = arith.constant 0 : index
    %45 = vector.load %arg4[%c3, %c0_31, %c0_32] : memref<9x128x128xbf16, #tpu.memory_space<vmem>>, vector<1x128x128xbf16>
    %46 = vector.shape_cast %45 : vector<1x128x128xbf16> to vector<128x128xbf16>
    %cst_33 = arith.constant dense<0.000000e+00> : vector<128x128xf32>
    %47 = tpu.matmul %42, %46, %cst_33 {dimension_numbers = #tpu.dot_dimension_numbers<[1], [0], [0], [1], [0, 0, 1, 1], [], []>} : vector<128x128xbf16>, vector<128x128xbf16>, vector<128x128xf32> -> vector<128x128xf32>
    %48 = arith.addf %40, %47 : vector<128x128xf32>
    %c3_34 = arith.constant 3 : index
    %c0_35 = arith.constant 0 : index
    %c0_36 = arith.constant 0 : index
    %49 = vector.load %arg5[%c3_34, %c0_35, %c0_36] : memref<9x128x128xbf16, #tpu.memory_space<vmem>>, vector<1x128x128xbf16>
    %50 = vector.shape_cast %49 : vector<1x128x128xbf16> to vector<128x128xbf16>
    %cst_37 = arith.constant dense<0.000000e+00> : vector<128x128xf32>
    %51 = tpu.matmul %44, %50, %cst_37 {dimension_numbers = #tpu.dot_dimension_numbers<[1], [0], [0], [1], [0, 0, 1, 1], [], []>} : vector<128x128xbf16>, vector<128x128xbf16>, vector<128x128xf32> -> vector<128x128xf32>
    %52 = arith.addf %48, %51 : vector<128x128xf32>
    %53 = vector.extract_strided_slice %1 {offsets = [1, 1, 0], sizes = [8, 16, 128], strides = [1, 1, 1]} : vector<10x18x128xbf16> to vector<8x16x128xbf16>
    %54 = vector.shape_cast %53 : vector<8x16x128xbf16> to vector<128x128xbf16>
    %55 = vector.extract_strided_slice %3 {offsets = [1, 1, 0], sizes = [8, 16, 128], strides = [1, 1, 1]} : vector<10x18x128xbf16> to vector<8x16x128xbf16>
    %56 = vector.shape_cast %55 : vector<8x16x128xbf16> to vector<128x128xbf16>
    %c4 = arith.constant 4 : index
    %c0_38 = arith.constant 0 : index
    %c0_39 = arith.constant 0 : index
    %57 = vector.load %arg4[%c4, %c0_38, %c0_39] : memref<9x128x128xbf16, #tpu.memory_space<vmem>>, vector<1x128x128xbf16>
    %58 = vector.shape_cast %57 : vector<1x128x128xbf16> to vector<128x128xbf16>
    %cst_40 = arith.constant dense<0.000000e+00> : vector<128x128xf32>
    %59 = tpu.matmul %54, %58, %cst_40 {dimension_numbers = #tpu.dot_dimension_numbers<[1], [0], [0], [1], [0, 0, 1, 1], [], []>} : vector<128x128xbf16>, vector<128x128xbf16>, vector<128x128xf32> -> vector<128x128xf32>
    %60 = arith.addf %52, %59 : vector<128x128xf32>
    %c4_41 = arith.constant 4 : index
    %c0_42 = arith.constant 0 : index
    %c0_43 = arith.constant 0 : index
    %61 = vector.load %arg5[%c4_41, %c0_42, %c0_43] : memref<9x128x128xbf16, #tpu.memory_space<vmem>>, vector<1x128x128xbf16>
    %62 = vector.shape_cast %61 : vector<1x128x128xbf16> to vector<128x128xbf16>
    %cst_44 = arith.constant dense<0.000000e+00> : vector<128x128xf32>
    %63 = tpu.matmul %56, %62, %cst_44 {dimension_numbers = #tpu.dot_dimension_numbers<[1], [0], [0], [1], [0, 0, 1, 1], [], []>} : vector<128x128xbf16>, vector<128x128xbf16>, vector<128x128xf32> -> vector<128x128xf32>
    %64 = arith.addf %60, %63 : vector<128x128xf32>
    %65 = vector.extract_strided_slice %1 {offsets = [1, 2, 0], sizes = [8, 16, 128], strides = [1, 1, 1]} : vector<10x18x128xbf16> to vector<8x16x128xbf16>
    %66 = vector.shape_cast %65 : vector<8x16x128xbf16> to vector<128x128xbf16>
    %67 = vector.extract_strided_slice %3 {offsets = [1, 2, 0], sizes = [8, 16, 128], strides = [1, 1, 1]} : vector<10x18x128xbf16> to vector<8x16x128xbf16>
    %68 = vector.shape_cast %67 : vector<8x16x128xbf16> to vector<128x128xbf16>
    %c5 = arith.constant 5 : index
    %c0_45 = arith.constant 0 : index
    %c0_46 = arith.constant 0 : index
    %69 = vector.load %arg4[%c5, %c0_45, %c0_46] : memref<9x128x128xbf16, #tpu.memory_space<vmem>>, vector<1x128x128xbf16>
    %70 = vector.shape_cast %69 : vector<1x128x128xbf16> to vector<128x128xbf16>
    %cst_47 = arith.constant dense<0.000000e+00> : vector<128x128xf32>
    %71 = tpu.matmul %66, %70, %cst_47 {dimension_numbers = #tpu.dot_dimension_numbers<[1], [0], [0], [1], [0, 0, 1, 1], [], []>} : vector<128x128xbf16>, vector<128x128xbf16>, vector<128x128xf32> -> vector<128x128xf32>
    %72 = arith.addf %64, %71 : vector<128x128xf32>
    %c5_48 = arith.constant 5 : index
    %c0_49 = arith.constant 0 : index
    %c0_50 = arith.constant 0 : index
    %73 = vector.load %arg5[%c5_48, %c0_49, %c0_50] : memref<9x128x128xbf16, #tpu.memory_space<vmem>>, vector<1x128x128xbf16>
    %74 = vector.shape_cast %73 : vector<1x128x128xbf16> to vector<128x128xbf16>
    %cst_51 = arith.constant dense<0.000000e+00> : vector<128x128xf32>
    %75 = tpu.matmul %68, %74, %cst_51 {dimension_numbers = #tpu.dot_dimension_numbers<[1], [0], [0], [1], [0, 0, 1, 1], [], []>} : vector<128x128xbf16>, vector<128x128xbf16>, vector<128x128xf32> -> vector<128x128xf32>
    %76 = arith.addf %72, %75 : vector<128x128xf32>
    %77 = vector.extract_strided_slice %1 {offsets = [2, 0, 0], sizes = [8, 16, 128], strides = [1, 1, 1]} : vector<10x18x128xbf16> to vector<8x16x128xbf16>
    %78 = vector.shape_cast %77 : vector<8x16x128xbf16> to vector<128x128xbf16>
    %79 = vector.extract_strided_slice %3 {offsets = [2, 0, 0], sizes = [8, 16, 128], strides = [1, 1, 1]} : vector<10x18x128xbf16> to vector<8x16x128xbf16>
    %80 = vector.shape_cast %79 : vector<8x16x128xbf16> to vector<128x128xbf16>
    %c6 = arith.constant 6 : index
    %c0_52 = arith.constant 0 : index
    %c0_53 = arith.constant 0 : index
    %81 = vector.load %arg4[%c6, %c0_52, %c0_53] : memref<9x128x128xbf16, #tpu.memory_space<vmem>>, vector<1x128x128xbf16>
    %82 = vector.shape_cast %81 : vector<1x128x128xbf16> to vector<128x128xbf16>
    %cst_54 = arith.constant dense<0.000000e+00> : vector<128x128xf32>
    %83 = tpu.matmul %78, %82, %cst_54 {dimension_numbers = #tpu.dot_dimension_numbers<[1], [0], [0], [1], [0, 0, 1, 1], [], []>} : vector<128x128xbf16>, vector<128x128xbf16>, vector<128x128xf32> -> vector<128x128xf32>
    %84 = arith.addf %76, %83 : vector<128x128xf32>
    %c6_55 = arith.constant 6 : index
    %c0_56 = arith.constant 0 : index
    %c0_57 = arith.constant 0 : index
    %85 = vector.load %arg5[%c6_55, %c0_56, %c0_57] : memref<9x128x128xbf16, #tpu.memory_space<vmem>>, vector<1x128x128xbf16>
    %86 = vector.shape_cast %85 : vector<1x128x128xbf16> to vector<128x128xbf16>
    %cst_58 = arith.constant dense<0.000000e+00> : vector<128x128xf32>
    %87 = tpu.matmul %80, %86, %cst_58 {dimension_numbers = #tpu.dot_dimension_numbers<[1], [0], [0], [1], [0, 0, 1, 1], [], []>} : vector<128x128xbf16>, vector<128x128xbf16>, vector<128x128xf32> -> vector<128x128xf32>
    %88 = arith.addf %84, %87 : vector<128x128xf32>
    %89 = vector.extract_strided_slice %1 {offsets = [2, 1, 0], sizes = [8, 16, 128], strides = [1, 1, 1]} : vector<10x18x128xbf16> to vector<8x16x128xbf16>
    %90 = vector.shape_cast %89 : vector<8x16x128xbf16> to vector<128x128xbf16>
    %91 = vector.extract_strided_slice %3 {offsets = [2, 1, 0], sizes = [8, 16, 128], strides = [1, 1, 1]} : vector<10x18x128xbf16> to vector<8x16x128xbf16>
    %92 = vector.shape_cast %91 : vector<8x16x128xbf16> to vector<128x128xbf16>
    %c7 = arith.constant 7 : index
    %c0_59 = arith.constant 0 : index
    %c0_60 = arith.constant 0 : index
    %93 = vector.load %arg4[%c7, %c0_59, %c0_60] : memref<9x128x128xbf16, #tpu.memory_space<vmem>>, vector<1x128x128xbf16>
    %94 = vector.shape_cast %93 : vector<1x128x128xbf16> to vector<128x128xbf16>
    %cst_61 = arith.constant dense<0.000000e+00> : vector<128x128xf32>
    %95 = tpu.matmul %90, %94, %cst_61 {dimension_numbers = #tpu.dot_dimension_numbers<[1], [0], [0], [1], [0, 0, 1, 1], [], []>} : vector<128x128xbf16>, vector<128x128xbf16>, vector<128x128xf32> -> vector<128x128xf32>
    %96 = arith.addf %88, %95 : vector<128x128xf32>
    %c7_62 = arith.constant 7 : index
    %c0_63 = arith.constant 0 : index
    %c0_64 = arith.constant 0 : index
    %97 = vector.load %arg5[%c7_62, %c0_63, %c0_64] : memref<9x128x128xbf16, #tpu.memory_space<vmem>>, vector<1x128x128xbf16>
    %98 = vector.shape_cast %97 : vector<1x128x128xbf16> to vector<128x128xbf16>
    %cst_65 = arith.constant dense<0.000000e+00> : vector<128x128xf32>
    %99 = tpu.matmul %92, %98, %cst_65 {dimension_numbers = #tpu.dot_dimension_numbers<[1], [0], [0], [1], [0, 0, 1, 1], [], []>} : vector<128x128xbf16>, vector<128x128xbf16>, vector<128x128xf32> -> vector<128x128xf32>
    %100 = arith.addf %96, %99 : vector<128x128xf32>
    %101 = vector.extract_strided_slice %1 {offsets = [2, 2, 0], sizes = [8, 16, 128], strides = [1, 1, 1]} : vector<10x18x128xbf16> to vector<8x16x128xbf16>
    %102 = vector.shape_cast %101 : vector<8x16x128xbf16> to vector<128x128xbf16>
    %103 = vector.extract_strided_slice %3 {offsets = [2, 2, 0], sizes = [8, 16, 128], strides = [1, 1, 1]} : vector<10x18x128xbf16> to vector<8x16x128xbf16>
    %104 = vector.shape_cast %103 : vector<8x16x128xbf16> to vector<128x128xbf16>
    %c8 = arith.constant 8 : index
    %c0_66 = arith.constant 0 : index
    %c0_67 = arith.constant 0 : index
    %105 = vector.load %arg4[%c8, %c0_66, %c0_67] : memref<9x128x128xbf16, #tpu.memory_space<vmem>>, vector<1x128x128xbf16>
    %106 = vector.shape_cast %105 : vector<1x128x128xbf16> to vector<128x128xbf16>
    %cst_68 = arith.constant dense<0.000000e+00> : vector<128x128xf32>
    %107 = tpu.matmul %102, %106, %cst_68 {dimension_numbers = #tpu.dot_dimension_numbers<[1], [0], [0], [1], [0, 0, 1, 1], [], []>} : vector<128x128xbf16>, vector<128x128xbf16>, vector<128x128xf32> -> vector<128x128xf32>
    %108 = arith.addf %100, %107 : vector<128x128xf32>
    %c8_69 = arith.constant 8 : index
    %c0_70 = arith.constant 0 : index
    %c0_71 = arith.constant 0 : index
    %109 = vector.load %arg5[%c8_69, %c0_70, %c0_71] : memref<9x128x128xbf16, #tpu.memory_space<vmem>>, vector<1x128x128xbf16>
    %110 = vector.shape_cast %109 : vector<1x128x128xbf16> to vector<128x128xbf16>
    %cst_72 = arith.constant dense<0.000000e+00> : vector<128x128xf32>
    %111 = tpu.matmul %104, %110, %cst_72 {dimension_numbers = #tpu.dot_dimension_numbers<[1], [0], [0], [1], [0, 0, 1, 1], [], []>} : vector<128x128xbf16>, vector<128x128xbf16>, vector<128x128xf32> -> vector<128x128xf32>
    %112 = arith.addf %108, %111 : vector<128x128xf32>
    %113 = vector.shape_cast %112 : vector<128x128xf32> to vector<1x8x16x128xf32>
    %114 = arith.truncf %113 : vector<1x8x16x128xf32> to vector<1x8x16x128xbf16>
    %c0_73 = arith.constant 0 : index
    %c0_74 = arith.constant 0 : index
    %c0_75 = arith.constant 0 : index
    %c0_76 = arith.constant 0 : index
    %115 = vector.load %arg6[%c0_73, %c0_74, %c0_75, %c0_76] : memref<1x8x16x128xbf16, #tpu.memory_space<vmem>>, vector<1x8x16x128xbf16>
    tpu.vector_store %arg6[%c0_73, %c0_74, %c0_75, %c0_76], %114 {strides = array<i32>} : memref<1x8x16x128xbf16, #tpu.memory_space<vmem>>, vector<1x8x16x128xbf16>,
    %cst_77 = arith.constant dense<0.000000e+00> : vector<128xf32>
    %116 = vector.multi_reduction <add>, %112, %cst_77 [0] : vector<128x128xf32> to vector<128xf32>
    %117 = vector.shape_cast %116 : vector<128xf32> to vector<1x128xf32>
    %118 = arith.mulf %112, %112 : vector<128x128xf32>
    %cst_78 = arith.constant dense<0.000000e+00> : vector<128xf32>
    %119 = vector.multi_reduction <add>, %118, %cst_78 [0] : vector<128x128xf32> to vector<128xf32>
    %120 = vector.shape_cast %119 : vector<128xf32> to vector<1x128xf32>
    %121 = tpu.concatenate %117, %120 in 0 : vector<1x128xf32>, vector<1x128xf32> -> vector<2x128xf32>
    %122 = vector.shape_cast %121 : vector<2x128xf32> to vector<1x1x2x128xf32>
    %c0_79 = arith.constant 0 : index
    %c0_80 = arith.constant 0 : index
    %c0_81 = arith.constant 0 : index
    %c0_82 = arith.constant 0 : index
    %123 = vector.load %arg7[%c0_79, %c0_80, %c0_81, %c0_82] : memref<1x1x2x128xf32, #tpu.memory_space<vmem>>, vector<1x1x2x128xf32>
    tpu.vector_store %arg7[%c0_79, %c0_80, %c0_81, %c0_82], %122 {strides = array<i32>} : memref<1x1x2x128xf32, #tpu.memory_space<vmem>>, vector<1x1x2x128xf32>,
    return
  }
  func.func @transform_0(%arg0: i32, %arg1: i32) -> (i32, i32, i32, i32, i32) {
    %c0_i32 = arith.constant 0 : i32
    %c0_i32_0 = arith.constant 0 : i32
    %c0_i32_1 = arith.constant 0 : i32
    %c0_i32_2 = arith.constant 0 : i32
    return %arg0, %arg1, %c0_i32, %c0_i32_0, %c0_i32_1 : i32, i32, i32, i32, i32
  }
  func.func @transform_1(%arg0: i32, %arg1: i32) -> (i32, i32, i32, i32, i32) {
    %c0_i32 = arith.constant 0 : i32
    %c0_i32_0 = arith.constant 0 : i32
    %c0_i32_1 = arith.constant 0 : i32
    %c0_i32_2 = arith.constant 0 : i32
    return %arg0, %arg1, %c0_i32, %c0_i32_0, %c0_i32_1 : i32, i32, i32, i32, i32
  }
  func.func @transform_2(%arg0: i32, %arg1: i32) -> (i32, i32, i32) {
    %c0_i32 = arith.constant 0 : i32
    %c0_i32_0 = arith.constant 0 : i32
    %c0_i32_1 = arith.constant 0 : i32
    %c0_i32_2 = arith.constant 0 : i32
    return %c0_i32, %c0_i32_0, %c0_i32_1 : i32, i32, i32
  }
  func.func @transform_3(%arg0: i32, %arg1: i32) -> (i32, i32, i32) {
    %c0_i32 = arith.constant 0 : i32
    %c0_i32_0 = arith.constant 0 : i32
    %c0_i32_1 = arith.constant 0 : i32
    %c0_i32_2 = arith.constant 0 : i32
    return %c0_i32, %c0_i32_0, %c0_i32_1 : i32, i32, i32
  }
  func.func @transform_4(%arg0: i32, %arg1: i32) -> (i32, i32, i32, i32) {
    %c0_i32 = arith.constant 0 : i32
    %c0_i32_0 = arith.constant 0 : i32
    %c0_i32_1 = arith.constant 0 : i32
    return %arg0, %arg1, %c0_i32, %c0_i32_0 : i32, i32, i32, i32
  }
  func.func @transform_5(%arg0: i32, %arg1: i32) -> (i32, i32, i32, i32) {
    %c0_i32 = arith.constant 0 : i32
    %c0_i32_0 = arith.constant 0 : i32
    %c0_i32_1 = arith.constant 0 : i32
    return %arg0, %arg1, %c0_i32, %c0_i32_0 : i32, i32, i32, i32
  }
}

module attributes {stable_mosaic.version = 11 : i64} {
  func.func @_bn_relu_conv2_stats_kernel(%arg0: i32, %arg1: i32, %arg2: memref<1x1x10x18x128xbf16, #tpu.memory_space<vmem>>, %arg3: memref<1x1x128xf32, #tpu.memory_space<vmem>>, %arg4: memref<1x1x128xf32, #tpu.memory_space<vmem>>, %arg5: memref<9x128x128xbf16, #tpu.memory_space<vmem>>, %arg6: memref<1x8x16x128xbf16, #tpu.memory_space<vmem>>, %arg7: memref<1x1x2x128xf32, #tpu.memory_space<vmem>>) attributes {dimension_semantics = [#tpu.dimension_semantics<parallel>, #tpu.dimension_semantics<parallel>], iteration_bounds = array<i64: 2, 2>, scalar_prefetch = 0 : i64, scratch_operands = 0 : i64, tpu.core_type = #tpu.core_type<tc>, window_params = [{transform_indices = @transform_0, window_bounds = array<i64: 1, 1, 10, 18, 128>}, {pipeline_mode = #tpu.pipeline_mode<synchronous>, transform_indices = @transform_1, window_bounds = array<i64: 1, 1, 128>}, {pipeline_mode = #tpu.pipeline_mode<synchronous>, transform_indices = @transform_2, window_bounds = array<i64: 1, 1, 128>}, {pipeline_mode = #tpu.pipeline_mode<synchronous>, transform_indices = @transform_3, window_bounds = array<i64: 9, 128, 128>}, {transform_indices = @transform_4, window_bounds = array<i64: 1, 8, 16, 128>}, {transform_indices = @transform_5, window_bounds = array<i64: 1, 1, 2, 128>}]} {
    %c0 = arith.constant 0 : index
    %c0_0 = arith.constant 0 : index
    %c0_1 = arith.constant 0 : index
    %c0_2 = arith.constant 0 : index
    %c0_3 = arith.constant 0 : index
    %0 = vector.load %arg2[%c0, %c0_0, %c0_1, %c0_2, %c0_3] : memref<1x1x10x18x128xbf16, #tpu.memory_space<vmem>>, vector<1x1x10x18x128xbf16>
    %1 = vector.shape_cast %0 : vector<1x1x10x18x128xbf16> to vector<10x18x128xbf16>
    %2 = arith.extf %1 : vector<10x18x128xbf16> to vector<10x18x128xf32>
    %c0_4 = arith.constant 0 : index
    %c0_5 = arith.constant 0 : index
    %c0_6 = arith.constant 0 : index
    %3 = vector.load %arg3[%c0_4, %c0_5, %c0_6] : memref<1x1x128xf32, #tpu.memory_space<vmem>>, vector<1x1x128xf32>
    %4 = vector.broadcast %3 : vector<1x1x128xf32> to vector<10x18x128xf32>
    %5 = arith.mulf %2, %4 : vector<10x18x128xf32>
    %c0_7 = arith.constant 0 : index
    %c0_8 = arith.constant 0 : index
    %c0_9 = arith.constant 0 : index
    %6 = vector.load %arg4[%c0_7, %c0_8, %c0_9] : memref<1x1x128xf32, #tpu.memory_space<vmem>>, vector<1x1x128xf32>
    %7 = vector.broadcast %6 : vector<1x1x128xf32> to vector<10x18x128xf32>
    %8 = arith.addf %5, %7 : vector<10x18x128xf32>
    %cst = arith.constant 0.000000e+00 : f32
    %9 = vector.broadcast %cst : f32 to vector<10x18x128xf32>
    %10 = arith.maximumf %8, %9 : vector<10x18x128xf32>
    %11 = tpu.iota {dimensions = array<i32: 0>} : vector<10x18x1xi32>
    %c8_i32 = arith.constant 8 : i32
    %12 = arith.muli %arg1, %c8_i32 : i32
    %13 = vector.broadcast %12 : i32 to vector<10x18x1xi32>
    %14 = arith.addi %11, %13 : vector<10x18x1xi32>
    %15 = tpu.iota {dimensions = array<i32: 1>} : vector<10x18x1xi32>
    %c1_i32 = arith.constant 1 : i32
    %16 = vector.broadcast %c1_i32 : i32 to vector<10x18x1xi32>
    %17 = arith.cmpi sge, %14, %16 : vector<10x18x1xi32>
    %c16_i32 = arith.constant 16 : i32
    %18 = vector.broadcast %c16_i32 : i32 to vector<10x18x1xi32>
    %19 = arith.cmpi sle, %14, %18 : vector<10x18x1xi32>
    %20 = arith.andi %17, %19 : vector<10x18x1xi1>
    %c1_i32_10 = arith.constant 1 : i32
    %21 = vector.broadcast %c1_i32_10 : i32 to vector<10x18x1xi32>
    %22 = arith.cmpi sge, %15, %21 : vector<10x18x1xi32>
    %23 = arith.andi %20, %22 : vector<10x18x1xi1>
    %c16_i32_11 = arith.constant 16 : i32
    %24 = vector.broadcast %c16_i32_11 : i32 to vector<10x18x1xi32>
    %25 = arith.cmpi sle, %15, %24 : vector<10x18x1xi32>
    %26 = arith.andi %23, %25 : vector<10x18x1xi1>
    %cst_12 = arith.constant 0.000000e+00 : f32
    %27 = vector.shape_cast %26 : vector<10x18x1xi1> to vector<10x18x1xi1>
    %28 = vector.broadcast %27 : vector<10x18x1xi1> to vector<10x18x128xi1>
    %29 = vector.broadcast %cst_12 : f32 to vector<10x18x128xf32>
    %30 = arith.select %28, %10, %29 : vector<10x18x128xi1>, vector<10x18x128xf32>
    %31 = arith.truncf %30 : vector<10x18x128xf32> to vector<10x18x128xbf16>
    %cst_13 = arith.constant 0.000000e+00 : f32
    %32 = vector.broadcast %cst_13 : f32 to vector<128x128xf32>
    %33 = vector.extract_strided_slice %31 {offsets = [0, 0, 0], sizes = [8, 16, 128], strides = [1, 1, 1]} : vector<10x18x128xbf16> to vector<8x16x128xbf16>
    %34 = vector.shape_cast %33 : vector<8x16x128xbf16> to vector<128x128xbf16>
    %c0_14 = arith.constant 0 : index
    %c0_15 = arith.constant 0 : index
    %c0_16 = arith.constant 0 : index
    %35 = vector.load %arg5[%c0_14, %c0_15, %c0_16] : memref<9x128x128xbf16, #tpu.memory_space<vmem>>, vector<1x128x128xbf16>
    %36 = vector.shape_cast %35 : vector<1x128x128xbf16> to vector<128x128xbf16>
    %cst_17 = arith.constant dense<0.000000e+00> : vector<128x128xf32>
    %37 = tpu.matmul %34, %36, %cst_17 {dimension_numbers = #tpu.dot_dimension_numbers<[1], [0], [0], [1], [0, 0, 1, 1], [], []>} : vector<128x128xbf16>, vector<128x128xbf16>, vector<128x128xf32> -> vector<128x128xf32>
    %38 = arith.addf %32, %37 : vector<128x128xf32>
    %39 = vector.extract_strided_slice %31 {offsets = [0, 1, 0], sizes = [8, 16, 128], strides = [1, 1, 1]} : vector<10x18x128xbf16> to vector<8x16x128xbf16>
    %40 = vector.shape_cast %39 : vector<8x16x128xbf16> to vector<128x128xbf16>
    %c1 = arith.constant 1 : index
    %c0_18 = arith.constant 0 : index
    %c0_19 = arith.constant 0 : index
    %41 = vector.load %arg5[%c1, %c0_18, %c0_19] : memref<9x128x128xbf16, #tpu.memory_space<vmem>>, vector<1x128x128xbf16>
    %42 = vector.shape_cast %41 : vector<1x128x128xbf16> to vector<128x128xbf16>
    %cst_20 = arith.constant dense<0.000000e+00> : vector<128x128xf32>
    %43 = tpu.matmul %40, %42, %cst_20 {dimension_numbers = #tpu.dot_dimension_numbers<[1], [0], [0], [1], [0, 0, 1, 1], [], []>} : vector<128x128xbf16>, vector<128x128xbf16>, vector<128x128xf32> -> vector<128x128xf32>
    %44 = arith.addf %38, %43 : vector<128x128xf32>
    %45 = vector.extract_strided_slice %31 {offsets = [0, 2, 0], sizes = [8, 16, 128], strides = [1, 1, 1]} : vector<10x18x128xbf16> to vector<8x16x128xbf16>
    %46 = vector.shape_cast %45 : vector<8x16x128xbf16> to vector<128x128xbf16>
    %c2 = arith.constant 2 : index
    %c0_21 = arith.constant 0 : index
    %c0_22 = arith.constant 0 : index
    %47 = vector.load %arg5[%c2, %c0_21, %c0_22] : memref<9x128x128xbf16, #tpu.memory_space<vmem>>, vector<1x128x128xbf16>
    %48 = vector.shape_cast %47 : vector<1x128x128xbf16> to vector<128x128xbf16>
    %cst_23 = arith.constant dense<0.000000e+00> : vector<128x128xf32>
    %49 = tpu.matmul %46, %48, %cst_23 {dimension_numbers = #tpu.dot_dimension_numbers<[1], [0], [0], [1], [0, 0, 1, 1], [], []>} : vector<128x128xbf16>, vector<128x128xbf16>, vector<128x128xf32> -> vector<128x128xf32>
    %50 = arith.addf %44, %49 : vector<128x128xf32>
    %51 = vector.extract_strided_slice %31 {offsets = [1, 0, 0], sizes = [8, 16, 128], strides = [1, 1, 1]} : vector<10x18x128xbf16> to vector<8x16x128xbf16>
    %52 = vector.shape_cast %51 : vector<8x16x128xbf16> to vector<128x128xbf16>
    %c3 = arith.constant 3 : index
    %c0_24 = arith.constant 0 : index
    %c0_25 = arith.constant 0 : index
    %53 = vector.load %arg5[%c3, %c0_24, %c0_25] : memref<9x128x128xbf16, #tpu.memory_space<vmem>>, vector<1x128x128xbf16>
    %54 = vector.shape_cast %53 : vector<1x128x128xbf16> to vector<128x128xbf16>
    %cst_26 = arith.constant dense<0.000000e+00> : vector<128x128xf32>
    %55 = tpu.matmul %52, %54, %cst_26 {dimension_numbers = #tpu.dot_dimension_numbers<[1], [0], [0], [1], [0, 0, 1, 1], [], []>} : vector<128x128xbf16>, vector<128x128xbf16>, vector<128x128xf32> -> vector<128x128xf32>
    %56 = arith.addf %50, %55 : vector<128x128xf32>
    %57 = vector.extract_strided_slice %31 {offsets = [1, 1, 0], sizes = [8, 16, 128], strides = [1, 1, 1]} : vector<10x18x128xbf16> to vector<8x16x128xbf16>
    %58 = vector.shape_cast %57 : vector<8x16x128xbf16> to vector<128x128xbf16>
    %c4 = arith.constant 4 : index
    %c0_27 = arith.constant 0 : index
    %c0_28 = arith.constant 0 : index
    %59 = vector.load %arg5[%c4, %c0_27, %c0_28] : memref<9x128x128xbf16, #tpu.memory_space<vmem>>, vector<1x128x128xbf16>
    %60 = vector.shape_cast %59 : vector<1x128x128xbf16> to vector<128x128xbf16>
    %cst_29 = arith.constant dense<0.000000e+00> : vector<128x128xf32>
    %61 = tpu.matmul %58, %60, %cst_29 {dimension_numbers = #tpu.dot_dimension_numbers<[1], [0], [0], [1], [0, 0, 1, 1], [], []>} : vector<128x128xbf16>, vector<128x128xbf16>, vector<128x128xf32> -> vector<128x128xf32>
    %62 = arith.addf %56, %61 : vector<128x128xf32>
    %63 = vector.extract_strided_slice %31 {offsets = [1, 2, 0], sizes = [8, 16, 128], strides = [1, 1, 1]} : vector<10x18x128xbf16> to vector<8x16x128xbf16>
    %64 = vector.shape_cast %63 : vector<8x16x128xbf16> to vector<128x128xbf16>
    %c5 = arith.constant 5 : index
    %c0_30 = arith.constant 0 : index
    %c0_31 = arith.constant 0 : index
    %65 = vector.load %arg5[%c5, %c0_30, %c0_31] : memref<9x128x128xbf16, #tpu.memory_space<vmem>>, vector<1x128x128xbf16>
    %66 = vector.shape_cast %65 : vector<1x128x128xbf16> to vector<128x128xbf16>
    %cst_32 = arith.constant dense<0.000000e+00> : vector<128x128xf32>
    %67 = tpu.matmul %64, %66, %cst_32 {dimension_numbers = #tpu.dot_dimension_numbers<[1], [0], [0], [1], [0, 0, 1, 1], [], []>} : vector<128x128xbf16>, vector<128x128xbf16>, vector<128x128xf32> -> vector<128x128xf32>
    %68 = arith.addf %62, %67 : vector<128x128xf32>
    %69 = vector.extract_strided_slice %31 {offsets = [2, 0, 0], sizes = [8, 16, 128], strides = [1, 1, 1]} : vector<10x18x128xbf16> to vector<8x16x128xbf16>
    %70 = vector.shape_cast %69 : vector<8x16x128xbf16> to vector<128x128xbf16>
    %c6 = arith.constant 6 : index
    %c0_33 = arith.constant 0 : index
    %c0_34 = arith.constant 0 : index
    %71 = vector.load %arg5[%c6, %c0_33, %c0_34] : memref<9x128x128xbf16, #tpu.memory_space<vmem>>, vector<1x128x128xbf16>
    %72 = vector.shape_cast %71 : vector<1x128x128xbf16> to vector<128x128xbf16>
    %cst_35 = arith.constant dense<0.000000e+00> : vector<128x128xf32>
    %73 = tpu.matmul %70, %72, %cst_35 {dimension_numbers = #tpu.dot_dimension_numbers<[1], [0], [0], [1], [0, 0, 1, 1], [], []>} : vector<128x128xbf16>, vector<128x128xbf16>, vector<128x128xf32> -> vector<128x128xf32>
    %74 = arith.addf %68, %73 : vector<128x128xf32>
    %75 = vector.extract_strided_slice %31 {offsets = [2, 1, 0], sizes = [8, 16, 128], strides = [1, 1, 1]} : vector<10x18x128xbf16> to vector<8x16x128xbf16>
    %76 = vector.shape_cast %75 : vector<8x16x128xbf16> to vector<128x128xbf16>
    %c7 = arith.constant 7 : index
    %c0_36 = arith.constant 0 : index
    %c0_37 = arith.constant 0 : index
    %77 = vector.load %arg5[%c7, %c0_36, %c0_37] : memref<9x128x128xbf16, #tpu.memory_space<vmem>>, vector<1x128x128xbf16>
    %78 = vector.shape_cast %77 : vector<1x128x128xbf16> to vector<128x128xbf16>
    %cst_38 = arith.constant dense<0.000000e+00> : vector<128x128xf32>
    %79 = tpu.matmul %76, %78, %cst_38 {dimension_numbers = #tpu.dot_dimension_numbers<[1], [0], [0], [1], [0, 0, 1, 1], [], []>} : vector<128x128xbf16>, vector<128x128xbf16>, vector<128x128xf32> -> vector<128x128xf32>
    %80 = arith.addf %74, %79 : vector<128x128xf32>
    %81 = vector.extract_strided_slice %31 {offsets = [2, 2, 0], sizes = [8, 16, 128], strides = [1, 1, 1]} : vector<10x18x128xbf16> to vector<8x16x128xbf16>
    %82 = vector.shape_cast %81 : vector<8x16x128xbf16> to vector<128x128xbf16>
    %c8 = arith.constant 8 : index
    %c0_39 = arith.constant 0 : index
    %c0_40 = arith.constant 0 : index
    %83 = vector.load %arg5[%c8, %c0_39, %c0_40] : memref<9x128x128xbf16, #tpu.memory_space<vmem>>, vector<1x128x128xbf16>
    %84 = vector.shape_cast %83 : vector<1x128x128xbf16> to vector<128x128xbf16>
    %cst_41 = arith.constant dense<0.000000e+00> : vector<128x128xf32>
    %85 = tpu.matmul %82, %84, %cst_41 {dimension_numbers = #tpu.dot_dimension_numbers<[1], [0], [0], [1], [0, 0, 1, 1], [], []>} : vector<128x128xbf16>, vector<128x128xbf16>, vector<128x128xf32> -> vector<128x128xf32>
    %86 = arith.addf %80, %85 : vector<128x128xf32>
    %87 = vector.shape_cast %86 : vector<128x128xf32> to vector<1x8x16x128xf32>
    %88 = arith.truncf %87 : vector<1x8x16x128xf32> to vector<1x8x16x128xbf16>
    %c0_42 = arith.constant 0 : index
    %c0_43 = arith.constant 0 : index
    %c0_44 = arith.constant 0 : index
    %c0_45 = arith.constant 0 : index
    %89 = vector.load %arg6[%c0_42, %c0_43, %c0_44, %c0_45] : memref<1x8x16x128xbf16, #tpu.memory_space<vmem>>, vector<1x8x16x128xbf16>
    tpu.vector_store %arg6[%c0_42, %c0_43, %c0_44, %c0_45], %88 {strides = array<i32>} : memref<1x8x16x128xbf16, #tpu.memory_space<vmem>>, vector<1x8x16x128xbf16>,
    %cst_46 = arith.constant dense<0.000000e+00> : vector<128xf32>
    %90 = vector.multi_reduction <add>, %86, %cst_46 [0] : vector<128x128xf32> to vector<128xf32>
    %91 = vector.shape_cast %90 : vector<128xf32> to vector<1x128xf32>
    %92 = arith.mulf %86, %86 : vector<128x128xf32>
    %cst_47 = arith.constant dense<0.000000e+00> : vector<128xf32>
    %93 = vector.multi_reduction <add>, %92, %cst_47 [0] : vector<128x128xf32> to vector<128xf32>
    %94 = vector.shape_cast %93 : vector<128xf32> to vector<1x128xf32>
    %95 = tpu.concatenate %91, %94 in 0 : vector<1x128xf32>, vector<1x128xf32> -> vector<2x128xf32>
    %96 = vector.shape_cast %95 : vector<2x128xf32> to vector<1x1x2x128xf32>
    %c0_48 = arith.constant 0 : index
    %c0_49 = arith.constant 0 : index
    %c0_50 = arith.constant 0 : index
    %c0_51 = arith.constant 0 : index
    %97 = vector.load %arg7[%c0_48, %c0_49, %c0_50, %c0_51] : memref<1x1x2x128xf32, #tpu.memory_space<vmem>>, vector<1x1x2x128xf32>
    tpu.vector_store %arg7[%c0_48, %c0_49, %c0_50, %c0_51], %96 {strides = array<i32>} : memref<1x1x2x128xf32, #tpu.memory_space<vmem>>, vector<1x1x2x128xf32>,
    return
  }
  func.func @transform_0(%arg0: i32, %arg1: i32) -> (i32, i32, i32, i32, i32) {
    %c0_i32 = arith.constant 0 : i32
    %c0_i32_0 = arith.constant 0 : i32
    %c0_i32_1 = arith.constant 0 : i32
    %c0_i32_2 = arith.constant 0 : i32
    return %arg0, %arg1, %c0_i32, %c0_i32_0, %c0_i32_1 : i32, i32, i32, i32, i32
  }
  func.func @transform_1(%arg0: i32, %arg1: i32) -> (i32, i32, i32) {
    %c0_i32 = arith.constant 0 : i32
    %c0_i32_0 = arith.constant 0 : i32
    %c0_i32_1 = arith.constant 0 : i32
    %c0_i32_2 = arith.constant 0 : i32
    return %c0_i32, %c0_i32_0, %c0_i32_1 : i32, i32, i32
  }
  func.func @transform_2(%arg0: i32, %arg1: i32) -> (i32, i32, i32) {
    %c0_i32 = arith.constant 0 : i32
    %c0_i32_0 = arith.constant 0 : i32
    %c0_i32_1 = arith.constant 0 : i32
    %c0_i32_2 = arith.constant 0 : i32
    return %c0_i32, %c0_i32_0, %c0_i32_1 : i32, i32, i32
  }
  func.func @transform_3(%arg0: i32, %arg1: i32) -> (i32, i32, i32) {
    %c0_i32 = arith.constant 0 : i32
    %c0_i32_0 = arith.constant 0 : i32
    %c0_i32_1 = arith.constant 0 : i32
    %c0_i32_2 = arith.constant 0 : i32
    return %c0_i32, %c0_i32_0, %c0_i32_1 : i32, i32, i32
  }
  func.func @transform_4(%arg0: i32, %arg1: i32) -> (i32, i32, i32, i32) {
    %c0_i32 = arith.constant 0 : i32
    %c0_i32_0 = arith.constant 0 : i32
    %c0_i32_1 = arith.constant 0 : i32
    return %arg0, %arg1, %c0_i32, %c0_i32_0 : i32, i32, i32, i32
  }
  func.func @transform_5(%arg0: i32, %arg1: i32) -> (i32, i32, i32, i32) {
    %c0_i32 = arith.constant 0 : i32
    %c0_i32_0 = arith.constant 0 : i32
    %c0_i32_1 = arith.constant 0 : i32
    return %arg0, %arg1, %c0_i32, %c0_i32_0 : i32, i32, i32, i32
  }
}

module attributes {stable_mosaic.version = 11 : i64} {
  func.func @_bn_relu_out_kernel(%arg0: i32, %arg1: i32, %arg2: memref<1x8x16x128xbf16, #tpu.memory_space<vmem>>, %arg3: memref<1x1x128xf32, #tpu.memory_space<vmem>>, %arg4: memref<1x1x128xf32, #tpu.memory_space<vmem>>, %arg5: memref<1x8x16x128xf32, #tpu.memory_space<vmem>>) attributes {dimension_semantics = [#tpu.dimension_semantics<parallel>, #tpu.dimension_semantics<parallel>], iteration_bounds = array<i64: 2, 2>, scalar_prefetch = 0 : i64, scratch_operands = 0 : i64, tpu.core_type = #tpu.core_type<tc>, window_params = [{transform_indices = @transform_0, window_bounds = array<i64: 1, 8, 16, 128>}, {pipeline_mode = #tpu.pipeline_mode<synchronous>, transform_indices = @transform_1, window_bounds = array<i64: 1, 1, 128>}, {pipeline_mode = #tpu.pipeline_mode<synchronous>, transform_indices = @transform_2, window_bounds = array<i64: 1, 1, 128>}, {transform_indices = @transform_3, window_bounds = array<i64: 1, 8, 16, 128>}]} {
    %c0 = arith.constant 0 : index
    %c0_0 = arith.constant 0 : index
    %c0_1 = arith.constant 0 : index
    %c0_2 = arith.constant 0 : index
    %0 = vector.load %arg2[%c0, %c0_0, %c0_1, %c0_2] : memref<1x8x16x128xbf16, #tpu.memory_space<vmem>>, vector<1x8x16x128xbf16>
    %1 = arith.extf %0 : vector<1x8x16x128xbf16> to vector<1x8x16x128xf32>
    %c0_3 = arith.constant 0 : index
    %c0_4 = arith.constant 0 : index
    %c0_5 = arith.constant 0 : index
    %2 = vector.load %arg3[%c0_3, %c0_4, %c0_5] : memref<1x1x128xf32, #tpu.memory_space<vmem>>, vector<1x1x128xf32>
    %3 = vector.shape_cast %2 : vector<1x1x128xf32> to vector<1x1x1x128xf32>
    %4 = vector.broadcast %3 : vector<1x1x1x128xf32> to vector<1x8x16x128xf32>
    %5 = arith.mulf %1, %4 : vector<1x8x16x128xf32>
    %c0_6 = arith.constant 0 : index
    %c0_7 = arith.constant 0 : index
    %c0_8 = arith.constant 0 : index
    %6 = vector.load %arg4[%c0_6, %c0_7, %c0_8] : memref<1x1x128xf32, #tpu.memory_space<vmem>>, vector<1x1x128xf32>
    %7 = vector.shape_cast %6 : vector<1x1x128xf32> to vector<1x1x1x128xf32>
    %8 = vector.broadcast %7 : vector<1x1x1x128xf32> to vector<1x8x16x128xf32>
    %9 = arith.addf %5, %8 : vector<1x8x16x128xf32>
    %cst = arith.constant 0.000000e+00 : f32
    %10 = vector.broadcast %cst : f32 to vector<1x8x16x128xf32>
    %11 = arith.maximumf %9, %10 : vector<1x8x16x128xf32>
    %c0_9 = arith.constant 0 : index
    %c0_10 = arith.constant 0 : index
    %c0_11 = arith.constant 0 : index
    %c0_12 = arith.constant 0 : index
    %12 = vector.load %arg5[%c0_9, %c0_10, %c0_11, %c0_12] : memref<1x8x16x128xf32, #tpu.memory_space<vmem>>, vector<1x8x16x128xf32>
    tpu.vector_store %arg5[%c0_9, %c0_10, %c0_11, %c0_12], %11 {strides = array<i32>} : memref<1x8x16x128xf32, #tpu.memory_space<vmem>>, vector<1x8x16x128xf32>,
    return
  }
  func.func @transform_0(%arg0: i32, %arg1: i32) -> (i32, i32, i32, i32) {
    %c0_i32 = arith.constant 0 : i32
    %c0_i32_0 = arith.constant 0 : i32
    %c0_i32_1 = arith.constant 0 : i32
    return %arg0, %arg1, %c0_i32, %c0_i32_0 : i32, i32, i32, i32
  }
  func.func @transform_1(%arg0: i32, %arg1: i32) -> (i32, i32, i32) {
    %c0_i32 = arith.constant 0 : i32
    %c0_i32_0 = arith.constant 0 : i32
    %c0_i32_1 = arith.constant 0 : i32
    %c0_i32_2 = arith.constant 0 : i32
    return %c0_i32, %c0_i32_0, %c0_i32_1 : i32, i32, i32
  }
  func.func @transform_2(%arg0: i32, %arg1: i32) -> (i32, i32, i32) {
    %c0_i32 = arith.constant 0 : i32
    %c0_i32_0 = arith.constant 0 : i32
    %c0_i32_1 = arith.constant 0 : i32
    %c0_i32_2 = arith.constant 0 : i32
    return %c0_i32, %c0_i32_0, %c0_i32_1 : i32, i32, i32
  }
  func.func @transform_3(%arg0: i32, %arg1: i32) -> (i32, i32, i32, i32) {
    %c0_i32 = arith.constant 0 : i32
    %c0_i32_0 = arith.constant 0 : i32
    %c0_i32_1 = arith.constant 0 : i32
    return %arg0, %arg1, %c0_i32, %c0_i32_0 : i32, i32, i32, i32
  }
}

</mosaic_0001>

<llo_original>
// kernel: decoder_block_forward.5
$region0: #{decoder_block_forward.5}
  #allocation0 [shape = 'u32[]', space=smem, size = 0x4, offset = 0x4, fixed_abs, tag = 'smem constant byte address 0x4 - core index']
  #allocation1 [shape = 'u32[144,128]{1,0:T(1,128)}', space=vmem, size = 0x12000, scoped, tag = 'internal scratch']
  %s0 = inlined_call_operand.vmem [shape: bf16[2,16,16,128], index: 0, kind: input, shape index: {}]
  %s1 = inlined_call_operand.vmem [shape: f32[1,1,128], index: 1, kind: input, shape index: {}]
  %s2 = inlined_call_operand.vmem [shape: f32[1,1,128], index: 2, kind: input, shape index: {}]
  %s3 = inlined_call_operand.vmem [shape: f32[2,16,16,128], index: 3, kind: output, shape index: {}]
  %s4 = sld [smem:[#allocation0]]
  $region45: #{decoder_block_forward.5} parent=0
    _
  %s6 = ssub.s32 1, %s4
  %s7 = scalar_select 0, %s6, %s4
  loop: start=0, step=1, limit=6
  $region2: #{decoder_block_forward.5} parent=0 // loop_pre_header
    _
  $region3: #{decoder_block_forward.5} parent=0 // loop_header
    %s9 = sphi 0, %s13
    %p10 = scmp.ge.s32.totalorder %s9, 6
    %s16 = sphi 0, %s28
    %s17 = sphi 0, %s24
    %s18 = sphi 0, %s16
    %s19 = sphi 0, %s17
    %s20 = sphi 0, %s18
    %s21 = sphi 0, %s19
    %s33 = sphi 0, %s35
    %s36 = sphi 0, %s33
    %s37 = sphi 0, %s36
    %s53 = sphi 0, %s37
    %s57 = sphi 0, %s57
    %s59 = sphi 0, %s57
    %s60 = sphi 0, %s59
    %s74 = sphi 0, %s60
    %s78 = sphi 0, %s78
    %s80 = sphi 0, %s78
    %s81 = sphi 0, %s80
    %s95 = sphi 0, %s81
    %s103 = sphi 0, %s105
    %s106 = sphi 0, %s103
    %s107 = sphi 0, %s106
    %s123 = sphi 0, %s107
  $region4: #{decoder_block_forward.5} parent=0 // loop_header_branch
    %12 = sbr.rel (%p10) target = $region8
  $region5: #{decoder_block_forward.5} parent=0 // loop_body
    %s14 = ssub.s32 %s9, 1
    %s15 = ssub.s32 %s9, 2
    %s22 = sadd.s32 1, %s17
    %p23 = scmp.ge.s32.totalorder %s22, 2
    %s24 = scalar_select %p23, 0, %s22
    %s25 = sadd.s32 1, %s16
    %s26 = scalar_select %p23, %s25, %s16
    %p27 = scmp.ge.s32.totalorder %s26, 2
    %s28 = scalar_select %p27, 0, %s26
    %s29 = ssub.s32 %s16, %s28
    %s30 = ssub.s32 %s17, %s24
    %s31 = sor.u32 %s29, %s30
    %p32 = scmp.eq.s32.totalorder %s31, 0
    %s34 = sadd.s32 %s33, 1
    %s35 = scalar_select %p32, %s33, %s34
    %p38 = pneg %p32
    %p39 = scmp.eq.s32.totalorder %s9, 3
    %p40 = por %p38, %p39
    %p41 = scmp.ne.s32.totalorder %s33, %s36
    %p42 = scmp.eq.s32.totalorder %s9, 0
    %p43 = por %p41, %p42
    %p44 = scmp.ne.s32.totalorder %s33, %s36
    %p45 = scmp.eq.s32.totalorder %s14, 3
    %p46 = por %p44, %p45
    %p47 = scmp.ne.s32.totalorder %s36, %s37
    %p48 = scmp.eq.s32.totalorder %s14, 0
    %p49 = por %p47, %p48
    %p50 = scmp.ne.s32.totalorder %s36, %s37
    %p51 = scmp.eq.s32.totalorder %s15, 3
    %p52 = por %p50, %p51
    %p54 = scmp.ne.s32.totalorder %s37, %s53
    %p55 = scmp.eq.s32.totalorder %s15, 0
    %p56 = por %p54, %p55
    %s58 = sadd.s32 %s57, 1
    %p61 = scmp.eq.s32.totalorder %s9, 3
    %p62 = scmp.ne.s32.totalorder %s57, %s59
    %p63 = scmp.eq.s32.totalorder %s9, 0
    %p64 = por %p62, %p63
    %p65 = scmp.ne.s32.totalorder %s57, %s59
    %p66 = scmp.eq.s32.totalorder %s14, 3
    %p67 = por %p65, %p66
    %p68 = scmp.ne.s32.totalorder %s59, %s60
    %p69 = scmp.eq.s32.totalorder %s14, 0
    %p70 = por %p68, %p69
    %p71 = scmp.ne.s32.totalorder %s59, %s60
    %p72 = scmp.eq.s32.totalorder %s15, 3
    %p73 = por %p71, %p72
    %p75 = scmp.ne.s32.totalorder %s60, %s74
    %p76 = scmp.eq.s32.totalorder %s15, 0
    %p77 = por %p75, %p76
    %s79 = sadd.s32 %s78, 1
    %p82 = scmp.eq.s32.totalorder %s9, 3
    %p83 = scmp.ne.s32.totalorder %s78, %s80
    %p84 = scmp.eq.s32.totalorder %s9, 0
    %p85 = por %p83, %p84
    %p86 = scmp.ne.s32.totalorder %s78, %s80
    %p87 = scmp.eq.s32.totalorder %s14, 3
    %p88 = por %p86, %p87
    %p89 = scmp.ne.s32.totalorder %s80, %s81
    %p90 = scmp.eq.s32.totalorder %s14, 0
    %p91 = por %p89, %p90
    %p92 = scmp.ne.s32.totalorder %s80, %s81
    %p93 = scmp.eq.s32.totalorder %s15, 3
    %p94 = por %p92, %p93
    %p96 = scmp.ne.s32.totalorder %s81, %s95
    %p97 = scmp.eq.s32.totalorder %s15, 0
    %p98 = por %p96, %p97
    %s99 = ssub.s32 %s16, %s28
    %s100 = ssub.s32 %s17, %s24
    %s101 = sor.u32 %s99, %s100
    %p102 = scmp.eq.s32.totalorder %s101, 0
    %s104 = sadd.s32 %s103, 1
    %s105 = scalar_select %p102, %s103, %s104
    %p108 = pneg %p102
    %p109 = scmp.eq.s32.totalorder %s9, 3
    %p110 = por %p108, %p109
    %p111 = scmp.ne.s32.totalorder %s103, %s106
    %p112 = scmp.eq.s32.totalorder %s9, 0
    %p113 = por %p111, %p112
    %p114 = scmp.ne.s32.totalorder %s103, %s106
    %p115 = scmp.eq.s32.totalorder %s14, 3
    %p116 = por %p114, %p115
    %p117 = scmp.ne.s32.totalorder %s106, %s107
    %p118 = scmp.eq.s32.totalorder %s14, 0
    %p119 = por %p117, %p118
    %p120 = scmp.ne.s32.totalorder %s106, %s107
    %p121 = scmp.eq.s32.totalorder %s15, 3
    %p122 = por %p120, %p121
    %p124 = scmp.ne.s32.totalorder %s107, %s123
    %p125 = scmp.eq.s32.totalorder %s15, 0
    %p126 = por %p124, %p125
    %p127 = scmp.le.s32.totalorder 1, %s9
    %p128 = scmp.lt.s32.totalorder %s9, 5
    %p129 = pnand %p127, %p128
    %p130 = pneg %p129
    // Predicated region
    $region9: #{decoder_block_forward.5} parent=5 // pred_check
      _
    $region10: #{decoder_block_forward.5} parent=5 // pred_check_branch
      %132 = sbr.rel (%p129) target = $region12
    $region11: #{decoder_block_forward.5} parent=5 // pred_region
      %s133 = ssub.s32 %s9, 1
      // Predicated region
      $region13: #{decoder_block_forward.5} parent=11 // pred_check
        %p134 = pneg %p70
      $region14: #{decoder_block_forward.5} parent=11 // pred_check_branch
        %136 = sbr.rel (%p134) target = $region16
      $region15: #{decoder_block_forward.5} parent=11 // pred_region
        _
      $region16: #{decoder_block_forward.5} parent=11 // pred_fallthru
        _
      // Predicated region
      $region17: #{decoder_block_forward.5} parent=11 // pred_check
        %p137 = pneg %p91
      $region18: #{decoder_block_forward.5} parent=11 // pred_check_branch
        %139 = sbr.rel (%p137) target = $region20
      $region19: #{decoder_block_forward.5} parent=11 // pred_region
        _
      $region20: #{decoder_block_forward.5} parent=11 // pred_fallthru
        _
    $region12: #{decoder_block_forward.5} parent=5 // pred_fallthru
      _
    %p140 = scmp.lt.s32.totalorder %s9, 4
    // Predicated region
    $region21: #{decoder_block_forward.5} parent=5 // pred_check
      %p141 = pneg %p140
    $region22: #{decoder_block_forward.5} parent=5 // pred_check_branch
      %143 = sbr.rel (%p141) target = $region24
    $region23: #{decoder_block_forward.5} parent=5 // pred_region
      // Predicated region
      $region25: #{decoder_block_forward.5} parent=23 // pred_check
        %p144 = pneg %p43
      $region26: #{decoder_block_forward.5} parent=23 // pred_check_branch
        %146 = sbr.rel (%p144) target = $region28
      $region27: #{decoder_block_forward.5} parent=23 // pred_region
        %s147 = smul.u32 8, %s17
        %p148 = scmp.lt.s32.totalorder %s16, 1
        %s149 = scalar_select %p148, %s16, 1
        %p150 = scmp.lt.s32.totalorder %s147, 15
        %s151 = scalar_select %p150, %s147, 15
        %s152 = smul.addr %s151, 2
        %s153 = smul.addr %s149, 32
        %s154 = sadd.s32 %s152, %s153
        %s155 = smul.addr %s154, 4
        %s156 = scalar_lea.vmem %s0, %s155
        %s157 = smul.u32 8, %s17
      $region28: #{decoder_block_forward.5} parent=23 // pred_fallthru
        _
    $region24: #{decoder_block_forward.5} parent=5 // pred_fallthru
      _
    %p158 = scmp.le.s32.totalorder 1, %s9
    %p159 = scmp.lt.s32.totalorder %s9, 5
    %p160 = pnand %p158, %p159
    %p161 = pneg %p160
    // Predicated region
    $region29: #{decoder_block_forward.5} parent=5 // pred_check
      _
    $region30: #{decoder_block_forward.5} parent=5 // pred_check_branch
      %163 = sbr.rel (%p160) target = $region32
    $region31: #{decoder_block_forward.5} parent=5 // pred_region
      %s164 = ssub.s32 %s9, 1
      %s165 = smul.u32 8, %s19
      %p166 = scmp.lt.s32.totalorder %s18, 1
      %s167 = scalar_select %p166, %s18, 1
      %p168 = scmp.lt.s32.totalorder %s165, 15
      %s169 = scalar_select %p168, %s165, 15
      %s170 = smul.addr %s169, 2
      %s171 = smul.addr %s167, 32
      %s172 = sadd.s32 %s170, %s171
      %s173 = smul.addr %s172, 4
      %s174 = scalar_lea.vmem %s0, %s173
      %p175 = pneg %p49
      %p176 = pneg %p46
      %p177 = pneg %p70
      %p178 = pneg %p67
      %p179 = pneg %p91
      %p180 = pneg %p88
      %p181 = pneg %p119
      %p182 = pneg %p116
      %s183 = smul.u32 8, %s19
      %p184 = scmp.lt.s32.totalorder %s18, 1
      %s185 = scalar_select %p184, %s18, 1
      %p186 = scmp.lt.s32.totalorder %s183, 15
      %s187 = scalar_select %p186, %s183, 15
      %s188 = smul.addr %s187, 2
      %s189 = smul.addr %s185, 32
      %s190 = sadd.s32 %s188, %s189
      %s191 = smul.addr %s190, 8
      %s192 = scalar_lea.vmem %s3, %s191
      %s193 = smul.u32 8, %s19
      %p194 = scmp.lt.s32.totalorder %s18, 1
      %s195 = scalar_select %p194, %s18, 1
      %p196 = scmp.lt.s32.totalorder %s193, 15
      %s197 = scalar_select %p196, %s193, 15
      %s198 = smul.addr %s197, 2
      %s199 = smul.addr %s195, 32
      %s200 = sadd.s32 %s198, %s199
      %s201 = smul.addr %s200, 4
      %s202 = scalar_lea.vmem %s0, %s201
      %s203 = smul.u32 8, %s19
      %s204 = smul.u32 8, %s19
      %p205 = scmp.lt.s32.totalorder %s18, 1
      %s206 = scalar_select %p205, %s18, 1
      %p207 = scmp.lt.s32.totalorder %s204, 15
      %s208 = scalar_select %p207, %s204, 15
      %s209 = smul.addr %s208, 2
      %s210 = smul.addr %s206, 32
      %s211 = sadd.s32 %s209, %s210
      %s212 = smul.addr %s211, 8
      %s213 = scalar_lea.vmem %s3, %s212
      %s214 = smul.u32 8, %s19
      %v215 = vld [vmem:[%s202] sm:$0xf]
      %v216 = vld [vmem:[%s202 + $0x4] sm:$0xf]
      %v217 = vld [vmem:[%s202 + $0x8] sm:$0xf]
      %v218 = vld [vmem:[%s202 + $0xc] sm:$0xf]
      %v219 = vld [vmem:[%s202 + $0x10] sm:$0xf]
      %v220 = vld [vmem:[%s202 + $0x14] sm:$0xf]
      %v221 = vld [vmem:[%s202 + $0x18] sm:$0xf]
      %v222 = vld [vmem:[%s202 + $0x1c] sm:$0xf]
      %v223 = vld [vmem:[%s202 + $0x20] sm:$0xf]
      %v224 = vld [vmem:[%s202 + $0x24] sm:$0xf]
      %v225 = vld [vmem:[%s202 + $0x28] sm:$0xf]
      %v226 = vld [vmem:[%s202 + $0x2c] sm:$0xf]
      %v227 = vld [vmem:[%s202 + $0x30] sm:$0xf]
      %v228 = vld [vmem:[%s202 + $0x34] sm:$0xf]
      %v229 = vld [vmem:[%s202 + $0x38] sm:$0xf]
      %v230 = vld [vmem:[%s202 + $0x3c] sm:$0xf]
      %v231 = vunpack.c.l.bf16 %v215
      %v232 = vunpack.c.l.bf16 %v216
      %v233 = vunpack.c.l.bf16 %v217
      %v234 = vunpack.c.l.bf16 %v218
      %v235 = vunpack.c.l.bf16 %v219
      %v236 = vunpack.c.l.bf16 %v220
      %v237 = vunpack.c.l.bf16 %v221
      %v238 = vunpack.c.l.bf16 %v222
      %v239 = vunpack.c.l.bf16 %v223
      %v240 = vunpack.c.l.bf16 %v224
      %v241 = vunpack.c.l.bf16 %v225
      %v242 = vunpack.c.l.bf16 %v226
      %v243 = vunpack.c.l.bf16 %v227
      %v244 = vunpack.c.l.bf16 %v228
      %v245 = vunpack.c.l.bf16 %v229
      %v246 = vunpack.c.l.bf16 %v230
      %v247 = vld [vmem:[%s1] sm:$0x1]
      %v249 = vlaneseq
      %v250 = vshrl.u32 %v249, 7
      %v251 = vsub.s32 0, %v250
      %v252 = vrot.slane %v247, %v251
      %v254 = vmul.f32 %v231, %v252
      %v255 = vmul.f32 %v232, %v252
      %v256 = vmul.f32 %v233, %v252
      %v257 = vmul.f32 %v234, %v252
      %v258 = vmul.f32 %v235, %v252
      %v259 = vmul.f32 %v236, %v252
      %v260 = vmul.f32 %v237, %v252
      %v261 = vmul.f32 %v238, %v252
      %v262 = vmul.f32 %v239, %v252
      %v263 = vmul.f32 %v240, %v252
      %v264 = vmul.f32 %v241, %v252
      %v265 = vmul.f32 %v242, %v252
      %v266 = vmul.f32 %v243, %v252
      %v267 = vmul.f32 %v244, %v252
      %v268 = vmul.f32 %v245, %v252
      %v269 = vmul.f32 %v246, %v252
      %v270 = vld [vmem:[%s2] sm:$0x1]
      %v272 = vlaneseq
      %v273 = vshrl.u32 %v272, 7
      %v274 = vsub.s32 0, %v273
      %v275 = vrot.slane %v270, %v274
      %v277 = vadd.f32 %v254, %v275
      %v278 = vadd.f32 %v255, %v275
      %v279 = vadd.f32 %v256, %v275
      %v280 = vadd.f32 %v257, %v275
      %v281 = vadd.f32 %v258, %v275
      %v282 = vadd.f32 %v259, %v275
      %v283 = vadd.f32 %v260, %v275
      %v284 = vadd.f32 %v261, %v275
      %v285 = vadd.f32 %v262, %v275
      %v286 = vadd.f32 %v263, %v275
      %v287 = vadd.f32 %v264, %v275
      %v288 = vadd.f32 %v265, %v275
      %v289 = vadd.f32 %v266, %v275
      %v290 = vadd.f32 %v267, %v275
      %v291 = vadd.f32 %v268, %v275
      %v292 = vadd.f32 %v269, %v275
      %v293 = vmax.f32 %v277, 0.0
      %v294 = vmax.f32 %v278, 0.0
      %v295 = vmax.f32 %v279, 0.0
      %v296 = vmax.f32 %v280, 0.0
      %v297 = vmax.f32 %v281, 0.0
      %v298 = vmax.f32 %v282, 0.0
      %v299 = vmax.f32 %v283, 0.0
      %v300 = vmax.f32 %v284, 0.0
      %v301 = vmax.f32 %v285, 0.0
      %v302 = vmax.f32 %v286, 0.0
      %v303 = vmax.f32 %v287, 0.0
      %v304 = vmax.f32 %v288, 0.0
      %v305 = vmax.f32 %v289, 0.0
      %v306 = vmax.f32 %v290, 0.0
      %v307 = vmax.f32 %v291, 0.0
      %v308 = vmax.f32 %v292, 0.0
      %309 = vst [vmem:[%s213] sm:$0xff] %v293
      %310 = vst [vmem:[%s213 + $0x8] sm:$0xff] %v294
      %311 = vst [vmem:[%s213 + $0x10] sm:$0xff] %v295
      %312 = vst [vmem:[%s213 + $0x18] sm:$0xff] %v296
      %313 = vst [vmem:[%s213 + $0x20] sm:$0xff] %v297
      %314 = vst [vmem:[%s213 + $0x28] sm:$0xff] %v298
      %315 = vst [vmem:[%s213 + $0x30] sm:$0xff] %v299
      %316 = vst [vmem:[%s213 + $0x38] sm:$0xff] %v300
      %317 = vst [vmem:[%s213 + $0x40] sm:$0xff] %v301
      %318 = vst [vmem:[%s213 + $0x48] sm:$0xff] %v302
      %319 = vst [vmem:[%s213 + $0x50] sm:$0xff] %v303
      %320 = vst [vmem:[%s213 + $0x58] sm:$0xff] %v304
      %321 = vst [vmem:[%s213 + $0x60] sm:$0xff] %v305
      %322 = vst [vmem:[%s213 + $0x68] sm:$0xff] %v306
      %323 = vst [vmem:[%s213 + $0x70] sm:$0xff] %v307
      %324 = vst [vmem:[%s213 + $0x78] sm:$0xff] %v308
      %s325 = smul.u32 8, %s19
      %p326 = scmp.lt.s32.totalorder %s18, 1
      %s327 = scalar_select %p326, %s18, 1
      %p328 = scmp.lt.s32.totalorder %s325, 15
      %s329 = scalar_select %p328, %s325, 15
      %s330 = smul.addr %s329, 2
      %s331 = smul.addr %s327, 32
      %s332 = sadd.s32 %s330, %s331
      %s333 = smul.addr %s332, 8
      %s334 = scalar_lea.vmem %s3, %s333
      // Predicated region
      $region33: #{decoder_block_forward.5} parent=31 // pred_check
        %p335 = pneg %p116
      $region34: #{decoder_block_forward.5} parent=31 // pred_check_branch
        %337 = sbr.rel (%p335) target = $region36
      $region35: #{decoder_block_forward.5} parent=31 // pred_region
        %s338 = smul.u32 8, %s19
      $region36: #{decoder_block_forward.5} parent=31 // pred_fallthru
        _
    $region32: #{decoder_block_forward.5} parent=5 // pred_fallthru
      _
    %p339 = scmp.le.s32.totalorder 2, %s9
    // Predicated region
    $region37: #{decoder_block_forward.5} parent=5 // pred_check
      %p340 = pneg %p339
    $region38: #{decoder_block_forward.5} parent=5 // pred_check_branch
      %342 = sbr.rel (%p340) target = $region40
    $region39: #{decoder_block_forward.5} parent=5 // pred_region
      %s343 = ssub.s32 %s9, 2
      // Predicated region
      $region41: #{decoder_block_forward.5} parent=39 // pred_check
        %p344 = pneg %p122
      $region42: #{decoder_block_forward.5} parent=39 // pred_check_branch
        %346 = sbr.rel (%p344) target = $region44
      $region43: #{decoder_block_forward.5} parent=39 // pred_region
        %s347 = smul.u32 8, %s21
        %p348 = scmp.lt.s32.totalorder %s20, 1
        %s349 = scalar_select %p348, %s20, 1
        %p350 = scmp.lt.s32.totalorder %s347, 15
        %s351 = scalar_select %p350, %s347, 15
        %s352 = smul.addr %s351, 2
        %s353 = smul.addr %s349, 32
        %s354 = sadd.s32 %s352, %s353
        %s355 = smul.addr %s354, 8
        %s356 = scalar_lea.vmem %s3, %s355
      $region44: #{decoder_block_forward.5} parent=39 // pred_fallthru
        _
    $region40: #{decoder_block_forward.5} parent=5 // pred_fallthru
      _
  $region6: #{decoder_block_forward.5} parent=0 // loop_footer
    %s13 = sadd.s32 1, %s9
  $region7: #{decoder_block_forward.5} parent=0 // loop_footer_branch
    %8 = sbr.rel target = $region3
  $region8: #{decoder_block_forward.5} parent=0 // loop_exit
    _

// kernel: decoder_block_forward.4
$region0: #{decoder_block_forward.4}
  #allocation0 [shape = 'u32[]', space=smem, size = 0x4, offset = 0x4, fixed_abs, tag = 'smem constant byte address 0x4 - core index']
  #allocation1 [shape = 'u32[144,128]{1,0:T(1,128)}', space=vmem, size = 0x12000, scoped, tag = 'internal scratch']
  %s0 = inlined_call_operand.vmem [shape: bf16[2,2,10,18,128], index: 0, kind: input, shape index: {}]
  %s1 = inlined_call_operand.vmem [shape: f32[1,1,128], index: 1, kind: input, shape index: {}]
  %s2 = inlined_call_operand.vmem [shape: f32[1,1,128], index: 2, kind: input, shape index: {}]
  %s3 = inlined_call_operand.vmem [shape: bf16[9,128,128], index: 3, kind: input, shape index: {}]
  %s4 = inlined_call_operand.vmem [shape: bf16[2,16,16,128], index: 4, kind: output, shape index: {0}]
  %s5 = inlined_call_operand.vmem [shape: f32[2,2,2,128], index: 5, kind: output, shape index: {1}]
  %6 = xla_tuple %s4, %s5
  %s7 = sld [smem:[#allocation0]]
  $region57: #{decoder_block_forward.4} parent=0
    _
  %s9 = ssub.s32 1, %s7
  %s10 = scalar_select 0, %s9, %s7
  loop: start=0, step=1, limit=6
  $region2: #{decoder_block_forward.4} parent=0 // loop_pre_header
    _
  $region3: #{decoder_block_forward.4} parent=0 // loop_header
    %s12 = sphi 0, %s16
    %p13 = scmp.ge.s32.totalorder %s12, 6
    %s19 = sphi 0, %s31
    %s20 = sphi 0, %s27
    %s21 = sphi 0, %s19
    %s22 = sphi 0, %s20
    %s23 = sphi 0, %s21
    %s24 = sphi 0, %s22
    %s36 = sphi 0, %s38
    %s39 = sphi 0, %s36
    %s40 = sphi 0, %s39
    %s56 = sphi 0, %s40
    %s60 = sphi 0, %s60
    %s62 = sphi 0, %s60
    %s63 = sphi 0, %s62
    %s77 = sphi 0, %s63
    %s81 = sphi 0, %s81
    %s83 = sphi 0, %s81
    %s84 = sphi 0, %s83
    %s98 = sphi 0, %s84
    %s102 = sphi 0, %s102
    %s104 = sphi 0, %s102
    %s105 = sphi 0, %s104
    %s119 = sphi 0, %s105
    %s127 = sphi 0, %s129
    %s130 = sphi 0, %s127
    %s131 = sphi 0, %s130
    %s147 = sphi 0, %s131
    %s155 = sphi 0, %s157
    %s158 = sphi 0, %s155
    %s159 = sphi 0, %s158
    %s175 = sphi 0, %s159
  $region4: #{decoder_block_forward.4} parent=0 // loop_header_branch
    %15 = sbr.rel (%p13) target = $region8
  $region5: #{decoder_block_forward.4} parent=0 // loop_body
    %s17 = ssub.s32 %s12, 1
    %s18 = ssub.s32 %s12, 2
    %s25 = sadd.s32 1, %s20
    %p26 = scmp.ge.s32.totalorder %s25, 2
    %s27 = scalar_select %p26, 0, %s25
    %s28 = sadd.s32 1, %s19
    %s29 = scalar_select %p26, %s28, %s19
    %p30 = scmp.ge.s32.totalorder %s29, 2
    %s31 = scalar_select %p30, 0, %s29
    %s32 = ssub.s32 %s19, %s31
    %s33 = ssub.s32 %s20, %s27
    %s34 = sor.u32 %s32, %s33
    %p35 = scmp.eq.s32.totalorder %s34, 0
    %s37 = sadd.s32 %s36, 1
    %s38 = scalar_select %p35, %s36, %s37
    %p41 = pneg %p35
    %p42 = scmp.eq.s32.totalorder %s12, 3
    %p43 = por %p41, %p42
    %p44 = scmp.ne.s32.totalorder %s36, %s39
    %p45 = scmp.eq.s32.totalorder %s12, 0
    %p46 = por %p44, %p45
    %p47 = scmp.ne.s32.totalorder %s36, %s39
    %p48 = scmp.eq.s32.totalorder %s17, 3
    %p49 = por %p47, %p48
    %p50 = scmp.ne.s32.totalorder %s39, %s40
    %p51 = scmp.eq.s32.totalorder %s17, 0
    %p52 = por %p50, %p51
    %p53 = scmp.ne.s32.totalorder %s39, %s40
    %p54 = scmp.eq.s32.totalorder %s18, 3
    %p55 = por %p53, %p54
    %p57 = scmp.ne.s32.totalorder %s40, %s56
    %p58 = scmp.eq.s32.totalorder %s18, 0
    %p59 = por %p57, %p58
    %s61 = sadd.s32 %s60, 1
    %p64 = scmp.eq.s32.totalorder %s12, 3
    %p65 = scmp.ne.s32.totalorder %s60, %s62
    %p66 = scmp.eq.s32.totalorder %s12, 0
    %p67 = por %p65, %p66
    %p68 = scmp.ne.s32.totalorder %s60, %s62
    %p69 = scmp.eq.s32.totalorder %s17, 3
    %p70 = por %p68, %p69
    %p71 = scmp.ne.s32.totalorder %s62, %s63
    %p72 = scmp.eq.s32.totalorder %s17, 0
    %p73 = por %p71, %p72
    %p74 = scmp.ne.s32.totalorder %s62, %s63
    %p75 = scmp.eq.s32.totalorder %s18, 3
    %p76 = por %p74, %p75
    %p78 = scmp.ne.s32.totalorder %s63, %s77
    %p79 = scmp.eq.s32.totalorder %s18, 0
    %p80 = por %p78, %p79
    %s82 = sadd.s32 %s81, 1
    %p85 = scmp.eq.s32.totalorder %s12, 3
    %p86 = scmp.ne.s32.totalorder %s81, %s83
    %p87 = scmp.eq.s32.totalorder %s12, 0
    %p88 = por %p86, %p87
    %p89 = scmp.ne.s32.totalorder %s81, %s83
    %p90 = scmp.eq.s32.totalorder %s17, 3
    %p91 = por %p89, %p90
    %p92 = scmp.ne.s32.totalorder %s83, %s84
    %p93 = scmp.eq.s32.totalorder %s17, 0
    %p94 = por %p92, %p93
    %p95 = scmp.ne.s32.totalorder %s83, %s84
    %p96 = scmp.eq.s32.totalorder %s18, 3
    %p97 = por %p95, %p96
    %p99 = scmp.ne.s32.totalorder %s84, %s98
    %p100 = scmp.eq.s32.totalorder %s18, 0
    %p101 = por %p99, %p100
    %s103 = sadd.s32 %s102, 1
    %p106 = scmp.eq.s32.totalorder %s12, 3
    %p107 = scmp.ne.s32.totalorder %s102, %s104
    %p108 = scmp.eq.s32.totalorder %s12, 0
    %p109 = por %p107, %p108
    %p110 = scmp.ne.s32.totalorder %s102, %s104
    %p111 = scmp.eq.s32.totalorder %s17, 3
    %p112 = por %p110, %p111
    %p113 = scmp.ne.s32.totalorder %s104, %s105
    %p114 = scmp.eq.s32.totalorder %s17, 0
    %p115 = por %p113, %p114
    %p116 = scmp.ne.s32.totalorder %s104, %s105
    %p117 = scmp.eq.s32.totalorder %s18, 3
    %p118 = por %p116, %p117
    %p120 = scmp.ne.s32.totalorder %s105, %s119
    %p121 = scmp.eq.s32.totalorder %s18, 0
    %p122 = por %p120, %p121
    %s123 = ssub.s32 %s19, %s31
    %s124 = ssub.s32 %s20, %s27
    %s125 = sor.u32 %s123, %s124
    %p126 = scmp.eq.s32.totalorder %s125, 0
    %s128 = sadd.s32 %s127, 1
    %s129 = scalar_select %p126, %s127, %s128
    %p132 = pneg %p126
    %p133 = scmp.eq.s32.totalorder %s12, 3
    %p134 = por %p132, %p133
    %p135 = scmp.ne.s32.totalorder %s127, %s130
    %p136 = scmp.eq.s32.totalorder %s12, 0
    %p137 = por %p135, %p136
    %p138 = scmp.ne.s32.totalorder %s127, %s130
    %p139 = scmp.eq.s32.totalorder %s17, 3
    %p140 = por %p138, %p139
    %p141 = scmp.ne.s32.totalorder %s130, %s131
    %p142 = scmp.eq.s32.totalorder %s17, 0
    %p143 = por %p141, %p142
    %p144 = scmp.ne.s32.totalorder %s130, %s131
    %p145 = scmp.eq.s32.totalorder %s18, 3
    %p146 = por %p144, %p145
    %p148 = scmp.ne.s32.totalorder %s131, %s147
    %p149 = scmp.eq.s32.totalorder %s18, 0
    %p150 = por %p148, %p149
    %s151 = ssub.s32 %s19, %s31
    %s152 = ssub.s32 %s20, %s27
    %s153 = sor.u32 %s151, %s152
    %p154 = scmp.eq.s32.totalorder %s153, 0
    %s156 = sadd.s32 %s155, 1
    %s157 = scalar_select %p154, %s155, %s156
    %p160 = pneg %p154
    %p161 = scmp.eq.s32.totalorder %s12, 3
    %p162 = por %p160, %p161
    %p163 = scmp.ne.s32.totalorder %s155, %s158
    %p164 = scmp.eq.s32.totalorder %s12, 0
    %p165 = por %p163, %p164
    %p166 = scmp.ne.s32.totalorder %s155, %s158
    %p167 = scmp.eq.s32.totalorder %s17, 3
    %p168 = por %p166, %p167
    %p169 = scmp.ne.s32.totalorder %s158, %s159
    %p170 = scmp.eq.s32.totalorder %s17, 0
    %p171 = por %p169, %p170
    %p172 = scmp.ne.s32.totalorder %s158, %s159
    %p173 = scmp.eq.s32.totalorder %s18, 3
    %p174 = por %p172, %p173
    %p176 = scmp.ne.s32.totalorder %s159, %s175
    %p177 = scmp.eq.s32.totalorder %s18, 0
    %p178 = por %p176, %p177
    %p179 = scmp.le.s32.totalorder 1, %s12
    %p180 = scmp.lt.s32.totalorder %s12, 5
    %p181 = pnand %p179, %p180
    %p182 = pneg %p181
    // Predicated region
    $region9: #{decoder_block_forward.4} parent=5 // pred_check
      _
    $region10: #{decoder_block_forward.4} parent=5 // pred_check_branch
      %184 = sbr.rel (%p181) target = $region12
    $region11: #{decoder_block_forward.4} parent=5 // pred_region
      %s185 = ssub.s32 %s12, 1
      // Predicated region
      $region13: #{decoder_block_forward.4} parent=11 // pred_check
        %p186 = pneg %p73
      $region14: #{decoder_block_forward.4} parent=11 // pred_check_branch
        %188 = sbr.rel (%p186) target = $region16
      $region15: #{decoder_block_forward.4} parent=11 // pred_region
        _
      $region16: #{decoder_block_forward.4} parent=11 // pred_fallthru
        _
      // Predicated region
      $region17: #{decoder_block_forward.4} parent=11 // pred_check
        %p189 = pneg %p94
      $region18: #{decoder_block_forward.4} parent=11 // pred_check_branch
        %191 = sbr.rel (%p189) target = $region20
      $region19: #{decoder_block_forward.4} parent=11 // pred_region
        _
      $region20: #{decoder_block_forward.4} parent=11 // pred_fallthru
        _
      // Predicated region
      $region21: #{decoder_block_forward.4} parent=11 // pred_check
        %p192 = pneg %p115
      $region22: #{decoder_block_forward.4} parent=11 // pred_check_branch
        %194 = sbr.rel (%p192) target = $region24
      $region23: #{decoder_block_forward.4} parent=11 // pred_region
        _
      $region24: #{decoder_block_forward.4} parent=11 // pred_fallthru
        _
    $region12: #{decoder_block_forward.4} parent=5 // pred_fallthru
      _
    %p195 = scmp.lt.s32.totalorder %s12, 4
    // Predicated region
    $region25: #{decoder_block_forward.4} parent=5 // pred_check
      %p196 = pneg %p195
    $region26: #{decoder_block_forward.4} parent=5 // pred_check_branch
      %198 = sbr.rel (%p196) target = $region28
    $region27: #{decoder_block_forward.4} parent=5 // pred_region
      // Predicated region
      $region29: #{decoder_block_forward.4} parent=27 // pred_check
        %p199 = pneg %p46
      $region30: #{decoder_block_forward.4} parent=27 // pred_check_branch
        %201 = sbr.rel (%p199) target = $region32
      $region31: #{decoder_block_forward.4} parent=27 // pred_region
        %p202 = scmp.lt.s32.totalorder %s19, 1
        %s203 = scalar_select %p202, %s19, 1
        %p204 = scmp.lt.s32.totalorder %s20, 1
        %s205 = scalar_select %p204, %s20, 1
        %s206 = smul.addr %s205, 30
        %s207 = smul.addr %s203, 60
        %s208 = sadd.s32 %s206, %s207
        %s209 = smul.addr %s208, 4
        %s210 = scalar_lea.vmem %s0, %s209
      $region32: #{decoder_block_forward.4} parent=27 // pred_fallthru
        _
    $region28: #{decoder_block_forward.4} parent=5 // pred_fallthru
      _
    %p211 = scmp.le.s32.totalorder 1, %s12
    %p212 = scmp.lt.s32.totalorder %s12, 5
    %p213 = pnand %p211, %p212
    %p214 = pneg %p213
    // Predicated region
    $region33: #{decoder_block_forward.4} parent=5 // pred_check
      _
    $region34: #{decoder_block_forward.4} parent=5 // pred_check_branch
      %216 = sbr.rel (%p213) target = $region36
    $region35: #{decoder_block_forward.4} parent=5 // pred_region
      %s217 = ssub.s32 %s12, 1
      %p218 = scmp.lt.s32.totalorder %s21, 1
      %s219 = scalar_select %p218, %s21, 1
      %p220 = scmp.lt.s32.totalorder %s22, 1
      %s221 = scalar_select %p220, %s22, 1
      %s222 = smul.addr %s221, 30
      %s223 = smul.addr %s219, 60
      %s224 = sadd.s32 %s222, %s223
      %s225 = smul.addr %s224, 4
      %s226 = scalar_lea.vmem %s0, %s225
      %p227 = pneg %p52
      %p228 = pneg %p49
      %p229 = pneg %p73
      %p230 = pneg %p70
      %p231 = pneg %p94
      %p232 = pneg %p91
      %p233 = pneg %p115
      %p234 = pneg %p112
      %p235 = pneg %p143
      %p236 = pneg %p140
      %s237 = smul.u32 8, %s22
      %p238 = scmp.lt.s32.totalorder %s21, 1
      %s239 = scalar_select %p238, %s21, 1
      %p240 = scmp.lt.s32.totalorder %s237, 15
      %s241 = scalar_select %p240, %s237, 15
      %s242 = smul.addr %s241, 2
      %s243 = smul.addr %s239, 32
      %s244 = sadd.s32 %s242, %s243
      %s245 = smul.addr %s244, 4
      %s246 = scalar_lea.vmem %s4, %s245
      %p247 = pneg %p171
      %p248 = pneg %p168
      %p249 = scmp.lt.s32.totalorder %s21, 1
      %s250 = scalar_select %p249, %s21, 1
      %p251 = scmp.lt.s32.totalorder %s22, 1
      %s252 = scalar_select %p251, %s22, 1
      %s253 = smul.addr %s250, 2
      %s254 = sadd.s32 %s252, %s253
      %s255 = smul.addr %s254, 2
      %s256 = scalar_lea.vmem %s5, %s255
      %p257 = scmp.lt.s32.totalorder %s21, 1
      %s258 = scalar_select %p257, %s21, 1
      %p259 = scmp.lt.s32.totalorder %s22, 1
      %s260 = scalar_select %p259, %s22, 1
      %s261 = smul.addr %s260, 30
      %s262 = smul.addr %s258, 60
      %s263 = sadd.s32 %s261, %s262
      %s264 = smul.addr %s263, 4
      %s265 = scalar_lea.vmem %s0, %s264
      %s266 = smul.u32 8, %s22
      %p267 = scmp.lt.s32.totalorder %s21, 1
      %s268 = scalar_select %p267, %s21, 1
      %p269 = scmp.lt.s32.totalorder %s266, 15
      %s270 = scalar_select %p269, %s266, 15
      %s271 = smul.addr %s270, 2
      %s272 = smul.addr %s268, 32
      %s273 = sadd.s32 %s271, %s272
      %s274 = smul.addr %s273, 4
      %s275 = scalar_lea.vmem %s4, %s274
      %s276 = smul.u32 8, %s22
      %p277 = scmp.lt.s32.totalorder %s21, 1
      %s278 = scalar_select %p277, %s21, 1
      %p279 = scmp.lt.s32.totalorder %s22, 1
      %s280 = scalar_select %p279, %s22, 1
      %s281 = smul.addr %s278, 2
      %s282 = sadd.s32 %s280, %s281
      %s283 = smul.addr %s282, 2
      %s284 = scalar_lea.vmem %s5, %s283
      %v286 = vld [vmem:[%s265] sm:$0xf]
      %v287 = vld [vmem:[%s265 + $0x4] sm:$0xf]
      %v288 = vld [vmem:[%s265 + $0x8] sm:$0x1]
      %v289 = vld [vmem:[%s265 + $0xc] sm:$0xf]
      %v290 = vld [vmem:[%s265 + $0x10] sm:$0xf]
      %v291 = vld [vmem:[%s265 + $0x14] sm:$0x1]
      %v292 = vld [vmem:[%s265 + $0x18] sm:$0xf]
      %v293 = vld [vmem:[%s265 + $0x1c] sm:$0xf]
      %v294 = vld [vmem:[%s265 + $0x20] sm:$0x1]
      %v295 = vld [vmem:[%s265 + $0x24] sm:$0xf]
      %v296 = vld [vmem:[%s265 + $0x28] sm:$0xf]
      %v297 = vld [vmem:[%s265 + $0x2c] sm:$0x1]
      %v298 = vld [vmem:[%s265 + $0x30] sm:$0xf]
      %v299 = vld [vmem:[%s265 + $0x34] sm:$0xf]
      %v300 = vld [vmem:[%s265 + $0x38] sm:$0x1]
      %v301 = vld [vmem:[%s265 + $0x3c] sm:$0xf]
      %v302 = vld [vmem:[%s265 + $0x40] sm:$0xf]
      %v303 = vld [vmem:[%s265 + $0x44] sm:$0x1]
      %v304 = vld [vmem:[%s265 + $0x48] sm:$0xf]
      %v305 = vld [vmem:[%s265 + $0x4c] sm:$0xf]
      %v306 = vld [vmem:[%s265 + $0x50] sm:$0x1]
      %v307 = vld [vmem:[%s265 + $0x54] sm:$0xf]
      %v308 = vld [vmem:[%s265 + $0x58] sm:$0xf]
      %v309 = vld [vmem:[%s265 + $0x5c] sm:$0x1]
      %v310 = vld [vmem:[%s265 + $0x60] sm:$0xf]
      %v311 = vld [vmem:[%s265 + $0x64] sm:$0xf]
      %v312 = vld [vmem:[%s265 + $0x68] sm:$0x1]
      %v313 = vld [vmem:[%s265 + $0x6c] sm:$0xf]
      %v314 = vld [vmem:[%s265 + $0x70] sm:$0xf]
      %v315 = vld [vmem:[%s265 + $0x74] sm:$0x1]
      %v316 = vunpack.c.l.bf16 %v286
      %v317 = vunpack.c.l.bf16 %v287
      %v318 = vunpack.c.l.bf16 %v288
      %v319 = vunpack.c.l.bf16 %v289
      %v320 = vunpack.c.l.bf16 %v290
      %v321 = vunpack.c.l.bf16 %v291
      %v322 = vunpack.c.l.bf16 %v292
      %v323 = vunpack.c.l.bf16 %v293
      %v324 = vunpack.c.l.bf16 %v294
      %v325 = vunpack.c.l.bf16 %v295
      %v326 = vunpack.c.l.bf16 %v296
      %v327 = vunpack.c.l.bf16 %v297
      %v328 = vunpack.c.l.bf16 %v298
      %v329 = vunpack.c.l.bf16 %v299
      %v330 = vunpack.c.l.bf16 %v300
      %v331 = vunpack.c.l.bf16 %v301
      %v332 = vunpack.c.l.bf16 %v302
      %v333 = vunpack.c.l.bf16 %v303
      %v334 = vunpack.c.l.bf16 %v304
      %v335 = vunpack.c.l.bf16 %v305
      %v336 = vunpack.c.l.bf16 %v306
      %v337 = vunpack.c.l.bf16 %v307
      %v338 = vunpack.c.l.bf16 %v308
      %v339 = vunpack.c.l.bf16 %v309
      %v340 = vunpack.c.l.bf16 %v310
      %v341 = vunpack.c.l.bf16 %v311
      %v342 = vunpack.c.l.bf16 %v312
      %v343 = vunpack.c.l.bf16 %v313
      %v344 = vunpack.c.l.bf16 %v314
      %v345 = vunpack.c.l.bf16 %v315
      %v346 = vld [vmem:[%s1] sm:$0x1]
      %v348 = vlaneseq
      %v349 = vshrl.u32 %v348, 7
      %v350 = vsub.s32 0, %v349
      %v351 = vrot.slane %v346, %v350
      %v353 = vmul.f32 %v316, %v351
      %v354 = vmul.f32 %v317, %v351
      %v355 = vmul.f32 %v318, %v351
      %v356 = vmul.f32 %v319, %v351
      %v357 = vmul.f32 %v320, %v351
      %v358 = vmul.f32 %v321, %v351
      %v359 = vmul.f32 %v322, %v351
      %v360 = vmul.f32 %v323, %v351
      %v361 = vmul.f32 %v324, %v351
      %v362 = vmul.f32 %v325, %v351
      %v363 = vmul.f32 %v326, %v351
      %v364 = vmul.f32 %v327, %v351
      %v365 = vmul.f32 %v328, %v351
      %v366 = vmul.f32 %v329, %v351
      %v367 = vmul.f32 %v330, %v351
      %v368 = vmul.f32 %v331, %v351
      %v369 = vmul.f32 %v332, %v351
      %v370 = vmul.f32 %v333, %v351
      %v371 = vmul.f32 %v334, %v351
      %v372 = vmul.f32 %v335, %v351
      %v373 = vmul.f32 %v336, %v351
      %v374 = vmul.f32 %v337, %v351
      %v375 = vmul.f32 %v338, %v351
      %v376 = vmul.f32 %v339, %v351
      %v377 = vmul.f32 %v340, %v351
      %v378 = vmul.f32 %v341, %v351
      %v379 = vmul.f32 %v342, %v351
      %v380 = vmul.f32 %v343, %v351
      %v381 = vmul.f32 %v344, %v351
      %v382 = vmul.f32 %v345, %v351
      %v383 = vld [vmem:[%s2] sm:$0x1]
      %v385 = vlaneseq
      %v386 = vshrl.u32 %v385, 7
      %v387 = vsub.s32 0, %v386
      %v388 = vrot.slane %v383, %v387
      %v390 = vadd.f32 %v353, %v388
      %v391 = vadd.f32 %v354, %v388
      %v392 = vadd.f32 %v355, %v388
      %v393 = vadd.f32 %v356, %v388
      %v394 = vadd.f32 %v357, %v388
      %v395 = vadd.f32 %v358, %v388
      %v396 = vadd.f32 %v359, %v388
      %v397 = vadd.f32 %v360, %v388
      %v398 = vadd.f32 %v361, %v388
      %v399 = vadd.f32 %v362, %v388
      %v400 = vadd.f32 %v363, %v388
      %v401 = vadd.f32 %v364, %v388
      %v402 = vadd.f32 %v365, %v388
      %v403 = vadd.f32 %v366, %v388
      %v404 = vadd.f32 %v367, %v388
      %v405 = vadd.f32 %v368, %v388
      %v406 = vadd.f32 %v369, %v388
      %v407 = vadd.f32 %v370, %v388
      %v408 = vadd.f32 %v371, %v388
      %v409 = vadd.f32 %v372, %v388
      %v410 = vadd.f32 %v373, %v388
      %v411 = vadd.f32 %v374, %v388
      %v412 = vadd.f32 %v375, %v388
      %v413 = vadd.f32 %v376, %v388
      %v414 = vadd.f32 %v377, %v388
      %v415 = vadd.f32 %v378, %v388
      %v416 = vadd.f32 %v379, %v388
      %v417 = vadd.f32 %v380, %v388
      %v418 = vadd.f32 %v381, %v388
      %v419 = vadd.f32 %v382, %v388
      %v420 = vmax.f32 %v390, 0.0
      %v421 = vmax.f32 %v391, 0.0
      %v422 = vmax.f32 %v392, 0.0
      %v423 = vmax.f32 %v393, 0.0
      %v424 = vmax.f32 %v394, 0.0
      %v425 = vmax.f32 %v395, 0.0
      %v426 = vmax.f32 %v396, 0.0
      %v427 = vmax.f32 %v397, 0.0
      %v428 = vmax.f32 %v398, 0.0
      %v429 = vmax.f32 %v399, 0.0
      %v430 = vmax.f32 %v400, 0.0
      %v431 = vmax.f32 %v401, 0.0
      %v432 = vmax.f32 %v402, 0.0
      %v433 = vmax.f32 %v403, 0.0
      %v434 = vmax.f32 %v404, 0.0
      %v435 = vmax.f32 %v405, 0.0
      %v436 = vmax.f32 %v406, 0.0
      %v437 = vmax.f32 %v407, 0.0
      %v438 = vmax.f32 %v408, 0.0
      %v439 = vmax.f32 %v409, 0.0
      %v440 = vmax.f32 %v410, 0.0
      %v441 = vmax.f32 %v411, 0.0
      %v442 = vmax.f32 %v412, 0.0
      %v443 = vmax.f32 %v413, 0.0
      %v444 = vmax.f32 %v414, 0.0
      %v445 = vmax.f32 %v415, 0.0
      %v446 = vmax.f32 %v416, 0.0
      %v447 = vmax.f32 %v417, 0.0
      %v448 = vmax.f32 %v418, 0.0
      %v449 = vmax.f32 %v419, 0.0
      %s450 = smul.u32 %s22, 8
      %v451 = vstv %s450
      %v452 = vadd.s32 %v451, 1
      %v453 = vadd.s32 %v451, 2
      %v454 = vadd.s32 %v451, 3
      %v455 = vadd.s32 %v451, 4
      %v456 = vadd.s32 %v451, 5
      %v457 = vadd.s32 %v451, 6
      %v458 = vadd.s32 %v451, 7
      %v459 = vadd.s32 %v451, 8
      %v460 = vadd.s32 %v451, 9
      %v461 = vlaneseq
      %v462 = vshrl.u32 %v461, 7
      %v463 = vadd.s32 %v462, 8
      %v464 = vadd.s32 %v462, 16
      %vm465 = vcmp.ge.s32.totalorder %v451, 1
      %vm466 = vcmp.ge.s32.totalorder %v452, 1
      %vm467 = vcmp.ge.s32.totalorder %v453, 1
      %vm468 = vcmp.ge.s32.totalorder %v454, 1
      %vm469 = vcmp.ge.s32.totalorder %v455, 1
      %vm470 = vcmp.ge.s32.totalorder %v456, 1
      %vm471 = vcmp.ge.s32.totalorder %v457, 1
      %vm472 = vcmp.ge.s32.totalorder %v458, 1
      %vm473 = vcmp.ge.s32.totalorder %v459, 1
      %vm474 = vcmp.ge.s32.totalorder %v460, 1
      %vm475 = vcmp.le.s32.totalorder %v451, 16
      %vm476 = vcmp.le.s32.totalorder %v452, 16
      %vm477 = vcmp.le.s32.totalorder %v453, 16
      %vm478 = vcmp.le.s32.totalorder %v454, 16
      %vm479 = vcmp.le.s32.totalorder %v455, 16
      %vm480 = vcmp.le.s32.totalorder %v456, 16
      %vm481 = vcmp.le.s32.totalorder %v457, 16
      %vm482 = vcmp.le.s32.totalorder %v458, 16
      %vm483 = vcmp.le.s32.totalorder %v459, 16
      %vm484 = vcmp.le.s32.totalorder %v460, 16
      %vm485 = vmand %vm465, %vm475
      %vm486 = vmand %vm466, %vm476
      %vm487 = vmand %vm467, %vm477
      %vm488 = vmand %vm468, %vm478
      %vm489 = vmand %vm469, %vm479
      %vm490 = vmand %vm470, %vm480
      %vm491 = vmand %vm471, %vm481
      %vm492 = vmand %vm472, %vm482
      %vm493 = vmand %vm473, %vm483
      %vm494 = vmand %vm474, %vm484
      %vm495 = vcmp.ge.s32.totalorder %v462, 1
      %vm496 = vcmp.ge.s32.totalorder %v463, 1
      %vm497 = vcmp.ge.s32.totalorder %v464, 1
      %vm498 = vmand %vm485, %vm495
      %vm499 = vmand %vm485, %vm496
      %vm500 = vmand %vm485, %vm497
      %vm501 = vmand %vm486, %vm495
      %vm502 = vmand %vm486, %vm496
      %vm503 = vmand %vm486, %vm497
      %vm504 = vmand %vm487, %vm495
      %vm505 = vmand %vm487, %vm496
      %vm506 = vmand %vm487, %vm497
      %vm507 = vmand %vm488, %vm495
      %vm508 = vmand %vm488, %vm496
      %vm509 = vmand %vm488, %vm497
      %vm510 = vmand %vm489, %vm495
      %vm511 = vmand %vm489, %vm496
      %vm512 = vmand %vm489, %vm497
      %vm513 = vmand %vm490, %vm495
      %vm514 = vmand %vm490, %vm496
      %vm515 = vmand %vm490, %vm497
      %vm516 = vmand %vm491, %vm495
      %vm517 = vmand %vm491, %vm496
      %vm518 = vmand %vm491, %vm497
      %vm519 = vmand %vm492, %vm495
      %vm520 = vmand %vm492, %vm496
      %vm521 = vmand %vm492, %vm497
      %vm522 = vmand %vm493, %vm495
      %vm523 = vmand %vm493, %vm496
      %vm524 = vmand %vm493, %vm497
      %vm525 = vmand %vm494, %vm495
      %vm526 = vmand %vm494, %vm496
      %vm527 = vmand %vm494, %vm497
      %vm528 = vcmp.le.s32.totalorder %v462, 16
      %vm529 = vcmp.le.s32.totalorder %v463, 16
      %vm530 = vcmp.le.s32.totalorder %v464, 16
      %vm531 = vmand %vm498, %vm528
      %vm532 = vmand %vm499, %vm529
      %vm533 = vmand %vm500, %vm530
      %vm534 = vmand %vm501, %vm528
      %vm535 = vmand %vm502, %vm529
      %vm536 = vmand %vm503, %vm530
      %vm537 = vmand %vm504, %vm528
      %vm538 = vmand %vm505, %vm529
      %vm539 = vmand %vm506, %vm530
      %vm540 = vmand %vm507, %vm528
      %vm541 = vmand %vm508, %vm529
      %vm542 = vmand %vm509, %vm530
      %vm543 = vmand %vm510, %vm528
      %vm544 = vmand %vm511, %vm529
      %vm545 = vmand %vm512, %vm530
      %vm546 = vmand %vm513, %vm528
      %vm547 = vmand %vm514, %vm529
      %vm548 = vmand %vm515, %vm530
      %vm549 = vmand %vm516, %vm528
      %vm550 = vmand %vm517, %vm529
      %vm551 = vmand %vm518, %vm530
      %vm552 = vmand %vm519, %vm528
      %vm553 = vmand %vm520, %vm529
      %vm554 = vmand %vm521, %vm530
      %vm555 = vmand %vm522, %vm528
      %vm556 = vmand %vm523, %vm529
      %vm557 = vmand %vm524, %vm530
      %vm558 = vmand %vm525, %vm528
      %vm559 = vmand %vm526, %vm529
      %vm560 = vmand %vm527, %vm530
      %v561 = vsel %vm531, 1, 0
      %v562 = vsel %vm532, 1, 0
      %v563 = vsel %vm533, 1, 0
      %v564 = vsel %vm534, 1, 0
      %v565 = vsel %vm535, 1, 0
      %v566 = vsel %vm536, 1, 0
      %v567 = vsel %vm537, 1, 0
      %v568 = vsel %vm538, 1, 0
      %v569 = vsel %vm539, 1, 0
      %v570 = vsel %vm540, 1, 0
      %v571 = vsel %vm541, 1, 0
      %v572 = vsel %vm542, 1, 0
      %v573 = vsel %vm543, 1, 0
      %v574 = vsel %vm544, 1, 0
      %v575 = vsel %vm545, 1, 0
      %v576 = vsel %vm546, 1, 0
      %v577 = vsel %vm547, 1, 0
      %v578 = vsel %vm548, 1, 0
      %v579 = vsel %vm549, 1, 0
      %v580 = vsel %vm550, 1, 0
      %v581 = vsel %vm551, 1, 0
      %v582 = vsel %vm552, 1, 0
      %v583 = vsel %vm553, 1, 0
      %v584 = vsel %vm554, 1, 0
      %v585 = vsel %vm555, 1, 0
      %v586 = vsel %vm556, 1, 0
      %v587 = vsel %vm557, 1, 0
      %v588 = vsel %vm558, 1, 0
      %v589 = vsel %vm559, 1, 0
      %v590 = vsel %vm560, 1, 0
      %vm591 = vcmp.eq.s32.totalorder %v561, 1
      %vm592 = vcmp.eq.s32.totalorder %v562, 1
      %vm593 = vcmp.eq.s32.totalorder %v563, 1
      %vm594 = vcmp.eq.s32.totalorder %v564, 1
      %vm595 = vcmp.eq.s32.totalorder %v565, 1
      %vm596 = vcmp.eq.s32.totalorder %v566, 1
      %vm597 = vcmp.eq.s32.totalorder %v567, 1
      %vm598 = vcmp.eq.s32.totalorder %v568, 1
      %vm599 = vcmp.eq.s32.totalorder %v569, 1
      %vm600 = vcmp.eq.s32.totalorder %v570, 1
      %vm601 = vcmp.eq.s32.totalorder %v571, 1
      %vm602 = vcmp.eq.s32.totalorder %v572, 1
      %vm603 = vcmp.eq.s32.totalorder %v573, 1
      %vm604 = vcmp.eq.s32.totalorder %v574, 1
      %vm605 = vcmp.eq.s32.totalorder %v575, 1
      %vm606 = vcmp.eq.s32.totalorder %v576, 1
      %vm607 = vcmp.eq.s32.totalorder %v577, 1
      %vm608 = vcmp.eq.s32.totalorder %v578, 1
      %vm609 = vcmp.eq.s32.totalorder %v579, 1
      %vm610 = vcmp.eq.s32.totalorder %v580, 1
      %vm611 = vcmp.eq.s32.totalorder %v581, 1
      %vm612 = vcmp.eq.s32.totalorder %v582, 1
      %vm613 = vcmp.eq.s32.totalorder %v583, 1
      %vm614 = vcmp.eq.s32.totalorder %v584, 1
      %vm615 = vcmp.eq.s32.totalorder %v585, 1
      %vm616 = vcmp.eq.s32.totalorder %v586, 1
      %vm617 = vcmp.eq.s32.totalorder %v587, 1
      %vm618 = vcmp.eq.s32.totalorder %v588, 1
      %vm619 = vcmp.eq.s32.totalorder %v589, 1
      %vm620 = vcmp.eq.s32.totalorder %v590, 1
      %v621 = vsel %vm591, %v420, 0.0
      %v622 = vsel %vm592, %v421, 0.0
      %v623 = vsel %vm593, %v422, 0.0
      %v624 = vsel %vm594, %v423, 0.0
      %v625 = vsel %vm595, %v424, 0.0
      %v626 = vsel %vm596, %v425, 0.0
      %v627 = vsel %vm597, %v426, 0.0
      %v628 = vsel %vm598, %v427, 0.0
      %v629 = vsel %vm599, %v428, 0.0
      %v630 = vsel %vm600, %v429, 0.0
      %v631 = vsel %vm601, %v430, 0.0
      %v632 = vsel %vm602, %v431, 0.0
      %v633 = vsel %vm603, %v432, 0.0
      %v634 = vsel %vm604, %v433, 0.0
      %v635 = vsel %vm605, %v434, 0.0
      %v636 = vsel %vm606, %v435, 0.0
      %v637 = vsel %vm607, %v436, 0.0
      %v638 = vsel %vm608, %v437, 0.0
      %v639 = vsel %vm609, %v438, 0.0
      %v640 = vsel %vm610, %v439, 0.0
      %v641 = vsel %vm611, %v440, 0.0
      %v642 = vsel %vm612, %v441, 0.0
      %v643 = vsel %vm613, %v442, 0.0
      %v644 = vsel %vm614, %v443, 0.0
      %v645 = vsel %vm615, %v444, 0.0
      %v646 = vsel %vm616, %v445, 0.0
      %v647 = vsel %vm617, %v446, 0.0
      %v648 = vsel %vm618, %v447, 0.0
      %v649 = vsel %vm619, %v448, 0.0
      %v650 = vsel %vm620, %v449, 0.0
      %v651 = vpack.c.bf16 %v622, %v621
      %v652 = vpack.c.bf16 %v623, %v623
      %v653 = vpack.c.bf16 %v625, %v624
      %v654 = vpack.c.bf16 %v626, %v626
      %v655 = vpack.c.bf16 %v628, %v627
      %v656 = vpack.c.bf16 %v629, %v629
      %v657 = vpack.c.bf16 %v631, %v630
      %v658 = vpack.c.bf16 %v632, %v632
      %v659 = vpack.c.bf16 %v634, %v633
      %v660 = vpack.c.bf16 %v635, %v635
      %v661 = vpack.c.bf16 %v637, %v636
      %v662 = vpack.c.bf16 %v638, %v638
      %v663 = vpack.c.bf16 %v640, %v639
      %v664 = vpack.c.bf16 %v641, %v641
      %v665 = vpack.c.bf16 %v643, %v642
      %v666 = vpack.c.bf16 %v644, %v644
      %v667 = vpack.c.bf16 %v646, %v645
      %v668 = vpack.c.bf16 %v647, %v647
      %v669 = vpack.c.bf16 %v649, %v648
      %v670 = vpack.c.bf16 %v650, %v650
      %v671 = vld [vmem:[%s3] sm:$0xf]
      %v672 = vld [vmem:[%s3 + $0x4] sm:$0xf]
      %v673 = vld [vmem:[%s3 + $0x8] sm:$0xf]
      %v674 = vld [vmem:[%s3 + $0xc] sm:$0xf]
      %v675 = vld [vmem:[%s3 + $0x10] sm:$0xf]
      %v676 = vld [vmem:[%s3 + $0x14] sm:$0xf]
      %v677 = vld [vmem:[%s3 + $0x18] sm:$0xf]
      %v678 = vld [vmem:[%s3 + $0x1c] sm:$0xf]
      %v679 = vld [vmem:[%s3 + $0x20] sm:$0xf]
      %v680 = vld [vmem:[%s3 + $0x24] sm:$0xf]
      %v681 = vld [vmem:[%s3 + $0x28] sm:$0xf]
      %v682 = vld [vmem:[%s3 + $0x2c] sm:$0xf]
      %v683 = vld [vmem:[%s3 + $0x30] sm:$0xf]
      %v684 = vld [vmem:[%s3 + $0x34] sm:$0xf]
      %v685 = vld [vmem:[%s3 + $0x38] sm:$0xf]
      %v686 = vld [vmem:[%s3 + $0x3c] sm:$0xf]
      %vm687 = vsmask.f32 7424
      %v689 = vshrl.u32 %v651, 16
      %v691 = vshll.u32 %v651, 16
      %v693 = vrot.slane %v691, 1
      %v694 = vor.u32 %v689, %v693
      %v696 = vshll.u32 %v652, 16
      %v698 = vrot.slane %v696, 1
      %v699 = vsel %vm687, %v694, %v698
      %v701 = vshrl.u32 %v653, 16
      %v703 = vshll.u32 %v653, 16
      %v705 = vrot.slane %v703, 1
      %v706 = vor.u32 %v701, %v705
      %v708 = vshll.u32 %v654, 16
      %v710 = vrot.slane %v708, 1
      %v711 = vsel %vm687, %v706, %v710
      %v713 = vshrl.u32 %v655, 16
      %v715 = vshll.u32 %v655, 16
      %v717 = vrot.slane %v715, 1
      %v718 = vor.u32 %v713, %v717
      %v720 = vshll.u32 %v656, 16
      %v722 = vrot.slane %v720, 1
      %v723 = vsel %vm687, %v718, %v722
      %v725 = vshrl.u32 %v657, 16
      %v727 = vshll.u32 %v657, 16
      %v729 = vrot.slane %v727, 1
      %v730 = vor.u32 %v725, %v729
      %v732 = vshll.u32 %v658, 16
      %v734 = vrot.slane %v732, 1
      %v735 = vsel %vm687, %v730, %v734
      %v737 = vshrl.u32 %v659, 16
      %v739 = vshll.u32 %v659, 16
      %v741 = vrot.slane %v739, 1
      %v742 = vor.u32 %v737, %v741
      %v744 = vshll.u32 %v660, 16
      %v746 = vrot.slane %v744, 1
      %v747 = vsel %vm687, %v742, %v746
      %v749 = vshrl.u32 %v661, 16
      %v751 = vshll.u32 %v661, 16
      %v753 = vrot.slane %v751, 1
      %v754 = vor.u32 %v749, %v753
      %v756 = vshll.u32 %v662, 16
      %v758 = vrot.slane %v756, 1
      %v759 = vsel %vm687, %v754, %v758
      %v761 = vshrl.u32 %v663, 16
      %v763 = vshll.u32 %v663, 16
      %v765 = vrot.slane %v763, 1
      %v766 = vor.u32 %v761, %v765
      %v768 = vshll.u32 %v664, 16
      %v770 = vrot.slane %v768, 1
      %v771 = vsel %vm687, %v766, %v770
      %v773 = vshrl.u32 %v665, 16
      %v775 = vshll.u32 %v665, 16
      %v777 = vrot.slane %v775, 1
      %v778 = vor.u32 %v773, %v777
      %v780 = vshll.u32 %v666, 16
      %v782 = vrot.slane %v780, 1
      %v783 = vsel %vm687, %v778, %v782
      %s792 = scalar_lea.vmem %s3, 64
      %v793 = vld [vmem:[%s792] sm:$0xf]
      %v794 = vld [vmem:[%s792 + $0x4] sm:$0xf]
      %v795 = vld [vmem:[%s792 + $0x8] sm:$0xf]
      %v796 = vld [vmem:[%s792 + $0xc] sm:$0xf]
      %v797 = vld [vmem:[%s792 + $0x10] sm:$0xf]
      %v798 = vld [vmem:[%s792 + $0x14] sm:$0xf]
      %v799 = vld [vmem:[%s792 + $0x18] sm:$0xf]
      %v800 = vld [vmem:[%s792 + $0x1c] sm:$0xf]
      %v801 = vld [vmem:[%s792 + $0x20] sm:$0xf]
      %v802 = vld [vmem:[%s792 + $0x24] sm:$0xf]
      %v803 = vld [vmem:[%s792 + $0x28] sm:$0xf]
      %v804 = vld [vmem:[%s792 + $0x2c] sm:$0xf]
      %v805 = vld [vmem:[%s792 + $0x30] sm:$0xf]
      %v806 = vld [vmem:[%s792 + $0x34] sm:$0xf]
      %v807 = vld [vmem:[%s792 + $0x38] sm:$0xf]
      %v808 = vld [vmem:[%s792 + $0x3c] sm:$0xf]
      %v825 = vunpack.c.l.b16 %v793
      %v826 = vunpack.c.l.b16 %v794
      %v827 = vunpack.c.l.b16 %v795
      %v828 = vunpack.c.l.b16 %v796
      %v829 = vunpack.c.l.b16 %v797
      %v830 = vunpack.c.l.b16 %v798
      %v831 = vunpack.c.l.b16 %v799
      %v832 = vunpack.c.l.b16 %v800
      %v833 = vunpack.c.l.b16 %v801
      %v834 = vunpack.c.l.b16 %v802
      %v835 = vunpack.c.l.b16 %v803
      %v836 = vunpack.c.l.b16 %v804
      %v837 = vunpack.c.l.b16 %v805
      %v838 = vunpack.c.l.b16 %v806
      %v839 = vunpack.c.l.b16 %v807
      %v840 = vunpack.c.l.b16 %v808
      %v841 = vpack.c.b16 %v826, %v825
      %v842 = vpack.c.b16 %v828, %v827
      %v843 = vpack.c.b16 %v830, %v829
      %v844 = vpack.c.b16 %v832, %v831
      %v845 = vpack.c.b16 %v834, %v833
      %v846 = vpack.c.b16 %v836, %v835
      %v847 = vpack.c.b16 %v838, %v837
      %v848 = vpack.c.b16 %v840, %v839
      %857 = vmatprep.subr.bf16.mxu0 0
      %858 = vmatpush1.bf16.msra.mxu0 %v841
      %859 = vmatprep.subr.bf16.mxu0 0
      %860 = vmatpush1.bf16.msra.mxu0 %v842
      %861 = vmatprep.subr.bf16.mxu0 0
      %862 = vmatpush1.bf16.msra.mxu0 %v843
      %863 = vmatprep.subr.bf16.mxu0 0
      %864 = vmatpush1.bf16.msra.mxu0 %v844
      %865 = vmatprep.subr.bf16.mxu0 0
      %866 = vmatpush1.bf16.msra.mxu0 %v845
      %867 = vmatprep.subr.bf16.mxu0 0
      %868 = vmatpush1.bf16.msra.mxu0 %v846
      %869 = vmatprep.subr.bf16.mxu0 0
      %870 = vmatpush1.bf16.msra.mxu0 %v847
      %871 = vmatprep.subr.bf16.mxu0 0
      %872 = vmatpush1.bf16.msra.mxu0 %v848
      %873 = vmatprep.subr.bf16.mxu0 0
      %874 = vmatpush1.bf16.msra.mxu0 0
      %875 = vmatprep.subr.bf16.mxu0 0
      %876 = vmatpush1.bf16.msra.mxu0 0
      %877 = vmatprep.subr.bf16.mxu0 0
      %878 = vmatpush1.bf16.msra.mxu0 0
      %879 = vmatprep.subr.bf16.mxu0 0
      %880 = vmatpush1.bf16.msra.mxu0 0
      %881 = vmatprep.subr.bf16.mxu0 0
      %882 = vmatpush1.bf16.msra.mxu0 0
      %883 = vmatprep.subr.bf16.mxu0 0
      %884 = vmatpush1.bf16.msra.mxu0 0
      %885 = vmatprep.subr.bf16.mxu0 0
      %886 = vmatpush1.bf16.msra.mxu0 0
      %887 = vmatprep.subr.bf16.mxu0 0
      %888 = vmatpush1.bf16.msra.mxu0 0
      %889 = vmatprep.mubr.bf16.mxu0 0
      %890 = vmatmul.mubr.bf16.gmra.mrb[0].mxu0 %v699
      %v891 = vpop.f32.mrb[0].mxu0
      %v892 = vadd.f32 0.0, %v891
      %v893 = vpop.f32.mrb[0].mxu0
      %v894 = vpop.f32.mrb[0].mxu0
      %v895 = vadd.f32 0.0, %v894
      %v896 = vpop.f32.mrb[0].mxu0
      %897 = vmatprep.mubr.bf16.mxu0 0
      %898 = vmatmul.mubr.bf16.gmra.mrb[0].mxu0 %v711
      %v899 = vpop.f32.mrb[0].mxu0
      %v900 = vadd.f32 0.0, %v899
      %v901 = vpop.f32.mrb[0].mxu0
      %v902 = vpop.f32.mrb[0].mxu0
      %v903 = vadd.f32 0.0, %v902
      %v904 = vpop.f32.mrb[0].mxu0
      %905 = vmatprep.mubr.bf16.mxu0 0
      %906 = vmatmul.mubr.bf16.gmra.mrb[0].mxu0 %v723
      %v907 = vpop.f32.mrb[0].mxu0
      %v908 = vadd.f32 0.0, %v907
      %v909 = vpop.f32.mrb[0].mxu0
      %v910 = vpop.f32.mrb[0].mxu0
      %v911 = vadd.f32 0.0, %v910
      %v912 = vpop.f32.mrb[0].mxu0
      %913 = vmatprep.mubr.bf16.mxu0 0
      %914 = vmatmul.mubr.bf16.gmra.mrb[0].mxu0 %v735
      %v915 = vpop.f32.mrb[0].mxu0
      %v916 = vadd.f32 0.0, %v915
      %v917 = vpop.f32.mrb[0].mxu0
      %v918 = vpop.f32.mrb[0].mxu0
      %v919 = vadd.f32 0.0, %v918
      %v920 = vpop.f32.mrb[0].mxu0
      %921 = vmatprep.mubr.bf16.mxu0 0
      %922 = vmatmul.mubr.bf16.gmra.mrb[0].mxu0 %v747
      %v923 = vpop.f32.mrb[0].mxu0
      %v924 = vadd.f32 0.0, %v923
      %v925 = vpop.f32.mrb[0].mxu0
      %v926 = vpop.f32.mrb[0].mxu0
      %v927 = vadd.f32 0.0, %v926
      %v928 = vpop.f32.mrb[0].mxu0
      %929 = vmatprep.mubr.bf16.mxu0 0
      %930 = vmatmul.mubr.bf16.gmra.mrb[0].mxu0 %v759
      %v931 = vpop.f32.mrb[0].mxu0
      %v932 = vadd.f32 0.0, %v931
      %v933 = vpop.f32.mrb[0].mxu0
      %v934 = vpop.f32.mrb[0].mxu0
      %v935 = vadd.f32 0.0, %v934
      %v936 = vpop.f32.mrb[0].mxu0
      %937 = vmatprep.mubr.bf16.mxu0 0
      %938 = vmatmul.mubr.bf16.gmra.mrb[0].mxu0 %v771
      %v939 = vpop.f32.mrb[0].mxu0
      %v940 = vadd.f32 0.0, %v939
      %v941 = vpop.f32.mrb[0].mxu0
      %v942 = vpop.f32.mrb[0].mxu0
      %v943 = vadd.f32 0.0, %v942
      %v944 = vpop.f32.mrb[0].mxu0
      %945 = vmatprep.mubr.bf16.mxu0 0
      %946 = vmatmul.mubr.bf16.gmra.mrb[0].mxu0 %v783
      %v947 = vpop.f32.mrb[0].mxu0
      %v948 = vadd.f32 0.0, %v947
      %v949 = vpop.f32.mrb[0].mxu0
      %v950 = vpop.f32.mrb[0].mxu0
      %v951 = vadd.f32 0.0, %v950
      %v952 = vpop.f32.mrb[0].mxu0
      %953 = vdwg.mxu0
      %v970 = vunpack.c.l.b16 %v671
      %v971 = vunpack.c.l.b16 %v672
      %v972 = vunpack.c.l.b16 %v673
      %v973 = vunpack.c.l.b16 %v674
      %v974 = vunpack.c.l.b16 %v675
      %v975 = vunpack.c.l.b16 %v676
      %v976 = vunpack.c.l.b16 %v677
      %v977 = vunpack.c.l.b16 %v678
      %v978 = vunpack.c.l.b16 %v679
      %v979 = vunpack.c.l.b16 %v680
      %v980 = vunpack.c.l.b16 %v681
      %v981 = vunpack.c.l.b16 %v682
      %v982 = vunpack.c.l.b16 %v683
      %v983 = vunpack.c.l.b16 %v684
      %v984 = vunpack.c.l.b16 %v685
      %v985 = vunpack.c.l.b16 %v686
      %v986 = vpack.c.b16 %v971, %v970
      %v987 = vpack.c.b16 %v973, %v972
      %v988 = vpack.c.b16 %v975, %v974
      %v989 = vpack.c.b16 %v977, %v976
      %v990 = vpack.c.b16 %v979, %v978
      %v991 = vpack.c.b16 %v981, %v980
      %v992 = vpack.c.b16 %v983, %v982
      %v993 = vpack.c.b16 %v985, %v984
      %1002 = vmatprep.subr.bf16.mxu0 0
      %1003 = vmatpush1.bf16.msra.mxu0 %v986
      %1004 = vmatprep.subr.bf16.mxu0 0
      %1005 = vmatpush1.bf16.msra.mxu0 %v987
      %1006 = vmatprep.subr.bf16.mxu0 0
      %1007 = vmatpush1.bf16.msra.mxu0 %v988
      %1008 = vmatprep.subr.bf16.mxu0 0
      %1009 = vmatpush1.bf16.msra.mxu0 %v989
      %1010 = vmatprep.subr.bf16.mxu0 0
      %1011 = vmatpush1.bf16.msra.mxu0 %v990
      %1012 = vmatprep.subr.bf16.mxu0 0
      %1013 = vmatpush1.bf16.msra.mxu0 %v991
      %1014 = vmatprep.subr.bf16.mxu0 0
      %1015 = vmatpush1.bf16.msra.mxu0 %v992
      %1016 = vmatprep.subr.bf16.mxu0 0
      %1017 = vmatpush1.bf16.msra.mxu0 %v993
      %1018 = vmatprep.subr.bf16.mxu0 0
      %1019 = vmatpush1.bf16.msra.mxu0 0
      %1020 = vmatprep.subr.bf16.mxu0 0
      %1021 = vmatpush1.bf16.msra.mxu0 0
      %1022 = vmatprep.subr.bf16.mxu0 0
      %1023 = vmatpush1.bf16.msra.mxu0 0
      %1024 = vmatprep.subr.bf16.mxu0 0
      %1025 = vmatpush1.bf16.msra.mxu0 0
      %1026 = vmatprep.subr.bf16.mxu0 0
      %1027 = vmatpush1.bf16.msra.mxu0 0
      %1028 = vmatprep.subr.bf16.mxu0 0
      %1029 = vmatpush1.bf16.msra.mxu0 0
      %1030 = vmatprep.subr.bf16.mxu0 0
      %1031 = vmatpush1.bf16.msra.mxu0 0
      %1032 = vmatprep.subr.bf16.mxu0 0
      %1033 = vmatpush1.bf16.msra.mxu0 0
      %1034 = vmatprep.mubr.bf16.mxu0 0
      %1035 = vmatmul.mubr.bf16.gmra.mrb[0].mxu0 %v651
      %v1036 = vpop.f32.mrb[0].mxu0
      %v1037 = vadd.f32 %v892, %v1036
      %v1038 = vpop.f32.mrb[0].mxu0
      %v1039 = vpop.f32.mrb[0].mxu0
      %v1040 = vadd.f32 %v895, %v1039
      %v1041 = vpop.f32.mrb[0].mxu0
      %1042 = vmatprep.mubr.bf16.mxu0 0
      %1043 = vmatmul.mubr.bf16.gmra.mrb[0].mxu0 %v653
      %v1044 = vpop.f32.mrb[0].mxu0
      %v1045 = vadd.f32 %v900, %v1044
      %v1046 = vpop.f32.mrb[0].mxu0
      %v1047 = vpop.f32.mrb[0].mxu0
      %v1048 = vadd.f32 %v903, %v1047
      %v1049 = vpop.f32.mrb[0].mxu0
      %1050 = vmatprep.mubr.bf16.mxu0 0
      %1051 = vmatmul.mubr.bf16.gmra.mrb[0].mxu0 %v655
      %v1052 = vpop.f32.mrb[0].mxu0
      %v1053 = vadd.f32 %v908, %v1052
      %v1054 = vpop.f32.mrb[0].mxu0
      %v1055 = vpop.f32.mrb[0].mxu0
      %v1056 = vadd.f32 %v911, %v1055
      %v1057 = vpop.f32.mrb[0].mxu0
      %1058 = vmatprep.mubr.bf16.mxu0 0
      %1059 = vmatmul.mubr.bf16.gmra.mrb[0].mxu0 %v657
      %v1060 = vpop.f32.mrb[0].mxu0
      %v1061 = vadd.f32 %v916, %v1060
      %v1062 = vpop.f32.mrb[0].mxu0
      %v1063 = vpop.f32.mrb[0].mxu0
      %v1064 = vadd.f32 %v919, %v1063
      %v1065 = vpop.f32.mrb[0].mxu0
      %1066 = vmatprep.mubr.bf16.mxu0 0
      %1067 = vmatmul.mubr.bf16.gmra.mrb[0].mxu0 %v659
      %v1068 = vpop.f32.mrb[0].mxu0
      %v1069 = vadd.f32 %v924, %v1068
      %v1070 = vpop.f32.mrb[0].mxu0
      %v1071 = vpop.f32.mrb[0].mxu0
      %v1072 = vadd.f32 %v927, %v1071
      %v1073 = vpop.f32.mrb[0].mxu0
      %1074 = vmatprep.mubr.bf16.mxu0 0
      %1075 = vmatmul.mubr.bf16.gmra.mrb[0].mxu0 %v661
      %v1076 = vpop.f32.mrb[0].mxu0
      %v1077 = vadd.f32 %v932, %v1076
      %v1078 = vpop.f32.mrb[0].mxu0
      %v1079 = vpop.f32.mrb[0].mxu0
      %v1080 = vadd.f32 %v935, %v1079
      %v1081 = vpop.f32.mrb[0].mxu0
      %1082 = vmatprep.mubr.bf16.mxu0 0
      %1083 = vmatmul.mubr.bf16.gmra.mrb[0].mxu0 %v663
      %v1084 = vpop.f32.mrb[0].mxu0
      %v1085 = vadd.f32 %v940, %v1084
      %v1086 = vpop.f32.mrb[0].mxu0
      %v1087 = vpop.f32.mrb[0].mxu0
      %v1088 = vadd.f32 %v943, %v1087
      %v1089 = vpop.f32.mrb[0].mxu0
      %1090 = vmatprep.mubr.bf16.mxu0 0
      %1091 = vmatmul.mubr.bf16.gmra.mrb[0].mxu0 %v665
      %v1092 = vpop.f32.mrb[0].mxu0
      %v1093 = vadd.f32 %v948, %v1092
      %v1094 = vpop.f32.mrb[0].mxu0
      %v1095 = vpop.f32.mrb[0].mxu0
      %v1096 = vadd.f32 %v951, %v1095
      %v1097 = vpop.f32.mrb[0].mxu0
      %1098 = vdwg.mxu0
      %vm1115 = vcmask 1046528
      %v1116 = vrot.slane %v651, 1
      %v1117 = vrot.slane %v652, 1
      %v1118 = vsel %vm1115, %v1116, %v1117
      %v1119 = vrot.slane %v653, 1
      %v1120 = vrot.slane %v654, 1
      %v1121 = vsel %vm1115, %v1119, %v1120
      %v1122 = vrot.slane %v655, 1
      %v1123 = vrot.slane %v656, 1
      %v1124 = vsel %vm1115, %v1122, %v1123
      %v1125 = vrot.slane %v657, 1
      %v1126 = vrot.slane %v658, 1
      %v1127 = vsel %vm1115, %v1125, %v1126
      %v1128 = vrot.slane %v659, 1
      %v1129 = vrot.slane %v660, 1
      %v1130 = vsel %vm1115, %v1128, %v1129
      %v1131 = vrot.slane %v661, 1
      %v1132 = vrot.slane %v662, 1
      %v1133 = vsel %vm1115, %v1131, %v1132
      %v1134 = vrot.slane %v663, 1
      %v1135 = vrot.slane %v664, 1
      %v1136 = vsel %vm1115, %v1134, %v1135
      %v1137 = vrot.slane %v665, 1
      %v1138 = vrot.slane %v666, 1
      %v1139 = vsel %vm1115, %v1137, %v1138
      %s1148 = scalar_lea.vmem %s3, 128
      %v1149 = vld [vmem:[%s1148] sm:$0xf]
      %v1150 = vld [vmem:[%s1148 + $0x4] sm:$0xf]
      %v1151 = vld [vmem:[%s1148 + $0x8] sm:$0xf]
      %v1152 = vld [vmem:[%s1148 + $0xc] sm:$0xf]
      %v1153 = vld [vmem:[%s1148 + $0x10] sm:$0xf]
      %v1154 = vld [vmem:[%s1148 + $0x14] sm:$0xf]
      %v1155 = vld [vmem:[%s1148 + $0x18] sm:$0xf]
      %v1156 = vld [vmem:[%s1148 + $0x1c] sm:$0xf]
      %v1157 = vld [vmem:[%s1148 + $0x20] sm:$0xf]
      %v1158 = vld [vmem:[%s1148 + $0x24] sm:$0xf]
      %v1159 = vld [vmem:[%s1148 + $0x28] sm:$0xf]
      %v1160 = vld [vmem:[%s1148 + $0x2c] sm:$0xf]
      %v1161 = vld [vmem:[%s1148 + $0x30] sm:$0xf]
      %v1162 = vld [vmem:[%s1148 + $0x34] sm:$0xf]
      %v1163 = vld [vmem:[%s1148 + $0x38] sm:$0xf]
      %v1164 = vld [vmem:[%s1148 + $0x3c] sm:$0xf]
      %v1181 = vunpack.c.l.b16 %v1149
      %v1182 = vunpack.c.l.b16 %v1150
      %v1183 = vunpack.c.l.b16 %v1151
      %v1184 = vunpack.c.l.b16 %v1152
      %v1185 = vunpack.c.l.b16 %v1153
      %v1186 = vunpack.c.l.b16 %v1154
      %v1187 = vunpack.c.l.b16 %v1155
      %v1188 = vunpack.c.l.b16 %v1156
      %v1189 = vunpack.c.l.b16 %v1157
      %v1190 = vunpack.c.l.b16 %v1158
      %v1191 = vunpack.c.l.b16 %v1159
      %v1192 = vunpack.c.l.b16 %v1160
      %v1193 = vunpack.c.l.b16 %v1161
      %v1194 = vunpack.c.l.b16 %v1162
      %v1195 = vunpack.c.l.b16 %v1163
      %v1196 = vunpack.c.l.b16 %v1164
      %v1197 = vpack.c.b16 %v1182, %v1181
      %v1198 = vpack.c.b16 %v1184, %v1183
      %v1199 = vpack.c.b16 %v1186, %v1185
      %v1200 = vpack.c.b16 %v1188, %v1187
      %v1201 = vpack.c.b16 %v1190, %v1189
      %v1202 = vpack.c.b16 %v1192, %v1191
      %v1203 = vpack.c.b16 %v1194, %v1193
      %v1204 = vpack.c.b16 %v1196, %v1195
      %1213 = vmatprep.subr.bf16.mxu0 0
      %1214 = vmatpush1.bf16.msra.mxu0 %v1197
      %1215 = vmatprep.subr.bf16.mxu0 0
      %1216 = vmatpush1.bf16.msra.mxu0 %v1198
      %1217 = vmatprep.subr.bf16.mxu0 0
      %1218 = vmatpush1.bf16.msra.mxu0 %v1199
      %1219 = vmatprep.subr.bf16.mxu0 0
      %1220 = vmatpush1.bf16.msra.mxu0 %v1200
      %1221 = vmatprep.subr.bf16.mxu0 0
      %1222 = vmatpush1.bf16.msra.mxu0 %v1201
      %1223 = vmatprep.subr.bf16.mxu0 0
      %1224 = vmatpush1.bf16.msra.mxu0 %v1202
      %1225 = vmatprep.subr.bf16.mxu0 0
      %1226 = vmatpush1.bf16.msra.mxu0 %v1203
      %1227 = vmatprep.subr.bf16.mxu0 0
      %1228 = vmatpush1.bf16.msra.mxu0 %v1204
      %1229 = vmatprep.subr.bf16.mxu0 0
      %1230 = vmatpush1.bf16.msra.mxu0 0
      %1231 = vmatprep.subr.bf16.mxu0 0
      %1232 = vmatpush1.bf16.msra.mxu0 0
      %1233 = vmatprep.subr.bf16.mxu0 0
      %1234 = vmatpush1.bf16.msra.mxu0 0
      %1235 = vmatprep.subr.bf16.mxu0 0
      %1236 = vmatpush1.bf16.msra.mxu0 0
      %1237 = vmatprep.subr.bf16.mxu0 0
      %1238 = vmatpush1.bf16.msra.mxu0 0
      %1239 = vmatprep.subr.bf16.mxu0 0
      %1240 = vmatpush1.bf16.msra.mxu0 0
      %1241 = vmatprep.subr.bf16.mxu0 0
      %1242 = vmatpush1.bf16.msra.mxu0 0
      %1243 = vmatprep.subr.bf16.mxu0 0
      %1244 = vmatpush1.bf16.msra.mxu0 0
      %1245 = vmatprep.mubr.bf16.mxu0 0
      %1246 = vmatmul.mubr.bf16.gmra.mrb[0].mxu0 %v1118
      %v1247 = vpop.f32.mrb[0].mxu0
      %v1248 = vadd.f32 0.0, %v1247
      %v1249 = vpop.f32.mrb[0].mxu0
      %v1250 = vpop.f32.mrb[0].mxu0
      %v1251 = vadd.f32 0.0, %v1250
      %v1252 = vpop.f32.mrb[0].mxu0
      %1253 = vmatprep.mubr.bf16.mxu0 0
      %1254 = vmatmul.mubr.bf16.gmra.mrb[0].mxu0 %v1121
      %v1255 = vpop.f32.mrb[0].mxu0
      %v1256 = vadd.f32 0.0, %v1255
      %v1257 = vpop.f32.mrb[0].mxu0
      %v1258 = vpop.f32.mrb[0].mxu0
      %v1259 = vadd.f32 0.0, %v1258
      %v1260 = vpop.f32.mrb[0].mxu0
      %1261 = vmatprep.mubr.bf16.mxu0 0
      %1262 = vmatmul.mubr.bf16.gmra.mrb[0].mxu0 %v1124
      %v1263 = vpop.f32.mrb[0].mxu0
      %v1264 = vadd.f32 0.0, %v1263
      %v1265 = vpop.f32.mrb[0].mxu0
      %v1266 = vpop.f32.mrb[0].mxu0
      %v1267 = vadd.f32 0.0, %v1266
      %v1268 = vpop.f32.mrb[0].mxu0
      %1269 = vmatprep.mubr.bf16.mxu0 0
      %1270 = vmatmul.mubr.bf16.gmra.mrb[0].mxu0 %v1127
      %v1271 = vpop.f32.mrb[0].mxu0
      %v1272 = vadd.f32 0.0, %v1271
      %v1273 = vpop.f32.mrb[0].mxu0
      %v1274 = vpop.f32.mrb[0].mxu0
      %v1275 = vadd.f32 0.0, %v1274
      %v1276 = vpop.f32.mrb[0].mxu0
      %1277 = vmatprep.mubr.bf16.mxu0 0
      %1278 = vmatmul.mubr.bf16.gmra.mrb[0].mxu0 %v1130
      %v1279 = vpop.f32.mrb[0].mxu0
      %v1280 = vadd.f32 0.0, %v1279
      %v1281 = vpop.f32.mrb[0].mxu0
      %v1282 = vpop.f32.mrb[0].mxu0
      %v1283 = vadd.f32 0.0, %v1282
      %v1284 = vpop.f32.mrb[0].mxu0
      %1285 = vmatprep.mubr.bf16.mxu0 0
      %1286 = vmatmul.mubr.bf16.gmra.mrb[0].mxu0 %v1133
      %v1287 = vpop.f32.mrb[0].mxu0
      %v1288 = vadd.f32 0.0, %v1287
      %v1289 = vpop.f32.mrb[0].mxu0
      %v1290 = vpop.f32.mrb[0].mxu0
      %v1291 = vadd.f32 0.0, %v1290
      %v1292 = vpop.f32.mrb[0].mxu0
      %1293 = vmatprep.mubr.bf16.mxu0 0
      %1294 = vmatmul.mubr.bf16.gmra.mrb[0].mxu0 %v1136
      %v1295 = vpop.f32.mrb[0].mxu0
      %v1296 = vadd.f32 0.0, %v1295
      %v1297 = vpop.f32.mrb[0].mxu0
      %v1298 = vpop.f32.mrb[0].mxu0
      %v1299 = vadd.f32 0.0, %v1298
      %v1300 = vpop.f32.mrb[0].mxu0
      %1301 = vmatprep.mubr.bf16.mxu0 0
      %1302 = vmatmul.mubr.bf16.gmra.mrb[0].mxu0 %v1139
      %v1303 = vpop.f32.mrb[0].mxu0
      %v1304 = vadd.f32 0.0, %v1303
      %v1305 = vpop.f32.mrb[0].mxu0
      %v1306 = vpop.f32.mrb[0].mxu0
      %v1307 = vadd.f32 0.0, %v1306
      %v1308 = vpop.f32.mrb[0].mxu0
      %1309 = vdwg.mxu0
      %v1310 = vadd.f32 %v1037, %v1248
      %v1311 = vadd.f32 %v1040, %v1251
      %v1312 = vadd.f32 %v1045, %v1256
      %v1313 = vadd.f32 %v1048, %v1259
      %v1314 = vadd.f32 %v1053, %v1264
      %v1315 = vadd.f32 %v1056, %v1267
      %v1316 = vadd.f32 %v1061, %v1272
      %v1317 = vadd.f32 %v1064, %v1275
      %v1318 = vadd.f32 %v1069, %v1280
      %v1319 = vadd.f32 %v1072, %v1283
      %v1320 = vadd.f32 %v1077, %v1288
      %v1321 = vadd.f32 %v1080, %v1291
      %v1322 = vadd.f32 %v1085, %v1296
      %v1323 = vadd.f32 %v1088, %v1299
      %v1324 = vadd.f32 %v1093, %v1304
      %v1325 = vadd.f32 %v1096, %v1307
      %s1326 = scalar_lea.vmem %s3, 192
      %v1327 = vld [vmem:[%s1326] sm:$0xf]
      %v1328 = vld [vmem:[%s1326 + $0x4] sm:$0xf]
      %v1329 = vld [vmem:[%s1326 + $0x8] sm:$0xf]
      %v1330 = vld [vmem:[%s1326 + $0xc] sm:$0xf]
      %v1331 = vld [vmem:[%s1326 + $0x10] sm:$0xf]
      %v1332 = vld [vmem:[%s1326 + $0x14] sm:$0xf]
      %v1333 = vld [vmem:[%s1326 + $0x18] sm:$0xf]
      %v1334 = vld [vmem:[%s1326 + $0x1c] sm:$0xf]
      %v1335 = vld [vmem:[%s1326 + $0x20] sm:$0xf]
      %v1336 = vld [vmem:[%s1326 + $0x24] sm:$0xf]
      %v1337 = vld [vmem:[%s1326 + $0x28] sm:$0xf]
      %v1338 = vld [vmem:[%s1326 + $0x2c] sm:$0xf]
      %v1339 = vld [vmem:[%s1326 + $0x30] sm:$0xf]
      %v1340 = vld [vmem:[%s1326 + $0x34] sm:$0xf]
      %v1341 = vld [vmem:[%s1326 + $0x38] sm:$0xf]
      %v1342 = vld [vmem:[%s1326 + $0x3c] sm:$0xf]
      %v1359 = vunpack.c.l.b16 %v1327
      %v1360 = vunpack.c.l.b16 %v1328
      %v1361 = vunpack.c.l.b16 %v1329
      %v1362 = vunpack.c.l.b16 %v1330
      %v1363 = vunpack.c.l.b16 %v1331
      %v1364 = vunpack.c.l.b16 %v1332
      %v1365 = vunpack.c.l.b16 %v1333
      %v1366 = vunpack.c.l.b16 %v1334
      %v1367 = vunpack.c.l.b16 %v1335
      %v1368 = vunpack.c.l.b16 %v1336
      %v1369 = vunpack.c.l.b16 %v1337
      %v1370 = vunpack.c.l.b16 %v1338
      %v1371 = vunpack.c.l.b16 %v1339
      %v1372 = vunpack.c.l.b16 %v1340
      %v1373 = vunpack.c.l.b16 %v1341
      %v1374 = vunpack.c.l.b16 %v1342
      %v1375 = vpack.c.b16 %v1360, %v1359
      %v1376 = vpack.c.b16 %v1362, %v1361
      %v1377 = vpack.c.b16 %v1364, %v1363
      %v1378 = vpack.c.b16 %v1366, %v1365
      %v1379 = vpack.c.b16 %v1368, %v1367
      %v1380 = vpack.c.b16 %v1370, %v1369
      %v1381 = vpack.c.b16 %v1372, %v1371
      %v1382 = vpack.c.b16 %v1374, %v1373
      %1391 = vmatprep.subr.bf16.mxu0 0
      %1392 = vmatpush1.bf16.msra.mxu0 %v1375
      %1393 = vmatprep.subr.bf16.mxu0 0
      %1394 = vmatpush1.bf16.msra.mxu0 %v1376
      %1395 = vmatprep.subr.bf16.mxu0 0
      %1396 = vmatpush1.bf16.msra.mxu0 %v1377
      %1397 = vmatprep.subr.bf16.mxu0 0
      %1398 = vmatpush1.bf16.msra.mxu0 %v1378
      %1399 = vmatprep.subr.bf16.mxu0 0
      %1400 = vmatpush1.bf16.msra.mxu0 %v1379
      %1401 = vmatprep.subr.bf16.mxu0 0
      %1402 = vmatpush1.bf16.msra.mxu0 %v1380
      %1403 = vmatprep.subr.bf16.mxu0 0
      %1404 = vmatpush1.bf16.msra.mxu0 %v1381
      %1405 = vmatprep.subr.bf16.mxu0 0
      %1406 = vmatpush1.bf16.msra.mxu0 %v1382
      %1407 = vmatprep.subr.bf16.mxu0 0
      %1408 = vmatpush1.bf16.msra.mxu0 0
      %1409 = vmatprep.subr.bf16.mxu0 0
      %1410 = vmatpush1.bf16.msra.mxu0 0
      %1411 = vmatprep.subr.bf16.mxu0 0
      %1412 = vmatpush1.bf16.msra.mxu0 0
      %1413 = vmatprep.subr.bf16.mxu0 0
      %1414 = vmatpush1.bf16.msra.mxu0 0
      %1415 = vmatprep.subr.bf16.mxu0 0
      %1416 = vmatpush1.bf16.msra.mxu0 0
      %1417 = vmatprep.subr.bf16.mxu0 0
      %1418 = vmatpush1.bf16.msra.mxu0 0
      %1419 = vmatprep.subr.bf16.mxu0 0
      %1420 = vmatpush1.bf16.msra.mxu0 0
      %1421 = vmatprep.subr.bf16.mxu0 0
      %1422 = vmatpush1.bf16.msra.mxu0 0
      %1423 = vmatprep.mubr.bf16.mxu0 0
      %1424 = vmatmul.mubr.bf16.gmra.mrb[0].mxu0 %v653
      %v1425 = vpop.f32.mrb[0].mxu0
      %v1426 = vadd.f32 0.0, %v1425
      %v1427 = vpop.f32.mrb[0].mxu0
      %v1428 = vpop.f32.mrb[0].mxu0
      %v1429 = vadd.f32 0.0, %v1428
      %v1430 = vpop.f32.mrb[0].mxu0
      %1431 = vmatprep.mubr.bf16.mxu0 0
      %1432 = vmatmul.mubr.bf16.gmra.mrb[0].mxu0 %v655
      %v1433 = vpop.f32.mrb[0].mxu0
      %v1434 = vadd.f32 0.0, %v1433
      %v1435 = vpop.f32.mrb[0].mxu0
      %v1436 = vpop.f32.mrb[0].mxu0
      %v1437 = vadd.f32 0.0, %v1436
      %v1438 = vpop.f32.mrb[0].mxu0
      %1439 = vmatprep.mubr.bf16.mxu0 0
      %1440 = vmatmul.mubr.bf16.gmra.mrb[0].mxu0 %v657
      %v1441 = vpop.f32.mrb[0].mxu0
      %v1442 = vadd.f32 0.0, %v1441
      %v1443 = vpop.f32.mrb[0].mxu0
      %v1444 = vpop.f32.mrb[0].mxu0
      %v1445 = vadd.f32 0.0, %v1444
      %v1446 = vpop.f32.mrb[0].mxu0
      %1447 = vmatprep.mubr.bf16.mxu0 0
      %1448 = vmatmul.mubr.bf16.gmra.mrb[0].mxu0 %v659
      %v1449 = vpop.f32.mrb[0].mxu0
      %v1450 = vadd.f32 0.0, %v1449
      %v1451 = vpop.f32.mrb[0].mxu0
      %v1452 = vpop.f32.mrb[0].mxu0
      %v1453 = vadd.f32 0.0, %v1452
      %v1454 = vpop.f32.mrb[0].mxu0
      %1455 = vmatprep.mubr.bf16.mxu0 0
      %1456 = vmatmul.mubr.bf16.gmra.mrb[0].mxu0 %v661
      %v1457 = vpop.f32.mrb[0].mxu0
      %v1458 = vadd.f32 0.0, %v1457
      %v1459 = vpop.f32.mrb[0].mxu0
      %v1460 = vpop.f32.mrb[0].mxu0
      %v1461 = vadd.f32 0.0, %v1460
      %v1462 = vpop.f32.mrb[0].mxu0
      %1463 = vmatprep.mubr.bf16.mxu0 0
      %1464 = vmatmul.mubr.bf16.gmra.mrb[0].mxu0 %v663
      %v1465 = vpop.f32.mrb[0].mxu0
      %v1466 = vadd.f32 0.0, %v1465
      %v1467 = vpop.f32.mrb[0].mxu0
      %v1468 = vpop.f32.mrb[0].mxu0
      %v1469 = vadd.f32 0.0, %v1468
      %v1470 = vpop.f32.mrb[0].mxu0
      %1471 = vmatprep.mubr.bf16.mxu0 0
      %1472 = vmatmul.mubr.bf16.gmra.mrb[0].mxu0 %v665
      %v1473 = vpop.f32.mrb[0].mxu0
      %v1474 = vadd.f32 0.0, %v1473
      %v1475 = vpop.f32.mrb[0].mxu0
      %v1476 = vpop.f32.mrb[0].mxu0
      %v1477 = vadd.f32 0.0, %v1476
      %v1478 = vpop.f32.mrb[0].mxu0
      %1479 = vmatprep.mubr.bf16.mxu0 0
      %1480 = vmatmul.mubr.bf16.gmra.mrb[0].mxu0 %v667
      %v1481 = vpop.f32.mrb[0].mxu0
      %v1482 = vadd.f32 0.0, %v1481
      %v1483 = vpop.f32.mrb[0].mxu0
      %v1484 = vpop.f32.mrb[0].mxu0
      %v1485 = vadd.f32 0.0, %v1484
      %v1486 = vpop.f32.mrb[0].mxu0
      %1487 = vdwg.mxu0
      %v1488 = vadd.f32 %v1310, %v1426
      %v1489 = vadd.f32 %v1311, %v1429
      %v1490 = vadd.f32 %v1312, %v1434
      %v1491 = vadd.f32 %v1313, %v1437
      %v1492 = vadd.f32 %v1314, %v1442
      %v1493 = vadd.f32 %v1315, %v1445
      %v1494 = vadd.f32 %v1316, %v1450
      %v1495 = vadd.f32 %v1317, %v1453
      %v1496 = vadd.f32 %v1318, %v1458
      %v1497 = vadd.f32 %v1319, %v1461
      %v1498 = vadd.f32 %v1320, %v1466
      %v1499 = vadd.f32 %v1321, %v1469
      %v1500 = vadd.f32 %v1322, %v1474
      %v1501 = vadd.f32 %v1323, %v1477
      %v1502 = vadd.f32 %v1324, %v1482
      %v1503 = vadd.f32 %v1325, %v1485
      %v1505 = vshrl.u32 %v667, 16
      %v1507 = vshll.u32 %v667, 16
      %v1509 = vrot.slane %v1507, 1
      %v1510 = vor.u32 %v1505, %v1509
      %v1512 = vshll.u32 %v668, 16
      %v1514 = vrot.slane %v1512, 1
      %v1515 = vsel %vm687, %v1510, %v1514
      %s1517 = scalar_lea.vmem %s3, 256
      %v1518 = vld [vmem:[%s1517] sm:$0xf]
      %v1519 = vld [vmem:[%s1517 + $0x4] sm:$0xf]
      %v1520 = vld [vmem:[%s1517 + $0x8] sm:$0xf]
      %v1521 = vld [vmem:[%s1517 + $0xc] sm:$0xf]
      %v1522 = vld [vmem:[%s1517 + $0x10] sm:$0xf]
      %v1523 = vld [vmem:[%s1517 + $0x14] sm:$0xf]
      %v1524 = vld [vmem:[%s1517 + $0x18] sm:$0xf]
      %v1525 = vld [vmem:[%s1517 + $0x1c] sm:$0xf]
      %v1526 = vld [vmem:[%s1517 + $0x20] sm:$0xf]
      %v1527 = vld [vmem:[%s1517 + $0x24] sm:$0xf]
      %v1528 = vld [vmem:[%s1517 + $0x28] sm:$0xf]
      %v1529 = vld [vmem:[%s1517 + $0x2c] sm:$0xf]
      %v1530 = vld [vmem:[%s1517 + $0x30] sm:$0xf]
      %v1531 = vld [vmem:[%s1517 + $0x34] sm:$0xf]
      %v1532 = vld [vmem:[%s1517 + $0x38] sm:$0xf]
      %v1533 = vld [vmem:[%s1517 + $0x3c] sm:$0xf]
      %v1550 = vunpack.c.l.b16 %v1518
      %v1551 = vunpack.c.l.b16 %v1519
      %v1552 = vunpack.c.l.b16 %v1520
      %v1553 = vunpack.c.l.b16 %v1521
      %v1554 = vunpack.c.l.b16 %v1522
      %v1555 = vunpack.c.l.b16 %v1523
      %v1556 = vunpack.c.l.b16 %v1524
      %v1557 = vunpack.c.l.b16 %v1525
      %v1558 = vunpack.c.l.b16 %v1526
      %v1559 = vunpack.c.l.b16 %v1527
      %v1560 = vunpack.c.l.b16 %v1528
      %v1561 = vunpack.c.l.b16 %v1529
      %v1562 = vunpack.c.l.b16 %v1530
      %v1563 = vunpack.c.l.b16 %v1531
      %v1564 = vunpack.c.l.b16 %v1532
      %v1565 = vunpack.c.l.b16 %v1533
      %v1566 = vpack.c.b16 %v1551, %v1550
      %v1567 = vpack.c.b16 %v1553, %v1552
      %v1568 = vpack.c.b16 %v1555, %v1554
      %v1569 = vpack.c.b16 %v1557, %v1556
      %v1570 = vpack.c.b16 %v1559, %v1558
      %v1571 = vpack.c.b16 %v1561, %v1560
      %v1572 = vpack.c.b16 %v1563, %v1562
      %v1573 = vpack.c.b16 %v1565, %v1564
      %1582 = vmatprep.subr.bf16.mxu0 0
      %1583 = vmatpush1.bf16.msra.mxu0 %v1566
      %1584 = vmatprep.subr.bf16.mxu0 0
      %1585 = vmatpush1.bf16.msra.mxu0 %v1567
      %1586 = vmatprep.subr.bf16.mxu0 0
      %1587 = vmatpush1.bf16.msra.mxu0 %v1568
      %1588 = vmatprep.subr.bf16.mxu0 0
      %1589 = vmatpush1.bf16.msra.mxu0 %v1569
      %1590 = vmatprep.subr.bf16.mxu0 0
      %1591 = vmatpush1.bf16.msra.mxu0 %v1570
      %1592 = vmatprep.subr.bf16.mxu0 0
      %1593 = vmatpush1.bf16.msra.mxu0 %v1571
      %1594 = vmatprep.subr.bf16.mxu0 0
      %1595 = vmatpush1.bf16.msra.mxu0 %v1572
      %1596 = vmatprep.subr.bf16.mxu0 0
      %1597 = vmatpush1.bf16.msra.mxu0 %v1573
      %1598 = vmatprep.subr.bf16.mxu0 0
      %1599 = vmatpush1.bf16.msra.mxu0 0
      %1600 = vmatprep.subr.bf16.mxu0 0
      %1601 = vmatpush1.bf16.msra.mxu0 0
      %1602 = vmatprep.subr.bf16.mxu0 0
      %1603 = vmatpush1.bf16.msra.mxu0 0
      %1604 = vmatprep.subr.bf16.mxu0 0
      %1605 = vmatpush1.bf16.msra.mxu0 0
      %1606 = vmatprep.subr.bf16.mxu0 0
      %1607 = vmatpush1.bf16.msra.mxu0 0
      %1608 = vmatprep.subr.bf16.mxu0 0
      %1609 = vmatpush1.bf16.msra.mxu0 0
      %1610 = vmatprep.subr.bf16.mxu0 0
      %1611 = vmatpush1.bf16.msra.mxu0 0
      %1612 = vmatprep.subr.bf16.mxu0 0
      %1613 = vmatpush1.bf16.msra.mxu0 0
      %1614 = vmatprep.mubr.bf16.mxu0 0
      %1615 = vmatmul.mubr.bf16.gmra.mrb[0].mxu0 %v711
      %v1616 = vpop.f32.mrb[0].mxu0
      %v1617 = vadd.f32 0.0, %v1616
      %v1618 = vpop.f32.mrb[0].mxu0
      %v1619 = vpop.f32.mrb[0].mxu0
      %v1620 = vadd.f32 0.0, %v1619
      %v1621 = vpop.f32.mrb[0].mxu0
      %1622 = vmatprep.mubr.bf16.mxu0 0
      %1623 = vmatmul.mubr.bf16.gmra.mrb[0].mxu0 %v723
      %v1624 = vpop.f32.mrb[0].mxu0
      %v1625 = vadd.f32 0.0, %v1624
      %v1626 = vpop.f32.mrb[0].mxu0
      %v1627 = vpop.f32.mrb[0].mxu0
      %v1628 = vadd.f32 0.0, %v1627
      %v1629 = vpop.f32.mrb[0].mxu0
      %1630 = vmatprep.mubr.bf16.mxu0 0
      %1631 = vmatmul.mubr.bf16.gmra.mrb[0].mxu0 %v735
      %v1632 = vpop.f32.mrb[0].mxu0
      %v1633 = vadd.f32 0.0, %v1632
      %v1634 = vpop.f32.mrb[0].mxu0
      %v1635 = vpop.f32.mrb[0].mxu0
      %v1636 = vadd.f32 0.0, %v1635
      %v1637 = vpop.f32.mrb[0].mxu0
      %1638 = vmatprep.mubr.bf16.mxu0 0
      %1639 = vmatmul.mubr.bf16.gmra.mrb[0].mxu0 %v747
      %v1640 = vpop.f32.mrb[0].mxu0
      %v1641 = vadd.f32 0.0, %v1640
      %v1642 = vpop.f32.mrb[0].mxu0
      %v1643 = vpop.f32.mrb[0].mxu0
      %v1644 = vadd.f32 0.0, %v1643
      %v1645 = vpop.f32.mrb[0].mxu0
      %1646 = vmatprep.mubr.bf16.mxu0 0
      %1647 = vmatmul.mubr.bf16.gmra.mrb[0].mxu0 %v759
      %v1648 = vpop.f32.mrb[0].mxu0
      %v1649 = vadd.f32 0.0, %v1648
      %v1650 = vpop.f32.mrb[0].mxu0
      %v1651 = vpop.f32.mrb[0].mxu0
      %v1652 = vadd.f32 0.0, %v1651
      %v1653 = vpop.f32.mrb[0].mxu0
      %1654 = vmatprep.mubr.bf16.mxu0 0
      %1655 = vmatmul.mubr.bf16.gmra.mrb[0].mxu0 %v771
      %v1656 = vpop.f32.mrb[0].mxu0
      %v1657 = vadd.f32 0.0, %v1656
      %v1658 = vpop.f32.mrb[0].mxu0
      %v1659 = vpop.f32.mrb[0].mxu0
      %v1660 = vadd.f32 0.0, %v1659
      %v1661 = vpop.f32.mrb[0].mxu0
      %1662 = vmatprep.mubr.bf16.mxu0 0
      %1663 = vmatmul.mubr.bf16.gmra.mrb[0].mxu0 %v783
      %v1664 = vpop.f32.mrb[0].mxu0
      %v1665 = vadd.f32 0.0, %v1664
      %v1666 = vpop.f32.mrb[0].mxu0
      %v1667 = vpop.f32.mrb[0].mxu0
      %v1668 = vadd.f32 0.0, %v1667
      %v1669 = vpop.f32.mrb[0].mxu0
      %1670 = vmatprep.mubr.bf16.mxu0 0
      %1671 = vmatmul.mubr.bf16.gmra.mrb[0].mxu0 %v1515
      %v1672 = vpop.f32.mrb[0].mxu0
      %v1673 = vadd.f32 0.0, %v1672
      %v1674 = vpop.f32.mrb[0].mxu0
      %v1675 = vpop.f32.mrb[0].mxu0
      %v1676 = vadd.f32 0.0, %v1675
      %v1677 = vpop.f32.mrb[0].mxu0
      %1678 = vdwg.mxu0
      %v1679 = vadd.f32 %v1488, %v1617
      %v1680 = vadd.f32 %v1489, %v1620
      %v1681 = vadd.f32 %v1490, %v1625
      %v1682 = vadd.f32 %v1491, %v1628
      %v1683 = vadd.f32 %v1492, %v1633
      %v1684 = vadd.f32 %v1493, %v1636
      %v1685 = vadd.f32 %v1494, %v1641
      %v1686 = vadd.f32 %v1495, %v1644
      %v1687 = vadd.f32 %v1496, %v1649
      %v1688 = vadd.f32 %v1497, %v1652
      %v1689 = vadd.f32 %v1498, %v1657
      %v1690 = vadd.f32 %v1499, %v1660
      %v1691 = vadd.f32 %v1500, %v1665
      %v1692 = vadd.f32 %v1501, %v1668
      %v1693 = vadd.f32 %v1502, %v1673
      %v1694 = vadd.f32 %v1503, %v1676
      %v1697 = vrot.slane %v667, 1
      %v1698 = vrot.slane %v668, 1
      %v1699 = vsel %vm1115, %v1697, %v1698
      %s1701 = scalar_lea.vmem %s3, 320
      %v1702 = vld [vmem:[%s1701] sm:$0xf]
      %v1703 = vld [vmem:[%s1701 + $0x4] sm:$0xf]
      %v1704 = vld [vmem:[%s1701 + $0x8] sm:$0xf]
      %v1705 = vld [vmem:[%s1701 + $0xc] sm:$0xf]
      %v1706 = vld [vmem:[%s1701 + $0x10] sm:$0xf]
      %v1707 = vld [vmem:[%s1701 + $0x14] sm:$0xf]
      %v1708 = vld [vmem:[%s1701 + $0x18] sm:$0xf]
      %v1709 = vld [vmem:[%s1701 + $0x1c] sm:$0xf]
      %v1710 = vld [vmem:[%s1701 + $0x20] sm:$0xf]
      %v1711 = vld [vmem:[%s1701 + $0x24] sm:$0xf]
      %v1712 = vld [vmem:[%s1701 + $0x28] sm:$0xf]
      %v1713 = vld [vmem:[%s1701 + $0x2c] sm:$0xf]
      %v1714 = vld [vmem:[%s1701 + $0x30] sm:$0xf]
      %v1715 = vld [vmem:[%s1701 + $0x34] sm:$0xf]
      %v1716 = vld [vmem:[%s1701 + $0x38] sm:$0xf]
      %v1717 = vld [vmem:[%s1701 + $0x3c] sm:$0xf]
      %v1734 = vunpack.c.l.b16 %v1702
      %v1735 = vunpack.c.l.b16 %v1703
      %v1736 = vunpack.c.l.b16 %v1704
      %v1737 = vunpack.c.l.b16 %v1705
      %v1738 = vunpack.c.l.b16 %v1706
      %v1739 = vunpack.c.l.b16 %v1707
      %v1740 = vunpack.c.l.b16 %v1708
      %v1741 = vunpack.c.l.b16 %v1709
      %v1742 = vunpack.c.l.b16 %v1710
      %v1743 = vunpack.c.l.b16 %v1711
      %v1744 = vunpack.c.l.b16 %v1712
      %v1745 = vunpack.c.l.b16 %v1713
      %v1746 = vunpack.c.l.b16 %v1714
      %v1747 = vunpack.c.l.b16 %v1715
      %v1748 = vunpack.c.l.b16 %v1716
      %v1749 = vunpack.c.l.b16 %v1717
      %v1750 = vpack.c.b16 %v1735, %v1734
      %v1751 = vpack.c.b16 %v1737, %v1736
      %v1752 = vpack.c.b16 %v1739, %v1738
      %v1753 = vpack.c.b16 %v1741, %v1740
      %v1754 = vpack.c.b16 %v1743, %v1742
      %v1755 = vpack.c.b16 %v1745, %v1744
      %v1756 = vpack.c.b16 %v1747, %v1746
      %v1757 = vpack.c.b16 %v1749, %v1748
      %1766 = vmatprep.subr.bf16.mxu0 0
      %1767 = vmatpush1.bf16.msra.mxu0 %v1750
      %1768 = vmatprep.subr.bf16.mxu0 0
      %1769 = vmatpush1.bf16.msra.mxu0 %v1751
      %1770 = vmatprep.subr.bf16.mxu0 0
      %1771 = vmatpush1.bf16.msra.mxu0 %v1752
      %1772 = vmatprep.subr.bf16.mxu0 0
      %1773 = vmatpush1.bf16.msra.mxu0 %v1753
      %1774 = vmatprep.subr.bf16.mxu0 0
      %1775 = vmatpush1.bf16.msra.mxu0 %v1754
      %1776 = vmatprep.subr.bf16.mxu0 0
      %1777 = vmatpush1.bf16.msra.mxu0 %v1755
      %1778 = vmatprep.subr.bf16.mxu0 0
      %1779 = vmatpush1.bf16.msra.mxu0 %v1756
      %1780 = vmatprep.subr.bf16.mxu0 0
      %1781 = vmatpush1.bf16.msra.mxu0 %v1757
      %1782 = vmatprep.subr.bf16.mxu0 0
      %1783 = vmatpush1.bf16.msra.mxu0 0
      %1784 = vmatprep.subr.bf16.mxu0 0
      %1785 = vmatpush1.bf16.msra.mxu0 0
      %1786 = vmatprep.subr.bf16.mxu0 0
      %1787 = vmatpush1.bf16.msra.mxu0 0
      %1788 = vmatprep.subr.bf16.mxu0 0
      %1789 = vmatpush1.bf16.msra.mxu0 0
      %1790 = vmatprep.subr.bf16.mxu0 0
      %1791 = vmatpush1.bf16.msra.mxu0 0
      %1792 = vmatprep.subr.bf16.mxu0 0
      %1793 = vmatpush1.bf16.msra.mxu0 0
      %1794 = vmatprep.subr.bf16.mxu0 0
      %1795 = vmatpush1.bf16.msra.mxu0 0
      %1796 = vmatprep.subr.bf16.mxu0 0
      %1797 = vmatpush1.bf16.msra.mxu0 0
      %1798 = vmatprep.mubr.bf16.mxu0 0
      %1799 = vmatmul.mubr.bf16.gmra.mrb[0].mxu0 %v1121
      %v1800 = vpop.f32.mrb[0].mxu0
      %v1801 = vadd.f32 0.0, %v1800
      %v1802 = vpop.f32.mrb[0].mxu0
      %v1803 = vpop.f32.mrb[0].mxu0
      %v1804 = vadd.f32 0.0, %v1803
      %v1805 = vpop.f32.mrb[0].mxu0
      %1806 = vmatprep.mubr.bf16.mxu0 0
      %1807 = vmatmul.mubr.bf16.gmra.mrb[0].mxu0 %v1124
      %v1808 = vpop.f32.mrb[0].mxu0
      %v1809 = vadd.f32 0.0, %v1808
      %v1810 = vpop.f32.mrb[0].mxu0
      %v1811 = vpop.f32.mrb[0].mxu0
      %v1812 = vadd.f32 0.0, %v1811
      %v1813 = vpop.f32.mrb[0].mxu0
      %1814 = vmatprep.mubr.bf16.mxu0 0
      %1815 = vmatmul.mubr.bf16.gmra.mrb[0].mxu0 %v1127
      %v1816 = vpop.f32.mrb[0].mxu0
      %v1817 = vadd.f32 0.0, %v1816
      %v1818 = vpop.f32.mrb[0].mxu0
      %v1819 = vpop.f32.mrb[0].mxu0
      %v1820 = vadd.f32 0.0, %v1819
      %v1821 = vpop.f32.mrb[0].mxu0
      %1822 = vmatprep.mubr.bf16.mxu0 0
      %1823 = vmatmul.mubr.bf16.gmra.mrb[0].mxu0 %v1130
      %v1824 = vpop.f32.mrb[0].mxu0
      %v1825 = vadd.f32 0.0, %v1824
      %v1826 = vpop.f32.mrb[0].mxu0
      %v1827 = vpop.f32.mrb[0].mxu0
      %v1828 = vadd.f32 0.0, %v1827
      %v1829 = vpop.f32.mrb[0].mxu0
      %1830 = vmatprep.mubr.bf16.mxu0 0
      %1831 = vmatmul.mubr.bf16.gmra.mrb[0].mxu0 %v1133
      %v1832 = vpop.f32.mrb[0].mxu0
      %v1833 = vadd.f32 0.0, %v1832
      %v1834 = vpop.f32.mrb[0].mxu0
      %v1835 = vpop.f32.mrb[0].mxu0
      %v1836 = vadd.f32 0.0, %v1835
      %v1837 = vpop.f32.mrb[0].mxu0
      %1838 = vmatprep.mubr.bf16.mxu0 0
      %1839 = vmatmul.mubr.bf16.gmra.mrb[0].mxu0 %v1136
      %v1840 = vpop.f32.mrb[0].mxu0
      %v1841 = vadd.f32 0.0, %v1840
      %v1842 = vpop.f32.mrb[0].mxu0
      %v1843 = vpop.f32.mrb[0].mxu0
      %v1844 = vadd.f32 0.0, %v1843
      %v1845 = vpop.f32.mrb[0].mxu0
      %1846 = vmatprep.mubr.bf16.mxu0 0
      %1847 = vmatmul.mubr.bf16.gmra.mrb[0].mxu0 %v1139
      %v1848 = vpop.f32.mrb[0].mxu0
      %v1849 = vadd.f32 0.0, %v1848
      %v1850 = vpop.f32.mrb[0].mxu0
      %v1851 = vpop.f32.mrb[0].mxu0
      %v1852 = vadd.f32 0.0, %v1851
      %v1853 = vpop.f32.mrb[0].mxu0
      %1854 = vmatprep.mubr.bf16.mxu0 0
      %1855 = vmatmul.mubr.bf16.gmra.mrb[0].mxu0 %v1699
      %v1856 = vpop.f32.mrb[0].mxu0
      %v1857 = vadd.f32 0.0, %v1856
      %v1858 = vpop.f32.mrb[0].mxu0
      %v1859 = vpop.f32.mrb[0].mxu0
      %v1860 = vadd.f32 0.0, %v1859
      %v1861 = vpop.f32.mrb[0].mxu0
      %1862 = vdwg.mxu0
      %v1863 = vadd.f32 %v1679, %v1801
      %v1864 = vadd.f32 %v1680, %v1804
      %v1865 = vadd.f32 %v1681, %v1809
      %v1866 = vadd.f32 %v1682, %v1812
      %v1867 = vadd.f32 %v1683, %v1817
      %v1868 = vadd.f32 %v1684, %v1820
      %v1869 = vadd.f32 %v1685, %v1825
      %v1870 = vadd.f32 %v1686, %v1828
      %v1871 = vadd.f32 %v1687, %v1833
      %v1872 = vadd.f32 %v1688, %v1836
      %v1873 = vadd.f32 %v1689, %v1841
      %v1874 = vadd.f32 %v1690, %v1844
      %v1875 = vadd.f32 %v1691, %v1849
      %v1876 = vadd.f32 %v1692, %v1852
      %v1877 = vadd.f32 %v1693, %v1857
      %v1878 = vadd.f32 %v1694, %v1860
      %s1879 = scalar_lea.vmem %s3, 384
      %v1880 = vld [vmem:[%s1879] sm:$0xf]
      %v1881 = vld [vmem:[%s1879 + $0x4] sm:$0xf]
      %v1882 = vld [vmem:[%s1879 + $0x8] sm:$0xf]
      %v1883 = vld [vmem:[%s1879 + $0xc] sm:$0xf]
      %v1884 = vld [vmem:[%s1879 + $0x10] sm:$0xf]
      %v1885 = vld [vmem:[%s1879 + $0x14] sm:$0xf]
      %v1886 = vld [vmem:[%s1879 + $0x18] sm:$0xf]
      %v1887 = vld [vmem:[%s1879 + $0x1c] sm:$0xf]
      %v1888 = vld [vmem:[%s1879 + $0x20] sm:$0xf]
      %v1889 = vld [vmem:[%s1879 + $0x24] sm:$0xf]
      %v1890 = vld [vmem:[%s1879 + $0x28] sm:$0xf]
      %v1891 = vld [vmem:[%s1879 + $0x2c] sm:$0xf]
      %v1892 = vld [vmem:[%s1879 + $0x30] sm:$0xf]
      %v1893 = vld [vmem:[%s1879 + $0x34] sm:$0xf]
      %v1894 = vld [vmem:[%s1879 + $0x38] sm:$0xf]
      %v1895 = vld [vmem:[%s1879 + $0x3c] sm:$0xf]
      %v1912 = vunpack.c.l.b16 %v1880
      %v1913 = vunpack.c.l.b16 %v1881
      %v1914 = vunpack.c.l.b16 %v1882
      %v1915 = vunpack.c.l.b16 %v1883
      %v1916 = vunpack.c.l.b16 %v1884
      %v1917 = vunpack.c.l.b16 %v1885
      %v1918 = vunpack.c.l.b16 %v1886
      %v1919 = vunpack.c.l.b16 %v1887
      %v1920 = vunpack.c.l.b16 %v1888
      %v1921 = vunpack.c.l.b16 %v1889
      %v1922 = vunpack.c.l.b16 %v1890
      %v1923 = vunpack.c.l.b16 %v1891
      %v1924 = vunpack.c.l.b16 %v1892
      %v1925 = vunpack.c.l.b16 %v1893
      %v1926 = vunpack.c.l.b16 %v1894
      %v1927 = vunpack.c.l.b16 %v1895
      %v1928 = vpack.c.b16 %v1913, %v1912
      %v1929 = vpack.c.b16 %v1915, %v1914
      %v1930 = vpack.c.b16 %v1917, %v1916
      %v1931 = vpack.c.b16 %v1919, %v1918
      %v1932 = vpack.c.b16 %v1921, %v1920
      %v1933 = vpack.c.b16 %v1923, %v1922
      %v1934 = vpack.c.b16 %v1925, %v1924
      %v1935 = vpack.c.b16 %v1927, %v1926
      %1944 = vmatprep.subr.bf16.mxu0 0
      %1945 = vmatpush1.bf16.msra.mxu0 %v1928
      %1946 = vmatprep.subr.bf16.mxu0 0
      %1947 = vmatpush1.bf16.msra.mxu0 %v1929
      %1948 = vmatprep.subr.bf16.mxu0 0
      %1949 = vmatpush1.bf16.msra.mxu0 %v1930
      %1950 = vmatprep.subr.bf16.mxu0 0
      %1951 = vmatpush1.bf16.msra.mxu0 %v1931
      %1952 = vmatprep.subr.bf16.mxu0 0
      %1953 = vmatpush1.bf16.msra.mxu0 %v1932
      %1954 = vmatprep.subr.bf16.mxu0 0
      %1955 = vmatpush1.bf16.msra.mxu0 %v1933
      %1956 = vmatprep.subr.bf16.mxu0 0
      %1957 = vmatpush1.bf16.msra.mxu0 %v1934
      %1958 = vmatprep.subr.bf16.mxu0 0
      %1959 = vmatpush1.bf16.msra.mxu0 %v1935
      %1960 = vmatprep.subr.bf16.mxu0 0
      %1961 = vmatpush1.bf16.msra.mxu0 0
      %1962 = vmatprep.subr.bf16.mxu0 0
      %1963 = vmatpush1.bf16.msra.mxu0 0
      %1964 = vmatprep.subr.bf16.mxu0 0
      %1965 = vmatpush1.bf16.msra.mxu0 0
      %1966 = vmatprep.subr.bf16.mxu0 0
      %1967 = vmatpush1.bf16.msra.mxu0 0
      %1968 = vmatprep.subr.bf16.mxu0 0
      %1969 = vmatpush1.bf16.msra.mxu0 0
      %1970 = vmatprep.subr.bf16.mxu0 0
      %1971 = vmatpush1.bf16.msra.mxu0 0
      %1972 = vmatprep.subr.bf16.mxu0 0
      %1973 = vmatpush1.bf16.msra.mxu0 0
      %1974 = vmatprep.subr.bf16.mxu0 0
      %1975 = vmatpush1.bf16.msra.mxu0 0
      %1976 = vmatprep.mubr.bf16.mxu0 0
      %1977 = vmatmul.mubr.bf16.gmra.mrb[0].mxu0 %v655
      %v1978 = vpop.f32.mrb[0].mxu0
      %v1979 = vadd.f32 0.0, %v1978
      %v1980 = vpop.f32.mrb[0].mxu0
      %v1981 = vpop.f32.mrb[0].mxu0
      %v1982 = vadd.f32 0.0, %v1981
      %v1983 = vpop.f32.mrb[0].mxu0
      %1984 = vmatprep.mubr.bf16.mxu0 0
      %1985 = vmatmul.mubr.bf16.gmra.mrb[0].mxu0 %v657
      %v1986 = vpop.f32.mrb[0].mxu0
      %v1987 = vadd.f32 0.0, %v1986
      %v1988 = vpop.f32.mrb[0].mxu0
      %v1989 = vpop.f32.mrb[0].mxu0
      %v1990 = vadd.f32 0.0, %v1989
      %v1991 = vpop.f32.mrb[0].mxu0
      %1992 = vmatprep.mubr.bf16.mxu0 0
      %1993 = vmatmul.mubr.bf16.gmra.mrb[0].mxu0 %v659
      %v1994 = vpop.f32.mrb[0].mxu0
      %v1995 = vadd.f32 0.0, %v1994
      %v1996 = vpop.f32.mrb[0].mxu0
      %v1997 = vpop.f32.mrb[0].mxu0
      %v1998 = vadd.f32 0.0, %v1997
      %v1999 = vpop.f32.mrb[0].mxu0
      %2000 = vmatprep.mubr.bf16.mxu0 0
      %2001 = vmatmul.mubr.bf16.gmra.mrb[0].mxu0 %v661
      %v2002 = vpop.f32.mrb[0].mxu0
      %v2003 = vadd.f32 0.0, %v2002
      %v2004 = vpop.f32.mrb[0].mxu0
      %v2005 = vpop.f32.mrb[0].mxu0
      %v2006 = vadd.f32 0.0, %v2005
      %v2007 = vpop.f32.mrb[0].mxu0
      %2008 = vmatprep.mubr.bf16.mxu0 0
      %2009 = vmatmul.mubr.bf16.gmra.mrb[0].mxu0 %v663
      %v2010 = vpop.f32.mrb[0].mxu0
      %v2011 = vadd.f32 0.0, %v2010
      %v2012 = vpop.f32.mrb[0].mxu0
      %v2013 = vpop.f32.mrb[0].mxu0
      %v2014 = vadd.f32 0.0, %v2013
      %v2015 = vpop.f32.mrb[0].mxu0
      %2016 = vmatprep.mubr.bf16.mxu0 0
      %2017 = vmatmul.mubr.bf16.gmra.mrb[0].mxu0 %v665
      %v2018 = vpop.f32.mrb[0].mxu0
      %v2019 = vadd.f32 0.0, %v2018
      %v2020 = vpop.f32.mrb[0].mxu0
      %v2021 = vpop.f32.mrb[0].mxu0
      %v2022 = vadd.f32 0.0, %v2021
      %v2023 = vpop.f32.mrb[0].mxu0
      %2024 = vmatprep.mubr.bf16.mxu0 0
      %2025 = vmatmul.mubr.bf16.gmra.mrb[0].mxu0 %v667
      %v2026 = vpop.f32.mrb[0].mxu0
      %v2027 = vadd.f32 0.0, %v2026
      %v2028 = vpop.f32.mrb[0].mxu0
      %v2029 = vpop.f32.mrb[0].mxu0
      %v2030 = vadd.f32 0.0, %v2029
      %v2031 = vpop.f32.mrb[0].mxu0
      %2032 = vmatprep.mubr.bf16.mxu0 0
      %2033 = vmatmul.mubr.bf16.gmra.mrb[0].mxu0 %v669
      %v2034 = vpop.f32.mrb[0].mxu0
      %v2035 = vadd.f32 0.0, %v2034
      %v2036 = vpop.f32.mrb[0].mxu0
      %v2037 = vpop.f32.mrb[0].mxu0
      %v2038 = vadd.f32 0.0, %v2037
      %v2039 = vpop.f32.mrb[0].mxu0
      %2040 = vdwg.mxu0
      %v2041 = vadd.f32 %v1863, %v1979
      %v2042 = vadd.f32 %v1864, %v1982
      %v2043 = vadd.f32 %v1865, %v1987
      %v2044 = vadd.f32 %v1866, %v1990
      %v2045 = vadd.f32 %v1867, %v1995
      %v2046 = vadd.f32 %v1868, %v1998
      %v2047 = vadd.f32 %v1869, %v2003
      %v2048 = vadd.f32 %v1870, %v2006
      %v2049 = vadd.f32 %v1871, %v2011
      %v2050 = vadd.f32 %v1872, %v2014
      %v2051 = vadd.f32 %v1873, %v2019
      %v2052 = vadd.f32 %v1874, %v2022
      %v2053 = vadd.f32 %v1875, %v2027
      %v2054 = vadd.f32 %v1876, %v2030
      %v2055 = vadd.f32 %v1877, %v2035
      %v2056 = vadd.f32 %v1878, %v2038
      %v2058 = vshrl.u32 %v669, 16
      %v2060 = vshll.u32 %v669, 16
      %v2062 = vrot.slane %v2060, 1
      %v2063 = vor.u32 %v2058, %v2062
      %v2065 = vshll.u32 %v670, 16
      %v2067 = vrot.slane %v2065, 1
      %v2068 = vsel %vm687, %v2063, %v2067
      %s2070 = scalar_lea.vmem %s3, 448
      %v2071 = vld [vmem:[%s2070] sm:$0xf]
      %v2072 = vld [vmem:[%s2070 + $0x4] sm:$0xf]
      %v2073 = vld [vmem:[%s2070 + $0x8] sm:$0xf]
      %v2074 = vld [vmem:[%s2070 + $0xc] sm:$0xf]
      %v2075 = vld [vmem:[%s2070 + $0x10] sm:$0xf]
      %v2076 = vld [vmem:[%s2070 + $0x14] sm:$0xf]
      %v2077 = vld [vmem:[%s2070 + $0x18] sm:$0xf]
      %v2078 = vld [vmem:[%s2070 + $0x1c] sm:$0xf]
      %v2079 = vld [vmem:[%s2070 + $0x20] sm:$0xf]
      %v2080 = vld [vmem:[%s2070 + $0x24] sm:$0xf]
      %v2081 = vld [vmem:[%s2070 + $0x28] sm:$0xf]
      %v2082 = vld [vmem:[%s2070 + $0x2c] sm:$0xf]
      %v2083 = vld [vmem:[%s2070 + $0x30] sm:$0xf]
      %v2084 = vld [vmem:[%s2070 + $0x34] sm:$0xf]
      %v2085 = vld [vmem:[%s2070 + $0x38] sm:$0xf]
      %v2086 = vld [vmem:[%s2070 + $0x3c] sm:$0xf]
      %v2103 = vunpack.c.l.b16 %v2071
      %v2104 = vunpack.c.l.b16 %v2072
      %v2105 = vunpack.c.l.b16 %v2073
      %v2106 = vunpack.c.l.b16 %v2074
      %v2107 = vunpack.c.l.b16 %v2075
      %v2108 = vunpack.c.l.b16 %v2076
      %v2109 = vunpack.c.l.b16 %v2077
      %v2110 = vunpack.c.l.b16 %v2078
      %v2111 = vunpack.c.l.b16 %v2079
      %v2112 = vunpack.c.l.b16 %v2080
      %v2113 = vunpack.c.l.b16 %v2081
      %v2114 = vunpack.c.l.b16 %v2082
      %v2115 = vunpack.c.l.b16 %v2083
      %v2116 = vunpack.c.l.b16 %v2084
      %v2117 = vunpack.c.l.b16 %v2085
      %v2118 = vunpack.c.l.b16 %v2086
      %v2119 = vpack.c.b16 %v2104, %v2103
      %v2120 = vpack.c.b16 %v2106, %v2105
      %v2121 = vpack.c.b16 %v2108, %v2107
      %v2122 = vpack.c.b16 %v2110, %v2109
      %v2123 = vpack.c.b16 %v2112, %v2111
      %v2124 = vpack.c.b16 %v2114, %v2113
      %v2125 = vpack.c.b16 %v2116, %v2115
      %v2126 = vpack.c.b16 %v2118, %v2117
      %2135 = vmatprep.subr.bf16.mxu0 0
      %2136 = vmatpush1.bf16.msra.mxu0 %v2119
      %2137 = vmatprep.subr.bf16.mxu0 0
      %2138 = vmatpush1.bf16.msra.mxu0 %v2120
      %2139 = vmatprep.subr.bf16.mxu0 0
      %2140 = vmatpush1.bf16.msra.mxu0 %v2121
      %2141 = vmatprep.subr.bf16.mxu0 0
      %2142 = vmatpush1.bf16.msra.mxu0 %v2122
      %2143 = vmatprep.subr.bf16.mxu0 0
      %2144 = vmatpush1.bf16.msra.mxu0 %v2123
      %2145 = vmatprep.subr.bf16.mxu0 0
      %2146 = vmatpush1.bf16.msra.mxu0 %v2124
      %2147 = vmatprep.subr.bf16.mxu0 0
      %2148 = vmatpush1.bf16.msra.mxu0 %v2125
      %2149 = vmatprep.subr.bf16.mxu0 0
      %2150 = vmatpush1.bf16.msra.mxu0 %v2126
      %2151 = vmatprep.subr.bf16.mxu0 0
      %2152 = vmatpush1.bf16.msra.mxu0 0
      %2153 = vmatprep.subr.bf16.mxu0 0
      %2154 = vmatpush1.bf16.msra.mxu0 0
      %2155 = vmatprep.subr.bf16.mxu0 0
      %2156 = vmatpush1.bf16.msra.mxu0 0
      %2157 = vmatprep.subr.bf16.mxu0 0
      %2158 = vmatpush1.bf16.msra.mxu0 0
      %2159 = vmatprep.subr.bf16.mxu0 0
      %2160 = vmatpush1.bf16.msra.mxu0 0
      %2161 = vmatprep.subr.bf16.mxu0 0
      %2162 = vmatpush1.bf16.msra.mxu0 0
      %2163 = vmatprep.subr.bf16.mxu0 0
      %2164 = vmatpush1.bf16.msra.mxu0 0
      %2165 = vmatprep.subr.bf16.mxu0 0
      %2166 = vmatpush1.bf16.msra.mxu0 0
      %2167 = vmatprep.mubr.bf16.mxu0 0
      %2168 = vmatmul.mubr.bf16.gmra.mrb[0].mxu0 %v723
      %v2169 = vpop.f32.mrb[0].mxu0
      %v2170 = vadd.f32 0.0, %v2169
      %v2171 = vpop.f32.mrb[0].mxu0
      %v2172 = vpop.f32.mrb[0].mxu0
      %v2173 = vadd.f32 0.0, %v2172
      %v2174 = vpop.f32.mrb[0].mxu0
      %2175 = vmatprep.mubr.bf16.mxu0 0
      %2176 = vmatmul.mubr.bf16.gmra.mrb[0].mxu0 %v735
      %v2177 = vpop.f32.mrb[0].mxu0
      %v2178 = vadd.f32 0.0, %v2177
      %v2179 = vpop.f32.mrb[0].mxu0
      %v2180 = vpop.f32.mrb[0].mxu0
      %v2181 = vadd.f32 0.0, %v2180
      %v2182 = vpop.f32.mrb[0].mxu0
      %2183 = vmatprep.mubr.bf16.mxu0 0
      %2184 = vmatmul.mubr.bf16.gmra.mrb[0].mxu0 %v747
      %v2185 = vpop.f32.mrb[0].mxu0
      %v2186 = vadd.f32 0.0, %v2185
      %v2187 = vpop.f32.mrb[0].mxu0
      %v2188 = vpop.f32.mrb[0].mxu0
      %v2189 = vadd.f32 0.0, %v2188
      %v2190 = vpop.f32.mrb[0].mxu0
      %2191 = vmatprep.mubr.bf16.mxu0 0
      %2192 = vmatmul.mubr.bf16.gmra.mrb[0].mxu0 %v759
      %v2193 = vpop.f32.mrb[0].mxu0
      %v2194 = vadd.f32 0.0, %v2193
      %v2195 = vpop.f32.mrb[0].mxu0
      %v2196 = vpop.f32.mrb[0].mxu0
      %v2197 = vadd.f32 0.0, %v2196
      %v2198 = vpop.f32.mrb[0].mxu0
      %2199 = vmatprep.mubr.bf16.mxu0 0
      %2200 = vmatmul.mubr.bf16.gmra.mrb[0].mxu0 %v771
      %v2201 = vpop.f32.mrb[0].mxu0
      %v2202 = vadd.f32 0.0, %v2201
      %v2203 = vpop.f32.mrb[0].mxu0
      %v2204 = vpop.f32.mrb[0].mxu0
      %v2205 = vadd.f32 0.0, %v2204
      %v2206 = vpop.f32.mrb[0].mxu0
      %2207 = vmatprep.mubr.bf16.mxu0 0
      %2208 = vmatmul.mubr.bf16.gmra.mrb[0].mxu0 %v783
      %v2209 = vpop.f32.mrb[0].mxu0
      %v2210 = vadd.f32 0.0, %v2209
      %v2211 = vpop.f32.mrb[0].mxu0
      %v2212 = vpop.f32.mrb[0].mxu0
      %v2213 = vadd.f32 0.0, %v2212
      %v2214 = vpop.f32.mrb[0].mxu0
      %2215 = vmatprep.mubr.bf16.mxu0 0
      %2216 = vmatmul.mubr.bf16.gmra.mrb[0].mxu0 %v1515
      %v2217 = vpop.f32.mrb[0].mxu0
      %v2218 = vadd.f32 0.0, %v2217
      %v2219 = vpop.f32.mrb[0].mxu0
      %v2220 = vpop.f32.mrb[0].mxu0
      %v2221 = vadd.f32 0.0, %v2220
      %v2222 = vpop.f32.mrb[0].mxu0
      %2223 = vmatprep.mubr.bf16.mxu0 0
      %2224 = vmatmul.mubr.bf16.gmra.mrb[0].mxu0 %v2068
      %v2225 = vpop.f32.mrb[0].mxu0
      %v2226 = vadd.f32 0.0, %v2225
      %v2227 = vpop.f32.mrb[0].mxu0
      %v2228 = vpop.f32.mrb[0].mxu0
      %v2229 = vadd.f32 0.0, %v2228
      %v2230 = vpop.f32.mrb[0].mxu0
      %2231 = vdwg.mxu0
      %v2232 = vadd.f32 %v2041, %v2170
      %v2233 = vadd.f32 %v2042, %v2173
      %v2234 = vadd.f32 %v2043, %v2178
      %v2235 = vadd.f32 %v2044, %v2181
      %v2236 = vadd.f32 %v2045, %v2186
      %v2237 = vadd.f32 %v2046, %v2189
      %v2238 = vadd.f32 %v2047, %v2194
      %v2239 = vadd.f32 %v2048, %v2197
      %v2240 = vadd.f32 %v2049, %v2202
      %v2241 = vadd.f32 %v2050, %v2205
      %v2242 = vadd.f32 %v2051, %v2210
      %v2243 = vadd.f32 %v2052, %v2213
      %v2244 = vadd.f32 %v2053, %v2218
      %v2245 = vadd.f32 %v2054, %v2221
      %v2246 = vadd.f32 %v2055, %v2226
      %v2247 = vadd.f32 %v2056, %v2229
      %v2250 = vrot.slane %v669, 1
      %v2251 = vrot.slane %v670, 1
      %v2252 = vsel %vm1115, %v2250, %v2251
      %s2254 = scalar_lea.vmem %s3, 512
      %v2255 = vld [vmem:[%s2254] sm:$0xf]
      %v2256 = vld [vmem:[%s2254 + $0x4] sm:$0xf]
      %v2257 = vld [vmem:[%s2254 + $0x8] sm:$0xf]
      %v2258 = vld [vmem:[%s2254 + $0xc] sm:$0xf]
      %v2259 = vld [vmem:[%s2254 + $0x10] sm:$0xf]
      %v2260 = vld [vmem:[%s2254 + $0x14] sm:$0xf]
      %v2261 = vld [vmem:[%s2254 + $0x18] sm:$0xf]
      %v2262 = vld [vmem:[%s2254 + $0x1c] sm:$0xf]
      %v2263 = vld [vmem:[%s2254 + $0x20] sm:$0xf]
      %v2264 = vld [vmem:[%s2254 + $0x24] sm:$0xf]
      %v2265 = vld [vmem:[%s2254 + $0x28] sm:$0xf]
      %v2266 = vld [vmem:[%s2254 + $0x2c] sm:$0xf]
      %v2267 = vld [vmem:[%s2254 + $0x30] sm:$0xf]
      %v2268 = vld [vmem:[%s2254 + $0x34] sm:$0xf]
      %v2269 = vld [vmem:[%s2254 + $0x38] sm:$0xf]
      %v2270 = vld [vmem:[%s2254 + $0x3c] sm:$0xf]
      %v2287 = vunpack.c.l.b16 %v2255
      %v2288 = vunpack.c.l.b16 %v2256
      %v2289 = vunpack.c.l.b16 %v2257
      %v2290 = vunpack.c.l.b16 %v2258
      %v2291 = vunpack.c.l.b16 %v2259
      %v2292 = vunpack.c.l.b16 %v2260
      %v2293 = vunpack.c.l.b16 %v2261
      %v2294 = vunpack.c.l.b16 %v2262
      %v2295 = vunpack.c.l.b16 %v2263
      %v2296 = vunpack.c.l.b16 %v2264
      %v2297 = vunpack.c.l.b16 %v2265
      %v2298 = vunpack.c.l.b16 %v2266
      %v2299 = vunpack.c.l.b16 %v2267
      %v2300 = vunpack.c.l.b16 %v2268
      %v2301 = vunpack.c.l.b16 %v2269
      %v2302 = vunpack.c.l.b16 %v2270
      %v2303 = vpack.c.b16 %v2288, %v2287
      %v2304 = vpack.c.b16 %v2290, %v2289
      %v2305 = vpack.c.b16 %v2292, %v2291
      %v2306 = vpack.c.b16 %v2294, %v2293
      %v2307 = vpack.c.b16 %v2296, %v2295
      %v2308 = vpack.c.b16 %v2298, %v2297
      %v2309 = vpack.c.b16 %v2300, %v2299
      %v2310 = vpack.c.b16 %v2302, %v2301
      %2319 = vmatprep.subr.bf16.mxu0 0
      %2320 = vmatpush1.bf16.msra.mxu0 %v2303
      %2321 = vmatprep.subr.bf16.mxu0 0
      %2322 = vmatpush1.bf16.msra.mxu0 %v2304
      %2323 = vmatprep.subr.bf16.mxu0 0
      %2324 = vmatpush1.bf16.msra.mxu0 %v2305
      %2325 = vmatprep.subr.bf16.mxu0 0
      %2326 = vmatpush1.bf16.msra.mxu0 %v2306
      %2327 = vmatprep.subr.bf16.mxu0 0
      %2328 = vmatpush1.bf16.msra.mxu0 %v2307
      %2329 = vmatprep.subr.bf16.mxu0 0
      %2330 = vmatpush1.bf16.msra.mxu0 %v2308
      %2331 = vmatprep.subr.bf16.mxu0 0
      %2332 = vmatpush1.bf16.msra.mxu0 %v2309
      %2333 = vmatprep.subr.bf16.mxu0 0
      %2334 = vmatpush1.bf16.msra.mxu0 %v2310
      %2335 = vmatprep.subr.bf16.mxu0 0
      %2336 = vmatpush1.bf16.msra.mxu0 0
      %2337 = vmatprep.subr.bf16.mxu0 0
      %2338 = vmatpush1.bf16.msra.mxu0 0
      %2339 = vmatprep.subr.bf16.mxu0 0
      %2340 = vmatpush1.bf16.msra.mxu0 0
      %2341 = vmatprep.subr.bf16.mxu0 0
      %2342 = vmatpush1.bf16.msra.mxu0 0
      %2343 = vmatprep.subr.bf16.mxu0 0
      %2344 = vmatpush1.bf16.msra.mxu0 0
      %2345 = vmatprep.subr.bf16.mxu0 0
      %2346 = vmatpush1.bf16.msra.mxu0 0
      %2347 = vmatprep.subr.bf16.mxu0 0
      %2348 = vmatpush1.bf16.msra.mxu0 0
      %2349 = vmatprep.subr.bf16.mxu0 0
      %2350 = vmatpush1.bf16.msra.mxu0 0
      %2351 = vmatprep.mubr.bf16.mxu0 0
      %2352 = vmatmul.mubr.bf16.gmra.mrb[0].mxu0 %v1124
      %v2353 = vpop.f32.mrb[0].mxu0
      %v2354 = vadd.f32 0.0, %v2353
      %v2355 = vpop.f32.mrb[0].mxu0
      %v2356 = vpop.f32.mrb[0].mxu0
      %v2357 = vadd.f32 0.0, %v2356
      %v2358 = vpop.f32.mrb[0].mxu0
      %2359 = vmatprep.mubr.bf16.mxu0 0
      %2360 = vmatmul.mubr.bf16.gmra.mrb[0].mxu0 %v1127
      %v2361 = vpop.f32.mrb[0].mxu0
      %v2362 = vadd.f32 0.0, %v2361
      %v2363 = vpop.f32.mrb[0].mxu0
      %v2364 = vpop.f32.mrb[0].mxu0
      %v2365 = vadd.f32 0.0, %v2364
      %v2366 = vpop.f32.mrb[0].mxu0
      %2367 = vmatprep.mubr.bf16.mxu0 0
      %2368 = vmatmul.mubr.bf16.gmra.mrb[0].mxu0 %v1130
      %v2369 = vpop.f32.mrb[0].mxu0
      %v2370 = vadd.f32 0.0, %v2369
      %v2371 = vpop.f32.mrb[0].mxu0
      %v2372 = vpop.f32.mrb[0].mxu0
      %v2373 = vadd.f32 0.0, %v2372
      %v2374 = vpop.f32.mrb[0].mxu0
      %2375 = vmatprep.mubr.bf16.mxu0 0
      %2376 = vmatmul.mubr.bf16.gmra.mrb[0].mxu0 %v1133
      %v2377 = vpop.f32.mrb[0].mxu0
      %v2378 = vadd.f32 0.0, %v2377
      %v2379 = vpop.f32.mrb[0].mxu0
      %v2380 = vpop.f32.mrb[0].mxu0
      %v2381 = vadd.f32 0.0, %v2380
      %v2382 = vpop.f32.mrb[0].mxu0
      %2383 = vmatprep.mubr.bf16.mxu0 0
      %2384 = vmatmul.mubr.bf16.gmra.mrb[0].mxu0 %v1136
      %v2385 = vpop.f32.mrb[0].mxu0
      %v2386 = vadd.f32 0.0, %v2385
      %v2387 = vpop.f32.mrb[0].mxu0
      %v2388 = vpop.f32.mrb[0].mxu0
      %v2389 = vadd.f32 0.0, %v2388
      %v2390 = vpop.f32.mrb[0].mxu0
      %2391 = vmatprep.mubr.bf16.mxu0 0
      %2392 = vmatmul.mubr.bf16.gmra.mrb[0].mxu0 %v1139
      %v2393 = vpop.f32.mrb[0].mxu0
      %v2394 = vadd.f32 0.0, %v2393
      %v2395 = vpop.f32.mrb[0].mxu0
      %v2396 = vpop.f32.mrb[0].mxu0
      %v2397 = vadd.f32 0.0, %v2396
      %v2398 = vpop.f32.mrb[0].mxu0
      %2399 = vmatprep.mubr.bf16.mxu0 0
      %2400 = vmatmul.mubr.bf16.gmra.mrb[0].mxu0 %v1699
      %v2401 = vpop.f32.mrb[0].mxu0
      %v2402 = vadd.f32 0.0, %v2401
      %v2403 = vpop.f32.mrb[0].mxu0
      %v2404 = vpop.f32.mrb[0].mxu0
      %v2405 = vadd.f32 0.0, %v2404
      %v2406 = vpop.f32.mrb[0].mxu0
      %2407 = vmatprep.mubr.bf16.mxu0 0
      %2408 = vmatmul.mubr.bf16.gmra.mrb[0].mxu0 %v2252
      %v2409 = vpop.f32.mrb[0].mxu0
      %v2410 = vadd.f32 0.0, %v2409
      %v2411 = vpop.f32.mrb[0].mxu0
      %v2412 = vpop.f32.mrb[0].mxu0
      %v2413 = vadd.f32 0.0, %v2412
      %v2414 = vpop.f32.mrb[0].mxu0
      %2415 = vdwg.mxu0
      %v2416 = vadd.f32 %v2232, %v2354
      %v2417 = vadd.f32 %v2233, %v2357
      %v2418 = vadd.f32 %v2234, %v2362
      %v2419 = vadd.f32 %v2235, %v2365
      %v2420 = vadd.f32 %v2236, %v2370
      %v2421 = vadd.f32 %v2237, %v2373
      %v2422 = vadd.f32 %v2238, %v2378
      %v2423 = vadd.f32 %v2239, %v2381
      %v2424 = vadd.f32 %v2240, %v2386
      %v2425 = vadd.f32 %v2241, %v2389
      %v2426 = vadd.f32 %v2242, %v2394
      %v2427 = vadd.f32 %v2243, %v2397
      %v2428 = vadd.f32 %v2244, %v2402
      %v2429 = vadd.f32 %v2245, %v2405
      %v2430 = vadd.f32 %v2246, %v2410
      %v2431 = vadd.f32 %v2247, %v2413
      %v2432 = vpack.c.bf16 %v2417, %v2416
      %v2433 = vpack.c.bf16 %v2419, %v2418
      %v2434 = vpack.c.bf16 %v2421, %v2420
      %v2435 = vpack.c.bf16 %v2423, %v2422
      %v2436 = vpack.c.bf16 %v2425, %v2424
      %v2437 = vpack.c.bf16 %v2427, %v2426
      %v2438 = vpack.c.bf16 %v2429, %v2428
      %v2439 = vpack.c.bf16 %v2431, %v2430
      %v2448 = vunpack.c.l.b16 %v2432
      %v2449 = vunpack.c.h.b16 %v2432
      %v2450 = vunpack.c.l.b16 %v2433
      %v2451 = vunpack.c.h.b16 %v2433
      %v2452 = vunpack.c.l.b16 %v2434
      %v2453 = vunpack.c.h.b16 %v2434
      %v2454 = vunpack.c.l.b16 %v2435
      %v2455 = vunpack.c.h.b16 %v2435
      %v2456 = vunpack.c.l.b16 %v2436
      %v2457 = vunpack.c.h.b16 %v2436
      %v2458 = vunpack.c.l.b16 %v2437
      %v2459 = vunpack.c.h.b16 %v2437
      %v2460 = vunpack.c.l.b16 %v2438
      %v2461 = vunpack.c.h.b16 %v2438
      %v2462 = vunpack.c.l.b16 %v2439
      %v2463 = vunpack.c.h.b16 %v2439
      %v2464 = vpack.c.b16 %v2448, %v2448
      %v2465 = vpack.c.b16 %v2449, %v2449
      %v2466 = vpack.c.b16 %v2450, %v2450
      %v2467 = vpack.c.b16 %v2451, %v2451
      %v2468 = vpack.c.b16 %v2452, %v2452
      %v2469 = vpack.c.b16 %v2453, %v2453
      %v2470 = vpack.c.b16 %v2454, %v2454
      %v2471 = vpack.c.b16 %v2455, %v2455
      %v2472 = vpack.c.b16 %v2456, %v2456
      %v2473 = vpack.c.b16 %v2457, %v2457
      %v2474 = vpack.c.b16 %v2458, %v2458
      %v2475 = vpack.c.b16 %v2459, %v2459
      %v2476 = vpack.c.b16 %v2460, %v2460
      %v2477 = vpack.c.b16 %v2461, %v2461
      %v2478 = vpack.c.b16 %v2462, %v2462
      %v2479 = vpack.c.b16 %v2463, %v2463
      %2496 = vst [vmem:[%s275] sm:$0xf] %v2464
      %2497 = vst [vmem:[%s275 + $0x4] sm:$0xf] %v2465
      %2498 = vst [vmem:[%s275 + $0x8] sm:$0xf] %v2466
      %2499 = vst [vmem:[%s275 + $0xc] sm:$0xf] %v2467
      %2500 = vst [vmem:[%s275 + $0x10] sm:$0xf] %v2468
      %2501 = vst [vmem:[%s275 + $0x14] sm:$0xf] %v2469
      %2502 = vst [vmem:[%s275 + $0x18] sm:$0xf] %v2470
      %2503 = vst [vmem:[%s275 + $0x1c] sm:$0xf] %v2471
      %2504 = vst [vmem:[%s275 + $0x20] sm:$0xf] %v2472
      %2505 = vst [vmem:[%s275 + $0x24] sm:$0xf] %v2473
      %2506 = vst [vmem:[%s275 + $0x28] sm:$0xf] %v2474
      %2507 = vst [vmem:[%s275 + $0x2c] sm:$0xf] %v2475
      %2508 = vst [vmem:[%s275 + $0x30] sm:$0xf] %v2476
      %2509 = vst [vmem:[%s275 + $0x34] sm:$0xf] %v2477
      %2510 = vst [vmem:[%s275 + $0x38] sm:$0xf] %v2478
      %2511 = vst [vmem:[%s275 + $0x3c] sm:$0xf] %v2479
      %v2512 = vadd.f32 %v2416, %v2417
      %v2513 = vadd.f32 %v2512, %v2418
      %v2514 = vadd.f32 %v2513, %v2419
      %v2515 = vadd.f32 %v2514, %v2420
      %v2516 = vadd.f32 %v2515, %v2421
      %v2517 = vadd.f32 %v2516, %v2422
      %v2518 = vadd.f32 %v2517, %v2423
      %v2519 = vadd.f32 %v2518, %v2424
      %v2520 = vadd.f32 %v2519, %v2425
      %v2521 = vadd.f32 %v2520, %v2426
      %v2522 = vadd.f32 %v2521, %v2427
      %v2523 = vadd.f32 %v2522, %v2428
      %v2524 = vadd.f32 %v2523, %v2429
      %v2525 = vadd.f32 %v2524, %v2430
      %v2526 = vadd.f32 %v2525, %v2431
      %v2527 = vrot.slane %v2526, 4
      %v2528 = vadd.f32 %v2526, %v2527
      %v2529 = vrot.slane %v2528, 2
      %v2530 = vadd.f32 %v2528, %v2529
      %v2531 = vrot.slane %v2530, 1
      %v2532 = vadd.f32 %v2530, %v2531
      %v2533 = vmul.f32 %v2416, %v2416
      %v2534 = vmul.f32 %v2417, %v2417
      %v2535 = vmul.f32 %v2418, %v2418
      %v2536 = vmul.f32 %v2419, %v2419
      %v2537 = vmul.f32 %v2420, %v2420
      %v2538 = vmul.f32 %v2421, %v2421
      %v2539 = vmul.f32 %v2422, %v2422
      %v2540 = vmul.f32 %v2423, %v2423
      %v2541 = vmul.f32 %v2424, %v2424
      %v2542 = vmul.f32 %v2425, %v2425
      %v2543 = vmul.f32 %v2426, %v2426
      %v2544 = vmul.f32 %v2427, %v2427
      %v2545 = vmul.f32 %v2428, %v2428
      %v2546 = vmul.f32 %v2429, %v2429
      %v2547 = vmul.f32 %v2430, %v2430
      %v2548 = vmul.f32 %v2431, %v2431
      %v2549 = vadd.f32 %v2533, %v2534
      %v2550 = vadd.f32 %v2549, %v2535
      %v2551 = vadd.f32 %v2550, %v2536
      %v2552 = vadd.f32 %v2551, %v2537
      %v2553 = vadd.f32 %v2552, %v2538
      %v2554 = vadd.f32 %v2553, %v2539
      %v2555 = vadd.f32 %v2554, %v2540
      %v2556 = vadd.f32 %v2555, %v2541
      %v2557 = vadd.f32 %v2556, %v2542
      %v2558 = vadd.f32 %v2557, %v2543
      %v2559 = vadd.f32 %v2558, %v2544
      %v2560 = vadd.f32 %v2559, %v2545
      %v2561 = vadd.f32 %v2560, %v2546
      %v2562 = vadd.f32 %v2561, %v2547
      %v2563 = vadd.f32 %v2562, %v2548
      %v2564 = vrot.slane %v2563, 4
      %v2565 = vadd.f32 %v2563, %v2564
      %v2566 = vrot.slane %v2565, 2
      %v2567 = vadd.f32 %v2565, %v2566
      %v2568 = vrot.slane %v2567, 1
      %v2569 = vadd.f32 %v2567, %v2568
      %vm2570 = vcmask 1040384
      %v2571 = vsel %vm2570, %v2532, %v2569
      %2572 = vst [vmem:[%s284] sm:$0x3] %v2571
      %s2573 = smul.u32 8, %s22
      %p2574 = scmp.lt.s32.totalorder %s21, 1
      %s2575 = scalar_select %p2574, %s21, 1
      %p2576 = scmp.lt.s32.totalorder %s2573, 15
      %s2577 = scalar_select %p2576, %s2573, 15
      %s2578 = smul.addr %s2577, 2
      %s2579 = smul.addr %s2575, 32
      %s2580 = sadd.s32 %s2578, %s2579
      %s2581 = smul.addr %s2580, 4
      %s2582 = scalar_lea.vmem %s4, %s2581
      %p2583 = scmp.lt.s32.totalorder %s21, 1
      %s2584 = scalar_select %p2583, %s21, 1
      %p2585 = scmp.lt.s32.totalorder %s22, 1
      %s2586 = scalar_select %p2585, %s22, 1
      %s2587 = smul.addr %s2584, 2
      %s2588 = sadd.s32 %s2586, %s2587
      %s2589 = smul.addr %s2588, 2
      %s2590 = scalar_lea.vmem %s5, %s2589
      // Predicated region
      $region37: #{decoder_block_forward.4} parent=35 // pred_check
        %p2591 = pneg %p140
      $region38: #{decoder_block_forward.4} parent=35 // pred_check_branch
        %2593 = sbr.rel (%p2591) target = $region40
      $region39: #{decoder_block_forward.4} parent=35 // pred_region
        %s2594 = smul.u32 8, %s22
      $region40: #{decoder_block_forward.4} parent=35 // pred_fallthru
        _
      // Predicated region
      $region41: #{decoder_block_forward.4} parent=35 // pred_check
        %p2595 = pneg %p168
      $region42: #{decoder_block_forward.4} parent=35 // pred_check_branch
        %2597 = sbr.rel (%p2595) target = $region44
      $region43: #{decoder_block_forward.4} parent=35 // pred_region
        _
      $region44: #{decoder_block_forward.4} parent=35 // pred_fallthru
        _
    $region36: #{decoder_block_forward.4} parent=5 // pred_fallthru
      _
    %p2598 = scmp.le.s32.totalorder 2, %s12
    // Predicated region
    $region45: #{decoder_block_forward.4} parent=5 // pred_check
      %p2599 = pneg %p2598
    $region46: #{decoder_block_forward.4} parent=5 // pred_check_branch
      %2601 = sbr.rel (%p2599) target = $region48
    $region47: #{decoder_block_forward.4} parent=5 // pred_region
      %s2602 = ssub.s32 %s12, 2
      // Predicated region
      $region49: #{decoder_block_forward.4} parent=47 // pred_check
        %p2603 = pneg %p146
      $region50: #{decoder_block_forward.4} parent=47 // pred_check_branch
        %2605 = sbr.rel (%p2603) target = $region52
      $region51: #{decoder_block_forward.4} parent=47 // pred_region
        %s2606 = smul.u32 8, %s24
        %p2607 = scmp.lt.s32.totalorder %s23, 1
        %s2608 = scalar_select %p2607, %s23, 1
        %p2609 = scmp.lt.s32.totalorder %s2606, 15
        %s2610 = scalar_select %p2609, %s2606, 15
        %s2611 = smul.addr %s2610, 2
        %s2612 = smul.addr %s2608, 32
        %s2613 = sadd.s32 %s2611, %s2612
        %s2614 = smul.addr %s2613, 4
        %s2615 = scalar_lea.vmem %s4, %s2614
      $region52: #{decoder_block_forward.4} parent=47 // pred_fallthru
        _
      // Predicated region
      $region53: #{decoder_block_forward.4} parent=47 // pred_check
        %p2616 = pneg %p174
      $region54: #{decoder_block_forward.4} parent=47 // pred_check_branch
        %2618 = sbr.rel (%p2616) target = $region56
      $region55: #{decoder_block_forward.4} parent=47 // pred_region
        %p2619 = scmp.lt.s32.totalorder %s23, 1
        %s2620 = scalar_select %p2619, %s23, 1
        %p2621 = scmp.lt.s32.totalorder %s24, 1
        %s2622 = scalar_select %p2621, %s24, 1
        %s2623 = smul.addr %s2620, 2
        %s2624 = sadd.s32 %s2622, %s2623
        %s2625 = smul.addr %s2624, 2
        %s2626 = scalar_lea.vmem %s5, %s2625
      $region56: #{decoder_block_forward.4} parent=47 // pred_fallthru
        _
    $region48: #{decoder_block_forward.4} parent=5 // pred_fallthru
      _
  $region6: #{decoder_block_forward.4} parent=0 // loop_footer
    %s16 = sadd.s32 1, %s12
  $region7: #{decoder_block_forward.4} parent=0 // loop_footer_branch
    %11 = sbr.rel target = $region3
  $region8: #{decoder_block_forward.4} parent=0 // loop_exit
    _

// kernel: decoder_block_forward.3
$region0: #{decoder_block_forward.3}
  #allocation0 [shape = 'u32[]', space=smem, size = 0x4, offset = 0x4, fixed_abs, tag = 'smem constant byte address 0x4 - core index']
  #allocation1 [shape = 'u32[144,128]{1,0:T(1,128)}', space=vmem, size = 0x12000, scoped, tag = 'internal scratch']
  %s0 = inlined_call_operand.vmem [shape: bf16[2,2,10,18,128], index: 0, kind: input, shape index: {}]
  %s1 = inlined_call_operand.vmem [shape: bf16[2,2,10,18,128], index: 1, kind: input, shape index: {}]
  %s2 = inlined_call_operand.vmem [shape: bf16[9,128,128], index: 2, kind: input, shape index: {}]
  %s3 = inlined_call_operand.vmem [shape: bf16[9,128,128], index: 3, kind: input, shape index: {}]
  %s4 = inlined_call_operand.vmem [shape: bf16[2,16,16,128], index: 4, kind: output, shape index: {0}]
  %s5 = inlined_call_operand.vmem [shape: f32[2,2,2,128], index: 5, kind: output, shape index: {1}]
  %6 = xla_tuple %s4, %s5
  %s7 = sld [smem:[#allocation0]]
  $region57: #{decoder_block_forward.3} parent=0
    _
  %s9 = ssub.s32 1, %s7
  %s10 = scalar_select 0, %s9, %s7
  loop: start=0, step=1, limit=6
  $region2: #{decoder_block_forward.3} parent=0 // loop_pre_header
    _
  $region3: #{decoder_block_forward.3} parent=0 // loop_header
    %s12 = sphi 0, %s16
    %p13 = scmp.ge.s32.totalorder %s12, 6
    %s19 = sphi 0, %s31
    %s20 = sphi 0, %s27
    %s21 = sphi 0, %s19
    %s22 = sphi 0, %s20
    %s23 = sphi 0, %s21
    %s24 = sphi 0, %s22
    %s36 = sphi 0, %s38
    %s39 = sphi 0, %s36
    %s40 = sphi 0, %s39
    %s56 = sphi 0, %s40
    %s64 = sphi 0, %s66
    %s67 = sphi 0, %s64
    %s68 = sphi 0, %s67
    %s84 = sphi 0, %s68
    %s88 = sphi 0, %s88
    %s90 = sphi 0, %s88
    %s91 = sphi 0, %s90
    %s105 = sphi 0, %s91
    %s109 = sphi 0, %s109
    %s111 = sphi 0, %s109
    %s112 = sphi 0, %s111
    %s126 = sphi 0, %s112
    %s134 = sphi 0, %s136
    %s137 = sphi 0, %s134
    %s138 = sphi 0, %s137
    %s154 = sphi 0, %s138
    %s162 = sphi 0, %s164
    %s165 = sphi 0, %s162
    %s166 = sphi 0, %s165
    %s182 = sphi 0, %s166
  $region4: #{decoder_block_forward.3} parent=0 // loop_header_branch
    %15 = sbr.rel (%p13) target = $region8
  $region5: #{decoder_block_forward.3} parent=0 // loop_body
    %s17 = ssub.s32 %s12, 1
    %s18 = ssub.s32 %s12, 2
    %s25 = sadd.s32 1, %s20
    %p26 = scmp.ge.s32.totalorder %s25, 2
    %s27 = scalar_select %p26, 0, %s25
    %s28 = sadd.s32 1, %s19
    %s29 = scalar_select %p26, %s28, %s19
    %p30 = scmp.ge.s32.totalorder %s29, 2
    %s31 = scalar_select %p30, 0, %s29
    %s32 = ssub.s32 %s19, %s31
    %s33 = ssub.s32 %s20, %s27
    %s34 = sor.u32 %s32, %s33
    %p35 = scmp.eq.s32.totalorder %s34, 0
    %s37 = sadd.s32 %s36, 1
    %s38 = scalar_select %p35, %s36, %s37
    %p41 = pneg %p35
    %p42 = scmp.eq.s32.totalorder %s12, 3
    %p43 = por %p41, %p42
    %p44 = scmp.ne.s32.totalorder %s36, %s39
    %p45 = scmp.eq.s32.totalorder %s12, 0
    %p46 = por %p44, %p45
    %p47 = scmp.ne.s32.totalorder %s36, %s39
    %p48 = scmp.eq.s32.totalorder %s17, 3
    %p49 = por %p47, %p48
    %p50 = scmp.ne.s32.totalorder %s39, %s40
    %p51 = scmp.eq.s32.totalorder %s17, 0
    %p52 = por %p50, %p51
    %p53 = scmp.ne.s32.totalorder %s39, %s40
    %p54 = scmp.eq.s32.totalorder %s18, 3
    %p55 = por %p53, %p54
    %p57 = scmp.ne.s32.totalorder %s40, %s56
    %p58 = scmp.eq.s32.totalorder %s18, 0
    %p59 = por %p57, %p58
    %s60 = ssub.s32 %s19, %s31
    %s61 = ssub.s32 %s20, %s27
    %s62 = sor.u32 %s60, %s61
    %p63 = scmp.eq.s32.totalorder %s62, 0
    %s65 = sadd.s32 %s64, 1
    %s66 = scalar_select %p63, %s64, %s65
    %p69 = pneg %p63
    %p70 = scmp.eq.s32.totalorder %s12, 3
    %p71 = por %p69, %p70
    %p72 = scmp.ne.s32.totalorder %s64, %s67
    %p73 = scmp.eq.s32.totalorder %s12, 0
    %p74 = por %p72, %p73
    %p75 = scmp.ne.s32.totalorder %s64, %s67
    %p76 = scmp.eq.s32.totalorder %s17, 3
    %p77 = por %p75, %p76
    %p78 = scmp.ne.s32.totalorder %s67, %s68
    %p79 = scmp.eq.s32.totalorder %s17, 0
    %p80 = por %p78, %p79
    %p81 = scmp.ne.s32.totalorder %s67, %s68
    %p82 = scmp.eq.s32.totalorder %s18, 3
    %p83 = por %p81, %p82
    %p85 = scmp.ne.s32.totalorder %s68, %s84
    %p86 = scmp.eq.s32.totalorder %s18, 0
    %p87 = por %p85, %p86
    %s89 = sadd.s32 %s88, 1
    %p92 = scmp.eq.s32.totalorder %s12, 3
    %p93 = scmp.ne.s32.totalorder %s88, %s90
    %p94 = scmp.eq.s32.totalorder %s12, 0
    %p95 = por %p93, %p94
    %p96 = scmp.ne.s32.totalorder %s88, %s90
    %p97 = scmp.eq.s32.totalorder %s17, 3
    %p98 = por %p96, %p97
    %p99 = scmp.ne.s32.totalorder %s90, %s91
    %p100 = scmp.eq.s32.totalorder %s17, 0
    %p101 = por %p99, %p100
    %p102 = scmp.ne.s32.totalorder %s90, %s91
    %p103 = scmp.eq.s32.totalorder %s18, 3
    %p104 = por %p102, %p103
    %p106 = scmp.ne.s32.totalorder %s91, %s105
    %p107 = scmp.eq.s32.totalorder %s18, 0
    %p108 = por %p106, %p107
    %s110 = sadd.s32 %s109, 1
    %p113 = scmp.eq.s32.totalorder %s12, 3
    %p114 = scmp.ne.s32.totalorder %s109, %s111
    %p115 = scmp.eq.s32.totalorder %s12, 0
    %p116 = por %p114, %p115
    %p117 = scmp.ne.s32.totalorder %s109, %s111
    %p118 = scmp.eq.s32.totalorder %s17, 3
    %p119 = por %p117, %p118
    %p120 = scmp.ne.s32.totalorder %s111, %s112
    %p121 = scmp.eq.s32.totalorder %s17, 0
    %p122 = por %p120, %p121
    %p123 = scmp.ne.s32.totalorder %s111, %s112
    %p124 = scmp.eq.s32.totalorder %s18, 3
    %p125 = por %p123, %p124
    %p127 = scmp.ne.s32.totalorder %s112, %s126
    %p128 = scmp.eq.s32.totalorder %s18, 0
    %p129 = por %p127, %p128
    %s130 = ssub.s32 %s19, %s31
    %s131 = ssub.s32 %s20, %s27
    %s132 = sor.u32 %s130, %s131
    %p133 = scmp.eq.s32.totalorder %s132, 0
    %s135 = sadd.s32 %s134, 1
    %s136 = scalar_select %p133, %s134, %s135
    %p139 = pneg %p133
    %p140 = scmp.eq.s32.totalorder %s12, 3
    %p141 = por %p139, %p140
    %p142 = scmp.ne.s32.totalorder %s134, %s137
    %p143 = scmp.eq.s32.totalorder %s12, 0
    %p144 = por %p142, %p143
    %p145 = scmp.ne.s32.totalorder %s134, %s137
    %p146 = scmp.eq.s32.totalorder %s17, 3
    %p147 = por %p145, %p146
    %p148 = scmp.ne.s32.totalorder %s137, %s138
    %p149 = scmp.eq.s32.totalorder %s17, 0
    %p150 = por %p148, %p149
    %p151 = scmp.ne.s32.totalorder %s137, %s138
    %p152 = scmp.eq.s32.totalorder %s18, 3
    %p153 = por %p151, %p152
    %p155 = scmp.ne.s32.totalorder %s138, %s154
    %p156 = scmp.eq.s32.totalorder %s18, 0
    %p157 = por %p155, %p156
    %s158 = ssub.s32 %s19, %s31
    %s159 = ssub.s32 %s20, %s27
    %s160 = sor.u32 %s158, %s159
    %p161 = scmp.eq.s32.totalorder %s160, 0
    %s163 = sadd.s32 %s162, 1
    %s164 = scalar_select %p161, %s162, %s163
    %p167 = pneg %p161
    %p168 = scmp.eq.s32.totalorder %s12, 3
    %p169 = por %p167, %p168
    %p170 = scmp.ne.s32.totalorder %s162, %s165
    %p171 = scmp.eq.s32.totalorder %s12, 0
    %p172 = por %p170, %p171
    %p173 = scmp.ne.s32.totalorder %s162, %s165
    %p174 = scmp.eq.s32.totalorder %s17, 3
    %p175 = por %p173, %p174
    %p176 = scmp.ne.s32.totalorder %s165, %s166
    %p177 = scmp.eq.s32.totalorder %s17, 0
    %p178 = por %p176, %p177
    %p179 = scmp.ne.s32.totalorder %s165, %s166
    %p180 = scmp.eq.s32.totalorder %s18, 3
    %p181 = por %p179, %p180
    %p183 = scmp.ne.s32.totalorder %s166, %s182
    %p184 = scmp.eq.s32.totalorder %s18, 0
    %p185 = por %p183, %p184
    %p186 = scmp.le.s32.totalorder 1, %s12
    %p187 = scmp.lt.s32.totalorder %s12, 5
    %p188 = pnand %p186, %p187
    %p189 = pneg %p188
    // Predicated region
    $region9: #{decoder_block_forward.3} parent=5 // pred_check
      _
    $region10: #{decoder_block_forward.3} parent=5 // pred_check_branch
      %191 = sbr.rel (%p188) target = $region12
    $region11: #{decoder_block_forward.3} parent=5 // pred_region
      %s192 = ssub.s32 %s12, 1
      // Predicated region
      $region13: #{decoder_block_forward.3} parent=11 // pred_check
        %p193 = pneg %p101
      $region14: #{decoder_block_forward.3} parent=11 // pred_check_branch
        %195 = sbr.rel (%p193) target = $region16
      $region15: #{decoder_block_forward.3} parent=11 // pred_region
        _
      $region16: #{decoder_block_forward.3} parent=11 // pred_fallthru
        _
      // Predicated region
      $region17: #{decoder_block_forward.3} parent=11 // pred_check
        %p196 = pneg %p122
      $region18: #{decoder_block_forward.3} parent=11 // pred_check_branch
        %198 = sbr.rel (%p196) target = $region20
      $region19: #{decoder_block_forward.3} parent=11 // pred_region
        _
      $region20: #{decoder_block_forward.3} parent=11 // pred_fallthru
        _
    $region12: #{decoder_block_forward.3} parent=5 // pred_fallthru
      _
    %p199 = scmp.lt.s32.totalorder %s12, 4
    // Predicated region
    $region21: #{decoder_block_forward.3} parent=5 // pred_check
      %p200 = pneg %p199
    $region22: #{decoder_block_forward.3} parent=5 // pred_check_branch
      %202 = sbr.rel (%p200) target = $region24
    $region23: #{decoder_block_forward.3} parent=5 // pred_region
      // Predicated region
      $region25: #{decoder_block_forward.3} parent=23 // pred_check
        %p203 = pneg %p46
      $region26: #{decoder_block_forward.3} parent=23 // pred_check_branch
        %205 = sbr.rel (%p203) target = $region28
      $region27: #{decoder_block_forward.3} parent=23 // pred_region
        %p206 = scmp.lt.s32.totalorder %s19, 1
        %s207 = scalar_select %p206, %s19, 1
        %p208 = scmp.lt.s32.totalorder %s20, 1
        %s209 = scalar_select %p208, %s20, 1
        %s210 = smul.addr %s209, 30
        %s211 = smul.addr %s207, 60
        %s212 = sadd.s32 %s210, %s211
        %s213 = smul.addr %s212, 4
        %s214 = scalar_lea.vmem %s0, %s213
      $region28: #{decoder_block_forward.3} parent=23 // pred_fallthru
        _
      // Predicated region
      $region29: #{decoder_block_forward.3} parent=23 // pred_check
        %p215 = pneg %p74
      $region30: #{decoder_block_forward.3} parent=23 // pred_check_branch
        %217 = sbr.rel (%p215) target = $region32
      $region31: #{decoder_block_forward.3} parent=23 // pred_region
        %p218 = scmp.lt.s32.totalorder %s19, 1
        %s219 = scalar_select %p218, %s19, 1
        %p220 = scmp.lt.s32.totalorder %s20, 1
        %s221 = scalar_select %p220, %s20, 1
        %s222 = smul.addr %s221, 30
        %s223 = smul.addr %s219, 60
        %s224 = sadd.s32 %s222, %s223
        %s225 = smul.addr %s224, 4
        %s226 = scalar_lea.vmem %s1, %s225
      $region32: #{decoder_block_forward.3} parent=23 // pred_fallthru
        _
    $region24: #{decoder_block_forward.3} parent=5 // pred_fallthru
      _
    %p227 = scmp.le.s32.totalorder 1, %s12
    %p228 = scmp.lt.s32.totalorder %s12, 5
    %p229 = pnand %p227, %p228
    %p230 = pneg %p229
    // Predicated region
    $region33: #{decoder_block_forward.3} parent=5 // pred_check
      _
    $region34: #{decoder_block_forward.3} parent=5 // pred_check_branch
      %232 = sbr.rel (%p229) target = $region36
    $region35: #{decoder_block_forward.3} parent=5 // pred_region
      %s233 = ssub.s32 %s12, 1
      %p234 = scmp.lt.s32.totalorder %s21, 1
      %s235 = scalar_select %p234, %s21, 1
      %p236 = scmp.lt.s32.totalorder %s22, 1
      %s237 = scalar_select %p236, %s22, 1
      %s238 = smul.addr %s237, 30
      %s239 = smul.addr %s235, 60
      %s240 = sadd.s32 %s238, %s239
      %s241 = smul.addr %s240, 4
      %s242 = scalar_lea.vmem %s0, %s241
      %p243 = pneg %p52
      %p244 = pneg %p49
      %p245 = scmp.lt.s32.totalorder %s21, 1
      %s246 = scalar_select %p245, %s21, 1
      %p247 = scmp.lt.s32.totalorder %s22, 1
      %s248 = scalar_select %p247, %s22, 1
      %s249 = smul.addr %s248, 30
      %s250 = smul.addr %s246, 60
      %s251 = sadd.s32 %s249, %s250
      %s252 = smul.addr %s251, 4
      %s253 = scalar_lea.vmem %s1, %s252
      %p254 = pneg %p80
      %p255 = pneg %p77
      %p256 = pneg %p101
      %p257 = pneg %p98
      %p258 = pneg %p122
      %p259 = pneg %p119
      %p260 = pneg %p150
      %p261 = pneg %p147
      %s262 = smul.u32 8, %s22
      %p263 = scmp.lt.s32.totalorder %s21, 1
      %s264 = scalar_select %p263, %s21, 1
      %p265 = scmp.lt.s32.totalorder %s262, 15
      %s266 = scalar_select %p265, %s262, 15
      %s267 = smul.addr %s266, 2
      %s268 = smul.addr %s264, 32
      %s269 = sadd.s32 %s267, %s268
      %s270 = smul.addr %s269, 4
      %s271 = scalar_lea.vmem %s4, %s270
      %p272 = pneg %p178
      %p273 = pneg %p175
      %p274 = scmp.lt.s32.totalorder %s21, 1
      %s275 = scalar_select %p274, %s21, 1
      %p276 = scmp.lt.s32.totalorder %s22, 1
      %s277 = scalar_select %p276, %s22, 1
      %s278 = smul.addr %s275, 2
      %s279 = sadd.s32 %s277, %s278
      %s280 = smul.addr %s279, 2
      %s281 = scalar_lea.vmem %s5, %s280
      %p282 = scmp.lt.s32.totalorder %s21, 1
      %s283 = scalar_select %p282, %s21, 1
      %p284 = scmp.lt.s32.totalorder %s22, 1
      %s285 = scalar_select %p284, %s22, 1
      %s286 = smul.addr %s285, 30
      %s287 = smul.addr %s283, 60
      %s288 = sadd.s32 %s286, %s287
      %s289 = smul.addr %s288, 4
      %s290 = scalar_lea.vmem %s0, %s289
      %p291 = scmp.lt.s32.totalorder %s21, 1
      %s292 = scalar_select %p291, %s21, 1
      %p293 = scmp.lt.s32.totalorder %s22, 1
      %s294 = scalar_select %p293, %s22, 1
      %s295 = smul.addr %s294, 30
      %s296 = smul.addr %s292, 60
      %s297 = sadd.s32 %s295, %s296
      %s298 = smul.addr %s297, 4
      %s299 = scalar_lea.vmem %s1, %s298
      %s300 = smul.u32 8, %s22
      %p301 = scmp.lt.s32.totalorder %s21, 1
      %s302 = scalar_select %p301, %s21, 1
      %p303 = scmp.lt.s32.totalorder %s300, 15
      %s304 = scalar_select %p303, %s300, 15
      %s305 = smul.addr %s304, 2
      %s306 = smul.addr %s302, 32
      %s307 = sadd.s32 %s305, %s306
      %s308 = smul.addr %s307, 4
      %s309 = scalar_lea.vmem %s4, %s308
      %s310 = smul.u32 8, %s22
      %p311 = scmp.lt.s32.totalorder %s21, 1
      %s312 = scalar_select %p311, %s21, 1
      %p313 = scmp.lt.s32.totalorder %s22, 1
      %s314 = scalar_select %p313, %s22, 1
      %s315 = smul.addr %s312, 2
      %s316 = sadd.s32 %s314, %s315
      %s317 = smul.addr %s316, 2
      %s318 = scalar_lea.vmem %s5, %s317
      %v320 = vld [vmem:[%s290] sm:$0xf]
      %v321 = vld [vmem:[%s290 + $0x4] sm:$0xf]
      %v322 = vld [vmem:[%s290 + $0x8] sm:$0x1]
      %v323 = vld [vmem:[%s290 + $0xc] sm:$0xf]
      %v324 = vld [vmem:[%s290 + $0x10] sm:$0xf]
      %v325 = vld [vmem:[%s290 + $0x14] sm:$0x1]
      %v326 = vld [vmem:[%s290 + $0x18] sm:$0xf]
      %v327 = vld [vmem:[%s290 + $0x1c] sm:$0xf]
      %v328 = vld [vmem:[%s290 + $0x20] sm:$0x1]
      %v329 = vld [vmem:[%s290 + $0x24] sm:$0xf]
      %v330 = vld [vmem:[%s290 + $0x28] sm:$0xf]
      %v331 = vld [vmem:[%s290 + $0x2c] sm:$0x1]
      %v332 = vld [vmem:[%s290 + $0x30] sm:$0xf]
      %v333 = vld [vmem:[%s290 + $0x34] sm:$0xf]
      %v334 = vld [vmem:[%s290 + $0x38] sm:$0x1]
      %v335 = vld [vmem:[%s290 + $0x3c] sm:$0xf]
      %v336 = vld [vmem:[%s290 + $0x40] sm:$0xf]
      %v337 = vld [vmem:[%s290 + $0x44] sm:$0x1]
      %v338 = vld [vmem:[%s290 + $0x48] sm:$0xf]
      %v339 = vld [vmem:[%s290 + $0x4c] sm:$0xf]
      %v340 = vld [vmem:[%s290 + $0x50] sm:$0x1]
      %v341 = vld [vmem:[%s290 + $0x54] sm:$0xf]
      %v342 = vld [vmem:[%s290 + $0x58] sm:$0xf]
      %v343 = vld [vmem:[%s290 + $0x5c] sm:$0x1]
      %v344 = vld [vmem:[%s290 + $0x60] sm:$0xf]
      %v345 = vld [vmem:[%s290 + $0x64] sm:$0xf]
      %v346 = vld [vmem:[%s290 + $0x68] sm:$0x1]
      %v347 = vld [vmem:[%s290 + $0x6c] sm:$0xf]
      %v348 = vld [vmem:[%s290 + $0x70] sm:$0xf]
      %v349 = vld [vmem:[%s290 + $0x74] sm:$0x1]
      %v350 = vld [vmem:[%s299] sm:$0xf]
      %v351 = vld [vmem:[%s299 + $0x4] sm:$0xf]
      %v352 = vld [vmem:[%s299 + $0x8] sm:$0x1]
      %v353 = vld [vmem:[%s299 + $0xc] sm:$0xf]
      %v354 = vld [vmem:[%s299 + $0x10] sm:$0xf]
      %v355 = vld [vmem:[%s299 + $0x14] sm:$0x1]
      %v356 = vld [vmem:[%s299 + $0x18] sm:$0xf]
      %v357 = vld [vmem:[%s299 + $0x1c] sm:$0xf]
      %v358 = vld [vmem:[%s299 + $0x20] sm:$0x1]
      %v359 = vld [vmem:[%s299 + $0x24] sm:$0xf]
      %v360 = vld [vmem:[%s299 + $0x28] sm:$0xf]
      %v361 = vld [vmem:[%s299 + $0x2c] sm:$0x1]
      %v362 = vld [vmem:[%s299 + $0x30] sm:$0xf]
      %v363 = vld [vmem:[%s299 + $0x34] sm:$0xf]
      %v364 = vld [vmem:[%s299 + $0x38] sm:$0x1]
      %v365 = vld [vmem:[%s299 + $0x3c] sm:$0xf]
      %v366 = vld [vmem:[%s299 + $0x40] sm:$0xf]
      %v367 = vld [vmem:[%s299 + $0x44] sm:$0x1]
      %v368 = vld [vmem:[%s299 + $0x48] sm:$0xf]
      %v369 = vld [vmem:[%s299 + $0x4c] sm:$0xf]
      %v370 = vld [vmem:[%s299 + $0x50] sm:$0x1]
      %v371 = vld [vmem:[%s299 + $0x54] sm:$0xf]
      %v372 = vld [vmem:[%s299 + $0x58] sm:$0xf]
      %v373 = vld [vmem:[%s299 + $0x5c] sm:$0x1]
      %v374 = vld [vmem:[%s299 + $0x60] sm:$0xf]
      %v375 = vld [vmem:[%s299 + $0x64] sm:$0xf]
      %v376 = vld [vmem:[%s299 + $0x68] sm:$0x1]
      %v377 = vld [vmem:[%s299 + $0x6c] sm:$0xf]
      %v378 = vld [vmem:[%s299 + $0x70] sm:$0xf]
      %v379 = vld [vmem:[%s299 + $0x74] sm:$0x1]
      %v380 = vld [vmem:[%s2] sm:$0xf]
      %v381 = vld [vmem:[%s2 + $0x4] sm:$0xf]
      %v382 = vld [vmem:[%s2 + $0x8] sm:$0xf]
      %v383 = vld [vmem:[%s2 + $0xc] sm:$0xf]
      %v384 = vld [vmem:[%s2 + $0x10] sm:$0xf]
      %v385 = vld [vmem:[%s2 + $0x14] sm:$0xf]
      %v386 = vld [vmem:[%s2 + $0x18] sm:$0xf]
      %v387 = vld [vmem:[%s2 + $0x1c] sm:$0xf]
      %v388 = vld [vmem:[%s2 + $0x20] sm:$0xf]
      %v389 = vld [vmem:[%s2 + $0x24] sm:$0xf]
      %v390 = vld [vmem:[%s2 + $0x28] sm:$0xf]
      %v391 = vld [vmem:[%s2 + $0x2c] sm:$0xf]
      %v392 = vld [vmem:[%s2 + $0x30] sm:$0xf]
      %v393 = vld [vmem:[%s2 + $0x34] sm:$0xf]
      %v394 = vld [vmem:[%s2 + $0x38] sm:$0xf]
      %v395 = vld [vmem:[%s2 + $0x3c] sm:$0xf]
      %v396 = vld [vmem:[%s3] sm:$0xf]
      %v397 = vld [vmem:[%s3 + $0x4] sm:$0xf]
      %v398 = vld [vmem:[%s3 + $0x8] sm:$0xf]
      %v399 = vld [vmem:[%s3 + $0xc] sm:$0xf]
      %v400 = vld [vmem:[%s3 + $0x10] sm:$0xf]
      %v401 = vld [vmem:[%s3 + $0x14] sm:$0xf]
      %v402 = vld [vmem:[%s3 + $0x18] sm:$0xf]
      %v403 = vld [vmem:[%s3 + $0x1c] sm:$0xf]
      %v404 = vld [vmem:[%s3 + $0x20] sm:$0xf]
      %v405 = vld [vmem:[%s3 + $0x24] sm:$0xf]
      %v406 = vld [vmem:[%s3 + $0x28] sm:$0xf]
      %v407 = vld [vmem:[%s3 + $0x2c] sm:$0xf]
      %v408 = vld [vmem:[%s3 + $0x30] sm:$0xf]
      %v409 = vld [vmem:[%s3 + $0x34] sm:$0xf]
      %v410 = vld [vmem:[%s3 + $0x38] sm:$0xf]
      %v411 = vld [vmem:[%s3 + $0x3c] sm:$0xf]
      %v428 = vunpack.c.l.b16 %v350
      %v429 = vunpack.c.l.b16 %v351
      %v430 = vunpack.c.l.b16 %v353
      %v431 = vunpack.c.l.b16 %v354
      %v432 = vunpack.c.l.b16 %v356
      %v433 = vunpack.c.l.b16 %v357
      %v434 = vunpack.c.l.b16 %v359
      %v435 = vunpack.c.l.b16 %v360
      %v436 = vunpack.c.l.b16 %v362
      %v437 = vunpack.c.l.b16 %v363
      %v438 = vunpack.c.l.b16 %v365
      %v439 = vunpack.c.l.b16 %v366
      %v440 = vunpack.c.l.b16 %v368
      %v441 = vunpack.c.l.b16 %v369
      %v442 = vunpack.c.l.b16 %v371
      %v443 = vunpack.c.l.b16 %v372
      %v444 = vpack.c.b16 %v429, %v428
      %v445 = vpack.c.b16 %v431, %v430
      %v446 = vpack.c.b16 %v433, %v432
      %v447 = vpack.c.b16 %v435, %v434
      %v448 = vpack.c.b16 %v437, %v436
      %v449 = vpack.c.b16 %v439, %v438
      %v450 = vpack.c.b16 %v441, %v440
      %v451 = vpack.c.b16 %v443, %v442
      %v476 = vunpack.c.l.b16 %v396
      %v477 = vunpack.c.l.b16 %v397
      %v478 = vunpack.c.l.b16 %v398
      %v479 = vunpack.c.l.b16 %v399
      %v480 = vunpack.c.l.b16 %v400
      %v481 = vunpack.c.l.b16 %v401
      %v482 = vunpack.c.l.b16 %v402
      %v483 = vunpack.c.l.b16 %v403
      %v484 = vunpack.c.l.b16 %v404
      %v485 = vunpack.c.l.b16 %v405
      %v486 = vunpack.c.l.b16 %v406
      %v487 = vunpack.c.l.b16 %v407
      %v488 = vunpack.c.l.b16 %v408
      %v489 = vunpack.c.l.b16 %v409
      %v490 = vunpack.c.l.b16 %v410
      %v491 = vunpack.c.l.b16 %v411
      %v492 = vpack.c.b16 %v477, %v476
      %v493 = vpack.c.b16 %v479, %v478
      %v494 = vpack.c.b16 %v481, %v480
      %v495 = vpack.c.b16 %v483, %v482
      %v496 = vpack.c.b16 %v485, %v484
      %v497 = vpack.c.b16 %v487, %v486
      %v498 = vpack.c.b16 %v489, %v488
      %v499 = vpack.c.b16 %v491, %v490
      %508 = vmatprep.subr.bf16.mxu0 0
      %509 = vmatpush1.bf16.msra.mxu0 %v492
      %510 = vmatprep.subr.bf16.mxu0 0
      %511 = vmatpush1.bf16.msra.mxu0 %v493
      %512 = vmatprep.subr.bf16.mxu0 0
      %513 = vmatpush1.bf16.msra.mxu0 %v494
      %514 = vmatprep.subr.bf16.mxu0 0
      %515 = vmatpush1.bf16.msra.mxu0 %v495
      %516 = vmatprep.subr.bf16.mxu0 0
      %517 = vmatpush1.bf16.msra.mxu0 %v496
      %518 = vmatprep.subr.bf16.mxu0 0
      %519 = vmatpush1.bf16.msra.mxu0 %v497
      %520 = vmatprep.subr.bf16.mxu0 0
      %521 = vmatpush1.bf16.msra.mxu0 %v498
      %522 = vmatprep.subr.bf16.mxu0 0
      %523 = vmatpush1.bf16.msra.mxu0 %v499
      %524 = vmatprep.subr.bf16.mxu0 0
      %525 = vmatpush1.bf16.msra.mxu0 0
      %526 = vmatprep.subr.bf16.mxu0 0
      %527 = vmatpush1.bf16.msra.mxu0 0
      %528 = vmatprep.subr.bf16.mxu0 0
      %529 = vmatpush1.bf16.msra.mxu0 0
      %530 = vmatprep.subr.bf16.mxu0 0
      %531 = vmatpush1.bf16.msra.mxu0 0
      %532 = vmatprep.subr.bf16.mxu0 0
      %533 = vmatpush1.bf16.msra.mxu0 0
      %534 = vmatprep.subr.bf16.mxu0 0
      %535 = vmatpush1.bf16.msra.mxu0 0
      %536 = vmatprep.subr.bf16.mxu0 0
      %537 = vmatpush1.bf16.msra.mxu0 0
      %538 = vmatprep.subr.bf16.mxu0 0
      %539 = vmatpush1.bf16.msra.mxu0 0
      %540 = vmatprep.mubr.bf16.mxu0 0
      %541 = vmatmul.mubr.bf16.gmra.mrb[0].mxu0 %v444
      %v542 = vpop.f32.mrb[0].mxu0
      %v543 = vadd.f32 0.0, %v542
      %v544 = vpop.f32.mrb[0].mxu0
      %v545 = vpop.f32.mrb[0].mxu0
      %v546 = vadd.f32 0.0, %v545
      %v547 = vpop.f32.mrb[0].mxu0
      %548 = vmatprep.mubr.bf16.mxu0 0
      %549 = vmatmul.mubr.bf16.gmra.mrb[0].mxu0 %v445
      %v550 = vpop.f32.mrb[0].mxu0
      %v551 = vadd.f32 0.0, %v550
      %v552 = vpop.f32.mrb[0].mxu0
      %v553 = vpop.f32.mrb[0].mxu0
      %v554 = vadd.f32 0.0, %v553
      %v555 = vpop.f32.mrb[0].mxu0
      %556 = vmatprep.mubr.bf16.mxu0 0
      %557 = vmatmul.mubr.bf16.gmra.mrb[0].mxu0 %v446
      %v558 = vpop.f32.mrb[0].mxu0
      %v559 = vadd.f32 0.0, %v558
      %v560 = vpop.f32.mrb[0].mxu0
      %v561 = vpop.f32.mrb[0].mxu0
      %v562 = vadd.f32 0.0, %v561
      %v563 = vpop.f32.mrb[0].mxu0
      %564 = vmatprep.mubr.bf16.mxu0 0
      %565 = vmatmul.mubr.bf16.gmra.mrb[0].mxu0 %v447
      %v566 = vpop.f32.mrb[0].mxu0
      %v567 = vadd.f32 0.0, %v566
      %v568 = vpop.f32.mrb[0].mxu0
      %v569 = vpop.f32.mrb[0].mxu0
      %v570 = vadd.f32 0.0, %v569
      %v571 = vpop.f32.mrb[0].mxu0
      %572 = vmatprep.mubr.bf16.mxu0 0
      %573 = vmatmul.mubr.bf16.gmra.mrb[0].mxu0 %v448
      %v574 = vpop.f32.mrb[0].mxu0
      %v575 = vadd.f32 0.0, %v574
      %v576 = vpop.f32.mrb[0].mxu0
      %v577 = vpop.f32.mrb[0].mxu0
      %v578 = vadd.f32 0.0, %v577
      %v579 = vpop.f32.mrb[0].mxu0
      %580 = vmatprep.mubr.bf16.mxu0 0
      %581 = vmatmul.mubr.bf16.gmra.mrb[0].mxu0 %v449
      %v582 = vpop.f32.mrb[0].mxu0
      %v583 = vadd.f32 0.0, %v582
      %v584 = vpop.f32.mrb[0].mxu0
      %v585 = vpop.f32.mrb[0].mxu0
      %v586 = vadd.f32 0.0, %v585
      %v587 = vpop.f32.mrb[0].mxu0
      %588 = vmatprep.mubr.bf16.mxu0 0
      %589 = vmatmul.mubr.bf16.gmra.mrb[0].mxu0 %v450
      %v590 = vpop.f32.mrb[0].mxu0
      %v591 = vadd.f32 0.0, %v590
      %v592 = vpop.f32.mrb[0].mxu0
      %v593 = vpop.f32.mrb[0].mxu0
      %v594 = vadd.f32 0.0, %v593
      %v595 = vpop.f32.mrb[0].mxu0
      %596 = vmatprep.mubr.bf16.mxu0 0
      %597 = vmatmul.mubr.bf16.gmra.mrb[0].mxu0 %v451
      %v598 = vpop.f32.mrb[0].mxu0
      %v599 = vadd.f32 0.0, %v598
      %v600 = vpop.f32.mrb[0].mxu0
      %v601 = vpop.f32.mrb[0].mxu0
      %v602 = vadd.f32 0.0, %v601
      %v603 = vpop.f32.mrb[0].mxu0
      %604 = vdwg.mxu0
      %v621 = vunpack.c.l.b16 %v320
      %v622 = vunpack.c.l.b16 %v321
      %v623 = vunpack.c.l.b16 %v323
      %v624 = vunpack.c.l.b16 %v324
      %v625 = vunpack.c.l.b16 %v326
      %v626 = vunpack.c.l.b16 %v327
      %v627 = vunpack.c.l.b16 %v329
      %v628 = vunpack.c.l.b16 %v330
      %v629 = vunpack.c.l.b16 %v332
      %v630 = vunpack.c.l.b16 %v333
      %v631 = vunpack.c.l.b16 %v335
      %v632 = vunpack.c.l.b16 %v336
      %v633 = vunpack.c.l.b16 %v338
      %v634 = vunpack.c.l.b16 %v339
      %v635 = vunpack.c.l.b16 %v341
      %v636 = vunpack.c.l.b16 %v342
      %v637 = vpack.c.b16 %v622, %v621
      %v638 = vpack.c.b16 %v624, %v623
      %v639 = vpack.c.b16 %v626, %v625
      %v640 = vpack.c.b16 %v628, %v627
      %v641 = vpack.c.b16 %v630, %v629
      %v642 = vpack.c.b16 %v632, %v631
      %v643 = vpack.c.b16 %v634, %v633
      %v644 = vpack.c.b16 %v636, %v635
      %v669 = vunpack.c.l.b16 %v380
      %v670 = vunpack.c.l.b16 %v381
      %v671 = vunpack.c.l.b16 %v382
      %v672 = vunpack.c.l.b16 %v383
      %v673 = vunpack.c.l.b16 %v384
      %v674 = vunpack.c.l.b16 %v385
      %v675 = vunpack.c.l.b16 %v386
      %v676 = vunpack.c.l.b16 %v387
      %v677 = vunpack.c.l.b16 %v388
      %v678 = vunpack.c.l.b16 %v389
      %v679 = vunpack.c.l.b16 %v390
      %v680 = vunpack.c.l.b16 %v391
      %v681 = vunpack.c.l.b16 %v392
      %v682 = vunpack.c.l.b16 %v393
      %v683 = vunpack.c.l.b16 %v394
      %v684 = vunpack.c.l.b16 %v395
      %v685 = vpack.c.b16 %v670, %v669
      %v686 = vpack.c.b16 %v672, %v671
      %v687 = vpack.c.b16 %v674, %v673
      %v688 = vpack.c.b16 %v676, %v675
      %v689 = vpack.c.b16 %v678, %v677
      %v690 = vpack.c.b16 %v680, %v679
      %v691 = vpack.c.b16 %v682, %v681
      %v692 = vpack.c.b16 %v684, %v683
      %701 = vmatprep.subr.bf16.mxu0 0
      %702 = vmatpush1.bf16.msra.mxu0 %v685
      %703 = vmatprep.subr.bf16.mxu0 0
      %704 = vmatpush1.bf16.msra.mxu0 %v686
      %705 = vmatprep.subr.bf16.mxu0 0
      %706 = vmatpush1.bf16.msra.mxu0 %v687
      %707 = vmatprep.subr.bf16.mxu0 0
      %708 = vmatpush1.bf16.msra.mxu0 %v688
      %709 = vmatprep.subr.bf16.mxu0 0
      %710 = vmatpush1.bf16.msra.mxu0 %v689
      %711 = vmatprep.subr.bf16.mxu0 0
      %712 = vmatpush1.bf16.msra.mxu0 %v690
      %713 = vmatprep.subr.bf16.mxu0 0
      %714 = vmatpush1.bf16.msra.mxu0 %v691
      %715 = vmatprep.subr.bf16.mxu0 0
      %716 = vmatpush1.bf16.msra.mxu0 %v692
      %717 = vmatprep.subr.bf16.mxu0 0
      %718 = vmatpush1.bf16.msra.mxu0 0
      %719 = vmatprep.subr.bf16.mxu0 0
      %720 = vmatpush1.bf16.msra.mxu0 0
      %721 = vmatprep.subr.bf16.mxu0 0
      %722 = vmatpush1.bf16.msra.mxu0 0
      %723 = vmatprep.subr.bf16.mxu0 0
      %724 = vmatpush1.bf16.msra.mxu0 0
      %725 = vmatprep.subr.bf16.mxu0 0
      %726 = vmatpush1.bf16.msra.mxu0 0
      %727 = vmatprep.subr.bf16.mxu0 0
      %728 = vmatpush1.bf16.msra.mxu0 0
      %729 = vmatprep.subr.bf16.mxu0 0
      %730 = vmatpush1.bf16.msra.mxu0 0
      %731 = vmatprep.subr.bf16.mxu0 0
      %732 = vmatpush1.bf16.msra.mxu0 0
      %733 = vmatprep.mubr.bf16.mxu0 0
      %734 = vmatmul.mubr.bf16.gmra.mrb[0].mxu0 %v637
      %v735 = vpop.f32.mrb[0].mxu0
      %v736 = vadd.f32 %v543, %v735
      %v737 = vpop.f32.mrb[0].mxu0
      %v738 = vpop.f32.mrb[0].mxu0
      %v739 = vadd.f32 %v546, %v738
      %v740 = vpop.f32.mrb[0].mxu0
      %741 = vmatprep.mubr.bf16.mxu0 0
      %742 = vmatmul.mubr.bf16.gmra.mrb[0].mxu0 %v638
      %v743 = vpop.f32.mrb[0].mxu0
      %v744 = vadd.f32 %v551, %v743
      %v745 = vpop.f32.mrb[0].mxu0
      %v746 = vpop.f32.mrb[0].mxu0
      %v747 = vadd.f32 %v554, %v746
      %v748 = vpop.f32.mrb[0].mxu0
      %749 = vmatprep.mubr.bf16.mxu0 0
      %750 = vmatmul.mubr.bf16.gmra.mrb[0].mxu0 %v639
      %v751 = vpop.f32.mrb[0].mxu0
      %v752 = vadd.f32 %v559, %v751
      %v753 = vpop.f32.mrb[0].mxu0
      %v754 = vpop.f32.mrb[0].mxu0
      %v755 = vadd.f32 %v562, %v754
      %v756 = vpop.f32.mrb[0].mxu0
      %757 = vmatprep.mubr.bf16.mxu0 0
      %758 = vmatmul.mubr.bf16.gmra.mrb[0].mxu0 %v640
      %v759 = vpop.f32.mrb[0].mxu0
      %v760 = vadd.f32 %v567, %v759
      %v761 = vpop.f32.mrb[0].mxu0
      %v762 = vpop.f32.mrb[0].mxu0
      %v763 = vadd.f32 %v570, %v762
      %v764 = vpop.f32.mrb[0].mxu0
      %765 = vmatprep.mubr.bf16.mxu0 0
      %766 = vmatmul.mubr.bf16.gmra.mrb[0].mxu0 %v641
      %v767 = vpop.f32.mrb[0].mxu0
      %v768 = vadd.f32 %v575, %v767
      %v769 = vpop.f32.mrb[0].mxu0
      %v770 = vpop.f32.mrb[0].mxu0
      %v771 = vadd.f32 %v578, %v770
      %v772 = vpop.f32.mrb[0].mxu0
      %773 = vmatprep.mubr.bf16.mxu0 0
      %774 = vmatmul.mubr.bf16.gmra.mrb[0].mxu0 %v642
      %v775 = vpop.f32.mrb[0].mxu0
      %v776 = vadd.f32 %v583, %v775
      %v777 = vpop.f32.mrb[0].mxu0
      %v778 = vpop.f32.mrb[0].mxu0
      %v779 = vadd.f32 %v586, %v778
      %v780 = vpop.f32.mrb[0].mxu0
      %781 = vmatprep.mubr.bf16.mxu0 0
      %782 = vmatmul.mubr.bf16.gmra.mrb[0].mxu0 %v643
      %v783 = vpop.f32.mrb[0].mxu0
      %v784 = vadd.f32 %v591, %v783
      %v785 = vpop.f32.mrb[0].mxu0
      %v786 = vpop.f32.mrb[0].mxu0
      %v787 = vadd.f32 %v594, %v786
      %v788 = vpop.f32.mrb[0].mxu0
      %789 = vmatprep.mubr.bf16.mxu0 0
      %790 = vmatmul.mubr.bf16.gmra.mrb[0].mxu0 %v644
      %v791 = vpop.f32.mrb[0].mxu0
      %v792 = vadd.f32 %v599, %v791
      %v793 = vpop.f32.mrb[0].mxu0
      %v794 = vpop.f32.mrb[0].mxu0
      %v795 = vadd.f32 %v602, %v794
      %v796 = vpop.f32.mrb[0].mxu0
      %797 = vdwg.mxu0
      %vm798 = vsmask.f32 3328
      %vm799 = vsmask.f32 7440
      %vm800 = vmor %vm798, %vm799
      %v802 = vshrl.u32 %v320, 16
      %v804 = vrot.slane %v802, 4
      %v805 = vshll.u32 %v320, 16
      %v807 = vrot.slane %v805, 5
      %v808 = vor.u32 %v804, %v807
      %v809 = vrot.slane %v808, 4
      %v811 = vshll.u32 %v321, 16
      %v813 = vrot.slane %v811, 5
      %v814 = vsel %vm800, %v809, %v813
      %v815 = vshrl.u32 %v321, 16
      %v817 = vrot.slane %v815, 4
      %v818 = vor.u32 %v817, %v813
      %v819 = vrot.slane %v818, 4
      %v821 = vshll.u32 %v322, 16
      %v823 = vrot.slane %v821, 5
      %v824 = vsel %vm800, %v819, %v823
      %v826 = vshrl.u32 %v323, 16
      %v828 = vrot.slane %v826, 4
      %v829 = vshll.u32 %v323, 16
      %v831 = vrot.slane %v829, 5
      %v832 = vor.u32 %v828, %v831
      %v833 = vrot.slane %v832, 4
      %v835 = vshll.u32 %v324, 16
      %v837 = vrot.slane %v835, 5
      %v838 = vsel %vm800, %v833, %v837
      %v839 = vshrl.u32 %v324, 16
      %v841 = vrot.slane %v839, 4
      %v842 = vor.u32 %v841, %v837
      %v843 = vrot.slane %v842, 4
      %v845 = vshll.u32 %v325, 16
      %v847 = vrot.slane %v845, 5
      %v848 = vsel %vm800, %v843, %v847
      %v850 = vshrl.u32 %v326, 16
      %v852 = vrot.slane %v850, 4
      %v853 = vshll.u32 %v326, 16
      %v855 = vrot.slane %v853, 5
      %v856 = vor.u32 %v852, %v855
      %v857 = vrot.slane %v856, 4
      %v859 = vshll.u32 %v327, 16
      %v861 = vrot.slane %v859, 5
      %v862 = vsel %vm800, %v857, %v861
      %v863 = vshrl.u32 %v327, 16
      %v865 = vrot.slane %v863, 4
      %v866 = vor.u32 %v865, %v861
      %v867 = vrot.slane %v866, 4
      %v869 = vshll.u32 %v328, 16
      %v871 = vrot.slane %v869, 5
      %v872 = vsel %vm800, %v867, %v871
      %v874 = vshrl.u32 %v329, 16
      %v876 = vrot.slane %v874, 4
      %v877 = vshll.u32 %v329, 16
      %v879 = vrot.slane %v877, 5
      %v880 = vor.u32 %v876, %v879
      %v881 = vrot.slane %v880, 4
      %v883 = vshll.u32 %v330, 16
      %v885 = vrot.slane %v883, 5
      %v886 = vsel %vm800, %v881, %v885
      %v887 = vshrl.u32 %v330, 16
      %v889 = vrot.slane %v887, 4
      %v890 = vor.u32 %v889, %v885
      %v891 = vrot.slane %v890, 4
      %v893 = vshll.u32 %v331, 16
      %v895 = vrot.slane %v893, 5
      %v896 = vsel %vm800, %v891, %v895
      %v898 = vshrl.u32 %v332, 16
      %v900 = vrot.slane %v898, 4
      %v901 = vshll.u32 %v332, 16
      %v903 = vrot.slane %v901, 5
      %v904 = vor.u32 %v900, %v903
      %v905 = vrot.slane %v904, 4
      %v907 = vshll.u32 %v333, 16
      %v909 = vrot.slane %v907, 5
      %v910 = vsel %vm800, %v905, %v909
      %v911 = vshrl.u32 %v333, 16
      %v913 = vrot.slane %v911, 4
      %v914 = vor.u32 %v913, %v909
      %v915 = vrot.slane %v914, 4
      %v917 = vshll.u32 %v334, 16
      %v919 = vrot.slane %v917, 5
      %v920 = vsel %vm800, %v915, %v919
      %v922 = vshrl.u32 %v335, 16
      %v924 = vrot.slane %v922, 4
      %v925 = vshll.u32 %v335, 16
      %v927 = vrot.slane %v925, 5
      %v928 = vor.u32 %v924, %v927
      %v929 = vrot.slane %v928, 4
      %v931 = vshll.u32 %v336, 16
      %v933 = vrot.slane %v931, 5
      %v934 = vsel %vm800, %v929, %v933
      %v935 = vshrl.u32 %v336, 16
      %v937 = vrot.slane %v935, 4
      %v938 = vor.u32 %v937, %v933
      %v939 = vrot.slane %v938, 4
      %v941 = vshll.u32 %v337, 16
      %v943 = vrot.slane %v941, 5
      %v944 = vsel %vm800, %v939, %v943
      %v946 = vshrl.u32 %v338, 16
      %v948 = vrot.slane %v946, 4
      %v949 = vshll.u32 %v338, 16
      %v951 = vrot.slane %v949, 5
      %v952 = vor.u32 %v948, %v951
      %v953 = vrot.slane %v952, 4
      %v955 = vshll.u32 %v339, 16
      %v957 = vrot.slane %v955, 5
      %v958 = vsel %vm800, %v953, %v957
      %v959 = vshrl.u32 %v339, 16
      %v961 = vrot.slane %v959, 4
      %v962 = vor.u32 %v961, %v957
      %v963 = vrot.slane %v962, 4
      %v965 = vshll.u32 %v340, 16
      %v967 = vrot.slane %v965, 5
      %v968 = vsel %vm800, %v963, %v967
      %v970 = vshrl.u32 %v341, 16
      %v972 = vrot.slane %v970, 4
      %v973 = vshll.u32 %v341, 16
      %v975 = vrot.slane %v973, 5
      %v976 = vor.u32 %v972, %v975
      %v977 = vrot.slane %v976, 4
      %v979 = vshll.u32 %v342, 16
      %v981 = vrot.slane %v979, 5
      %v982 = vsel %vm800, %v977, %v981
      %v983 = vshrl.u32 %v342, 16
      %v985 = vrot.slane %v983, 4
      %v986 = vor.u32 %v985, %v981
      %v987 = vrot.slane %v986, 4
      %v989 = vshll.u32 %v343, 16
      %v991 = vrot.slane %v989, 5
      %v992 = vsel %vm800, %v987, %v991
      %v994 = vshrl.u32 %v350, 16
      %v996 = vrot.slane %v994, 4
      %v997 = vshll.u32 %v350, 16
      %v999 = vrot.slane %v997, 5
      %v1000 = vor.u32 %v996, %v999
      %v1001 = vrot.slane %v1000, 4
      %v1003 = vshll.u32 %v351, 16
      %v1005 = vrot.slane %v1003, 5
      %v1006 = vsel %vm800, %v1001, %v1005
      %v1007 = vshrl.u32 %v351, 16
      %v1009 = vrot.slane %v1007, 4
      %v1010 = vor.u32 %v1009, %v1005
      %v1011 = vrot.slane %v1010, 4
      %v1013 = vshll.u32 %v352, 16
      %v1015 = vrot.slane %v1013, 5
      %v1016 = vsel %vm800, %v1011, %v1015
      %v1018 = vshrl.u32 %v353, 16
      %v1020 = vrot.slane %v1018, 4
      %v1021 = vshll.u32 %v353, 16
      %v1023 = vrot.slane %v1021, 5
      %v1024 = vor.u32 %v1020, %v1023
      %v1025 = vrot.slane %v1024, 4
      %v1027 = vshll.u32 %v354, 16
      %v1029 = vrot.slane %v1027, 5
      %v1030 = vsel %vm800, %v1025, %v1029
      %v1031 = vshrl.u32 %v354, 16
      %v1033 = vrot.slane %v1031, 4
      %v1034 = vor.u32 %v1033, %v1029
      %v1035 = vrot.slane %v1034, 4
      %v1037 = vshll.u32 %v355, 16
      %v1039 = vrot.slane %v1037, 5
      %v1040 = vsel %vm800, %v1035, %v1039
      %v1042 = vshrl.u32 %v356, 16
      %v1044 = vrot.slane %v1042, 4
      %v1045 = vshll.u32 %v356, 16
      %v1047 = vrot.slane %v1045, 5
      %v1048 = vor.u32 %v1044, %v1047
      %v1049 = vrot.slane %v1048, 4
      %v1051 = vshll.u32 %v357, 16
      %v1053 = vrot.slane %v1051, 5
      %v1054 = vsel %vm800, %v1049, %v1053
      %v1055 = vshrl.u32 %v357, 16
      %v1057 = vrot.slane %v1055, 4
      %v1058 = vor.u32 %v1057, %v1053
      %v1059 = vrot.slane %v1058, 4
      %v1061 = vshll.u32 %v358, 16
      %v1063 = vrot.slane %v1061, 5
      %v1064 = vsel %vm800, %v1059, %v1063
      %v1066 = vshrl.u32 %v359, 16
      %v1068 = vrot.slane %v1066, 4
      %v1069 = vshll.u32 %v359, 16
      %v1071 = vrot.slane %v1069, 5
      %v1072 = vor.u32 %v1068, %v1071
      %v1073 = vrot.slane %v1072, 4
      %v1075 = vshll.u32 %v360, 16
      %v1077 = vrot.slane %v1075, 5
      %v1078 = vsel %vm800, %v1073, %v1077
      %v1079 = vshrl.u32 %v360, 16
      %v1081 = vrot.slane %v1079, 4
      %v1082 = vor.u32 %v1081, %v1077
      %v1083 = vrot.slane %v1082, 4
      %v1085 = vshll.u32 %v361, 16
      %v1087 = vrot.slane %v1085, 5
      %v1088 = vsel %vm800, %v1083, %v1087
      %v1090 = vshrl.u32 %v362, 16
      %v1092 = vrot.slane %v1090, 4
      %v1093 = vshll.u32 %v362, 16
      %v1095 = vrot.slane %v1093, 5
      %v1096 = vor.u32 %v1092, %v1095
      %v1097 = vrot.slane %v1096, 4
      %v1099 = vshll.u32 %v363, 16
      %v1101 = vrot.slane %v1099, 5
      %v1102 = vsel %vm800, %v1097, %v1101
      %v1103 = vshrl.u32 %v363, 16
      %v1105 = vrot.slane %v1103, 4
      %v1106 = vor.u32 %v1105, %v1101
      %v1107 = vrot.slane %v1106, 4
      %v1109 = vshll.u32 %v364, 16
      %v1111 = vrot.slane %v1109, 5
      %v1112 = vsel %vm800, %v1107, %v1111
      %v1114 = vshrl.u32 %v365, 16
      %v1116 = vrot.slane %v1114, 4
      %v1117 = vshll.u32 %v365, 16
      %v1119 = vrot.slane %v1117, 5
      %v1120 = vor.u32 %v1116, %v1119
      %v1121 = vrot.slane %v1120, 4
      %v1123 = vshll.u32 %v366, 16
      %v1125 = vrot.slane %v1123, 5
      %v1126 = vsel %vm800, %v1121, %v1125
      %v1127 = vshrl.u32 %v366, 16
      %v1129 = vrot.slane %v1127, 4
      %v1130 = vor.u32 %v1129, %v1125
      %v1131 = vrot.slane %v1130, 4
      %v1133 = vshll.u32 %v367, 16
      %v1135 = vrot.slane %v1133, 5
      %v1136 = vsel %vm800, %v1131, %v1135
      %v1138 = vshrl.u32 %v368, 16
      %v1140 = vrot.slane %v1138, 4
      %v1141 = vshll.u32 %v368, 16
      %v1143 = vrot.slane %v1141, 5
      %v1144 = vor.u32 %v1140, %v1143
      %v1145 = vrot.slane %v1144, 4
      %v1147 = vshll.u32 %v369, 16
      %v1149 = vrot.slane %v1147, 5
      %v1150 = vsel %vm800, %v1145, %v1149
      %v1151 = vshrl.u32 %v369, 16
      %v1153 = vrot.slane %v1151, 4
      %v1154 = vor.u32 %v1153, %v1149
      %v1155 = vrot.slane %v1154, 4
      %v1157 = vshll.u32 %v370, 16
      %v1159 = vrot.slane %v1157, 5
      %v1160 = vsel %vm800, %v1155, %v1159
      %v1162 = vshrl.u32 %v371, 16
      %v1164 = vrot.slane %v1162, 4
      %v1165 = vshll.u32 %v371, 16
      %v1167 = vrot.slane %v1165, 5
      %v1168 = vor.u32 %v1164, %v1167
      %v1169 = vrot.slane %v1168, 4
      %v1171 = vshll.u32 %v372, 16
      %v1173 = vrot.slane %v1171, 5
      %v1174 = vsel %vm800, %v1169, %v1173
      %v1175 = vshrl.u32 %v372, 16
      %v1177 = vrot.slane %v1175, 4
      %v1178 = vor.u32 %v1177, %v1173
      %v1179 = vrot.slane %v1178, 4
      %v1181 = vshll.u32 %v373, 16
      %v1183 = vrot.slane %v1181, 5
      %v1184 = vsel %vm800, %v1179, %v1183
      %s1185 = scalar_lea.vmem %s2, 64
      %v1186 = vld [vmem:[%s1185] sm:$0xf]
      %v1187 = vld [vmem:[%s1185 + $0x4] sm:$0xf]
      %v1188 = vld [vmem:[%s1185 + $0x8] sm:$0xf]
      %v1189 = vld [vmem:[%s1185 + $0xc] sm:$0xf]
      %v1190 = vld [vmem:[%s1185 + $0x10] sm:$0xf]
      %v1191 = vld [vmem:[%s1185 + $0x14] sm:$0xf]
      %v1192 = vld [vmem:[%s1185 + $0x18] sm:$0xf]
      %v1193 = vld [vmem:[%s1185 + $0x1c] sm:$0xf]
      %v1194 = vld [vmem:[%s1185 + $0x20] sm:$0xf]
      %v1195 = vld [vmem:[%s1185 + $0x24] sm:$0xf]
      %v1196 = vld [vmem:[%s1185 + $0x28] sm:$0xf]
      %v1197 = vld [vmem:[%s1185 + $0x2c] sm:$0xf]
      %v1198 = vld [vmem:[%s1185 + $0x30] sm:$0xf]
      %v1199 = vld [vmem:[%s1185 + $0x34] sm:$0xf]
      %v1200 = vld [vmem:[%s1185 + $0x38] sm:$0xf]
      %v1201 = vld [vmem:[%s1185 + $0x3c] sm:$0xf]
      %v1202 = vunpack.c.l.b16 %v814
      %v1203 = vunpack.c.l.b16 %v824
      %v1204 = vunpack.c.l.b16 %v838
      %v1205 = vunpack.c.l.b16 %v848
      %v1206 = vunpack.c.l.b16 %v862
      %v1207 = vunpack.c.l.b16 %v872
      %v1208 = vunpack.c.l.b16 %v886
      %v1209 = vunpack.c.l.b16 %v896
      %v1210 = vunpack.c.l.b16 %v910
      %v1211 = vunpack.c.l.b16 %v920
      %v1212 = vunpack.c.l.b16 %v934
      %v1213 = vunpack.c.l.b16 %v944
      %v1214 = vunpack.c.l.b16 %v958
      %v1215 = vunpack.c.l.b16 %v968
      %v1216 = vunpack.c.l.b16 %v982
      %v1217 = vunpack.c.l.b16 %v992
      %v1218 = vpack.c.b16 %v1203, %v1202
      %v1219 = vpack.c.b16 %v1205, %v1204
      %v1220 = vpack.c.b16 %v1207, %v1206
      %v1221 = vpack.c.b16 %v1209, %v1208
      %v1222 = vpack.c.b16 %v1211, %v1210
      %v1223 = vpack.c.b16 %v1213, %v1212
      %v1224 = vpack.c.b16 %v1215, %v1214
      %v1225 = vpack.c.b16 %v1217, %v1216
      %v1250 = vunpack.c.l.b16 %v1186
      %v1251 = vunpack.c.l.b16 %v1187
      %v1252 = vunpack.c.l.b16 %v1188
      %v1253 = vunpack.c.l.b16 %v1189
      %v1254 = vunpack.c.l.b16 %v1190
      %v1255 = vunpack.c.l.b16 %v1191
      %v1256 = vunpack.c.l.b16 %v1192
      %v1257 = vunpack.c.l.b16 %v1193
      %v1258 = vunpack.c.l.b16 %v1194
      %v1259 = vunpack.c.l.b16 %v1195
      %v1260 = vunpack.c.l.b16 %v1196
      %v1261 = vunpack.c.l.b16 %v1197
      %v1262 = vunpack.c.l.b16 %v1198
      %v1263 = vunpack.c.l.b16 %v1199
      %v1264 = vunpack.c.l.b16 %v1200
      %v1265 = vunpack.c.l.b16 %v1201
      %v1266 = vpack.c.b16 %v1251, %v1250
      %v1267 = vpack.c.b16 %v1253, %v1252
      %v1268 = vpack.c.b16 %v1255, %v1254
      %v1269 = vpack.c.b16 %v1257, %v1256
      %v1270 = vpack.c.b16 %v1259, %v1258
      %v1271 = vpack.c.b16 %v1261, %v1260
      %v1272 = vpack.c.b16 %v1263, %v1262
      %v1273 = vpack.c.b16 %v1265, %v1264
      %1282 = vmatprep.subr.bf16.mxu0 0
      %1283 = vmatpush1.bf16.msra.mxu0 %v1266
      %1284 = vmatprep.subr.bf16.mxu0 0
      %1285 = vmatpush1.bf16.msra.mxu0 %v1267
      %1286 = vmatprep.subr.bf16.mxu0 0
      %1287 = vmatpush1.bf16.msra.mxu0 %v1268
      %1288 = vmatprep.subr.bf16.mxu0 0
      %1289 = vmatpush1.bf16.msra.mxu0 %v1269
      %1290 = vmatprep.subr.bf16.mxu0 0
      %1291 = vmatpush1.bf16.msra.mxu0 %v1270
      %1292 = vmatprep.subr.bf16.mxu0 0
      %1293 = vmatpush1.bf16.msra.mxu0 %v1271
      %1294 = vmatprep.subr.bf16.mxu0 0
      %1295 = vmatpush1.bf16.msra.mxu0 %v1272
      %1296 = vmatprep.subr.bf16.mxu0 0
      %1297 = vmatpush1.bf16.msra.mxu0 %v1273
      %1298 = vmatprep.subr.bf16.mxu0 0
      %1299 = vmatpush1.bf16.msra.mxu0 0
      %1300 = vmatprep.subr.bf16.mxu0 0
      %1301 = vmatpush1.bf16.msra.mxu0 0
      %1302 = vmatprep.subr.bf16.mxu0 0
      %1303 = vmatpush1.bf16.msra.mxu0 0
      %1304 = vmatprep.subr.bf16.mxu0 0
      %1305 = vmatpush1.bf16.msra.mxu0 0
      %1306 = vmatprep.subr.bf16.mxu0 0
      %1307 = vmatpush1.bf16.msra.mxu0 0
      %1308 = vmatprep.subr.bf16.mxu0 0
      %1309 = vmatpush1.bf16.msra.mxu0 0
      %1310 = vmatprep.subr.bf16.mxu0 0
      %1311 = vmatpush1.bf16.msra.mxu0 0
      %1312 = vmatprep.subr.bf16.mxu0 0
      %1313 = vmatpush1.bf16.msra.mxu0 0
      %1314 = vmatprep.mubr.bf16.mxu0 0
      %1315 = vmatmul.mubr.bf16.gmra.mrb[0].mxu0 %v1218
      %v1316 = vpop.f32.mrb[0].mxu0
      %v1317 = vadd.f32 0.0, %v1316
      %v1318 = vpop.f32.mrb[0].mxu0
      %v1319 = vpop.f32.mrb[0].mxu0
      %v1320 = vadd.f32 0.0, %v1319
      %v1321 = vpop.f32.mrb[0].mxu0
      %1322 = vmatprep.mubr.bf16.mxu0 0
      %1323 = vmatmul.mubr.bf16.gmra.mrb[0].mxu0 %v1219
      %v1324 = vpop.f32.mrb[0].mxu0
      %v1325 = vadd.f32 0.0, %v1324
      %v1326 = vpop.f32.mrb[0].mxu0
      %v1327 = vpop.f32.mrb[0].mxu0
      %v1328 = vadd.f32 0.0, %v1327
      %v1329 = vpop.f32.mrb[0].mxu0
      %1330 = vmatprep.mubr.bf16.mxu0 0
      %1331 = vmatmul.mubr.bf16.gmra.mrb[0].mxu0 %v1220
      %v1332 = vpop.f32.mrb[0].mxu0
      %v1333 = vadd.f32 0.0, %v1332
      %v1334 = vpop.f32.mrb[0].mxu0
      %v1335 = vpop.f32.mrb[0].mxu0
      %v1336 = vadd.f32 0.0, %v1335
      %v1337 = vpop.f32.mrb[0].mxu0
      %1338 = vmatprep.mubr.bf16.mxu0 0
      %1339 = vmatmul.mubr.bf16.gmra.mrb[0].mxu0 %v1221
      %v1340 = vpop.f32.mrb[0].mxu0
      %v1341 = vadd.f32 0.0, %v1340
      %v1342 = vpop.f32.mrb[0].mxu0
      %v1343 = vpop.f32.mrb[0].mxu0
      %v1344 = vadd.f32 0.0, %v1343
      %v1345 = vpop.f32.mrb[0].mxu0
      %1346 = vmatprep.mubr.bf16.mxu0 0
      %1347 = vmatmul.mubr.bf16.gmra.mrb[0].mxu0 %v1222
      %v1348 = vpop.f32.mrb[0].mxu0
      %v1349 = vadd.f32 0.0, %v1348
      %v1350 = vpop.f32.mrb[0].mxu0
      %v1351 = vpop.f32.mrb[0].mxu0
      %v1352 = vadd.f32 0.0, %v1351
      %v1353 = vpop.f32.mrb[0].mxu0
      %1354 = vmatprep.mubr.bf16.mxu0 0
      %1355 = vmatmul.mubr.bf16.gmra.mrb[0].mxu0 %v1223
      %v1356 = vpop.f32.mrb[0].mxu0
      %v1357 = vadd.f32 0.0, %v1356
      %v1358 = vpop.f32.mrb[0].mxu0
      %v1359 = vpop.f32.mrb[0].mxu0
      %v1360 = vadd.f32 0.0, %v1359
      %v1361 = vpop.f32.mrb[0].mxu0
      %1362 = vmatprep.mubr.bf16.mxu0 0
      %1363 = vmatmul.mubr.bf16.gmra.mrb[0].mxu0 %v1224
      %v1364 = vpop.f32.mrb[0].mxu0
      %v1365 = vadd.f32 0.0, %v1364
      %v1366 = vpop.f32.mrb[0].mxu0
      %v1367 = vpop.f32.mrb[0].mxu0
      %v1368 = vadd.f32 0.0, %v1367
      %v1369 = vpop.f32.mrb[0].mxu0
      %1370 = vmatprep.mubr.bf16.mxu0 0
      %1371 = vmatmul.mubr.bf16.gmra.mrb[0].mxu0 %v1225
      %v1372 = vpop.f32.mrb[0].mxu0
      %v1373 = vadd.f32 0.0, %v1372
      %v1374 = vpop.f32.mrb[0].mxu0
      %v1375 = vpop.f32.mrb[0].mxu0
      %v1376 = vadd.f32 0.0, %v1375
      %v1377 = vpop.f32.mrb[0].mxu0
      %1378 = vdwg.mxu0
      %v1379 = vadd.f32 %v736, %v1317
      %v1380 = vadd.f32 %v739, %v1320
      %v1381 = vadd.f32 %v744, %v1325
      %v1382 = vadd.f32 %v747, %v1328
      %v1383 = vadd.f32 %v752, %v1333
      %v1384 = vadd.f32 %v755, %v1336
      %v1385 = vadd.f32 %v760, %v1341
      %v1386 = vadd.f32 %v763, %v1344
      %v1387 = vadd.f32 %v768, %v1349
      %v1388 = vadd.f32 %v771, %v1352
      %v1389 = vadd.f32 %v776, %v1357
      %v1390 = vadd.f32 %v779, %v1360
      %v1391 = vadd.f32 %v784, %v1365
      %v1392 = vadd.f32 %v787, %v1368
      %v1393 = vadd.f32 %v792, %v1373
      %v1394 = vadd.f32 %v795, %v1376
      %s1395 = scalar_lea.vmem %s3, 64
      %v1396 = vld [vmem:[%s1395] sm:$0xf]
      %v1397 = vld [vmem:[%s1395 + $0x4] sm:$0xf]
      %v1398 = vld [vmem:[%s1395 + $0x8] sm:$0xf]
      %v1399 = vld [vmem:[%s1395 + $0xc] sm:$0xf]
      %v1400 = vld [vmem:[%s1395 + $0x10] sm:$0xf]
      %v1401 = vld [vmem:[%s1395 + $0x14] sm:$0xf]
      %v1402 = vld [vmem:[%s1395 + $0x18] sm:$0xf]
      %v1403 = vld [vmem:[%s1395 + $0x1c] sm:$0xf]
      %v1404 = vld [vmem:[%s1395 + $0x20] sm:$0xf]
      %v1405 = vld [vmem:[%s1395 + $0x24] sm:$0xf]
      %v1406 = vld [vmem:[%s1395 + $0x28] sm:$0xf]
      %v1407 = vld [vmem:[%s1395 + $0x2c] sm:$0xf]
      %v1408 = vld [vmem:[%s1395 + $0x30] sm:$0xf]
      %v1409 = vld [vmem:[%s1395 + $0x34] sm:$0xf]
      %v1410 = vld [vmem:[%s1395 + $0x38] sm:$0xf]
      %v1411 = vld [vmem:[%s1395 + $0x3c] sm:$0xf]
      %v1412 = vunpack.c.l.b16 %v1006
      %v1413 = vunpack.c.l.b16 %v1016
      %v1414 = vunpack.c.l.b16 %v1030
      %v1415 = vunpack.c.l.b16 %v1040
      %v1416 = vunpack.c.l.b16 %v1054
      %v1417 = vunpack.c.l.b16 %v1064
      %v1418 = vunpack.c.l.b16 %v1078
      %v1419 = vunpack.c.l.b16 %v1088
      %v1420 = vunpack.c.l.b16 %v1102
      %v1421 = vunpack.c.l.b16 %v1112
      %v1422 = vunpack.c.l.b16 %v1126
      %v1423 = vunpack.c.l.b16 %v1136
      %v1424 = vunpack.c.l.b16 %v1150
      %v1425 = vunpack.c.l.b16 %v1160
      %v1426 = vunpack.c.l.b16 %v1174
      %v1427 = vunpack.c.l.b16 %v1184
      %v1428 = vpack.c.b16 %v1413, %v1412
      %v1429 = vpack.c.b16 %v1415, %v1414
      %v1430 = vpack.c.b16 %v1417, %v1416
      %v1431 = vpack.c.b16 %v1419, %v1418
      %v1432 = vpack.c.b16 %v1421, %v1420
      %v1433 = vpack.c.b16 %v1423, %v1422
      %v1434 = vpack.c.b16 %v1425, %v1424
      %v1435 = vpack.c.b16 %v1427, %v1426
      %v1460 = vunpack.c.l.b16 %v1396
      %v1461 = vunpack.c.l.b16 %v1397
      %v1462 = vunpack.c.l.b16 %v1398
      %v1463 = vunpack.c.l.b16 %v1399
      %v1464 = vunpack.c.l.b16 %v1400
      %v1465 = vunpack.c.l.b16 %v1401
      %v1466 = vunpack.c.l.b16 %v1402
      %v1467 = vunpack.c.l.b16 %v1403
      %v1468 = vunpack.c.l.b16 %v1404
      %v1469 = vunpack.c.l.b16 %v1405
      %v1470 = vunpack.c.l.b16 %v1406
      %v1471 = vunpack.c.l.b16 %v1407
      %v1472 = vunpack.c.l.b16 %v1408
      %v1473 = vunpack.c.l.b16 %v1409
      %v1474 = vunpack.c.l.b16 %v1410
      %v1475 = vunpack.c.l.b16 %v1411
      %v1476 = vpack.c.b16 %v1461, %v1460
      %v1477 = vpack.c.b16 %v1463, %v1462
      %v1478 = vpack.c.b16 %v1465, %v1464
      %v1479 = vpack.c.b16 %v1467, %v1466
      %v1480 = vpack.c.b16 %v1469, %v1468
      %v1481 = vpack.c.b16 %v1471, %v1470
      %v1482 = vpack.c.b16 %v1473, %v1472
      %v1483 = vpack.c.b16 %v1475, %v1474
      %1492 = vmatprep.subr.bf16.mxu0 0
      %1493 = vmatpush1.bf16.msra.mxu0 %v1476
      %1494 = vmatprep.subr.bf16.mxu0 0
      %1495 = vmatpush1.bf16.msra.mxu0 %v1477
      %1496 = vmatprep.subr.bf16.mxu0 0
      %1497 = vmatpush1.bf16.msra.mxu0 %v1478
      %1498 = vmatprep.subr.bf16.mxu0 0
      %1499 = vmatpush1.bf16.msra.mxu0 %v1479
      %1500 = vmatprep.subr.bf16.mxu0 0
      %1501 = vmatpush1.bf16.msra.mxu0 %v1480
      %1502 = vmatprep.subr.bf16.mxu0 0
      %1503 = vmatpush1.bf16.msra.mxu0 %v1481
      %1504 = vmatprep.subr.bf16.mxu0 0
      %1505 = vmatpush1.bf16.msra.mxu0 %v1482
      %1506 = vmatprep.subr.bf16.mxu0 0
      %1507 = vmatpush1.bf16.msra.mxu0 %v1483
      %1508 = vmatprep.subr.bf16.mxu0 0
      %1509 = vmatpush1.bf16.msra.mxu0 0
      %1510 = vmatprep.subr.bf16.mxu0 0
      %1511 = vmatpush1.bf16.msra.mxu0 0
      %1512 = vmatprep.subr.bf16.mxu0 0
      %1513 = vmatpush1.bf16.msra.mxu0 0
      %1514 = vmatprep.subr.bf16.mxu0 0
      %1515 = vmatpush1.bf16.msra.mxu0 0
      %1516 = vmatprep.subr.bf16.mxu0 0
      %1517 = vmatpush1.bf16.msra.mxu0 0
      %1518 = vmatprep.subr.bf16.mxu0 0
      %1519 = vmatpush1.bf16.msra.mxu0 0
      %1520 = vmatprep.subr.bf16.mxu0 0
      %1521 = vmatpush1.bf16.msra.mxu0 0
      %1522 = vmatprep.subr.bf16.mxu0 0
      %1523 = vmatpush1.bf16.msra.mxu0 0
      %1524 = vmatprep.mubr.bf16.mxu0 0
      %1525 = vmatmul.mubr.bf16.gmra.mrb[0].mxu0 %v1428
      %v1526 = vpop.f32.mrb[0].mxu0
      %v1527 = vadd.f32 0.0, %v1526
      %v1528 = vpop.f32.mrb[0].mxu0
      %v1529 = vpop.f32.mrb[0].mxu0
      %v1530 = vadd.f32 0.0, %v1529
      %v1531 = vpop.f32.mrb[0].mxu0
      %1532 = vmatprep.mubr.bf16.mxu0 0
      %1533 = vmatmul.mubr.bf16.gmra.mrb[0].mxu0 %v1429
      %v1534 = vpop.f32.mrb[0].mxu0
      %v1535 = vadd.f32 0.0, %v1534
      %v1536 = vpop.f32.mrb[0].mxu0
      %v1537 = vpop.f32.mrb[0].mxu0
      %v1538 = vadd.f32 0.0, %v1537
      %v1539 = vpop.f32.mrb[0].mxu0
      %1540 = vmatprep.mubr.bf16.mxu0 0
      %1541 = vmatmul.mubr.bf16.gmra.mrb[0].mxu0 %v1430
      %v1542 = vpop.f32.mrb[0].mxu0
      %v1543 = vadd.f32 0.0, %v1542
      %v1544 = vpop.f32.mrb[0].mxu0
      %v1545 = vpop.f32.mrb[0].mxu0
      %v1546 = vadd.f32 0.0, %v1545
      %v1547 = vpop.f32.mrb[0].mxu0
      %1548 = vmatprep.mubr.bf16.mxu0 0
      %1549 = vmatmul.mubr.bf16.gmra.mrb[0].mxu0 %v1431
      %v1550 = vpop.f32.mrb[0].mxu0
      %v1551 = vadd.f32 0.0, %v1550
      %v1552 = vpop.f32.mrb[0].mxu0
      %v1553 = vpop.f32.mrb[0].mxu0
      %v1554 = vadd.f32 0.0, %v1553
      %v1555 = vpop.f32.mrb[0].mxu0
      %1556 = vmatprep.mubr.bf16.mxu0 0
      %1557 = vmatmul.mubr.bf16.gmra.mrb[0].mxu0 %v1432
      %v1558 = vpop.f32.mrb[0].mxu0
      %v1559 = vadd.f32 0.0, %v1558
      %v1560 = vpop.f32.mrb[0].mxu0
      %v1561 = vpop.f32.mrb[0].mxu0
      %v1562 = vadd.f32 0.0, %v1561
      %v1563 = vpop.f32.mrb[0].mxu0
      %1564 = vmatprep.mubr.bf16.mxu0 0
      %1565 = vmatmul.mubr.bf16.gmra.mrb[0].mxu0 %v1433
      %v1566 = vpop.f32.mrb[0].mxu0
      %v1567 = vadd.f32 0.0, %v1566
      %v1568 = vpop.f32.mrb[0].mxu0
      %v1569 = vpop.f32.mrb[0].mxu0
      %v1570 = vadd.f32 0.0, %v1569
      %v1571 = vpop.f32.mrb[0].mxu0
      %1572 = vmatprep.mubr.bf16.mxu0 0
      %1573 = vmatmul.mubr.bf16.gmra.mrb[0].mxu0 %v1434
      %v1574 = vpop.f32.mrb[0].mxu0
      %v1575 = vadd.f32 0.0, %v1574
      %v1576 = vpop.f32.mrb[0].mxu0
      %v1577 = vpop.f32.mrb[0].mxu0
      %v1578 = vadd.f32 0.0, %v1577
      %v1579 = vpop.f32.mrb[0].mxu0
      %1580 = vmatprep.mubr.bf16.mxu0 0
      %1581 = vmatmul.mubr.bf16.gmra.mrb[0].mxu0 %v1435
      %v1582 = vpop.f32.mrb[0].mxu0
      %v1583 = vadd.f32 0.0, %v1582
      %v1584 = vpop.f32.mrb[0].mxu0
      %v1585 = vpop.f32.mrb[0].mxu0
      %v1586 = vadd.f32 0.0, %v1585
      %v1587 = vpop.f32.mrb[0].mxu0
      %1588 = vdwg.mxu0
      %v1589 = vadd.f32 %v1379, %v1527
      %v1590 = vadd.f32 %v1380, %v1530
      %v1591 = vadd.f32 %v1381, %v1535
      %v1592 = vadd.f32 %v1382, %v1538
      %v1593 = vadd.f32 %v1383, %v1543
      %v1594 = vadd.f32 %v1384, %v1546
      %v1595 = vadd.f32 %v1385, %v1551
      %v1596 = vadd.f32 %v1386, %v1554
      %v1597 = vadd.f32 %v1387, %v1559
      %v1598 = vadd.f32 %v1388, %v1562
      %v1599 = vadd.f32 %v1389, %v1567
      %v1600 = vadd.f32 %v1390, %v1570
      %v1601 = vadd.f32 %v1391, %v1575
      %v1602 = vadd.f32 %v1392, %v1578
      %v1603 = vadd.f32 %v1393, %v1583
      %v1604 = vadd.f32 %v1394, %v1586
      %vm1613 = vcmask 1042432
      %vm1614 = vcmask 1046532
      %vm1615 = vmor %vm1613, %vm1614
      %v1616 = vrot.slane %v320, 5
      %v1617 = vrot.slane %v1616, 4
      %v1618 = vrot.slane %v321, 5
      %v1619 = vsel %vm1615, %v1617, %v1618
      %v1620 = vrot.slane %v1618, 4
      %v1621 = vrot.slane %v322, 5
      %v1622 = vsel %vm1615, %v1620, %v1621
      %v1623 = vrot.slane %v323, 5
      %v1624 = vrot.slane %v1623, 4
      %v1625 = vrot.slane %v324, 5
      %v1626 = vsel %vm1615, %v1624, %v1625
      %v1627 = vrot.slane %v1625, 4
      %v1628 = vrot.slane %v325, 5
      %v1629 = vsel %vm1615, %v1627, %v1628
      %v1630 = vrot.slane %v326, 5
      %v1631 = vrot.slane %v1630, 4
      %v1632 = vrot.slane %v327, 5
      %v1633 = vsel %vm1615, %v1631, %v1632
      %v1634 = vrot.slane %v1632, 4
      %v1635 = vrot.slane %v328, 5
      %v1636 = vsel %vm1615, %v1634, %v1635
      %v1637 = vrot.slane %v329, 5
      %v1638 = vrot.slane %v1637, 4
      %v1639 = vrot.slane %v330, 5
      %v1640 = vsel %vm1615, %v1638, %v1639
      %v1641 = vrot.slane %v1639, 4
      %v1642 = vrot.slane %v331, 5
      %v1643 = vsel %vm1615, %v1641, %v1642
      %v1644 = vrot.slane %v332, 5
      %v1645 = vrot.slane %v1644, 4
      %v1646 = vrot.slane %v333, 5
      %v1647 = vsel %vm1615, %v1645, %v1646
      %v1648 = vrot.slane %v1646, 4
      %v1649 = vrot.slane %v334, 5
      %v1650 = vsel %vm1615, %v1648, %v1649
      %v1651 = vrot.slane %v335, 5
      %v1652 = vrot.slane %v1651, 4
      %v1653 = vrot.slane %v336, 5
      %v1654 = vsel %vm1615, %v1652, %v1653
      %v1655 = vrot.slane %v1653, 4
      %v1656 = vrot.slane %v337, 5
      %v1657 = vsel %vm1615, %v1655, %v1656
      %v1658 = vrot.slane %v338, 5
      %v1659 = vrot.slane %v1658, 4
      %v1660 = vrot.slane %v339, 5
      %v1661 = vsel %vm1615, %v1659, %v1660
      %v1662 = vrot.slane %v1660, 4
      %v1663 = vrot.slane %v340, 5
      %v1664 = vsel %vm1615, %v1662, %v1663
      %v1665 = vrot.slane %v341, 5
      %v1666 = vrot.slane %v1665, 4
      %v1667 = vrot.slane %v342, 5
      %v1668 = vsel %vm1615, %v1666, %v1667
      %v1669 = vrot.slane %v1667, 4
      %v1670 = vrot.slane %v343, 5
      %v1671 = vsel %vm1615, %v1669, %v1670
      %v1680 = vrot.slane %v350, 5
      %v1681 = vrot.slane %v1680, 4
      %v1682 = vrot.slane %v351, 5
      %v1683 = vsel %vm1615, %v1681, %v1682
      %v1684 = vrot.slane %v1682, 4
      %v1685 = vrot.slane %v352, 5
      %v1686 = vsel %vm1615, %v1684, %v1685
      %v1687 = vrot.slane %v353, 5
      %v1688 = vrot.slane %v1687, 4
      %v1689 = vrot.slane %v354, 5
      %v1690 = vsel %vm1615, %v1688, %v1689
      %v1691 = vrot.slane %v1689, 4
      %v1692 = vrot.slane %v355, 5
      %v1693 = vsel %vm1615, %v1691, %v1692
      %v1694 = vrot.slane %v356, 5
      %v1695 = vrot.slane %v1694, 4
      %v1696 = vrot.slane %v357, 5
      %v1697 = vsel %vm1615, %v1695, %v1696
      %v1698 = vrot.slane %v1696, 4
      %v1699 = vrot.slane %v358, 5
      %v1700 = vsel %vm1615, %v1698, %v1699
      %v1701 = vrot.slane %v359, 5
      %v1702 = vrot.slane %v1701, 4
      %v1703 = vrot.slane %v360, 5
      %v1704 = vsel %vm1615, %v1702, %v1703
      %v1705 = vrot.slane %v1703, 4
      %v1706 = vrot.slane %v361, 5
      %v1707 = vsel %vm1615, %v1705, %v1706
      %v1708 = vrot.slane %v362, 5
      %v1709 = vrot.slane %v1708, 4
      %v1710 = vrot.slane %v363, 5
      %v1711 = vsel %vm1615, %v1709, %v1710
      %v1712 = vrot.slane %v1710, 4
      %v1713 = vrot.slane %v364, 5
      %v1714 = vsel %vm1615, %v1712, %v1713
      %v1715 = vrot.slane %v365, 5
      %v1716 = vrot.slane %v1715, 4
      %v1717 = vrot.slane %v366, 5
      %v1718 = vsel %vm1615, %v1716, %v1717
      %v1719 = vrot.slane %v1717, 4
      %v1720 = vrot.slane %v367, 5
      %v1721 = vsel %vm1615, %v1719, %v1720
      %v1722 = vrot.slane %v368, 5
      %v1723 = vrot.slane %v1722, 4
      %v1724 = vrot.slane %v369, 5
      %v1725 = vsel %vm1615, %v1723, %v1724
      %v1726 = vrot.slane %v1724, 4
      %v1727 = vrot.slane %v370, 5
      %v1728 = vsel %vm1615, %v1726, %v1727
      %v1729 = vrot.slane %v371, 5
      %v1730 = vrot.slane %v1729, 4
      %v1731 = vrot.slane %v372, 5
      %v1732 = vsel %vm1615, %v1730, %v1731
      %v1733 = vrot.slane %v1731, 4
      %v1734 = vrot.slane %v373, 5
      %v1735 = vsel %vm1615, %v1733, %v1734
      %s1736 = scalar_lea.vmem %s2, 128
      %v1737 = vld [vmem:[%s1736] sm:$0xf]
      %v1738 = vld [vmem:[%s1736 + $0x4] sm:$0xf]
      %v1739 = vld [vmem:[%s1736 + $0x8] sm:$0xf]
      %v1740 = vld [vmem:[%s1736 + $0xc] sm:$0xf]
      %v1741 = vld [vmem:[%s1736 + $0x10] sm:$0xf]
      %v1742 = vld [vmem:[%s1736 + $0x14] sm:$0xf]
      %v1743 = vld [vmem:[%s1736 + $0x18] sm:$0xf]
      %v1744 = vld [vmem:[%s1736 + $0x1c] sm:$0xf]
      %v1745 = vld [vmem:[%s1736 + $0x20] sm:$0xf]
      %v1746 = vld [vmem:[%s1736 + $0x24] sm:$0xf]
      %v1747 = vld [vmem:[%s1736 + $0x28] sm:$0xf]
      %v1748 = vld [vmem:[%s1736 + $0x2c] sm:$0xf]
      %v1749 = vld [vmem:[%s1736 + $0x30] sm:$0xf]
      %v1750 = vld [vmem:[%s1736 + $0x34] sm:$0xf]
      %v1751 = vld [vmem:[%s1736 + $0x38] sm:$0xf]
      %v1752 = vld [vmem:[%s1736 + $0x3c] sm:$0xf]
      %v1753 = vunpack.c.l.b16 %v1619
      %v1754 = vunpack.c.l.b16 %v1622
      %v1755 = vunpack.c.l.b16 %v1626
      %v1756 = vunpack.c.l.b16 %v1629
      %v1757 = vunpack.c.l.b16 %v1633
      %v1758 = vunpack.c.l.b16 %v1636
      %v1759 = vunpack.c.l.b16 %v1640
      %v1760 = vunpack.c.l.b16 %v1643
      %v1761 = vunpack.c.l.b16 %v1647
      %v1762 = vunpack.c.l.b16 %v1650
      %v1763 = vunpack.c.l.b16 %v1654
      %v1764 = vunpack.c.l.b16 %v1657
      %v1765 = vunpack.c.l.b16 %v1661
      %v1766 = vunpack.c.l.b16 %v1664
      %v1767 = vunpack.c.l.b16 %v1668
      %v1768 = vunpack.c.l.b16 %v1671
      %v1769 = vpack.c.b16 %v1754, %v1753
      %v1770 = vpack.c.b16 %v1756, %v1755
      %v1771 = vpack.c.b16 %v1758, %v1757
      %v1772 = vpack.c.b16 %v1760, %v1759
      %v1773 = vpack.c.b16 %v1762, %v1761
      %v1774 = vpack.c.b16 %v1764, %v1763
      %v1775 = vpack.c.b16 %v1766, %v1765
      %v1776 = vpack.c.b16 %v1768, %v1767
      %v1801 = vunpack.c.l.b16 %v1737
      %v1802 = vunpack.c.l.b16 %v1738
      %v1803 = vunpack.c.l.b16 %v1739
      %v1804 = vunpack.c.l.b16 %v1740
      %v1805 = vunpack.c.l.b16 %v1741
      %v1806 = vunpack.c.l.b16 %v1742
      %v1807 = vunpack.c.l.b16 %v1743
      %v1808 = vunpack.c.l.b16 %v1744
      %v1809 = vunpack.c.l.b16 %v1745
      %v1810 = vunpack.c.l.b16 %v1746
      %v1811 = vunpack.c.l.b16 %v1747
      %v1812 = vunpack.c.l.b16 %v1748
      %v1813 = vunpack.c.l.b16 %v1749
      %v1814 = vunpack.c.l.b16 %v1750
      %v1815 = vunpack.c.l.b16 %v1751
      %v1816 = vunpack.c.l.b16 %v1752
      %v1817 = vpack.c.b16 %v1802, %v1801
      %v1818 = vpack.c.b16 %v1804, %v1803
      %v1819 = vpack.c.b16 %v1806, %v1805
      %v1820 = vpack.c.b16 %v1808, %v1807
      %v1821 = vpack.c.b16 %v1810, %v1809
      %v1822 = vpack.c.b16 %v1812, %v1811
      %v1823 = vpack.c.b16 %v1814, %v1813
      %v1824 = vpack.c.b16 %v1816, %v1815
      %1833 = vmatprep.subr.bf16.mxu0 0
      %1834 = vmatpush1.bf16.msra.mxu0 %v1817
      %1835 = vmatprep.subr.bf16.mxu0 0
      %1836 = vmatpush1.bf16.msra.mxu0 %v1818
      %1837 = vmatprep.subr.bf16.mxu0 0
      %1838 = vmatpush1.bf16.msra.mxu0 %v1819
      %1839 = vmatprep.subr.bf16.mxu0 0
      %1840 = vmatpush1.bf16.msra.mxu0 %v1820
      %1841 = vmatprep.subr.bf16.mxu0 0
      %1842 = vmatpush1.bf16.msra.mxu0 %v1821
      %1843 = vmatprep.subr.bf16.mxu0 0
      %1844 = vmatpush1.bf16.msra.mxu0 %v1822
      %1845 = vmatprep.subr.bf16.mxu0 0
      %1846 = vmatpush1.bf16.msra.mxu0 %v1823
      %1847 = vmatprep.subr.bf16.mxu0 0
      %1848 = vmatpush1.bf16.msra.mxu0 %v1824
      %1849 = vmatprep.subr.bf16.mxu0 0
      %1850 = vmatpush1.bf16.msra.mxu0 0
      %1851 = vmatprep.subr.bf16.mxu0 0
      %1852 = vmatpush1.bf16.msra.mxu0 0
      %1853 = vmatprep.subr.bf16.mxu0 0
      %1854 = vmatpush1.bf16.msra.mxu0 0
      %1855 = vmatprep.subr.bf16.mxu0 0
      %1856 = vmatpush1.bf16.msra.mxu0 0
      %1857 = vmatprep.subr.bf16.mxu0 0
      %1858 = vmatpush1.bf16.msra.mxu0 0
      %1859 = vmatprep.subr.bf16.mxu0 0
      %1860 = vmatpush1.bf16.msra.mxu0 0
      %1861 = vmatprep.subr.bf16.mxu0 0
      %1862 = vmatpush1.bf16.msra.mxu0 0
      %1863 = vmatprep.subr.bf16.mxu0 0
      %1864 = vmatpush1.bf16.msra.mxu0 0
      %1865 = vmatprep.mubr.bf16.mxu0 0
      %1866 = vmatmul.mubr.bf16.gmra.mrb[0].mxu0 %v1769
      %v1867 = vpop.f32.mrb[0].mxu0
      %v1868 = vadd.f32 0.0, %v1867
      %v1869 = vpop.f32.mrb[0].mxu0
      %v1870 = vpop.f32.mrb[0].mxu0
      %v1871 = vadd.f32 0.0, %v1870
      %v1872 = vpop.f32.mrb[0].mxu0
      %1873 = vmatprep.mubr.bf16.mxu0 0
      %1874 = vmatmul.mubr.bf16.gmra.mrb[0].mxu0 %v1770
      %v1875 = vpop.f32.mrb[0].mxu0
      %v1876 = vadd.f32 0.0, %v1875
      %v1877 = vpop.f32.mrb[0].mxu0
      %v1878 = vpop.f32.mrb[0].mxu0
      %v1879 = vadd.f32 0.0, %v1878
      %v1880 = vpop.f32.mrb[0].mxu0
      %1881 = vmatprep.mubr.bf16.mxu0 0
      %1882 = vmatmul.mubr.bf16.gmra.mrb[0].mxu0 %v1771
      %v1883 = vpop.f32.mrb[0].mxu0
      %v1884 = vadd.f32 0.0, %v1883
      %v1885 = vpop.f32.mrb[0].mxu0
      %v1886 = vpop.f32.mrb[0].mxu0
      %v1887 = vadd.f32 0.0, %v1886
      %v1888 = vpop.f32.mrb[0].mxu0
      %1889 = vmatprep.mubr.bf16.mxu0 0
      %1890 = vmatmul.mubr.bf16.gmra.mrb[0].mxu0 %v1772
      %v1891 = vpop.f32.mrb[0].mxu0
      %v1892 = vadd.f32 0.0, %v1891
      %v1893 = vpop.f32.mrb[0].mxu0
      %v1894 = vpop.f32.mrb[0].mxu0
      %v1895 = vadd.f32 0.0, %v1894
      %v1896 = vpop.f32.mrb[0].mxu0
      %1897 = vmatprep.mubr.bf16.mxu0 0
      %1898 = vmatmul.mubr.bf16.gmra.mrb[0].mxu0 %v1773
      %v1899 = vpop.f32.mrb[0].mxu0
      %v1900 = vadd.f32 0.0, %v1899
      %v1901 = vpop.f32.mrb[0].mxu0
      %v1902 = vpop.f32.mrb[0].mxu0
      %v1903 = vadd.f32 0.0, %v1902
      %v1904 = vpop.f32.mrb[0].mxu0
      %1905 = vmatprep.mubr.bf16.mxu0 0
      %1906 = vmatmul.mubr.bf16.gmra.mrb[0].mxu0 %v1774
      %v1907 = vpop.f32.mrb[0].mxu0
      %v1908 = vadd.f32 0.0, %v1907
      %v1909 = vpop.f32.mrb[0].mxu0
      %v1910 = vpop.f32.mrb[0].mxu0
      %v1911 = vadd.f32 0.0, %v1910
      %v1912 = vpop.f32.mrb[0].mxu0
      %1913 = vmatprep.mubr.bf16.mxu0 0
      %1914 = vmatmul.mubr.bf16.gmra.mrb[0].mxu0 %v1775
      %v1915 = vpop.f32.mrb[0].mxu0
      %v1916 = vadd.f32 0.0, %v1915
      %v1917 = vpop.f32.mrb[0].mxu0
      %v1918 = vpop.f32.mrb[0].mxu0
      %v1919 = vadd.f32 0.0, %v1918
      %v1920 = vpop.f32.mrb[0].mxu0
      %1921 = vmatprep.mubr.bf16.mxu0 0
      %1922 = vmatmul.mubr.bf16.gmra.mrb[0].mxu0 %v1776
      %v1923 = vpop.f32.mrb[0].mxu0
      %v1924 = vadd.f32 0.0, %v1923
      %v1925 = vpop.f32.mrb[0].mxu0
      %v1926 = vpop.f32.mrb[0].mxu0
      %v1927 = vadd.f32 0.0, %v1926
      %v1928 = vpop.f32.mrb[0].mxu0
      %1929 = vdwg.mxu0
      %v1930 = vadd.f32 %v1589, %v1868
      %v1931 = vadd.f32 %v1590, %v1871
      %v1932 = vadd.f32 %v1591, %v1876
      %v1933 = vadd.f32 %v1592, %v1879
      %v1934 = vadd.f32 %v1593, %v1884
      %v1935 = vadd.f32 %v1594, %v1887
      %v1936 = vadd.f32 %v1595, %v1892
      %v1937 = vadd.f32 %v1596, %v1895
      %v1938 = vadd.f32 %v1597, %v1900
      %v1939 = vadd.f32 %v1598, %v1903
      %v1940 = vadd.f32 %v1599, %v1908
      %v1941 = vadd.f32 %v1600, %v1911
      %v1942 = vadd.f32 %v1601, %v1916
      %v1943 = vadd.f32 %v1602, %v1919
      %v1944 = vadd.f32 %v1603, %v1924
      %v1945 = vadd.f32 %v1604, %v1927
      %s1946 = scalar_lea.vmem %s3, 128
      %v1947 = vld [vmem:[%s1946] sm:$0xf]
      %v1948 = vld [vmem:[%s1946 + $0x4] sm:$0xf]
      %v1949 = vld [vmem:[%s1946 + $0x8] sm:$0xf]
      %v1950 = vld [vmem:[%s1946 + $0xc] sm:$0xf]
      %v1951 = vld [vmem:[%s1946 + $0x10] sm:$0xf]
      %v1952 = vld [vmem:[%s1946 + $0x14] sm:$0xf]
      %v1953 = vld [vmem:[%s1946 + $0x18] sm:$0xf]
      %v1954 = vld [vmem:[%s1946 + $0x1c] sm:$0xf]
      %v1955 = vld [vmem:[%s1946 + $0x20] sm:$0xf]
      %v1956 = vld [vmem:[%s1946 + $0x24] sm:$0xf]
      %v1957 = vld [vmem:[%s1946 + $0x28] sm:$0xf]
      %v1958 = vld [vmem:[%s1946 + $0x2c] sm:$0xf]
      %v1959 = vld [vmem:[%s1946 + $0x30] sm:$0xf]
      %v1960 = vld [vmem:[%s1946 + $0x34] sm:$0xf]
      %v1961 = vld [vmem:[%s1946 + $0x38] sm:$0xf]
      %v1962 = vld [vmem:[%s1946 + $0x3c] sm:$0xf]
      %v1963 = vunpack.c.l.b16 %v1683
      %v1964 = vunpack.c.l.b16 %v1686
      %v1965 = vunpack.c.l.b16 %v1690
      %v1966 = vunpack.c.l.b16 %v1693
      %v1967 = vunpack.c.l.b16 %v1697
      %v1968 = vunpack.c.l.b16 %v1700
      %v1969 = vunpack.c.l.b16 %v1704
      %v1970 = vunpack.c.l.b16 %v1707
      %v1971 = vunpack.c.l.b16 %v1711
      %v1972 = vunpack.c.l.b16 %v1714
      %v1973 = vunpack.c.l.b16 %v1718
      %v1974 = vunpack.c.l.b16 %v1721
      %v1975 = vunpack.c.l.b16 %v1725
      %v1976 = vunpack.c.l.b16 %v1728
      %v1977 = vunpack.c.l.b16 %v1732
      %v1978 = vunpack.c.l.b16 %v1735
      %v1979 = vpack.c.b16 %v1964, %v1963
      %v1980 = vpack.c.b16 %v1966, %v1965
      %v1981 = vpack.c.b16 %v1968, %v1967
      %v1982 = vpack.c.b16 %v1970, %v1969
      %v1983 = vpack.c.b16 %v1972, %v1971
      %v1984 = vpack.c.b16 %v1974, %v1973
      %v1985 = vpack.c.b16 %v1976, %v1975
      %v1986 = vpack.c.b16 %v1978, %v1977
      %v2011 = vunpack.c.l.b16 %v1947
      %v2012 = vunpack.c.l.b16 %v1948
      %v2013 = vunpack.c.l.b16 %v1949
      %v2014 = vunpack.c.l.b16 %v1950
      %v2015 = vunpack.c.l.b16 %v1951
      %v2016 = vunpack.c.l.b16 %v1952
      %v2017 = vunpack.c.l.b16 %v1953
      %v2018 = vunpack.c.l.b16 %v1954
      %v2019 = vunpack.c.l.b16 %v1955
      %v2020 = vunpack.c.l.b16 %v1956
      %v2021 = vunpack.c.l.b16 %v1957
      %v2022 = vunpack.c.l.b16 %v1958
      %v2023 = vunpack.c.l.b16 %v1959
      %v2024 = vunpack.c.l.b16 %v1960
      %v2025 = vunpack.c.l.b16 %v1961
      %v2026 = vunpack.c.l.b16 %v1962
      %v2027 = vpack.c.b16 %v2012, %v2011
      %v2028 = vpack.c.b16 %v2014, %v2013
      %v2029 = vpack.c.b16 %v2016, %v2015
      %v2030 = vpack.c.b16 %v2018, %v2017
      %v2031 = vpack.c.b16 %v2020, %v2019
      %v2032 = vpack.c.b16 %v2022, %v2021
      %v2033 = vpack.c.b16 %v2024, %v2023
      %v2034 = vpack.c.b16 %v2026, %v2025
      %2043 = vmatprep.subr.bf16.mxu0 0
      %2044 = vmatpush1.bf16.msra.mxu0 %v2027
      %2045 = vmatprep.subr.bf16.mxu0 0
      %2046 = vmatpush1.bf16.msra.mxu0 %v2028
      %2047 = vmatprep.subr.bf16.mxu0 0
      %2048 = vmatpush1.bf16.msra.mxu0 %v2029
      %2049 = vmatprep.subr.bf16.mxu0 0
      %2050 = vmatpush1.bf16.msra.mxu0 %v2030
      %2051 = vmatprep.subr.bf16.mxu0 0
      %2052 = vmatpush1.bf16.msra.mxu0 %v2031
      %2053 = vmatprep.subr.bf16.mxu0 0
      %2054 = vmatpush1.bf16.msra.mxu0 %v2032
      %2055 = vmatprep.subr.bf16.mxu0 0
      %2056 = vmatpush1.bf16.msra.mxu0 %v2033
      %2057 = vmatprep.subr.bf16.mxu0 0
      %2058 = vmatpush1.bf16.msra.mxu0 %v2034
      %2059 = vmatprep.subr.bf16.mxu0 0
      %2060 = vmatpush1.bf16.msra.mxu0 0
      %2061 = vmatprep.subr.bf16.mxu0 0
      %2062 = vmatpush1.bf16.msra.mxu0 0
      %2063 = vmatprep.subr.bf16.mxu0 0
      %2064 = vmatpush1.bf16.msra.mxu0 0
      %2065 = vmatprep.subr.bf16.mxu0 0
      %2066 = vmatpush1.bf16.msra.mxu0 0
      %2067 = vmatprep.subr.bf16.mxu0 0
      %2068 = vmatpush1.bf16.msra.mxu0 0
      %2069 = vmatprep.subr.bf16.mxu0 0
      %2070 = vmatpush1.bf16.msra.mxu0 0
      %2071 = vmatprep.subr.bf16.mxu0 0
      %2072 = vmatpush1.bf16.msra.mxu0 0
      %2073 = vmatprep.subr.bf16.mxu0 0
      %2074 = vmatpush1.bf16.msra.mxu0 0
      %2075 = vmatprep.mubr.bf16.mxu0 0
      %2076 = vmatmul.mubr.bf16.gmra.mrb[0].mxu0 %v1979
      %v2077 = vpop.f32.mrb[0].mxu0
      %v2078 = vadd.f32 0.0, %v2077
      %v2079 = vpop.f32.mrb[0].mxu0
      %v2080 = vpop.f32.mrb[0].mxu0
      %v2081 = vadd.f32 0.0, %v2080
      %v2082 = vpop.f32.mrb[0].mxu0
      %2083 = vmatprep.mubr.bf16.mxu0 0
      %2084 = vmatmul.mubr.bf16.gmra.mrb[0].mxu0 %v1980
      %v2085 = vpop.f32.mrb[0].mxu0
      %v2086 = vadd.f32 0.0, %v2085
      %v2087 = vpop.f32.mrb[0].mxu0
      %v2088 = vpop.f32.mrb[0].mxu0
      %v2089 = vadd.f32 0.0, %v2088
      %v2090 = vpop.f32.mrb[0].mxu0
      %2091 = vmatprep.mubr.bf16.mxu0 0
      %2092 = vmatmul.mubr.bf16.gmra.mrb[0].mxu0 %v1981
      %v2093 = vpop.f32.mrb[0].mxu0
      %v2094 = vadd.f32 0.0, %v2093
      %v2095 = vpop.f32.mrb[0].mxu0
      %v2096 = vpop.f32.mrb[0].mxu0
      %v2097 = vadd.f32 0.0, %v2096
      %v2098 = vpop.f32.mrb[0].mxu0
      %2099 = vmatprep.mubr.bf16.mxu0 0
      %2100 = vmatmul.mubr.bf16.gmra.mrb[0].mxu0 %v1982
      %v2101 = vpop.f32.mrb[0].mxu0
      %v2102 = vadd.f32 0.0, %v2101
      %v2103 = vpop.f32.mrb[0].mxu0
      %v2104 = vpop.f32.mrb[0].mxu0
      %v2105 = vadd.f32 0.0, %v2104
      %v2106 = vpop.f32.mrb[0].mxu0
      %2107 = vmatprep.mubr.bf16.mxu0 0
      %2108 = vmatmul.mubr.bf16.gmra.mrb[0].mxu0 %v1983
      %v2109 = vpop.f32.mrb[0].mxu0
      %v2110 = vadd.f32 0.0, %v2109
      %v2111 = vpop.f32.mrb[0].mxu0
      %v2112 = vpop.f32.mrb[0].mxu0
      %v2113 = vadd.f32 0.0, %v2112
      %v2114 = vpop.f32.mrb[0].mxu0
      %2115 = vmatprep.mubr.bf16.mxu0 0
      %2116 = vmatmul.mubr.bf16.gmra.mrb[0].mxu0 %v1984
      %v2117 = vpop.f32.mrb[0].mxu0
      %v2118 = vadd.f32 0.0, %v2117
      %v2119 = vpop.f32.mrb[0].mxu0
      %v2120 = vpop.f32.mrb[0].mxu0
      %v2121 = vadd.f32 0.0, %v2120
      %v2122 = vpop.f32.mrb[0].mxu0
      %2123 = vmatprep.mubr.bf16.mxu0 0
      %2124 = vmatmul.mubr.bf16.gmra.mrb[0].mxu0 %v1985
      %v2125 = vpop.f32.mrb[0].mxu0
      %v2126 = vadd.f32 0.0, %v2125
      %v2127 = vpop.f32.mrb[0].mxu0
      %v2128 = vpop.f32.mrb[0].mxu0
      %v2129 = vadd.f32 0.0, %v2128
      %v2130 = vpop.f32.mrb[0].mxu0
      %2131 = vmatprep.mubr.bf16.mxu0 0
      %2132 = vmatmul.mubr.bf16.gmra.mrb[0].mxu0 %v1986
      %v2133 = vpop.f32.mrb[0].mxu0
      %v2134 = vadd.f32 0.0, %v2133
      %v2135 = vpop.f32.mrb[0].mxu0
      %v2136 = vpop.f32.mrb[0].mxu0
      %v2137 = vadd.f32 0.0, %v2136
      %v2138 = vpop.f32.mrb[0].mxu0
      %2139 = vdwg.mxu0
      %v2140 = vadd.f32 %v1930, %v2078
      %v2141 = vadd.f32 %v1931, %v2081
      %v2142 = vadd.f32 %v1932, %v2086
      %v2143 = vadd.f32 %v1933, %v2089
      %v2144 = vadd.f32 %v1934, %v2094
      %v2145 = vadd.f32 %v1935, %v2097
      %v2146 = vadd.f32 %v1936, %v2102
      %v2147 = vadd.f32 %v1937, %v2105
      %v2148 = vadd.f32 %v1938, %v2110
      %v2149 = vadd.f32 %v1939, %v2113
      %v2150 = vadd.f32 %v1940, %v2118
      %v2151 = vadd.f32 %v1941, %v2121
      %v2152 = vadd.f32 %v1942, %v2126
      %v2153 = vadd.f32 %v1943, %v2129
      %v2154 = vadd.f32 %v1944, %v2134
      %v2155 = vadd.f32 %v1945, %v2137
      %s2156 = scalar_lea.vmem %s2, 192
      %v2157 = vld [vmem:[%s2156] sm:$0xf]
      %v2158 = vld [vmem:[%s2156 + $0x4] sm:$0xf]
      %v2159 = vld [vmem:[%s2156 + $0x8] sm:$0xf]
      %v2160 = vld [vmem:[%s2156 + $0xc] sm:$0xf]
      %v2161 = vld [vmem:[%s2156 + $0x10] sm:$0xf]
      %v2162 = vld [vmem:[%s2156 + $0x14] sm:$0xf]
      %v2163 = vld [vmem:[%s2156 + $0x18] sm:$0xf]
      %v2164 = vld [vmem:[%s2156 + $0x1c] sm:$0xf]
      %v2165 = vld [vmem:[%s2156 + $0x20] sm:$0xf]
      %v2166 = vld [vmem:[%s2156 + $0x24] sm:$0xf]
      %v2167 = vld [vmem:[%s2156 + $0x28] sm:$0xf]
      %v2168 = vld [vmem:[%s2156 + $0x2c] sm:$0xf]
      %v2169 = vld [vmem:[%s2156 + $0x30] sm:$0xf]
      %v2170 = vld [vmem:[%s2156 + $0x34] sm:$0xf]
      %v2171 = vld [vmem:[%s2156 + $0x38] sm:$0xf]
      %v2172 = vld [vmem:[%s2156 + $0x3c] sm:$0xf]
      %v2175 = vunpack.c.l.b16 %v344
      %v2176 = vunpack.c.l.b16 %v345
      %v2177 = vpack.c.b16 %v2176, %v2175
      %v2195 = vunpack.c.l.b16 %v2157
      %v2196 = vunpack.c.l.b16 %v2158
      %v2197 = vunpack.c.l.b16 %v2159
      %v2198 = vunpack.c.l.b16 %v2160
      %v2199 = vunpack.c.l.b16 %v2161
      %v2200 = vunpack.c.l.b16 %v2162
      %v2201 = vunpack.c.l.b16 %v2163
      %v2202 = vunpack.c.l.b16 %v2164
      %v2203 = vunpack.c.l.b16 %v2165
      %v2204 = vunpack.c.l.b16 %v2166
      %v2205 = vunpack.c.l.b16 %v2167
      %v2206 = vunpack.c.l.b16 %v2168
      %v2207 = vunpack.c.l.b16 %v2169
      %v2208 = vunpack.c.l.b16 %v2170
      %v2209 = vunpack.c.l.b16 %v2171
      %v2210 = vunpack.c.l.b16 %v2172
      %v2211 = vpack.c.b16 %v2196, %v2195
      %v2212 = vpack.c.b16 %v2198, %v2197
      %v2213 = vpack.c.b16 %v2200, %v2199
      %v2214 = vpack.c.b16 %v2202, %v2201
      %v2215 = vpack.c.b16 %v2204, %v2203
      %v2216 = vpack.c.b16 %v2206, %v2205
      %v2217 = vpack.c.b16 %v2208, %v2207
      %v2218 = vpack.c.b16 %v2210, %v2209
      %2227 = vmatprep.subr.bf16.mxu0 0
      %2228 = vmatpush1.bf16.msra.mxu0 %v2211
      %2229 = vmatprep.subr.bf16.mxu0 0
      %2230 = vmatpush1.bf16.msra.mxu0 %v2212
      %2231 = vmatprep.subr.bf16.mxu0 0
      %2232 = vmatpush1.bf16.msra.mxu0 %v2213
      %2233 = vmatprep.subr.bf16.mxu0 0
      %2234 = vmatpush1.bf16.msra.mxu0 %v2214
      %2235 = vmatprep.subr.bf16.mxu0 0
      %2236 = vmatpush1.bf16.msra.mxu0 %v2215
      %2237 = vmatprep.subr.bf16.mxu0 0
      %2238 = vmatpush1.bf16.msra.mxu0 %v2216
      %2239 = vmatprep.subr.bf16.mxu0 0
      %2240 = vmatpush1.bf16.msra.mxu0 %v2217
      %2241 = vmatprep.subr.bf16.mxu0 0
      %2242 = vmatpush1.bf16.msra.mxu0 %v2218
      %2243 = vmatprep.subr.bf16.mxu0 0
      %2244 = vmatpush1.bf16.msra.mxu0 0
      %2245 = vmatprep.subr.bf16.mxu0 0
      %2246 = vmatpush1.bf16.msra.mxu0 0
      %2247 = vmatprep.subr.bf16.mxu0 0
      %2248 = vmatpush1.bf16.msra.mxu0 0
      %2249 = vmatprep.subr.bf16.mxu0 0
      %2250 = vmatpush1.bf16.msra.mxu0 0
      %2251 = vmatprep.subr.bf16.mxu0 0
      %2252 = vmatpush1.bf16.msra.mxu0 0
      %2253 = vmatprep.subr.bf16.mxu0 0
      %2254 = vmatpush1.bf16.msra.mxu0 0
      %2255 = vmatprep.subr.bf16.mxu0 0
      %2256 = vmatpush1.bf16.msra.mxu0 0
      %2257 = vmatprep.subr.bf16.mxu0 0
      %2258 = vmatpush1.bf16.msra.mxu0 0
      %2259 = vmatprep.mubr.bf16.mxu0 0
      %2260 = vmatmul.mubr.bf16.gmra.mrb[0].mxu0 %v638
      %v2261 = vpop.f32.mrb[0].mxu0
      %v2262 = vadd.f32 0.0, %v2261
      %v2263 = vpop.f32.mrb[0].mxu0
      %v2264 = vpop.f32.mrb[0].mxu0
      %v2265 = vadd.f32 0.0, %v2264
      %v2266 = vpop.f32.mrb[0].mxu0
      %2267 = vmatprep.mubr.bf16.mxu0 0
      %2268 = vmatmul.mubr.bf16.gmra.mrb[0].mxu0 %v639
      %v2269 = vpop.f32.mrb[0].mxu0
      %v2270 = vadd.f32 0.0, %v2269
      %v2271 = vpop.f32.mrb[0].mxu0
      %v2272 = vpop.f32.mrb[0].mxu0
      %v2273 = vadd.f32 0.0, %v2272
      %v2274 = vpop.f32.mrb[0].mxu0
      %2275 = vmatprep.mubr.bf16.mxu0 0
      %2276 = vmatmul.mubr.bf16.gmra.mrb[0].mxu0 %v640
      %v2277 = vpop.f32.mrb[0].mxu0
      %v2278 = vadd.f32 0.0, %v2277
      %v2279 = vpop.f32.mrb[0].mxu0
      %v2280 = vpop.f32.mrb[0].mxu0
      %v2281 = vadd.f32 0.0, %v2280
      %v2282 = vpop.f32.mrb[0].mxu0
      %2283 = vmatprep.mubr.bf16.mxu0 0
      %2284 = vmatmul.mubr.bf16.gmra.mrb[0].mxu0 %v641
      %v2285 = vpop.f32.mrb[0].mxu0
      %v2286 = vadd.f32 0.0, %v2285
      %v2287 = vpop.f32.mrb[0].mxu0
      %v2288 = vpop.f32.mrb[0].mxu0
      %v2289 = vadd.f32 0.0, %v2288
      %v2290 = vpop.f32.mrb[0].mxu0
      %2291 = vmatprep.mubr.bf16.mxu0 0
      %2292 = vmatmul.mubr.bf16.gmra.mrb[0].mxu0 %v642
      %v2293 = vpop.f32.mrb[0].mxu0
      %v2294 = vadd.f32 0.0, %v2293
      %v2295 = vpop.f32.mrb[0].mxu0
      %v2296 = vpop.f32.mrb[0].mxu0
      %v2297 = vadd.f32 0.0, %v2296
      %v2298 = vpop.f32.mrb[0].mxu0
      %2299 = vmatprep.mubr.bf16.mxu0 0
      %2300 = vmatmul.mubr.bf16.gmra.mrb[0].mxu0 %v643
      %v2301 = vpop.f32.mrb[0].mxu0
      %v2302 = vadd.f32 0.0, %v2301
      %v2303 = vpop.f32.mrb[0].mxu0
      %v2304 = vpop.f32.mrb[0].mxu0
      %v2305 = vadd.f32 0.0, %v2304
      %v2306 = vpop.f32.mrb[0].mxu0
      %2307 = vmatprep.mubr.bf16.mxu0 0
      %2308 = vmatmul.mubr.bf16.gmra.mrb[0].mxu0 %v644
      %v2309 = vpop.f32.mrb[0].mxu0
      %v2310 = vadd.f32 0.0, %v2309
      %v2311 = vpop.f32.mrb[0].mxu0
      %v2312 = vpop.f32.mrb[0].mxu0
      %v2313 = vadd.f32 0.0, %v2312
      %v2314 = vpop.f32.mrb[0].mxu0
      %2315 = vmatprep.mubr.bf16.mxu0 0
      %2316 = vmatmul.mubr.bf16.gmra.mrb[0].mxu0 %v2177
      %v2317 = vpop.f32.mrb[0].mxu0
      %v2318 = vadd.f32 0.0, %v2317
      %v2319 = vpop.f32.mrb[0].mxu0
      %v2320 = vpop.f32.mrb[0].mxu0
      %v2321 = vadd.f32 0.0, %v2320
      %v2322 = vpop.f32.mrb[0].mxu0
      %2323 = vdwg.mxu0
      %v2324 = vadd.f32 %v2140, %v2262
      %v2325 = vadd.f32 %v2141, %v2265
      %v2326 = vadd.f32 %v2142, %v2270
      %v2327 = vadd.f32 %v2143, %v2273
      %v2328 = vadd.f32 %v2144, %v2278
      %v2329 = vadd.f32 %v2145, %v2281
      %v2330 = vadd.f32 %v2146, %v2286
      %v2331 = vadd.f32 %v2147, %v2289
      %v2332 = vadd.f32 %v2148, %v2294
      %v2333 = vadd.f32 %v2149, %v2297
      %v2334 = vadd.f32 %v2150, %v2302
      %v2335 = vadd.f32 %v2151, %v2305
      %v2336 = vadd.f32 %v2152, %v2310
      %v2337 = vadd.f32 %v2153, %v2313
      %v2338 = vadd.f32 %v2154, %v2318
      %v2339 = vadd.f32 %v2155, %v2321
      %s2340 = scalar_lea.vmem %s3, 192
      %v2341 = vld [vmem:[%s2340] sm:$0xf]
      %v2342 = vld [vmem:[%s2340 + $0x4] sm:$0xf]
      %v2343 = vld [vmem:[%s2340 + $0x8] sm:$0xf]
      %v2344 = vld [vmem:[%s2340 + $0xc] sm:$0xf]
      %v2345 = vld [vmem:[%s2340 + $0x10] sm:$0xf]
      %v2346 = vld [vmem:[%s2340 + $0x14] sm:$0xf]
      %v2347 = vld [vmem:[%s2340 + $0x18] sm:$0xf]
      %v2348 = vld [vmem:[%s2340 + $0x1c] sm:$0xf]
      %v2349 = vld [vmem:[%s2340 + $0x20] sm:$0xf]
      %v2350 = vld [vmem:[%s2340 + $0x24] sm:$0xf]
      %v2351 = vld [vmem:[%s2340 + $0x28] sm:$0xf]
      %v2352 = vld [vmem:[%s2340 + $0x2c] sm:$0xf]
      %v2353 = vld [vmem:[%s2340 + $0x30] sm:$0xf]
      %v2354 = vld [vmem:[%s2340 + $0x34] sm:$0xf]
      %v2355 = vld [vmem:[%s2340 + $0x38] sm:$0xf]
      %v2356 = vld [vmem:[%s2340 + $0x3c] sm:$0xf]
      %v2359 = vunpack.c.l.b16 %v374
      %v2360 = vunpack.c.l.b16 %v375
      %v2361 = vpack.c.b16 %v2360, %v2359
      %v2379 = vunpack.c.l.b16 %v2341
      %v2380 = vunpack.c.l.b16 %v2342
      %v2381 = vunpack.c.l.b16 %v2343
      %v2382 = vunpack.c.l.b16 %v2344
      %v2383 = vunpack.c.l.b16 %v2345
      %v2384 = vunpack.c.l.b16 %v2346
      %v2385 = vunpack.c.l.b16 %v2347
      %v2386 = vunpack.c.l.b16 %v2348
      %v2387 = vunpack.c.l.b16 %v2349
      %v2388 = vunpack.c.l.b16 %v2350
      %v2389 = vunpack.c.l.b16 %v2351
      %v2390 = vunpack.c.l.b16 %v2352
      %v2391 = vunpack.c.l.b16 %v2353
      %v2392 = vunpack.c.l.b16 %v2354
      %v2393 = vunpack.c.l.b16 %v2355
      %v2394 = vunpack.c.l.b16 %v2356
      %v2395 = vpack.c.b16 %v2380, %v2379
      %v2396 = vpack.c.b16 %v2382, %v2381
      %v2397 = vpack.c.b16 %v2384, %v2383
      %v2398 = vpack.c.b16 %v2386, %v2385
      %v2399 = vpack.c.b16 %v2388, %v2387
      %v2400 = vpack.c.b16 %v2390, %v2389
      %v2401 = vpack.c.b16 %v2392, %v2391
      %v2402 = vpack.c.b16 %v2394, %v2393
      %2411 = vmatprep.subr.bf16.mxu0 0
      %2412 = vmatpush1.bf16.msra.mxu0 %v2395
      %2413 = vmatprep.subr.bf16.mxu0 0
      %2414 = vmatpush1.bf16.msra.mxu0 %v2396
      %2415 = vmatprep.subr.bf16.mxu0 0
      %2416 = vmatpush1.bf16.msra.mxu0 %v2397
      %2417 = vmatprep.subr.bf16.mxu0 0
      %2418 = vmatpush1.bf16.msra.mxu0 %v2398
      %2419 = vmatprep.subr.bf16.mxu0 0
      %2420 = vmatpush1.bf16.msra.mxu0 %v2399
      %2421 = vmatprep.subr.bf16.mxu0 0
      %2422 = vmatpush1.bf16.msra.mxu0 %v2400
      %2423 = vmatprep.subr.bf16.mxu0 0
      %2424 = vmatpush1.bf16.msra.mxu0 %v2401
      %2425 = vmatprep.subr.bf16.mxu0 0
      %2426 = vmatpush1.bf16.msra.mxu0 %v2402
      %2427 = vmatprep.subr.bf16.mxu0 0
      %2428 = vmatpush1.bf16.msra.mxu0 0
      %2429 = vmatprep.subr.bf16.mxu0 0
      %2430 = vmatpush1.bf16.msra.mxu0 0
      %2431 = vmatprep.subr.bf16.mxu0 0
      %2432 = vmatpush1.bf16.msra.mxu0 0
      %2433 = vmatprep.subr.bf16.mxu0 0
      %2434 = vmatpush1.bf16.msra.mxu0 0
      %2435 = vmatprep.subr.bf16.mxu0 0
      %2436 = vmatpush1.bf16.msra.mxu0 0
      %2437 = vmatprep.subr.bf16.mxu0 0
      %2438 = vmatpush1.bf16.msra.mxu0 0
      %2439 = vmatprep.subr.bf16.mxu0 0
      %2440 = vmatpush1.bf16.msra.mxu0 0
      %2441 = vmatprep.subr.bf16.mxu0 0
      %2442 = vmatpush1.bf16.msra.mxu0 0
      %2443 = vmatprep.mubr.bf16.mxu0 0
      %2444 = vmatmul.mubr.bf16.gmra.mrb[0].mxu0 %v445
      %v2445 = vpop.f32.mrb[0].mxu0
      %v2446 = vadd.f32 0.0, %v2445
      %v2447 = vpop.f32.mrb[0].mxu0
      %v2448 = vpop.f32.mrb[0].mxu0
      %v2449 = vadd.f32 0.0, %v2448
      %v2450 = vpop.f32.mrb[0].mxu0
      %2451 = vmatprep.mubr.bf16.mxu0 0
      %2452 = vmatmul.mubr.bf16.gmra.mrb[0].mxu0 %v446
      %v2453 = vpop.f32.mrb[0].mxu0
      %v2454 = vadd.f32 0.0, %v2453
      %v2455 = vpop.f32.mrb[0].mxu0
      %v2456 = vpop.f32.mrb[0].mxu0
      %v2457 = vadd.f32 0.0, %v2456
      %v2458 = vpop.f32.mrb[0].mxu0
      %2459 = vmatprep.mubr.bf16.mxu0 0
      %2460 = vmatmul.mubr.bf16.gmra.mrb[0].mxu0 %v447
      %v2461 = vpop.f32.mrb[0].mxu0
      %v2462 = vadd.f32 0.0, %v2461
      %v2463 = vpop.f32.mrb[0].mxu0
      %v2464 = vpop.f32.mrb[0].mxu0
      %v2465 = vadd.f32 0.0, %v2464
      %v2466 = vpop.f32.mrb[0].mxu0
      %2467 = vmatprep.mubr.bf16.mxu0 0
      %2468 = vmatmul.mubr.bf16.gmra.mrb[0].mxu0 %v448
      %v2469 = vpop.f32.mrb[0].mxu0
      %v2470 = vadd.f32 0.0, %v2469
      %v2471 = vpop.f32.mrb[0].mxu0
      %v2472 = vpop.f32.mrb[0].mxu0
      %v2473 = vadd.f32 0.0, %v2472
      %v2474 = vpop.f32.mrb[0].mxu0
      %2475 = vmatprep.mubr.bf16.mxu0 0
      %2476 = vmatmul.mubr.bf16.gmra.mrb[0].mxu0 %v449
      %v2477 = vpop.f32.mrb[0].mxu0
      %v2478 = vadd.f32 0.0, %v2477
      %v2479 = vpop.f32.mrb[0].mxu0
      %v2480 = vpop.f32.mrb[0].mxu0
      %v2481 = vadd.f32 0.0, %v2480
      %v2482 = vpop.f32.mrb[0].mxu0
      %2483 = vmatprep.mubr.bf16.mxu0 0
      %2484 = vmatmul.mubr.bf16.gmra.mrb[0].mxu0 %v450
      %v2485 = vpop.f32.mrb[0].mxu0
      %v2486 = vadd.f32 0.0, %v2485
      %v2487 = vpop.f32.mrb[0].mxu0
      %v2488 = vpop.f32.mrb[0].mxu0
      %v2489 = vadd.f32 0.0, %v2488
      %v2490 = vpop.f32.mrb[0].mxu0
      %2491 = vmatprep.mubr.bf16.mxu0 0
      %2492 = vmatmul.mubr.bf16.gmra.mrb[0].mxu0 %v451
      %v2493 = vpop.f32.mrb[0].mxu0
      %v2494 = vadd.f32 0.0, %v2493
      %v2495 = vpop.f32.mrb[0].mxu0
      %v2496 = vpop.f32.mrb[0].mxu0
      %v2497 = vadd.f32 0.0, %v2496
      %v2498 = vpop.f32.mrb[0].mxu0
      %2499 = vmatprep.mubr.bf16.mxu0 0
      %2500 = vmatmul.mubr.bf16.gmra.mrb[0].mxu0 %v2361
      %v2501 = vpop.f32.mrb[0].mxu0
      %v2502 = vadd.f32 0.0, %v2501
      %v2503 = vpop.f32.mrb[0].mxu0
      %v2504 = vpop.f32.mrb[0].mxu0
      %v2505 = vadd.f32 0.0, %v2504
      %v2506 = vpop.f32.mrb[0].mxu0
      %2507 = vdwg.mxu0
      %v2508 = vadd.f32 %v2324, %v2446
      %v2509 = vadd.f32 %v2325, %v2449
      %v2510 = vadd.f32 %v2326, %v2454
      %v2511 = vadd.f32 %v2327, %v2457
      %v2512 = vadd.f32 %v2328, %v2462
      %v2513 = vadd.f32 %v2329, %v2465
      %v2514 = vadd.f32 %v2330, %v2470
      %v2515 = vadd.f32 %v2331, %v2473
      %v2516 = vadd.f32 %v2332, %v2478
      %v2517 = vadd.f32 %v2333, %v2481
      %v2518 = vadd.f32 %v2334, %v2486
      %v2519 = vadd.f32 %v2335, %v2489
      %v2520 = vadd.f32 %v2336, %v2494
      %v2521 = vadd.f32 %v2337, %v2497
      %v2522 = vadd.f32 %v2338, %v2502
      %v2523 = vadd.f32 %v2339, %v2505
      %v2525 = vshrl.u32 %v344, 16
      %v2527 = vrot.slane %v2525, 4
      %v2528 = vshll.u32 %v344, 16
      %v2530 = vrot.slane %v2528, 5
      %v2531 = vor.u32 %v2527, %v2530
      %v2532 = vrot.slane %v2531, 4
      %v2534 = vshll.u32 %v345, 16
      %v2536 = vrot.slane %v2534, 5
      %v2537 = vsel %vm800, %v2532, %v2536
      %v2538 = vshrl.u32 %v345, 16
      %v2540 = vrot.slane %v2538, 4
      %v2541 = vor.u32 %v2540, %v2536
      %v2542 = vrot.slane %v2541, 4
      %v2544 = vshll.u32 %v346, 16
      %v2546 = vrot.slane %v2544, 5
      %v2547 = vsel %vm800, %v2542, %v2546
      %v2549 = vshrl.u32 %v374, 16
      %v2551 = vrot.slane %v2549, 4
      %v2552 = vshll.u32 %v374, 16
      %v2554 = vrot.slane %v2552, 5
      %v2555 = vor.u32 %v2551, %v2554
      %v2556 = vrot.slane %v2555, 4
      %v2558 = vshll.u32 %v375, 16
      %v2560 = vrot.slane %v2558, 5
      %v2561 = vsel %vm800, %v2556, %v2560
      %v2562 = vshrl.u32 %v375, 16
      %v2564 = vrot.slane %v2562, 4
      %v2565 = vor.u32 %v2564, %v2560
      %v2566 = vrot.slane %v2565, 4
      %v2568 = vshll.u32 %v376, 16
      %v2570 = vrot.slane %v2568, 5
      %v2571 = vsel %vm800, %v2566, %v2570
      %s2572 = scalar_lea.vmem %s2, 256
      %v2573 = vld [vmem:[%s2572] sm:$0xf]
      %v2574 = vld [vmem:[%s2572 + $0x4] sm:$0xf]
      %v2575 = vld [vmem:[%s2572 + $0x8] sm:$0xf]
      %v2576 = vld [vmem:[%s2572 + $0xc] sm:$0xf]
      %v2577 = vld [vmem:[%s2572 + $0x10] sm:$0xf]
      %v2578 = vld [vmem:[%s2572 + $0x14] sm:$0xf]
      %v2579 = vld [vmem:[%s2572 + $0x18] sm:$0xf]
      %v2580 = vld [vmem:[%s2572 + $0x1c] sm:$0xf]
      %v2581 = vld [vmem:[%s2572 + $0x20] sm:$0xf]
      %v2582 = vld [vmem:[%s2572 + $0x24] sm:$0xf]
      %v2583 = vld [vmem:[%s2572 + $0x28] sm:$0xf]
      %v2584 = vld [vmem:[%s2572 + $0x2c] sm:$0xf]
      %v2585 = vld [vmem:[%s2572 + $0x30] sm:$0xf]
      %v2586 = vld [vmem:[%s2572 + $0x34] sm:$0xf]
      %v2587 = vld [vmem:[%s2572 + $0x38] sm:$0xf]
      %v2588 = vld [vmem:[%s2572 + $0x3c] sm:$0xf]
      %v2589 = vunpack.c.l.b16 %v2537
      %v2590 = vunpack.c.l.b16 %v2547
      %v2591 = vpack.c.b16 %v2590, %v2589
      %v2609 = vunpack.c.l.b16 %v2573
      %v2610 = vunpack.c.l.b16 %v2574
      %v2611 = vunpack.c.l.b16 %v2575
      %v2612 = vunpack.c.l.b16 %v2576
      %v2613 = vunpack.c.l.b16 %v2577
      %v2614 = vunpack.c.l.b16 %v2578
      %v2615 = vunpack.c.l.b16 %v2579
      %v2616 = vunpack.c.l.b16 %v2580
      %v2617 = vunpack.c.l.b16 %v2581
      %v2618 = vunpack.c.l.b16 %v2582
      %v2619 = vunpack.c.l.b16 %v2583
      %v2620 = vunpack.c.l.b16 %v2584
      %v2621 = vunpack.c.l.b16 %v2585
      %v2622 = vunpack.c.l.b16 %v2586
      %v2623 = vunpack.c.l.b16 %v2587
      %v2624 = vunpack.c.l.b16 %v2588
      %v2625 = vpack.c.b16 %v2610, %v2609
      %v2626 = vpack.c.b16 %v2612, %v2611
      %v2627 = vpack.c.b16 %v2614, %v2613
      %v2628 = vpack.c.b16 %v2616, %v2615
      %v2629 = vpack.c.b16 %v2618, %v2617
      %v2630 = vpack.c.b16 %v2620, %v2619
      %v2631 = vpack.c.b16 %v2622, %v2621
      %v2632 = vpack.c.b16 %v2624, %v2623
      %2641 = vmatprep.subr.bf16.mxu0 0
      %2642 = vmatpush1.bf16.msra.mxu0 %v2625
      %2643 = vmatprep.subr.bf16.mxu0 0
      %2644 = vmatpush1.bf16.msra.mxu0 %v2626
      %2645 = vmatprep.subr.bf16.mxu0 0
      %2646 = vmatpush1.bf16.msra.mxu0 %v2627
      %2647 = vmatprep.subr.bf16.mxu0 0
      %2648 = vmatpush1.bf16.msra.mxu0 %v2628
      %2649 = vmatprep.subr.bf16.mxu0 0
      %2650 = vmatpush1.bf16.msra.mxu0 %v2629
      %2651 = vmatprep.subr.bf16.mxu0 0
      %2652 = vmatpush1.bf16.msra.mxu0 %v2630
      %2653 = vmatprep.subr.bf16.mxu0 0
      %2654 = vmatpush1.bf16.msra.mxu0 %v2631
      %2655 = vmatprep.subr.bf16.mxu0 0
      %2656 = vmatpush1.bf16.msra.mxu0 %v2632
      %2657 = vmatprep.subr.bf16.mxu0 0
      %2658 = vmatpush1.bf16.msra.mxu0 0
      %2659 = vmatprep.subr.bf16.mxu0 0
      %2660 = vmatpush1.bf16.msra.mxu0 0
      %2661 = vmatprep.subr.bf16.mxu0 0
      %2662 = vmatpush1.bf16.msra.mxu0 0
      %2663 = vmatprep.subr.bf16.mxu0 0
      %2664 = vmatpush1.bf16.msra.mxu0 0
      %2665 = vmatprep.subr.bf16.mxu0 0
      %2666 = vmatpush1.bf16.msra.mxu0 0
      %2667 = vmatprep.subr.bf16.mxu0 0
      %2668 = vmatpush1.bf16.msra.mxu0 0
      %2669 = vmatprep.subr.bf16.mxu0 0
      %2670 = vmatpush1.bf16.msra.mxu0 0
      %2671 = vmatprep.subr.bf16.mxu0 0
      %2672 = vmatpush1.bf16.msra.mxu0 0
      %2673 = vmatprep.mubr.bf16.mxu0 0
      %2674 = vmatmul.mubr.bf16.gmra.mrb[0].mxu0 %v1219
      %v2675 = vpop.f32.mrb[0].mxu0
      %v2676 = vadd.f32 0.0, %v2675
      %v2677 = vpop.f32.mrb[0].mxu0
      %v2678 = vpop.f32.mrb[0].mxu0
      %v2679 = vadd.f32 0.0, %v2678
      %v2680 = vpop.f32.mrb[0].mxu0
      %2681 = vmatprep.mubr.bf16.mxu0 0
      %2682 = vmatmul.mubr.bf16.gmra.mrb[0].mxu0 %v1220
      %v2683 = vpop.f32.mrb[0].mxu0
      %v2684 = vadd.f32 0.0, %v2683
      %v2685 = vpop.f32.mrb[0].mxu0
      %v2686 = vpop.f32.mrb[0].mxu0
      %v2687 = vadd.f32 0.0, %v2686
      %v2688 = vpop.f32.mrb[0].mxu0
      %2689 = vmatprep.mubr.bf16.mxu0 0
      %2690 = vmatmul.mubr.bf16.gmra.mrb[0].mxu0 %v1221
      %v2691 = vpop.f32.mrb[0].mxu0
      %v2692 = vadd.f32 0.0, %v2691
      %v2693 = vpop.f32.mrb[0].mxu0
      %v2694 = vpop.f32.mrb[0].mxu0
      %v2695 = vadd.f32 0.0, %v2694
      %v2696 = vpop.f32.mrb[0].mxu0
      %2697 = vmatprep.mubr.bf16.mxu0 0
      %2698 = vmatmul.mubr.bf16.gmra.mrb[0].mxu0 %v1222
      %v2699 = vpop.f32.mrb[0].mxu0
      %v2700 = vadd.f32 0.0, %v2699
      %v2701 = vpop.f32.mrb[0].mxu0
      %v2702 = vpop.f32.mrb[0].mxu0
      %v2703 = vadd.f32 0.0, %v2702
      %v2704 = vpop.f32.mrb[0].mxu0
      %2705 = vmatprep.mubr.bf16.mxu0 0
      %2706 = vmatmul.mubr.bf16.gmra.mrb[0].mxu0 %v1223
      %v2707 = vpop.f32.mrb[0].mxu0
      %v2708 = vadd.f32 0.0, %v2707
      %v2709 = vpop.f32.mrb[0].mxu0
      %v2710 = vpop.f32.mrb[0].mxu0
      %v2711 = vadd.f32 0.0, %v2710
      %v2712 = vpop.f32.mrb[0].mxu0
      %2713 = vmatprep.mubr.bf16.mxu0 0
      %2714 = vmatmul.mubr.bf16.gmra.mrb[0].mxu0 %v1224
      %v2715 = vpop.f32.mrb[0].mxu0
      %v2716 = vadd.f32 0.0, %v2715
      %v2717 = vpop.f32.mrb[0].mxu0
      %v2718 = vpop.f32.mrb[0].mxu0
      %v2719 = vadd.f32 0.0, %v2718
      %v2720 = vpop.f32.mrb[0].mxu0
      %2721 = vmatprep.mubr.bf16.mxu0 0
      %2722 = vmatmul.mubr.bf16.gmra.mrb[0].mxu0 %v1225
      %v2723 = vpop.f32.mrb[0].mxu0
      %v2724 = vadd.f32 0.0, %v2723
      %v2725 = vpop.f32.mrb[0].mxu0
      %v2726 = vpop.f32.mrb[0].mxu0
      %v2727 = vadd.f32 0.0, %v2726
      %v2728 = vpop.f32.mrb[0].mxu0
      %2729 = vmatprep.mubr.bf16.mxu0 0
      %2730 = vmatmul.mubr.bf16.gmra.mrb[0].mxu0 %v2591
      %v2731 = vpop.f32.mrb[0].mxu0
      %v2732 = vadd.f32 0.0, %v2731
      %v2733 = vpop.f32.mrb[0].mxu0
      %v2734 = vpop.f32.mrb[0].mxu0
      %v2735 = vadd.f32 0.0, %v2734
      %v2736 = vpop.f32.mrb[0].mxu0
      %2737 = vdwg.mxu0
      %v2738 = vadd.f32 %v2508, %v2676
      %v2739 = vadd.f32 %v2509, %v2679
      %v2740 = vadd.f32 %v2510, %v2684
      %v2741 = vadd.f32 %v2511, %v2687
      %v2742 = vadd.f32 %v2512, %v2692
      %v2743 = vadd.f32 %v2513, %v2695
      %v2744 = vadd.f32 %v2514, %v2700
      %v2745 = vadd.f32 %v2515, %v2703
      %v2746 = vadd.f32 %v2516, %v2708
      %v2747 = vadd.f32 %v2517, %v2711
      %v2748 = vadd.f32 %v2518, %v2716
      %v2749 = vadd.f32 %v2519, %v2719
      %v2750 = vadd.f32 %v2520, %v2724
      %v2751 = vadd.f32 %v2521, %v2727
      %v2752 = vadd.f32 %v2522, %v2732
      %v2753 = vadd.f32 %v2523, %v2735
      %s2754 = scalar_lea.vmem %s3, 256
      %v2755 = vld [vmem:[%s2754] sm:$0xf]
      %v2756 = vld [vmem:[%s2754 + $0x4] sm:$0xf]
      %v2757 = vld [vmem:[%s2754 + $0x8] sm:$0xf]
      %v2758 = vld [vmem:[%s2754 + $0xc] sm:$0xf]
      %v2759 = vld [vmem:[%s2754 + $0x10] sm:$0xf]
      %v2760 = vld [vmem:[%s2754 + $0x14] sm:$0xf]
      %v2761 = vld [vmem:[%s2754 + $0x18] sm:$0xf]
      %v2762 = vld [vmem:[%s2754 + $0x1c] sm:$0xf]
      %v2763 = vld [vmem:[%s2754 + $0x20] sm:$0xf]
      %v2764 = vld [vmem:[%s2754 + $0x24] sm:$0xf]
      %v2765 = vld [vmem:[%s2754 + $0x28] sm:$0xf]
      %v2766 = vld [vmem:[%s2754 + $0x2c] sm:$0xf]
      %v2767 = vld [vmem:[%s2754 + $0x30] sm:$0xf]
      %v2768 = vld [vmem:[%s2754 + $0x34] sm:$0xf]
      %v2769 = vld [vmem:[%s2754 + $0x38] sm:$0xf]
      %v2770 = vld [vmem:[%s2754 + $0x3c] sm:$0xf]
      %v2771 = vunpack.c.l.b16 %v2561
      %v2772 = vunpack.c.l.b16 %v2571
      %v2773 = vpack.c.b16 %v2772, %v2771
      %v2791 = vunpack.c.l.b16 %v2755
      %v2792 = vunpack.c.l.b16 %v2756
      %v2793 = vunpack.c.l.b16 %v2757
      %v2794 = vunpack.c.l.b16 %v2758
      %v2795 = vunpack.c.l.b16 %v2759
      %v2796 = vunpack.c.l.b16 %v2760
      %v2797 = vunpack.c.l.b16 %v2761
      %v2798 = vunpack.c.l.b16 %v2762
      %v2799 = vunpack.c.l.b16 %v2763
      %v2800 = vunpack.c.l.b16 %v2764
      %v2801 = vunpack.c.l.b16 %v2765
      %v2802 = vunpack.c.l.b16 %v2766
      %v2803 = vunpack.c.l.b16 %v2767
      %v2804 = vunpack.c.l.b16 %v2768
      %v2805 = vunpack.c.l.b16 %v2769
      %v2806 = vunpack.c.l.b16 %v2770
      %v2807 = vpack.c.b16 %v2792, %v2791
      %v2808 = vpack.c.b16 %v2794, %v2793
      %v2809 = vpack.c.b16 %v2796, %v2795
      %v2810 = vpack.c.b16 %v2798, %v2797
      %v2811 = vpack.c.b16 %v2800, %v2799
      %v2812 = vpack.c.b16 %v2802, %v2801
      %v2813 = vpack.c.b16 %v2804, %v2803
      %v2814 = vpack.c.b16 %v2806, %v2805
      %2823 = vmatprep.subr.bf16.mxu0 0
      %2824 = vmatpush1.bf16.msra.mxu0 %v2807
      %2825 = vmatprep.subr.bf16.mxu0 0
      %2826 = vmatpush1.bf16.msra.mxu0 %v2808
      %2827 = vmatprep.subr.bf16.mxu0 0
      %2828 = vmatpush1.bf16.msra.mxu0 %v2809
      %2829 = vmatprep.subr.bf16.mxu0 0
      %2830 = vmatpush1.bf16.msra.mxu0 %v2810
      %2831 = vmatprep.subr.bf16.mxu0 0
      %2832 = vmatpush1.bf16.msra.mxu0 %v2811
      %2833 = vmatprep.subr.bf16.mxu0 0
      %2834 = vmatpush1.bf16.msra.mxu0 %v2812
      %2835 = vmatprep.subr.bf16.mxu0 0
      %2836 = vmatpush1.bf16.msra.mxu0 %v2813
      %2837 = vmatprep.subr.bf16.mxu0 0
      %2838 = vmatpush1.bf16.msra.mxu0 %v2814
      %2839 = vmatprep.subr.bf16.mxu0 0
      %2840 = vmatpush1.bf16.msra.mxu0 0
      %2841 = vmatprep.subr.bf16.mxu0 0
      %2842 = vmatpush1.bf16.msra.mxu0 0
      %2843 = vmatprep.subr.bf16.mxu0 0
      %2844 = vmatpush1.bf16.msra.mxu0 0
      %2845 = vmatprep.subr.bf16.mxu0 0
      %2846 = vmatpush1.bf16.msra.mxu0 0
      %2847 = vmatprep.subr.bf16.mxu0 0
      %2848 = vmatpush1.bf16.msra.mxu0 0
      %2849 = vmatprep.subr.bf16.mxu0 0
      %2850 = vmatpush1.bf16.msra.mxu0 0
      %2851 = vmatprep.subr.bf16.mxu0 0
      %2852 = vmatpush1.bf16.msra.mxu0 0
      %2853 = vmatprep.subr.bf16.mxu0 0
      %2854 = vmatpush1.bf16.msra.mxu0 0
      %2855 = vmatprep.mubr.bf16.mxu0 0
      %2856 = vmatmul.mubr.bf16.gmra.mrb[0].mxu0 %v1429
      %v2857 = vpop.f32.mrb[0].mxu0
      %v2858 = vadd.f32 0.0, %v2857
      %v2859 = vpop.f32.mrb[0].mxu0
      %v2860 = vpop.f32.mrb[0].mxu0
      %v2861 = vadd.f32 0.0, %v2860
      %v2862 = vpop.f32.mrb[0].mxu0
      %2863 = vmatprep.mubr.bf16.mxu0 0
      %2864 = vmatmul.mubr.bf16.gmra.mrb[0].mxu0 %v1430
      %v2865 = vpop.f32.mrb[0].mxu0
      %v2866 = vadd.f32 0.0, %v2865
      %v2867 = vpop.f32.mrb[0].mxu0
      %v2868 = vpop.f32.mrb[0].mxu0
      %v2869 = vadd.f32 0.0, %v2868
      %v2870 = vpop.f32.mrb[0].mxu0
      %2871 = vmatprep.mubr.bf16.mxu0 0
      %2872 = vmatmul.mubr.bf16.gmra.mrb[0].mxu0 %v1431
      %v2873 = vpop.f32.mrb[0].mxu0
      %v2874 = vadd.f32 0.0, %v2873
      %v2875 = vpop.f32.mrb[0].mxu0
      %v2876 = vpop.f32.mrb[0].mxu0
      %v2877 = vadd.f32 0.0, %v2876
      %v2878 = vpop.f32.mrb[0].mxu0
      %2879 = vmatprep.mubr.bf16.mxu0 0
      %2880 = vmatmul.mubr.bf16.gmra.mrb[0].mxu0 %v1432
      %v2881 = vpop.f32.mrb[0].mxu0
      %v2882 = vadd.f32 0.0, %v2881
      %v2883 = vpop.f32.mrb[0].mxu0
      %v2884 = vpop.f32.mrb[0].mxu0
      %v2885 = vadd.f32 0.0, %v2884
      %v2886 = vpop.f32.mrb[0].mxu0
      %2887 = vmatprep.mubr.bf16.mxu0 0
      %2888 = vmatmul.mubr.bf16.gmra.mrb[0].mxu0 %v1433
      %v2889 = vpop.f32.mrb[0].mxu0
      %v2890 = vadd.f32 0.0, %v2889
      %v2891 = vpop.f32.mrb[0].mxu0
      %v2892 = vpop.f32.mrb[0].mxu0
      %v2893 = vadd.f32 0.0, %v2892
      %v2894 = vpop.f32.mrb[0].mxu0
      %2895 = vmatprep.mubr.bf16.mxu0 0
      %2896 = vmatmul.mubr.bf16.gmra.mrb[0].mxu0 %v1434
      %v2897 = vpop.f32.mrb[0].mxu0
      %v2898 = vadd.f32 0.0, %v2897
      %v2899 = vpop.f32.mrb[0].mxu0
      %v2900 = vpop.f32.mrb[0].mxu0
      %v2901 = vadd.f32 0.0, %v2900
      %v2902 = vpop.f32.mrb[0].mxu0
      %2903 = vmatprep.mubr.bf16.mxu0 0
      %2904 = vmatmul.mubr.bf16.gmra.mrb[0].mxu0 %v1435
      %v2905 = vpop.f32.mrb[0].mxu0
      %v2906 = vadd.f32 0.0, %v2905
      %v2907 = vpop.f32.mrb[0].mxu0
      %v2908 = vpop.f32.mrb[0].mxu0
      %v2909 = vadd.f32 0.0, %v2908
      %v2910 = vpop.f32.mrb[0].mxu0
      %2911 = vmatprep.mubr.bf16.mxu0 0
      %2912 = vmatmul.mubr.bf16.gmra.mrb[0].mxu0 %v2773
      %v2913 = vpop.f32.mrb[0].mxu0
      %v2914 = vadd.f32 0.0, %v2913
      %v2915 = vpop.f32.mrb[0].mxu0
      %v2916 = vpop.f32.mrb[0].mxu0
      %v2917 = vadd.f32 0.0, %v2916
      %v2918 = vpop.f32.mrb[0].mxu0
      %2919 = vdwg.mxu0
      %v2920 = vadd.f32 %v2738, %v2858
      %v2921 = vadd.f32 %v2739, %v2861
      %v2922 = vadd.f32 %v2740, %v2866
      %v2923 = vadd.f32 %v2741, %v2869
      %v2924 = vadd.f32 %v2742, %v2874
      %v2925 = vadd.f32 %v2743, %v2877
      %v2926 = vadd.f32 %v2744, %v2882
      %v2927 = vadd.f32 %v2745, %v2885
      %v2928 = vadd.f32 %v2746, %v2890
      %v2929 = vadd.f32 %v2747, %v2893
      %v2930 = vadd.f32 %v2748, %v2898
      %v2931 = vadd.f32 %v2749, %v2901
      %v2932 = vadd.f32 %v2750, %v2906
      %v2933 = vadd.f32 %v2751, %v2909
      %v2934 = vadd.f32 %v2752, %v2914
      %v2935 = vadd.f32 %v2753, %v2917
      %v2937 = vrot.slane %v344, 5
      %v2938 = vrot.slane %v2937, 4
      %v2939 = vrot.slane %v345, 5
      %v2940 = vsel %vm1615, %v2938, %v2939
      %v2941 = vrot.slane %v2939, 4
      %v2942 = vrot.slane %v346, 5
      %v2943 = vsel %vm1615, %v2941, %v2942
      %v2945 = vrot.slane %v374, 5
      %v2946 = vrot.slane %v2945, 4
      %v2947 = vrot.slane %v375, 5
      %v2948 = vsel %vm1615, %v2946, %v2947
      %v2949 = vrot.slane %v2947, 4
      %v2950 = vrot.slane %v376, 5
      %v2951 = vsel %vm1615, %v2949, %v2950
      %s2952 = scalar_lea.vmem %s2, 320
      %v2953 = vld [vmem:[%s2952] sm:$0xf]
      %v2954 = vld [vmem:[%s2952 + $0x4] sm:$0xf]
      %v2955 = vld [vmem:[%s2952 + $0x8] sm:$0xf]
      %v2956 = vld [vmem:[%s2952 + $0xc] sm:$0xf]
      %v2957 = vld [vmem:[%s2952 + $0x10] sm:$0xf]
      %v2958 = vld [vmem:[%s2952 + $0x14] sm:$0xf]
      %v2959 = vld [vmem:[%s2952 + $0x18] sm:$0xf]
      %v2960 = vld [vmem:[%s2952 + $0x1c] sm:$0xf]
      %v2961 = vld [vmem:[%s2952 + $0x20] sm:$0xf]
      %v2962 = vld [vmem:[%s2952 + $0x24] sm:$0xf]
      %v2963 = vld [vmem:[%s2952 + $0x28] sm:$0xf]
      %v2964 = vld [vmem:[%s2952 + $0x2c] sm:$0xf]
      %v2965 = vld [vmem:[%s2952 + $0x30] sm:$0xf]
      %v2966 = vld [vmem:[%s2952 + $0x34] sm:$0xf]
      %v2967 = vld [vmem:[%s2952 + $0x38] sm:$0xf]
      %v2968 = vld [vmem:[%s2952 + $0x3c] sm:$0xf]
      %v2969 = vunpack.c.l.b16 %v2940
      %v2970 = vunpack.c.l.b16 %v2943
      %v2971 = vpack.c.b16 %v2970, %v2969
      %v2989 = vunpack.c.l.b16 %v2953
      %v2990 = vunpack.c.l.b16 %v2954
      %v2991 = vunpack.c.l.b16 %v2955
      %v2992 = vunpack.c.l.b16 %v2956
      %v2993 = vunpack.c.l.b16 %v2957
      %v2994 = vunpack.c.l.b16 %v2958
      %v2995 = vunpack.c.l.b16 %v2959
      %v2996 = vunpack.c.l.b16 %v2960
      %v2997 = vunpack.c.l.b16 %v2961
      %v2998 = vunpack.c.l.b16 %v2962
      %v2999 = vunpack.c.l.b16 %v2963
      %v3000 = vunpack.c.l.b16 %v2964
      %v3001 = vunpack.c.l.b16 %v2965
      %v3002 = vunpack.c.l.b16 %v2966
      %v3003 = vunpack.c.l.b16 %v2967
      %v3004 = vunpack.c.l.b16 %v2968
      %v3005 = vpack.c.b16 %v2990, %v2989
      %v3006 = vpack.c.b16 %v2992, %v2991
      %v3007 = vpack.c.b16 %v2994, %v2993
      %v3008 = vpack.c.b16 %v2996, %v2995
      %v3009 = vpack.c.b16 %v2998, %v2997
      %v3010 = vpack.c.b16 %v3000, %v2999
      %v3011 = vpack.c.b16 %v3002, %v3001
      %v3012 = vpack.c.b16 %v3004, %v3003
      %3021 = vmatprep.subr.bf16.mxu0 0
      %3022 = vmatpush1.bf16.msra.mxu0 %v3005
      %3023 = vmatprep.subr.bf16.mxu0 0
      %3024 = vmatpush1.bf16.msra.mxu0 %v3006
      %3025 = vmatprep.subr.bf16.mxu0 0
      %3026 = vmatpush1.bf16.msra.mxu0 %v3007
      %3027 = vmatprep.subr.bf16.mxu0 0
      %3028 = vmatpush1.bf16.msra.mxu0 %v3008
      %3029 = vmatprep.subr.bf16.mxu0 0
      %3030 = vmatpush1.bf16.msra.mxu0 %v3009
      %3031 = vmatprep.subr.bf16.mxu0 0
      %3032 = vmatpush1.bf16.msra.mxu0 %v3010
      %3033 = vmatprep.subr.bf16.mxu0 0
      %3034 = vmatpush1.bf16.msra.mxu0 %v3011
      %3035 = vmatprep.subr.bf16.mxu0 0
      %3036 = vmatpush1.bf16.msra.mxu0 %v3012
      %3037 = vmatprep.subr.bf16.mxu0 0
      %3038 = vmatpush1.bf16.msra.mxu0 0
      %3039 = vmatprep.subr.bf16.mxu0 0
      %3040 = vmatpush1.bf16.msra.mxu0 0
      %3041 = vmatprep.subr.bf16.mxu0 0
      %3042 = vmatpush1.bf16.msra.mxu0 0
      %3043 = vmatprep.subr.bf16.mxu0 0
      %3044 = vmatpush1.bf16.msra.mxu0 0
      %3045 = vmatprep.subr.bf16.mxu0 0
      %3046 = vmatpush1.bf16.msra.mxu0 0
      %3047 = vmatprep.subr.bf16.mxu0 0
      %3048 = vmatpush1.bf16.msra.mxu0 0
      %3049 = vmatprep.subr.bf16.mxu0 0
      %3050 = vmatpush1.bf16.msra.mxu0 0
      %3051 = vmatprep.subr.bf16.mxu0 0
      %3052 = vmatpush1.bf16.msra.mxu0 0
      %3053 = vmatprep.mubr.bf16.mxu0 0
      %3054 = vmatmul.mubr.bf16.gmra.mrb[0].mxu0 %v1770
      %v3055 = vpop.f32.mrb[0].mxu0
      %v3056 = vadd.f32 0.0, %v3055
      %v3057 = vpop.f32.mrb[0].mxu0
      %v3058 = vpop.f32.mrb[0].mxu0
      %v3059 = vadd.f32 0.0, %v3058
      %v3060 = vpop.f32.mrb[0].mxu0
      %3061 = vmatprep.mubr.bf16.mxu0 0
      %3062 = vmatmul.mubr.bf16.gmra.mrb[0].mxu0 %v1771
      %v3063 = vpop.f32.mrb[0].mxu0
      %v3064 = vadd.f32 0.0, %v3063
      %v3065 = vpop.f32.mrb[0].mxu0
      %v3066 = vpop.f32.mrb[0].mxu0
      %v3067 = vadd.f32 0.0, %v3066
      %v3068 = vpop.f32.mrb[0].mxu0
      %3069 = vmatprep.mubr.bf16.mxu0 0
      %3070 = vmatmul.mubr.bf16.gmra.mrb[0].mxu0 %v1772
      %v3071 = vpop.f32.mrb[0].mxu0
      %v3072 = vadd.f32 0.0, %v3071
      %v3073 = vpop.f32.mrb[0].mxu0
      %v3074 = vpop.f32.mrb[0].mxu0
      %v3075 = vadd.f32 0.0, %v3074
      %v3076 = vpop.f32.mrb[0].mxu0
      %3077 = vmatprep.mubr.bf16.mxu0 0
      %3078 = vmatmul.mubr.bf16.gmra.mrb[0].mxu0 %v1773
      %v3079 = vpop.f32.mrb[0].mxu0
      %v3080 = vadd.f32 0.0, %v3079
      %v3081 = vpop.f32.mrb[0].mxu0
      %v3082 = vpop.f32.mrb[0].mxu0
      %v3083 = vadd.f32 0.0, %v3082
      %v3084 = vpop.f32.mrb[0].mxu0
      %3085 = vmatprep.mubr.bf16.mxu0 0
      %3086 = vmatmul.mubr.bf16.gmra.mrb[0].mxu0 %v1774
      %v3087 = vpop.f32.mrb[0].mxu0
      %v3088 = vadd.f32 0.0, %v3087
      %v3089 = vpop.f32.mrb[0].mxu0
      %v3090 = vpop.f32.mrb[0].mxu0
      %v3091 = vadd.f32 0.0, %v3090
      %v3092 = vpop.f32.mrb[0].mxu0
      %3093 = vmatprep.mubr.bf16.mxu0 0
      %3094 = vmatmul.mubr.bf16.gmra.mrb[0].mxu0 %v1775
      %v3095 = vpop.f32.mrb[0].mxu0
      %v3096 = vadd.f32 0.0, %v3095
      %v3097 = vpop.f32.mrb[0].mxu0
      %v3098 = vpop.f32.mrb[0].mxu0
      %v3099 = vadd.f32 0.0, %v3098
      %v3100 = vpop.f32.mrb[0].mxu0
      %3101 = vmatprep.mubr.bf16.mxu0 0
      %3102 = vmatmul.mubr.bf16.gmra.mrb[0].mxu0 %v1776
      %v3103 = vpop.f32.mrb[0].mxu0
      %v3104 = vadd.f32 0.0, %v3103
      %v3105 = vpop.f32.mrb[0].mxu0
      %v3106 = vpop.f32.mrb[0].mxu0
      %v3107 = vadd.f32 0.0, %v3106
      %v3108 = vpop.f32.mrb[0].mxu0
      %3109 = vmatprep.mubr.bf16.mxu0 0
      %3110 = vmatmul.mubr.bf16.gmra.mrb[0].mxu0 %v2971
      %v3111 = vpop.f32.mrb[0].mxu0
      %v3112 = vadd.f32 0.0, %v3111
      %v3113 = vpop.f32.mrb[0].mxu0
      %v3114 = vpop.f32.mrb[0].mxu0
      %v3115 = vadd.f32 0.0, %v3114
      %v3116 = vpop.f32.mrb[0].mxu0
      %3117 = vdwg.mxu0
      %v3118 = vadd.f32 %v2920, %v3056
      %v3119 = vadd.f32 %v2921, %v3059
      %v3120 = vadd.f32 %v2922, %v3064
      %v3121 = vadd.f32 %v2923, %v3067
      %v3122 = vadd.f32 %v2924, %v3072
      %v3123 = vadd.f32 %v2925, %v3075
      %v3124 = vadd.f32 %v2926, %v3080
      %v3125 = vadd.f32 %v2927, %v3083
      %v3126 = vadd.f32 %v2928, %v3088
      %v3127 = vadd.f32 %v2929, %v3091
      %v3128 = vadd.f32 %v2930, %v3096
      %v3129 = vadd.f32 %v2931, %v3099
      %v3130 = vadd.f32 %v2932, %v3104
      %v3131 = vadd.f32 %v2933, %v3107
      %v3132 = vadd.f32 %v2934, %v3112
      %v3133 = vadd.f32 %v2935, %v3115
      %s3134 = scalar_lea.vmem %s3, 320
      %v3135 = vld [vmem:[%s3134] sm:$0xf]
      %v3136 = vld [vmem:[%s3134 + $0x4] sm:$0xf]
      %v3137 = vld [vmem:[%s3134 + $0x8] sm:$0xf]
      %v3138 = vld [vmem:[%s3134 + $0xc] sm:$0xf]
      %v3139 = vld [vmem:[%s3134 + $0x10] sm:$0xf]
      %v3140 = vld [vmem:[%s3134 + $0x14] sm:$0xf]
      %v3141 = vld [vmem:[%s3134 + $0x18] sm:$0xf]
      %v3142 = vld [vmem:[%s3134 + $0x1c] sm:$0xf]
      %v3143 = vld [vmem:[%s3134 + $0x20] sm:$0xf]
      %v3144 = vld [vmem:[%s3134 + $0x24] sm:$0xf]
      %v3145 = vld [vmem:[%s3134 + $0x28] sm:$0xf]
      %v3146 = vld [vmem:[%s3134 + $0x2c] sm:$0xf]
      %v3147 = vld [vmem:[%s3134 + $0x30] sm:$0xf]
      %v3148 = vld [vmem:[%s3134 + $0x34] sm:$0xf]
      %v3149 = vld [vmem:[%s3134 + $0x38] sm:$0xf]
      %v3150 = vld [vmem:[%s3134 + $0x3c] sm:$0xf]
      %v3151 = vunpack.c.l.b16 %v2948
      %v3152 = vunpack.c.l.b16 %v2951
      %v3153 = vpack.c.b16 %v3152, %v3151
      %v3171 = vunpack.c.l.b16 %v3135
      %v3172 = vunpack.c.l.b16 %v3136
      %v3173 = vunpack.c.l.b16 %v3137
      %v3174 = vunpack.c.l.b16 %v3138
      %v3175 = vunpack.c.l.b16 %v3139
      %v3176 = vunpack.c.l.b16 %v3140
      %v3177 = vunpack.c.l.b16 %v3141
      %v3178 = vunpack.c.l.b16 %v3142
      %v3179 = vunpack.c.l.b16 %v3143
      %v3180 = vunpack.c.l.b16 %v3144
      %v3181 = vunpack.c.l.b16 %v3145
      %v3182 = vunpack.c.l.b16 %v3146
      %v3183 = vunpack.c.l.b16 %v3147
      %v3184 = vunpack.c.l.b16 %v3148
      %v3185 = vunpack.c.l.b16 %v3149
      %v3186 = vunpack.c.l.b16 %v3150
      %v3187 = vpack.c.b16 %v3172, %v3171
      %v3188 = vpack.c.b16 %v3174, %v3173
      %v3189 = vpack.c.b16 %v3176, %v3175
      %v3190 = vpack.c.b16 %v3178, %v3177
      %v3191 = vpack.c.b16 %v3180, %v3179
      %v3192 = vpack.c.b16 %v3182, %v3181
      %v3193 = vpack.c.b16 %v3184, %v3183
      %v3194 = vpack.c.b16 %v3186, %v3185
      %3203 = vmatprep.subr.bf16.mxu0 0
      %3204 = vmatpush1.bf16.msra.mxu0 %v3187
      %3205 = vmatprep.subr.bf16.mxu0 0
      %3206 = vmatpush1.bf16.msra.mxu0 %v3188
      %3207 = vmatprep.subr.bf16.mxu0 0
      %3208 = vmatpush1.bf16.msra.mxu0 %v3189
      %3209 = vmatprep.subr.bf16.mxu0 0
      %3210 = vmatpush1.bf16.msra.mxu0 %v3190
      %3211 = vmatprep.subr.bf16.mxu0 0
      %3212 = vmatpush1.bf16.msra.mxu0 %v3191
      %3213 = vmatprep.subr.bf16.mxu0 0
      %3214 = vmatpush1.bf16.msra.mxu0 %v3192
      %3215 = vmatprep.subr.bf16.mxu0 0
      %3216 = vmatpush1.bf16.msra.mxu0 %v3193
      %3217 = vmatprep.subr.bf16.mxu0 0
      %3218 = vmatpush1.bf16.msra.mxu0 %v3194
      %3219 = vmatprep.subr.bf16.mxu0 0
      %3220 = vmatpush1.bf16.msra.mxu0 0
      %3221 = vmatprep.subr.bf16.mxu0 0
      %3222 = vmatpush1.bf16.msra.mxu0 0
      %3223 = vmatprep.subr.bf16.mxu0 0
      %3224 = vmatpush1.bf16.msra.mxu0 0
      %3225 = vmatprep.subr.bf16.mxu0 0
      %3226 = vmatpush1.bf16.msra.mxu0 0
      %3227 = vmatprep.subr.bf16.mxu0 0
      %3228 = vmatpush1.bf16.msra.mxu0 0
      %3229 = vmatprep.subr.bf16.mxu0 0
      %3230 = vmatpush1.bf16.msra.mxu0 0
      %3231 = vmatprep.subr.bf16.mxu0 0
      %3232 = vmatpush1.bf16.msra.mxu0 0
      %3233 = vmatprep.subr.bf16.mxu0 0
      %3234 = vmatpush1.bf16.msra.mxu0 0
      %3235 = vmatprep.mubr.bf16.mxu0 0
      %3236 = vmatmul.mubr.bf16.gmra.mrb[0].mxu0 %v1980
      %v3237 = vpop.f32.mrb[0].mxu0
      %v3238 = vadd.f32 0.0, %v3237
      %v3239 = vpop.f32.mrb[0].mxu0
      %v3240 = vpop.f32.mrb[0].mxu0
      %v3241 = vadd.f32 0.0, %v3240
      %v3242 = vpop.f32.mrb[0].mxu0
      %3243 = vmatprep.mubr.bf16.mxu0 0
      %3244 = vmatmul.mubr.bf16.gmra.mrb[0].mxu0 %v1981
      %v3245 = vpop.f32.mrb[0].mxu0
      %v3246 = vadd.f32 0.0, %v3245
      %v3247 = vpop.f32.mrb[0].mxu0
      %v3248 = vpop.f32.mrb[0].mxu0
      %v3249 = vadd.f32 0.0, %v3248
      %v3250 = vpop.f32.mrb[0].mxu0
      %3251 = vmatprep.mubr.bf16.mxu0 0
      %3252 = vmatmul.mubr.bf16.gmra.mrb[0].mxu0 %v1982
      %v3253 = vpop.f32.mrb[0].mxu0
      %v3254 = vadd.f32 0.0, %v3253
      %v3255 = vpop.f32.mrb[0].mxu0
      %v3256 = vpop.f32.mrb[0].mxu0
      %v3257 = vadd.f32 0.0, %v3256
      %v3258 = vpop.f32.mrb[0].mxu0
      %3259 = vmatprep.mubr.bf16.mxu0 0
      %3260 = vmatmul.mubr.bf16.gmra.mrb[0].mxu0 %v1983
      %v3261 = vpop.f32.mrb[0].mxu0
      %v3262 = vadd.f32 0.0, %v3261
      %v3263 = vpop.f32.mrb[0].mxu0
      %v3264 = vpop.f32.mrb[0].mxu0
      %v3265 = vadd.f32 0.0, %v3264
      %v3266 = vpop.f32.mrb[0].mxu0
      %3267 = vmatprep.mubr.bf16.mxu0 0
      %3268 = vmatmul.mubr.bf16.gmra.mrb[0].mxu0 %v1984
      %v3269 = vpop.f32.mrb[0].mxu0
      %v3270 = vadd.f32 0.0, %v3269
      %v3271 = vpop.f32.mrb[0].mxu0
      %v3272 = vpop.f32.mrb[0].mxu0
      %v3273 = vadd.f32 0.0, %v3272
      %v3274 = vpop.f32.mrb[0].mxu0
      %3275 = vmatprep.mubr.bf16.mxu0 0
      %3276 = vmatmul.mubr.bf16.gmra.mrb[0].mxu0 %v1985
      %v3277 = vpop.f32.mrb[0].mxu0
      %v3278 = vadd.f32 0.0, %v3277
      %v3279 = vpop.f32.mrb[0].mxu0
      %v3280 = vpop.f32.mrb[0].mxu0
      %v3281 = vadd.f32 0.0, %v3280
      %v3282 = vpop.f32.mrb[0].mxu0
      %3283 = vmatprep.mubr.bf16.mxu0 0
      %3284 = vmatmul.mubr.bf16.gmra.mrb[0].mxu0 %v1986
      %v3285 = vpop.f32.mrb[0].mxu0
      %v3286 = vadd.f32 0.0, %v3285
      %v3287 = vpop.f32.mrb[0].mxu0
      %v3288 = vpop.f32.mrb[0].mxu0
      %v3289 = vadd.f32 0.0, %v3288
      %v3290 = vpop.f32.mrb[0].mxu0
      %3291 = vmatprep.mubr.bf16.mxu0 0
      %3292 = vmatmul.mubr.bf16.gmra.mrb[0].mxu0 %v3153
      %v3293 = vpop.f32.mrb[0].mxu0
      %v3294 = vadd.f32 0.0, %v3293
      %v3295 = vpop.f32.mrb[0].mxu0
      %v3296 = vpop.f32.mrb[0].mxu0
      %v3297 = vadd.f32 0.0, %v3296
      %v3298 = vpop.f32.mrb[0].mxu0
      %3299 = vdwg.mxu0
      %v3300 = vadd.f32 %v3118, %v3238
      %v3301 = vadd.f32 %v3119, %v3241
      %v3302 = vadd.f32 %v3120, %v3246
      %v3303 = vadd.f32 %v3121, %v3249
      %v3304 = vadd.f32 %v3122, %v3254
      %v3305 = vadd.f32 %v3123, %v3257
      %v3306 = vadd.f32 %v3124, %v3262
      %v3307 = vadd.f32 %v3125, %v3265
      %v3308 = vadd.f32 %v3126, %v3270
      %v3309 = vadd.f32 %v3127, %v3273
      %v3310 = vadd.f32 %v3128, %v3278
      %v3311 = vadd.f32 %v3129, %v3281
      %v3312 = vadd.f32 %v3130, %v3286
      %v3313 = vadd.f32 %v3131, %v3289
      %v3314 = vadd.f32 %v3132, %v3294
      %v3315 = vadd.f32 %v3133, %v3297
      %s3316 = scalar_lea.vmem %s2, 384
      %v3317 = vld [vmem:[%s3316] sm:$0xf]
      %v3318 = vld [vmem:[%s3316 + $0x4] sm:$0xf]
      %v3319 = vld [vmem:[%s3316 + $0x8] sm:$0xf]
      %v3320 = vld [vmem:[%s3316 + $0xc] sm:$0xf]
      %v3321 = vld [vmem:[%s3316 + $0x10] sm:$0xf]
      %v3322 = vld [vmem:[%s3316 + $0x14] sm:$0xf]
      %v3323 = vld [vmem:[%s3316 + $0x18] sm:$0xf]
      %v3324 = vld [vmem:[%s3316 + $0x1c] sm:$0xf]
      %v3325 = vld [vmem:[%s3316 + $0x20] sm:$0xf]
      %v3326 = vld [vmem:[%s3316 + $0x24] sm:$0xf]
      %v3327 = vld [vmem:[%s3316 + $0x28] sm:$0xf]
      %v3328 = vld [vmem:[%s3316 + $0x2c] sm:$0xf]
      %v3329 = vld [vmem:[%s3316 + $0x30] sm:$0xf]
      %v3330 = vld [vmem:[%s3316 + $0x34] sm:$0xf]
      %v3331 = vld [vmem:[%s3316 + $0x38] sm:$0xf]
      %v3332 = vld [vmem:[%s3316 + $0x3c] sm:$0xf]
      %v3335 = vunpack.c.l.b16 %v347
      %v3336 = vunpack.c.l.b16 %v348
      %v3337 = vpack.c.b16 %v3336, %v3335
      %v3355 = vunpack.c.l.b16 %v3317
      %v3356 = vunpack.c.l.b16 %v3318
      %v3357 = vunpack.c.l.b16 %v3319
      %v3358 = vunpack.c.l.b16 %v3320
      %v3359 = vunpack.c.l.b16 %v3321
      %v3360 = vunpack.c.l.b16 %v3322
      %v3361 = vunpack.c.l.b16 %v3323
      %v3362 = vunpack.c.l.b16 %v3324
      %v3363 = vunpack.c.l.b16 %v3325
      %v3364 = vunpack.c.l.b16 %v3326
      %v3365 = vunpack.c.l.b16 %v3327
      %v3366 = vunpack.c.l.b16 %v3328
      %v3367 = vunpack.c.l.b16 %v3329
      %v3368 = vunpack.c.l.b16 %v3330
      %v3369 = vunpack.c.l.b16 %v3331
      %v3370 = vunpack.c.l.b16 %v3332
      %v3371 = vpack.c.b16 %v3356, %v3355
      %v3372 = vpack.c.b16 %v3358, %v3357
      %v3373 = vpack.c.b16 %v3360, %v3359
      %v3374 = vpack.c.b16 %v3362, %v3361
      %v3375 = vpack.c.b16 %v3364, %v3363
      %v3376 = vpack.c.b16 %v3366, %v3365
      %v3377 = vpack.c.b16 %v3368, %v3367
      %v3378 = vpack.c.b16 %v3370, %v3369
      %3387 = vmatprep.subr.bf16.mxu0 0
      %3388 = vmatpush1.bf16.msra.mxu0 %v3371
      %3389 = vmatprep.subr.bf16.mxu0 0
      %3390 = vmatpush1.bf16.msra.mxu0 %v3372
      %3391 = vmatprep.subr.bf16.mxu0 0
      %3392 = vmatpush1.bf16.msra.mxu0 %v3373
      %3393 = vmatprep.subr.bf16.mxu0 0
      %3394 = vmatpush1.bf16.msra.mxu0 %v3374
      %3395 = vmatprep.subr.bf16.mxu0 0
      %3396 = vmatpush1.bf16.msra.mxu0 %v3375
      %3397 = vmatprep.subr.bf16.mxu0 0
      %3398 = vmatpush1.bf16.msra.mxu0 %v3376
      %3399 = vmatprep.subr.bf16.mxu0 0
      %3400 = vmatpush1.bf16.msra.mxu0 %v3377
      %3401 = vmatprep.subr.bf16.mxu0 0
      %3402 = vmatpush1.bf16.msra.mxu0 %v3378
      %3403 = vmatprep.subr.bf16.mxu0 0
      %3404 = vmatpush1.bf16.msra.mxu0 0
      %3405 = vmatprep.subr.bf16.mxu0 0
      %3406 = vmatpush1.bf16.msra.mxu0 0
      %3407 = vmatprep.subr.bf16.mxu0 0
      %3408 = vmatpush1.bf16.msra.mxu0 0
      %3409 = vmatprep.subr.bf16.mxu0 0
      %3410 = vmatpush1.bf16.msra.mxu0 0
      %3411 = vmatprep.subr.bf16.mxu0 0
      %3412 = vmatpush1.bf16.msra.mxu0 0
      %3413 = vmatprep.subr.bf16.mxu0 0
      %3414 = vmatpush1.bf16.msra.mxu0 0
      %3415 = vmatprep.subr.bf16.mxu0 0
      %3416 = vmatpush1.bf16.msra.mxu0 0
      %3417 = vmatprep.subr.bf16.mxu0 0
      %3418 = vmatpush1.bf16.msra.mxu0 0
      %3419 = vmatprep.mubr.bf16.mxu0 0
      %3420 = vmatmul.mubr.bf16.gmra.mrb[0].mxu0 %v639
      %v3421 = vpop.f32.mrb[0].mxu0
      %v3422 = vadd.f32 0.0, %v3421
      %v3423 = vpop.f32.mrb[0].mxu0
      %v3424 = vpop.f32.mrb[0].mxu0
      %v3425 = vadd.f32 0.0, %v3424
      %v3426 = vpop.f32.mrb[0].mxu0
      %3427 = vmatprep.mubr.bf16.mxu0 0
      %3428 = vmatmul.mubr.bf16.gmra.mrb[0].mxu0 %v640
      %v3429 = vpop.f32.mrb[0].mxu0
      %v3430 = vadd.f32 0.0, %v3429
      %v3431 = vpop.f32.mrb[0].mxu0
      %v3432 = vpop.f32.mrb[0].mxu0
      %v3433 = vadd.f32 0.0, %v3432
      %v3434 = vpop.f32.mrb[0].mxu0
      %3435 = vmatprep.mubr.bf16.mxu0 0
      %3436 = vmatmul.mubr.bf16.gmra.mrb[0].mxu0 %v641
      %v3437 = vpop.f32.mrb[0].mxu0
      %v3438 = vadd.f32 0.0, %v3437
      %v3439 = vpop.f32.mrb[0].mxu0
      %v3440 = vpop.f32.mrb[0].mxu0
      %v3441 = vadd.f32 0.0, %v3440
      %v3442 = vpop.f32.mrb[0].mxu0
      %3443 = vmatprep.mubr.bf16.mxu0 0
      %3444 = vmatmul.mubr.bf16.gmra.mrb[0].mxu0 %v642
      %v3445 = vpop.f32.mrb[0].mxu0
      %v3446 = vadd.f32 0.0, %v3445
      %v3447 = vpop.f32.mrb[0].mxu0
      %v3448 = vpop.f32.mrb[0].mxu0
      %v3449 = vadd.f32 0.0, %v3448
      %v3450 = vpop.f32.mrb[0].mxu0
      %3451 = vmatprep.mubr.bf16.mxu0 0
      %3452 = vmatmul.mubr.bf16.gmra.mrb[0].mxu0 %v643
      %v3453 = vpop.f32.mrb[0].mxu0
      %v3454 = vadd.f32 0.0, %v3453
      %v3455 = vpop.f32.mrb[0].mxu0
      %v3456 = vpop.f32.mrb[0].mxu0
      %v3457 = vadd.f32 0.0, %v3456
      %v3458 = vpop.f32.mrb[0].mxu0
      %3459 = vmatprep.mubr.bf16.mxu0 0
      %3460 = vmatmul.mubr.bf16.gmra.mrb[0].mxu0 %v644
      %v3461 = vpop.f32.mrb[0].mxu0
      %v3462 = vadd.f32 0.0, %v3461
      %v3463 = vpop.f32.mrb[0].mxu0
      %v3464 = vpop.f32.mrb[0].mxu0
      %v3465 = vadd.f32 0.0, %v3464
      %v3466 = vpop.f32.mrb[0].mxu0
      %3467 = vmatprep.mubr.bf16.mxu0 0
      %3468 = vmatmul.mubr.bf16.gmra.mrb[0].mxu0 %v2177
      %v3469 = vpop.f32.mrb[0].mxu0
      %v3470 = vadd.f32 0.0, %v3469
      %v3471 = vpop.f32.mrb[0].mxu0
      %v3472 = vpop.f32.mrb[0].mxu0
      %v3473 = vadd.f32 0.0, %v3472
      %v3474 = vpop.f32.mrb[0].mxu0
      %3475 = vmatprep.mubr.bf16.mxu0 0
      %3476 = vmatmul.mubr.bf16.gmra.mrb[0].mxu0 %v3337
      %v3477 = vpop.f32.mrb[0].mxu0
      %v3478 = vadd.f32 0.0, %v3477
      %v3479 = vpop.f32.mrb[0].mxu0
      %v3480 = vpop.f32.mrb[0].mxu0
      %v3481 = vadd.f32 0.0, %v3480
      %v3482 = vpop.f32.mrb[0].mxu0
      %3483 = vdwg.mxu0
      %v3484 = vadd.f32 %v3300, %v3422
      %v3485 = vadd.f32 %v3301, %v3425
      %v3486 = vadd.f32 %v3302, %v3430
      %v3487 = vadd.f32 %v3303, %v3433
      %v3488 = vadd.f32 %v3304, %v3438
      %v3489 = vadd.f32 %v3305, %v3441
      %v3490 = vadd.f32 %v3306, %v3446
      %v3491 = vadd.f32 %v3307, %v3449
      %v3492 = vadd.f32 %v3308, %v3454
      %v3493 = vadd.f32 %v3309, %v3457
      %v3494 = vadd.f32 %v3310, %v3462
      %v3495 = vadd.f32 %v3311, %v3465
      %v3496 = vadd.f32 %v3312, %v3470
      %v3497 = vadd.f32 %v3313, %v3473
      %v3498 = vadd.f32 %v3314, %v3478
      %v3499 = vadd.f32 %v3315, %v3481
      %s3500 = scalar_lea.vmem %s3, 384
      %v3501 = vld [vmem:[%s3500] sm:$0xf]
      %v3502 = vld [vmem:[%s3500 + $0x4] sm:$0xf]
      %v3503 = vld [vmem:[%s3500 + $0x8] sm:$0xf]
      %v3504 = vld [vmem:[%s3500 + $0xc] sm:$0xf]
      %v3505 = vld [vmem:[%s3500 + $0x10] sm:$0xf]
      %v3506 = vld [vmem:[%s3500 + $0x14] sm:$0xf]
      %v3507 = vld [vmem:[%s3500 + $0x18] sm:$0xf]
      %v3508 = vld [vmem:[%s3500 + $0x1c] sm:$0xf]
      %v3509 = vld [vmem:[%s3500 + $0x20] sm:$0xf]
      %v3510 = vld [vmem:[%s3500 + $0x24] sm:$0xf]
      %v3511 = vld [vmem:[%s3500 + $0x28] sm:$0xf]
      %v3512 = vld [vmem:[%s3500 + $0x2c] sm:$0xf]
      %v3513 = vld [vmem:[%s3500 + $0x30] sm:$0xf]
      %v3514 = vld [vmem:[%s3500 + $0x34] sm:$0xf]
      %v3515 = vld [vmem:[%s3500 + $0x38] sm:$0xf]
      %v3516 = vld [vmem:[%s3500 + $0x3c] sm:$0xf]
      %v3519 = vunpack.c.l.b16 %v377
      %v3520 = vunpack.c.l.b16 %v378
      %v3521 = vpack.c.b16 %v3520, %v3519
      %v3539 = vunpack.c.l.b16 %v3501
      %v3540 = vunpack.c.l.b16 %v3502
      %v3541 = vunpack.c.l.b16 %v3503
      %v3542 = vunpack.c.l.b16 %v3504
      %v3543 = vunpack.c.l.b16 %v3505
      %v3544 = vunpack.c.l.b16 %v3506
      %v3545 = vunpack.c.l.b16 %v3507
      %v3546 = vunpack.c.l.b16 %v3508
      %v3547 = vunpack.c.l.b16 %v3509
      %v3548 = vunpack.c.l.b16 %v3510
      %v3549 = vunpack.c.l.b16 %v3511
      %v3550 = vunpack.c.l.b16 %v3512
      %v3551 = vunpack.c.l.b16 %v3513
      %v3552 = vunpack.c.l.b16 %v3514
      %v3553 = vunpack.c.l.b16 %v3515
      %v3554 = vunpack.c.l.b16 %v3516
      %v3555 = vpack.c.b16 %v3540, %v3539
      %v3556 = vpack.c.b16 %v3542, %v3541
      %v3557 = vpack.c.b16 %v3544, %v3543
      %v3558 = vpack.c.b16 %v3546, %v3545
      %v3559 = vpack.c.b16 %v3548, %v3547
      %v3560 = vpack.c.b16 %v3550, %v3549
      %v3561 = vpack.c.b16 %v3552, %v3551
      %v3562 = vpack.c.b16 %v3554, %v3553
      %3571 = vmatprep.subr.bf16.mxu0 0
      %3572 = vmatpush1.bf16.msra.mxu0 %v3555
      %3573 = vmatprep.subr.bf16.mxu0 0
      %3574 = vmatpush1.bf16.msra.mxu0 %v3556
      %3575 = vmatprep.subr.bf16.mxu0 0
      %3576 = vmatpush1.bf16.msra.mxu0 %v3557
      %3577 = vmatprep.subr.bf16.mxu0 0
      %3578 = vmatpush1.bf16.msra.mxu0 %v3558
      %3579 = vmatprep.subr.bf16.mxu0 0
      %3580 = vmatpush1.bf16.msra.mxu0 %v3559
      %3581 = vmatprep.subr.bf16.mxu0 0
      %3582 = vmatpush1.bf16.msra.mxu0 %v3560
      %3583 = vmatprep.subr.bf16.mxu0 0
      %3584 = vmatpush1.bf16.msra.mxu0 %v3561
      %3585 = vmatprep.subr.bf16.mxu0 0
      %3586 = vmatpush1.bf16.msra.mxu0 %v3562
      %3587 = vmatprep.subr.bf16.mxu0 0
      %3588 = vmatpush1.bf16.msra.mxu0 0
      %3589 = vmatprep.subr.bf16.mxu0 0
      %3590 = vmatpush1.bf16.msra.mxu0 0
      %3591 = vmatprep.subr.bf16.mxu0 0
      %3592 = vmatpush1.bf16.msra.mxu0 0
      %3593 = vmatprep.subr.bf16.mxu0 0
      %3594 = vmatpush1.bf16.msra.mxu0 0
      %3595 = vmatprep.subr.bf16.mxu0 0
      %3596 = vmatpush1.bf16.msra.mxu0 0
      %3597 = vmatprep.subr.bf16.mxu0 0
      %3598 = vmatpush1.bf16.msra.mxu0 0
      %3599 = vmatprep.subr.bf16.mxu0 0
      %3600 = vmatpush1.bf16.msra.mxu0 0
      %3601 = vmatprep.subr.bf16.mxu0 0
      %3602 = vmatpush1.bf16.msra.mxu0 0
      %3603 = vmatprep.mubr.bf16.mxu0 0
      %3604 = vmatmul.mubr.bf16.gmra.mrb[0].mxu0 %v446
      %v3605 = vpop.f32.mrb[0].mxu0
      %v3606 = vadd.f32 0.0, %v3605
      %v3607 = vpop.f32.mrb[0].mxu0
      %v3608 = vpop.f32.mrb[0].mxu0
      %v3609 = vadd.f32 0.0, %v3608
      %v3610 = vpop.f32.mrb[0].mxu0
      %3611 = vmatprep.mubr.bf16.mxu0 0
      %3612 = vmatmul.mubr.bf16.gmra.mrb[0].mxu0 %v447
      %v3613 = vpop.f32.mrb[0].mxu0
      %v3614 = vadd.f32 0.0, %v3613
      %v3615 = vpop.f32.mrb[0].mxu0
      %v3616 = vpop.f32.mrb[0].mxu0
      %v3617 = vadd.f32 0.0, %v3616
      %v3618 = vpop.f32.mrb[0].mxu0
      %3619 = vmatprep.mubr.bf16.mxu0 0
      %3620 = vmatmul.mubr.bf16.gmra.mrb[0].mxu0 %v448
      %v3621 = vpop.f32.mrb[0].mxu0
      %v3622 = vadd.f32 0.0, %v3621
      %v3623 = vpop.f32.mrb[0].mxu0
      %v3624 = vpop.f32.mrb[0].mxu0
      %v3625 = vadd.f32 0.0, %v3624
      %v3626 = vpop.f32.mrb[0].mxu0
      %3627 = vmatprep.mubr.bf16.mxu0 0
      %3628 = vmatmul.mubr.bf16.gmra.mrb[0].mxu0 %v449
      %v3629 = vpop.f32.mrb[0].mxu0
      %v3630 = vadd.f32 0.0, %v3629
      %v3631 = vpop.f32.mrb[0].mxu0
      %v3632 = vpop.f32.mrb[0].mxu0
      %v3633 = vadd.f32 0.0, %v3632
      %v3634 = vpop.f32.mrb[0].mxu0
      %3635 = vmatprep.mubr.bf16.mxu0 0
      %3636 = vmatmul.mubr.bf16.gmra.mrb[0].mxu0 %v450
      %v3637 = vpop.f32.mrb[0].mxu0
      %v3638 = vadd.f32 0.0, %v3637
      %v3639 = vpop.f32.mrb[0].mxu0
      %v3640 = vpop.f32.mrb[0].mxu0
      %v3641 = vadd.f32 0.0, %v3640
      %v3642 = vpop.f32.mrb[0].mxu0
      %3643 = vmatprep.mubr.bf16.mxu0 0
      %3644 = vmatmul.mubr.bf16.gmra.mrb[0].mxu0 %v451
      %v3645 = vpop.f32.mrb[0].mxu0
      %v3646 = vadd.f32 0.0, %v3645
      %v3647 = vpop.f32.mrb[0].mxu0
      %v3648 = vpop.f32.mrb[0].mxu0
      %v3649 = vadd.f32 0.0, %v3648
      %v3650 = vpop.f32.mrb[0].mxu0
      %3651 = vmatprep.mubr.bf16.mxu0 0
      %3652 = vmatmul.mubr.bf16.gmra.mrb[0].mxu0 %v2361
      %v3653 = vpop.f32.mrb[0].mxu0
      %v3654 = vadd.f32 0.0, %v3653
      %v3655 = vpop.f32.mrb[0].mxu0
      %v3656 = vpop.f32.mrb[0].mxu0
      %v3657 = vadd.f32 0.0, %v3656
      %v3658 = vpop.f32.mrb[0].mxu0
      %3659 = vmatprep.mubr.bf16.mxu0 0
      %3660 = vmatmul.mubr.bf16.gmra.mrb[0].mxu0 %v3521
      %v3661 = vpop.f32.mrb[0].mxu0
      %v3662 = vadd.f32 0.0, %v3661
      %v3663 = vpop.f32.mrb[0].mxu0
      %v3664 = vpop.f32.mrb[0].mxu0
      %v3665 = vadd.f32 0.0, %v3664
      %v3666 = vpop.f32.mrb[0].mxu0
      %3667 = vdwg.mxu0
      %v3668 = vadd.f32 %v3484, %v3606
      %v3669 = vadd.f32 %v3485, %v3609
      %v3670 = vadd.f32 %v3486, %v3614
      %v3671 = vadd.f32 %v3487, %v3617
      %v3672 = vadd.f32 %v3488, %v3622
      %v3673 = vadd.f32 %v3489, %v3625
      %v3674 = vadd.f32 %v3490, %v3630
      %v3675 = vadd.f32 %v3491, %v3633
      %v3676 = vadd.f32 %v3492, %v3638
      %v3677 = vadd.f32 %v3493, %v3641
      %v3678 = vadd.f32 %v3494, %v3646
      %v3679 = vadd.f32 %v3495, %v3649
      %v3680 = vadd.f32 %v3496, %v3654
      %v3681 = vadd.f32 %v3497, %v3657
      %v3682 = vadd.f32 %v3498, %v3662
      %v3683 = vadd.f32 %v3499, %v3665
      %v3685 = vshrl.u32 %v347, 16
      %v3687 = vrot.slane %v3685, 4
      %v3688 = vshll.u32 %v347, 16
      %v3690 = vrot.slane %v3688, 5
      %v3691 = vor.u32 %v3687, %v3690
      %v3692 = vrot.slane %v3691, 4
      %v3694 = vshll.u32 %v348, 16
      %v3696 = vrot.slane %v3694, 5
      %v3697 = vsel %vm800, %v3692, %v3696
      %v3698 = vshrl.u32 %v348, 16
      %v3700 = vrot.slane %v3698, 4
      %v3701 = vor.u32 %v3700, %v3696
      %v3702 = vrot.slane %v3701, 4
      %v3704 = vshll.u32 %v349, 16
      %v3706 = vrot.slane %v3704, 5
      %v3707 = vsel %vm800, %v3702, %v3706
      %v3709 = vshrl.u32 %v377, 16
      %v3711 = vrot.slane %v3709, 4
      %v3712 = vshll.u32 %v377, 16
      %v3714 = vrot.slane %v3712, 5
      %v3715 = vor.u32 %v3711, %v3714
      %v3716 = vrot.slane %v3715, 4
      %v3718 = vshll.u32 %v378, 16
      %v3720 = vrot.slane %v3718, 5
      %v3721 = vsel %vm800, %v3716, %v3720
      %v3722 = vshrl.u32 %v378, 16
      %v3724 = vrot.slane %v3722, 4
      %v3725 = vor.u32 %v3724, %v3720
      %v3726 = vrot.slane %v3725, 4
      %v3728 = vshll.u32 %v379, 16
      %v3730 = vrot.slane %v3728, 5
      %v3731 = vsel %vm800, %v3726, %v3730
      %s3732 = scalar_lea.vmem %s2, 448
      %v3733 = vld [vmem:[%s3732] sm:$0xf]
      %v3734 = vld [vmem:[%s3732 + $0x4] sm:$0xf]
      %v3735 = vld [vmem:[%s3732 + $0x8] sm:$0xf]
      %v3736 = vld [vmem:[%s3732 + $0xc] sm:$0xf]
      %v3737 = vld [vmem:[%s3732 + $0x10] sm:$0xf]
      %v3738 = vld [vmem:[%s3732 + $0x14] sm:$0xf]
      %v3739 = vld [vmem:[%s3732 + $0x18] sm:$0xf]
      %v3740 = vld [vmem:[%s3732 + $0x1c] sm:$0xf]
      %v3741 = vld [vmem:[%s3732 + $0x20] sm:$0xf]
      %v3742 = vld [vmem:[%s3732 + $0x24] sm:$0xf]
      %v3743 = vld [vmem:[%s3732 + $0x28] sm:$0xf]
      %v3744 = vld [vmem:[%s3732 + $0x2c] sm:$0xf]
      %v3745 = vld [vmem:[%s3732 + $0x30] sm:$0xf]
      %v3746 = vld [vmem:[%s3732 + $0x34] sm:$0xf]
      %v3747 = vld [vmem:[%s3732 + $0x38] sm:$0xf]
      %v3748 = vld [vmem:[%s3732 + $0x3c] sm:$0xf]
      %v3749 = vunpack.c.l.b16 %v3697
      %v3750 = vunpack.c.l.b16 %v3707
      %v3751 = vpack.c.b16 %v3750, %v3749
      %v3769 = vunpack.c.l.b16 %v3733
      %v3770 = vunpack.c.l.b16 %v3734
      %v3771 = vunpack.c.l.b16 %v3735
      %v3772 = vunpack.c.l.b16 %v3736
      %v3773 = vunpack.c.l.b16 %v3737
      %v3774 = vunpack.c.l.b16 %v3738
      %v3775 = vunpack.c.l.b16 %v3739
      %v3776 = vunpack.c.l.b16 %v3740
      %v3777 = vunpack.c.l.b16 %v3741
      %v3778 = vunpack.c.l.b16 %v3742
      %v3779 = vunpack.c.l.b16 %v3743
      %v3780 = vunpack.c.l.b16 %v3744
      %v3781 = vunpack.c.l.b16 %v3745
      %v3782 = vunpack.c.l.b16 %v3746
      %v3783 = vunpack.c.l.b16 %v3747
      %v3784 = vunpack.c.l.b16 %v3748
      %v3785 = vpack.c.b16 %v3770, %v3769
      %v3786 = vpack.c.b16 %v3772, %v3771
      %v3787 = vpack.c.b16 %v3774, %v3773
      %v3788 = vpack.c.b16 %v3776, %v3775
      %v3789 = vpack.c.b16 %v3778, %v3777
      %v3790 = vpack.c.b16 %v3780, %v3779
      %v3791 = vpack.c.b16 %v3782, %v3781
      %v3792 = vpack.c.b16 %v3784, %v3783
      %3801 = vmatprep.subr.bf16.mxu0 0
      %3802 = vmatpush1.bf16.msra.mxu0 %v3785
      %3803 = vmatprep.subr.bf16.mxu0 0
      %3804 = vmatpush1.bf16.msra.mxu0 %v3786
      %3805 = vmatprep.subr.bf16.mxu0 0
      %3806 = vmatpush1.bf16.msra.mxu0 %v3787
      %3807 = vmatprep.subr.bf16.mxu0 0
      %3808 = vmatpush1.bf16.msra.mxu0 %v3788
      %3809 = vmatprep.subr.bf16.mxu0 0
      %3810 = vmatpush1.bf16.msra.mxu0 %v3789
      %3811 = vmatprep.subr.bf16.mxu0 0
      %3812 = vmatpush1.bf16.msra.mxu0 %v3790
      %3813 = vmatprep.subr.bf16.mxu0 0
      %3814 = vmatpush1.bf16.msra.mxu0 %v3791
      %3815 = vmatprep.subr.bf16.mxu0 0
      %3816 = vmatpush1.bf16.msra.mxu0 %v3792
      %3817 = vmatprep.subr.bf16.mxu0 0
      %3818 = vmatpush1.bf16.msra.mxu0 0
      %3819 = vmatprep.subr.bf16.mxu0 0
      %3820 = vmatpush1.bf16.msra.mxu0 0
      %3821 = vmatprep.subr.bf16.mxu0 0
      %3822 = vmatpush1.bf16.msra.mxu0 0
      %3823 = vmatprep.subr.bf16.mxu0 0
      %3824 = vmatpush1.bf16.msra.mxu0 0
      %3825 = vmatprep.subr.bf16.mxu0 0
      %3826 = vmatpush1.bf16.msra.mxu0 0
      %3827 = vmatprep.subr.bf16.mxu0 0
      %3828 = vmatpush1.bf16.msra.mxu0 0
      %3829 = vmatprep.subr.bf16.mxu0 0
      %3830 = vmatpush1.bf16.msra.mxu0 0
      %3831 = vmatprep.subr.bf16.mxu0 0
      %3832 = vmatpush1.bf16.msra.mxu0 0
      %3833 = vmatprep.mubr.bf16.mxu0 0
      %3834 = vmatmul.mubr.bf16.gmra.mrb[0].mxu0 %v1220
      %v3835 = vpop.f32.mrb[0].mxu0
      %v3836 = vadd.f32 0.0, %v3835
      %v3837 = vpop.f32.mrb[0].mxu0
      %v3838 = vpop.f32.mrb[0].mxu0
      %v3839 = vadd.f32 0.0, %v3838
      %v3840 = vpop.f32.mrb[0].mxu0
      %3841 = vmatprep.mubr.bf16.mxu0 0
      %3842 = vmatmul.mubr.bf16.gmra.mrb[0].mxu0 %v1221
      %v3843 = vpop.f32.mrb[0].mxu0
      %v3844 = vadd.f32 0.0, %v3843
      %v3845 = vpop.f32.mrb[0].mxu0
      %v3846 = vpop.f32.mrb[0].mxu0
      %v3847 = vadd.f32 0.0, %v3846
      %v3848 = vpop.f32.mrb[0].mxu0
      %3849 = vmatprep.mubr.bf16.mxu0 0
      %3850 = vmatmul.mubr.bf16.gmra.mrb[0].mxu0 %v1222
      %v3851 = vpop.f32.mrb[0].mxu0
      %v3852 = vadd.f32 0.0, %v3851
      %v3853 = vpop.f32.mrb[0].mxu0
      %v3854 = vpop.f32.mrb[0].mxu0
      %v3855 = vadd.f32 0.0, %v3854
      %v3856 = vpop.f32.mrb[0].mxu0
      %3857 = vmatprep.mubr.bf16.mxu0 0
      %3858 = vmatmul.mubr.bf16.gmra.mrb[0].mxu0 %v1223
      %v3859 = vpop.f32.mrb[0].mxu0
      %v3860 = vadd.f32 0.0, %v3859
      %v3861 = vpop.f32.mrb[0].mxu0
      %v3862 = vpop.f32.mrb[0].mxu0
      %v3863 = vadd.f32 0.0, %v3862
      %v3864 = vpop.f32.mrb[0].mxu0
      %3865 = vmatprep.mubr.bf16.mxu0 0
      %3866 = vmatmul.mubr.bf16.gmra.mrb[0].mxu0 %v1224
      %v3867 = vpop.f32.mrb[0].mxu0
      %v3868 = vadd.f32 0.0, %v3867
      %v3869 = vpop.f32.mrb[0].mxu0
      %v3870 = vpop.f32.mrb[0].mxu0
      %v3871 = vadd.f32 0.0, %v3870
      %v3872 = vpop.f32.mrb[0].mxu0
      %3873 = vmatprep.mubr.bf16.mxu0 0
      %3874 = vmatmul.mubr.bf16.gmra.mrb[0].mxu0 %v1225
      %v3875 = vpop.f32.mrb[0].mxu0
      %v3876 = vadd.f32 0.0, %v3875
      %v3877 = vpop.f32.mrb[0].mxu0
      %v3878 = vpop.f32.mrb[0].mxu0
      %v3879 = vadd.f32 0.0, %v3878
      %v3880 = vpop.f32.mrb[0].mxu0
      %3881 = vmatprep.mubr.bf16.mxu0 0
      %3882 = vmatmul.mubr.bf16.gmra.mrb[0].mxu0 %v2591
      %v3883 = vpop.f32.mrb[0].mxu0
      %v3884 = vadd.f32 0.0, %v3883
      %v3885 = vpop.f32.mrb[0].mxu0
      %v3886 = vpop.f32.mrb[0].mxu0
      %v3887 = vadd.f32 0.0, %v3886
      %v3888 = vpop.f32.mrb[0].mxu0
      %3889 = vmatprep.mubr.bf16.mxu0 0
      %3890 = vmatmul.mubr.bf16.gmra.mrb[0].mxu0 %v3751
      %v3891 = vpop.f32.mrb[0].mxu0
      %v3892 = vadd.f32 0.0, %v3891
      %v3893 = vpop.f32.mrb[0].mxu0
      %v3894 = vpop.f32.mrb[0].mxu0
      %v3895 = vadd.f32 0.0, %v3894
      %v3896 = vpop.f32.mrb[0].mxu0
      %3897 = vdwg.mxu0
      %v3898 = vadd.f32 %v3668, %v3836
      %v3899 = vadd.f32 %v3669, %v3839
      %v3900 = vadd.f32 %v3670, %v3844
      %v3901 = vadd.f32 %v3671, %v3847
      %v3902 = vadd.f32 %v3672, %v3852
      %v3903 = vadd.f32 %v3673, %v3855
      %v3904 = vadd.f32 %v3674, %v3860
      %v3905 = vadd.f32 %v3675, %v3863
      %v3906 = vadd.f32 %v3676, %v3868
      %v3907 = vadd.f32 %v3677, %v3871
      %v3908 = vadd.f32 %v3678, %v3876
      %v3909 = vadd.f32 %v3679, %v3879
      %v3910 = vadd.f32 %v3680, %v3884
      %v3911 = vadd.f32 %v3681, %v3887
      %v3912 = vadd.f32 %v3682, %v3892
      %v3913 = vadd.f32 %v3683, %v3895
      %s3914 = scalar_lea.vmem %s3, 448
      %v3915 = vld [vmem:[%s3914] sm:$0xf]
      %v3916 = vld [vmem:[%s3914 + $0x4] sm:$0xf]
      %v3917 = vld [vmem:[%s3914 + $0x8] sm:$0xf]
      %v3918 = vld [vmem:[%s3914 + $0xc] sm:$0xf]
      %v3919 = vld [vmem:[%s3914 + $0x10] sm:$0xf]
      %v3920 = vld [vmem:[%s3914 + $0x14] sm:$0xf]
      %v3921 = vld [vmem:[%s3914 + $0x18] sm:$0xf]
      %v3922 = vld [vmem:[%s3914 + $0x1c] sm:$0xf]
      %v3923 = vld [vmem:[%s3914 + $0x20] sm:$0xf]
      %v3924 = vld [vmem:[%s3914 + $0x24] sm:$0xf]
      %v3925 = vld [vmem:[%s3914 + $0x28] sm:$0xf]
      %v3926 = vld [vmem:[%s3914 + $0x2c] sm:$0xf]
      %v3927 = vld [vmem:[%s3914 + $0x30] sm:$0xf]
      %v3928 = vld [vmem:[%s3914 + $0x34] sm:$0xf]
      %v3929 = vld [vmem:[%s3914 + $0x38] sm:$0xf]
      %v3930 = vld [vmem:[%s3914 + $0x3c] sm:$0xf]
      %v3931 = vunpack.c.l.b16 %v3721
      %v3932 = vunpack.c.l.b16 %v3731
      %v3933 = vpack.c.b16 %v3932, %v3931
      %v3951 = vunpack.c.l.b16 %v3915
      %v3952 = vunpack.c.l.b16 %v3916
      %v3953 = vunpack.c.l.b16 %v3917
      %v3954 = vunpack.c.l.b16 %v3918
      %v3955 = vunpack.c.l.b16 %v3919
      %v3956 = vunpack.c.l.b16 %v3920
      %v3957 = vunpack.c.l.b16 %v3921
      %v3958 = vunpack.c.l.b16 %v3922
      %v3959 = vunpack.c.l.b16 %v3923
      %v3960 = vunpack.c.l.b16 %v3924
      %v3961 = vunpack.c.l.b16 %v3925
      %v3962 = vunpack.c.l.b16 %v3926
      %v3963 = vunpack.c.l.b16 %v3927
      %v3964 = vunpack.c.l.b16 %v3928
      %v3965 = vunpack.c.l.b16 %v3929
      %v3966 = vunpack.c.l.b16 %v3930
      %v3967 = vpack.c.b16 %v3952, %v3951
      %v3968 = vpack.c.b16 %v3954, %v3953
      %v3969 = vpack.c.b16 %v3956, %v3955
      %v3970 = vpack.c.b16 %v3958, %v3957
      %v3971 = vpack.c.b16 %v3960, %v3959
      %v3972 = vpack.c.b16 %v3962, %v3961
      %v3973 = vpack.c.b16 %v3964, %v3963
      %v3974 = vpack.c.b16 %v3966, %v3965
      %3983 = vmatprep.subr.bf16.mxu0 0
      %3984 = vmatpush1.bf16.msra.mxu0 %v3967
      %3985 = vmatprep.subr.bf16.mxu0 0
      %3986 = vmatpush1.bf16.msra.mxu0 %v3968
      %3987 = vmatprep.subr.bf16.mxu0 0
      %3988 = vmatpush1.bf16.msra.mxu0 %v3969
      %3989 = vmatprep.subr.bf16.mxu0 0
      %3990 = vmatpush1.bf16.msra.mxu0 %v3970
      %3991 = vmatprep.subr.bf16.mxu0 0
      %3992 = vmatpush1.bf16.msra.mxu0 %v3971
      %3993 = vmatprep.subr.bf16.mxu0 0
      %3994 = vmatpush1.bf16.msra.mxu0 %v3972
      %3995 = vmatprep.subr.bf16.mxu0 0
      %3996 = vmatpush1.bf16.msra.mxu0 %v3973
      %3997 = vmatprep.subr.bf16.mxu0 0
      %3998 = vmatpush1.bf16.msra.mxu0 %v3974
      %3999 = vmatprep.subr.bf16.mxu0 0
      %4000 = vmatpush1.bf16.msra.mxu0 0
      %4001 = vmatprep.subr.bf16.mxu0 0
      %4002 = vmatpush1.bf16.msra.mxu0 0
      %4003 = vmatprep.subr.bf16.mxu0 0
      %4004 = vmatpush1.bf16.msra.mxu0 0
      %4005 = vmatprep.subr.bf16.mxu0 0
      %4006 = vmatpush1.bf16.msra.mxu0 0
      %4007 = vmatprep.subr.bf16.mxu0 0
      %4008 = vmatpush1.bf16.msra.mxu0 0
      %4009 = vmatprep.subr.bf16.mxu0 0
      %4010 = vmatpush1.bf16.msra.mxu0 0
      %4011 = vmatprep.subr.bf16.mxu0 0
      %4012 = vmatpush1.bf16.msra.mxu0 0
      %4013 = vmatprep.subr.bf16.mxu0 0
      %4014 = vmatpush1.bf16.msra.mxu0 0
      %4015 = vmatprep.mubr.bf16.mxu0 0
      %4016 = vmatmul.mubr.bf16.gmra.mrb[0].mxu0 %v1430
      %v4017 = vpop.f32.mrb[0].mxu0
      %v4018 = vadd.f32 0.0, %v4017
      %v4019 = vpop.f32.mrb[0].mxu0
      %v4020 = vpop.f32.mrb[0].mxu0
      %v4021 = vadd.f32 0.0, %v4020
      %v4022 = vpop.f32.mrb[0].mxu0
      %4023 = vmatprep.mubr.bf16.mxu0 0
      %4024 = vmatmul.mubr.bf16.gmra.mrb[0].mxu0 %v1431
      %v4025 = vpop.f32.mrb[0].mxu0
      %v4026 = vadd.f32 0.0, %v4025
      %v4027 = vpop.f32.mrb[0].mxu0
      %v4028 = vpop.f32.mrb[0].mxu0
      %v4029 = vadd.f32 0.0, %v4028
      %v4030 = vpop.f32.mrb[0].mxu0
      %4031 = vmatprep.mubr.bf16.mxu0 0
      %4032 = vmatmul.mubr.bf16.gmra.mrb[0].mxu0 %v1432
      %v4033 = vpop.f32.mrb[0].mxu0
      %v4034 = vadd.f32 0.0, %v4033
      %v4035 = vpop.f32.mrb[0].mxu0
      %v4036 = vpop.f32.mrb[0].mxu0
      %v4037 = vadd.f32 0.0, %v4036
      %v4038 = vpop.f32.mrb[0].mxu0
      %4039 = vmatprep.mubr.bf16.mxu0 0
      %4040 = vmatmul.mubr.bf16.gmra.mrb[0].mxu0 %v1433
      %v4041 = vpop.f32.mrb[0].mxu0
      %v4042 = vadd.f32 0.0, %v4041
      %v4043 = vpop.f32.mrb[0].mxu0
      %v4044 = vpop.f32.mrb[0].mxu0
      %v4045 = vadd.f32 0.0, %v4044
      %v4046 = vpop.f32.mrb[0].mxu0
      %4047 = vmatprep.mubr.bf16.mxu0 0
      %4048 = vmatmul.mubr.bf16.gmra.mrb[0].mxu0 %v1434
      %v4049 = vpop.f32.mrb[0].mxu0
      %v4050 = vadd.f32 0.0, %v4049
      %v4051 = vpop.f32.mrb[0].mxu0
      %v4052 = vpop.f32.mrb[0].mxu0
      %v4053 = vadd.f32 0.0, %v4052
      %v4054 = vpop.f32.mrb[0].mxu0
      %4055 = vmatprep.mubr.bf16.mxu0 0
      %4056 = vmatmul.mubr.bf16.gmra.mrb[0].mxu0 %v1435
      %v4057 = vpop.f32.mrb[0].mxu0
      %v4058 = vadd.f32 0.0, %v4057
      %v4059 = vpop.f32.mrb[0].mxu0
      %v4060 = vpop.f32.mrb[0].mxu0
      %v4061 = vadd.f32 0.0, %v4060
      %v4062 = vpop.f32.mrb[0].mxu0
      %4063 = vmatprep.mubr.bf16.mxu0 0
      %4064 = vmatmul.mubr.bf16.gmra.mrb[0].mxu0 %v2773
      %v4065 = vpop.f32.mrb[0].mxu0
      %v4066 = vadd.f32 0.0, %v4065
      %v4067 = vpop.f32.mrb[0].mxu0
      %v4068 = vpop.f32.mrb[0].mxu0
      %v4069 = vadd.f32 0.0, %v4068
      %v4070 = vpop.f32.mrb[0].mxu0
      %4071 = vmatprep.mubr.bf16.mxu0 0
      %4072 = vmatmul.mubr.bf16.gmra.mrb[0].mxu0 %v3933
      %v4073 = vpop.f32.mrb[0].mxu0
      %v4074 = vadd.f32 0.0, %v4073
      %v4075 = vpop.f32.mrb[0].mxu0
      %v4076 = vpop.f32.mrb[0].mxu0
      %v4077 = vadd.f32 0.0, %v4076
      %v4078 = vpop.f32.mrb[0].mxu0
      %4079 = vdwg.mxu0
      %v4080 = vadd.f32 %v3898, %v4018
      %v4081 = vadd.f32 %v3899, %v4021
      %v4082 = vadd.f32 %v3900, %v4026
      %v4083 = vadd.f32 %v3901, %v4029
      %v4084 = vadd.f32 %v3902, %v4034
      %v4085 = vadd.f32 %v3903, %v4037
      %v4086 = vadd.f32 %v3904, %v4042
      %v4087 = vadd.f32 %v3905, %v4045
      %v4088 = vadd.f32 %v3906, %v4050
      %v4089 = vadd.f32 %v3907, %v4053
      %v4090 = vadd.f32 %v3908, %v4058
      %v4091 = vadd.f32 %v3909, %v4061
      %v4092 = vadd.f32 %v3910, %v4066
      %v4093 = vadd.f32 %v3911, %v4069
      %v4094 = vadd.f32 %v3912, %v4074
      %v4095 = vadd.f32 %v3913, %v4077
      %v4097 = vrot.slane %v347, 5
      %v4098 = vrot.slane %v4097, 4
      %v4099 = vrot.slane %v348, 5
      %v4100 = vsel %vm1615, %v4098, %v4099
      %v4101 = vrot.slane %v4099, 4
      %v4102 = vrot.slane %v349, 5
      %v4103 = vsel %vm1615, %v4101, %v4102
      %v4105 = vrot.slane %v377, 5
      %v4106 = vrot.slane %v4105, 4
      %v4107 = vrot.slane %v378, 5
      %v4108 = vsel %vm1615, %v4106, %v4107
      %v4109 = vrot.slane %v4107, 4
      %v4110 = vrot.slane %v379, 5
      %v4111 = vsel %vm1615, %v4109, %v4110
      %s4112 = scalar_lea.vmem %s2, 512
      %v4113 = vld [vmem:[%s4112] sm:$0xf]
      %v4114 = vld [vmem:[%s4112 + $0x4] sm:$0xf]
      %v4115 = vld [vmem:[%s4112 + $0x8] sm:$0xf]
      %v4116 = vld [vmem:[%s4112 + $0xc] sm:$0xf]
      %v4117 = vld [vmem:[%s4112 + $0x10] sm:$0xf]
      %v4118 = vld [vmem:[%s4112 + $0x14] sm:$0xf]
      %v4119 = vld [vmem:[%s4112 + $0x18] sm:$0xf]
      %v4120 = vld [vmem:[%s4112 + $0x1c] sm:$0xf]
      %v4121 = vld [vmem:[%s4112 + $0x20] sm:$0xf]
      %v4122 = vld [vmem:[%s4112 + $0x24] sm:$0xf]
      %v4123 = vld [vmem:[%s4112 + $0x28] sm:$0xf]
      %v4124 = vld [vmem:[%s4112 + $0x2c] sm:$0xf]
      %v4125 = vld [vmem:[%s4112 + $0x30] sm:$0xf]
      %v4126 = vld [vmem:[%s4112 + $0x34] sm:$0xf]
      %v4127 = vld [vmem:[%s4112 + $0x38] sm:$0xf]
      %v4128 = vld [vmem:[%s4112 + $0x3c] sm:$0xf]
      %v4129 = vunpack.c.l.b16 %v4100
      %v4130 = vunpack.c.l.b16 %v4103
      %v4131 = vpack.c.b16 %v4130, %v4129
      %v4149 = vunpack.c.l.b16 %v4113
      %v4150 = vunpack.c.l.b16 %v4114
      %v4151 = vunpack.c.l.b16 %v4115
      %v4152 = vunpack.c.l.b16 %v4116
      %v4153 = vunpack.c.l.b16 %v4117
      %v4154 = vunpack.c.l.b16 %v4118
      %v4155 = vunpack.c.l.b16 %v4119
      %v4156 = vunpack.c.l.b16 %v4120
      %v4157 = vunpack.c.l.b16 %v4121
      %v4158 = vunpack.c.l.b16 %v4122
      %v4159 = vunpack.c.l.b16 %v4123
      %v4160 = vunpack.c.l.b16 %v4124
      %v4161 = vunpack.c.l.b16 %v4125
      %v4162 = vunpack.c.l.b16 %v4126
      %v4163 = vunpack.c.l.b16 %v4127
      %v4164 = vunpack.c.l.b16 %v4128
      %v4165 = vpack.c.b16 %v4150, %v4149
      %v4166 = vpack.c.b16 %v4152, %v4151
      %v4167 = vpack.c.b16 %v4154, %v4153
      %v4168 = vpack.c.b16 %v4156, %v4155
      %v4169 = vpack.c.b16 %v4158, %v4157
      %v4170 = vpack.c.b16 %v4160, %v4159
      %v4171 = vpack.c.b16 %v4162, %v4161
      %v4172 = vpack.c.b16 %v4164, %v4163
      %4181 = vmatprep.subr.bf16.mxu0 0
      %4182 = vmatpush1.bf16.msra.mxu0 %v4165
      %4183 = vmatprep.subr.bf16.mxu0 0
      %4184 = vmatpush1.bf16.msra.mxu0 %v4166
      %4185 = vmatprep.subr.bf16.mxu0 0
      %4186 = vmatpush1.bf16.msra.mxu0 %v4167
      %4187 = vmatprep.subr.bf16.mxu0 0
      %4188 = vmatpush1.bf16.msra.mxu0 %v4168
      %4189 = vmatprep.subr.bf16.mxu0 0
      %4190 = vmatpush1.bf16.msra.mxu0 %v4169
      %4191 = vmatprep.subr.bf16.mxu0 0
      %4192 = vmatpush1.bf16.msra.mxu0 %v4170
      %4193 = vmatprep.subr.bf16.mxu0 0
      %4194 = vmatpush1.bf16.msra.mxu0 %v4171
      %4195 = vmatprep.subr.bf16.mxu0 0
      %4196 = vmatpush1.bf16.msra.mxu0 %v4172
      %4197 = vmatprep.subr.bf16.mxu0 0
      %4198 = vmatpush1.bf16.msra.mxu0 0
      %4199 = vmatprep.subr.bf16.mxu0 0
      %4200 = vmatpush1.bf16.msra.mxu0 0
      %4201 = vmatprep.subr.bf16.mxu0 0
      %4202 = vmatpush1.bf16.msra.mxu0 0
      %4203 = vmatprep.subr.bf16.mxu0 0
      %4204 = vmatpush1.bf16.msra.mxu0 0
      %4205 = vmatprep.subr.bf16.mxu0 0
      %4206 = vmatpush1.bf16.msra.mxu0 0
      %4207 = vmatprep.subr.bf16.mxu0 0
      %4208 = vmatpush1.bf16.msra.mxu0 0
      %4209 = vmatprep.subr.bf16.mxu0 0
      %4210 = vmatpush1.bf16.msra.mxu0 0
      %4211 = vmatprep.subr.bf16.mxu0 0
      %4212 = vmatpush1.bf16.msra.mxu0 0
      %4213 = vmatprep.mubr.bf16.mxu0 0
      %4214 = vmatmul.mubr.bf16.gmra.mrb[0].mxu0 %v1771
      %v4215 = vpop.f32.mrb[0].mxu0
      %v4216 = vadd.f32 0.0, %v4215
      %v4217 = vpop.f32.mrb[0].mxu0
      %v4218 = vpop.f32.mrb[0].mxu0
      %v4219 = vadd.f32 0.0, %v4218
      %v4220 = vpop.f32.mrb[0].mxu0
      %4221 = vmatprep.mubr.bf16.mxu0 0
      %4222 = vmatmul.mubr.bf16.gmra.mrb[0].mxu0 %v1772
      %v4223 = vpop.f32.mrb[0].mxu0
      %v4224 = vadd.f32 0.0, %v4223
      %v4225 = vpop.f32.mrb[0].mxu0
      %v4226 = vpop.f32.mrb[0].mxu0
      %v4227 = vadd.f32 0.0, %v4226
      %v4228 = vpop.f32.mrb[0].mxu0
      %4229 = vmatprep.mubr.bf16.mxu0 0
      %4230 = vmatmul.mubr.bf16.gmra.mrb[0].mxu0 %v1773
      %v4231 = vpop.f32.mrb[0].mxu0
      %v4232 = vadd.f32 0.0, %v4231
      %v4233 = vpop.f32.mrb[0].mxu0
      %v4234 = vpop.f32.mrb[0].mxu0
      %v4235 = vadd.f32 0.0, %v4234
      %v4236 = vpop.f32.mrb[0].mxu0
      %4237 = vmatprep.mubr.bf16.mxu0 0
      %4238 = vmatmul.mubr.bf16.gmra.mrb[0].mxu0 %v1774
      %v4239 = vpop.f32.mrb[0].mxu0
      %v4240 = vadd.f32 0.0, %v4239
      %v4241 = vpop.f32.mrb[0].mxu0
      %v4242 = vpop.f32.mrb[0].mxu0
      %v4243 = vadd.f32 0.0, %v4242
      %v4244 = vpop.f32.mrb[0].mxu0
      %4245 = vmatprep.mubr.bf16.mxu0 0
      %4246 = vmatmul.mubr.bf16.gmra.mrb[0].mxu0 %v1775
      %v4247 = vpop.f32.mrb[0].mxu0
      %v4248 = vadd.f32 0.0, %v4247
      %v4249 = vpop.f32.mrb[0].mxu0
      %v4250 = vpop.f32.mrb[0].mxu0
      %v4251 = vadd.f32 0.0, %v4250
      %v4252 = vpop.f32.mrb[0].mxu0
      %4253 = vmatprep.mubr.bf16.mxu0 0
      %4254 = vmatmul.mubr.bf16.gmra.mrb[0].mxu0 %v1776
      %v4255 = vpop.f32.mrb[0].mxu0
      %v4256 = vadd.f32 0.0, %v4255
      %v4257 = vpop.f32.mrb[0].mxu0
      %v4258 = vpop.f32.mrb[0].mxu0
      %v4259 = vadd.f32 0.0, %v4258
      %v4260 = vpop.f32.mrb[0].mxu0
      %4261 = vmatprep.mubr.bf16.mxu0 0
      %4262 = vmatmul.mubr.bf16.gmra.mrb[0].mxu0 %v2971
      %v4263 = vpop.f32.mrb[0].mxu0
      %v4264 = vadd.f32 0.0, %v4263
      %v4265 = vpop.f32.mrb[0].mxu0
      %v4266 = vpop.f32.mrb[0].mxu0
      %v4267 = vadd.f32 0.0, %v4266
      %v4268 = vpop.f32.mrb[0].mxu0
      %4269 = vmatprep.mubr.bf16.mxu0 0
      %4270 = vmatmul.mubr.bf16.gmra.mrb[0].mxu0 %v4131
      %v4271 = vpop.f32.mrb[0].mxu0
      %v4272 = vadd.f32 0.0, %v4271
      %v4273 = vpop.f32.mrb[0].mxu0
      %v4274 = vpop.f32.mrb[0].mxu0
      %v4275 = vadd.f32 0.0, %v4274
      %v4276 = vpop.f32.mrb[0].mxu0
      %4277 = vdwg.mxu0
      %v4278 = vadd.f32 %v4080, %v4216
      %v4279 = vadd.f32 %v4081, %v4219
      %v4280 = vadd.f32 %v4082, %v4224
      %v4281 = vadd.f32 %v4083, %v4227
      %v4282 = vadd.f32 %v4084, %v4232
      %v4283 = vadd.f32 %v4085, %v4235
      %v4284 = vadd.f32 %v4086, %v4240
      %v4285 = vadd.f32 %v4087, %v4243
      %v4286 = vadd.f32 %v4088, %v4248
      %v4287 = vadd.f32 %v4089, %v4251
      %v4288 = vadd.f32 %v4090, %v4256
      %v4289 = vadd.f32 %v4091, %v4259
      %v4290 = vadd.f32 %v4092, %v4264
      %v4291 = vadd.f32 %v4093, %v4267
      %v4292 = vadd.f32 %v4094, %v4272
      %v4293 = vadd.f32 %v4095, %v4275
      %s4294 = scalar_lea.vmem %s3, 512
      %v4295 = vld [vmem:[%s4294] sm:$0xf]
      %v4296 = vld [vmem:[%s4294 + $0x4] sm:$0xf]
      %v4297 = vld [vmem:[%s4294 + $0x8] sm:$0xf]
      %v4298 = vld [vmem:[%s4294 + $0xc] sm:$0xf]
      %v4299 = vld [vmem:[%s4294 + $0x10] sm:$0xf]
      %v4300 = vld [vmem:[%s4294 + $0x14] sm:$0xf]
      %v4301 = vld [vmem:[%s4294 + $0x18] sm:$0xf]
      %v4302 = vld [vmem:[%s4294 + $0x1c] sm:$0xf]
      %v4303 = vld [vmem:[%s4294 + $0x20] sm:$0xf]
      %v4304 = vld [vmem:[%s4294 + $0x24] sm:$0xf]
      %v4305 = vld [vmem:[%s4294 + $0x28] sm:$0xf]
      %v4306 = vld [vmem:[%s4294 + $0x2c] sm:$0xf]
      %v4307 = vld [vmem:[%s4294 + $0x30] sm:$0xf]
      %v4308 = vld [vmem:[%s4294 + $0x34] sm:$0xf]
      %v4309 = vld [vmem:[%s4294 + $0x38] sm:$0xf]
      %v4310 = vld [vmem:[%s4294 + $0x3c] sm:$0xf]
      %v4311 = vunpack.c.l.b16 %v4108
      %v4312 = vunpack.c.l.b16 %v4111
      %v4313 = vpack.c.b16 %v4312, %v4311
      %v4331 = vunpack.c.l.b16 %v4295
      %v4332 = vunpack.c.l.b16 %v4296
      %v4333 = vunpack.c.l.b16 %v4297
      %v4334 = vunpack.c.l.b16 %v4298
      %v4335 = vunpack.c.l.b16 %v4299
      %v4336 = vunpack.c.l.b16 %v4300
      %v4337 = vunpack.c.l.b16 %v4301
      %v4338 = vunpack.c.l.b16 %v4302
      %v4339 = vunpack.c.l.b16 %v4303
      %v4340 = vunpack.c.l.b16 %v4304
      %v4341 = vunpack.c.l.b16 %v4305
      %v4342 = vunpack.c.l.b16 %v4306
      %v4343 = vunpack.c.l.b16 %v4307
      %v4344 = vunpack.c.l.b16 %v4308
      %v4345 = vunpack.c.l.b16 %v4309
      %v4346 = vunpack.c.l.b16 %v4310
      %v4347 = vpack.c.b16 %v4332, %v4331
      %v4348 = vpack.c.b16 %v4334, %v4333
      %v4349 = vpack.c.b16 %v4336, %v4335
      %v4350 = vpack.c.b16 %v4338, %v4337
      %v4351 = vpack.c.b16 %v4340, %v4339
      %v4352 = vpack.c.b16 %v4342, %v4341
      %v4353 = vpack.c.b16 %v4344, %v4343
      %v4354 = vpack.c.b16 %v4346, %v4345
      %4363 = vmatprep.subr.bf16.mxu0 0
      %4364 = vmatpush1.bf16.msra.mxu0 %v4347
      %4365 = vmatprep.subr.bf16.mxu0 0
      %4366 = vmatpush1.bf16.msra.mxu0 %v4348
      %4367 = vmatprep.subr.bf16.mxu0 0
      %4368 = vmatpush1.bf16.msra.mxu0 %v4349
      %4369 = vmatprep.subr.bf16.mxu0 0
      %4370 = vmatpush1.bf16.msra.mxu0 %v4350
      %4371 = vmatprep.subr.bf16.mxu0 0
      %4372 = vmatpush1.bf16.msra.mxu0 %v4351
      %4373 = vmatprep.subr.bf16.mxu0 0
      %4374 = vmatpush1.bf16.msra.mxu0 %v4352
      %4375 = vmatprep.subr.bf16.mxu0 0
      %4376 = vmatpush1.bf16.msra.mxu0 %v4353
      %4377 = vmatprep.subr.bf16.mxu0 0
      %4378 = vmatpush1.bf16.msra.mxu0 %v4354
      %4379 = vmatprep.subr.bf16.mxu0 0
      %4380 = vmatpush1.bf16.msra.mxu0 0
      %4381 = vmatprep.subr.bf16.mxu0 0
      %4382 = vmatpush1.bf16.msra.mxu0 0
      %4383 = vmatprep.subr.bf16.mxu0 0
      %4384 = vmatpush1.bf16.msra.mxu0 0
      %4385 = vmatprep.subr.bf16.mxu0 0
      %4386 = vmatpush1.bf16.msra.mxu0 0
      %4387 = vmatprep.subr.bf16.mxu0 0
      %4388 = vmatpush1.bf16.msra.mxu0 0
      %4389 = vmatprep.subr.bf16.mxu0 0
      %4390 = vmatpush1.bf16.msra.mxu0 0
      %4391 = vmatprep.subr.bf16.mxu0 0
      %4392 = vmatpush1.bf16.msra.mxu0 0
      %4393 = vmatprep.subr.bf16.mxu0 0
      %4394 = vmatpush1.bf16.msra.mxu0 0
      %4395 = vmatprep.mubr.bf16.mxu0 0
      %4396 = vmatmul.mubr.bf16.gmra.mrb[0].mxu0 %v1981
      %v4397 = vpop.f32.mrb[0].mxu0
      %v4398 = vadd.f32 0.0, %v4397
      %v4399 = vpop.f32.mrb[0].mxu0
      %v4400 = vpop.f32.mrb[0].mxu0
      %v4401 = vadd.f32 0.0, %v4400
      %v4402 = vpop.f32.mrb[0].mxu0
      %4403 = vmatprep.mubr.bf16.mxu0 0
      %4404 = vmatmul.mubr.bf16.gmra.mrb[0].mxu0 %v1982
      %v4405 = vpop.f32.mrb[0].mxu0
      %v4406 = vadd.f32 0.0, %v4405
      %v4407 = vpop.f32.mrb[0].mxu0
      %v4408 = vpop.f32.mrb[0].mxu0
      %v4409 = vadd.f32 0.0, %v4408
      %v4410 = vpop.f32.mrb[0].mxu0
      %4411 = vmatprep.mubr.bf16.mxu0 0
      %4412 = vmatmul.mubr.bf16.gmra.mrb[0].mxu0 %v1983
      %v4413 = vpop.f32.mrb[0].mxu0
      %v4414 = vadd.f32 0.0, %v4413
      %v4415 = vpop.f32.mrb[0].mxu0
      %v4416 = vpop.f32.mrb[0].mxu0
      %v4417 = vadd.f32 0.0, %v4416
      %v4418 = vpop.f32.mrb[0].mxu0
      %4419 = vmatprep.mubr.bf16.mxu0 0
      %4420 = vmatmul.mubr.bf16.gmra.mrb[0].mxu0 %v1984
      %v4421 = vpop.f32.mrb[0].mxu0
      %v4422 = vadd.f32 0.0, %v4421
      %v4423 = vpop.f32.mrb[0].mxu0
      %v4424 = vpop.f32.mrb[0].mxu0
      %v4425 = vadd.f32 0.0, %v4424
      %v4426 = vpop.f32.mrb[0].mxu0
      %4427 = vmatprep.mubr.bf16.mxu0 0
      %4428 = vmatmul.mubr.bf16.gmra.mrb[0].mxu0 %v1985
      %v4429 = vpop.f32.mrb[0].mxu0
      %v4430 = vadd.f32 0.0, %v4429
      %v4431 = vpop.f32.mrb[0].mxu0
      %v4432 = vpop.f32.mrb[0].mxu0
      %v4433 = vadd.f32 0.0, %v4432
      %v4434 = vpop.f32.mrb[0].mxu0
      %4435 = vmatprep.mubr.bf16.mxu0 0
      %4436 = vmatmul.mubr.bf16.gmra.mrb[0].mxu0 %v1986
      %v4437 = vpop.f32.mrb[0].mxu0
      %v4438 = vadd.f32 0.0, %v4437
      %v4439 = vpop.f32.mrb[0].mxu0
      %v4440 = vpop.f32.mrb[0].mxu0
      %v4441 = vadd.f32 0.0, %v4440
      %v4442 = vpop.f32.mrb[0].mxu0
      %4443 = vmatprep.mubr.bf16.mxu0 0
      %4444 = vmatmul.mubr.bf16.gmra.mrb[0].mxu0 %v3153
      %v4445 = vpop.f32.mrb[0].mxu0
      %v4446 = vadd.f32 0.0, %v4445
      %v4447 = vpop.f32.mrb[0].mxu0
      %v4448 = vpop.f32.mrb[0].mxu0
      %v4449 = vadd.f32 0.0, %v4448
      %v4450 = vpop.f32.mrb[0].mxu0
      %4451 = vmatprep.mubr.bf16.mxu0 0
      %4452 = vmatmul.mubr.bf16.gmra.mrb[0].mxu0 %v4313
      %v4453 = vpop.f32.mrb[0].mxu0
      %v4454 = vadd.f32 0.0, %v4453
      %v4455 = vpop.f32.mrb[0].mxu0
      %v4456 = vpop.f32.mrb[0].mxu0
      %v4457 = vadd.f32 0.0, %v4456
      %v4458 = vpop.f32.mrb[0].mxu0
      %4459 = vdwg.mxu0
      %v4460 = vadd.f32 %v4278, %v4398
      %v4461 = vadd.f32 %v4279, %v4401
      %v4462 = vadd.f32 %v4280, %v4406
      %v4463 = vadd.f32 %v4281, %v4409
      %v4464 = vadd.f32 %v4282, %v4414
      %v4465 = vadd.f32 %v4283, %v4417
      %v4466 = vadd.f32 %v4284, %v4422
      %v4467 = vadd.f32 %v4285, %v4425
      %v4468 = vadd.f32 %v4286, %v4430
      %v4469 = vadd.f32 %v4287, %v4433
      %v4470 = vadd.f32 %v4288, %v4438
      %v4471 = vadd.f32 %v4289, %v4441
      %v4472 = vadd.f32 %v4290, %v4446
      %v4473 = vadd.f32 %v4291, %v4449
      %v4474 = vadd.f32 %v4292, %v4454
      %v4475 = vadd.f32 %v4293, %v4457
      %v4476 = vpack.c.bf16 %v4461, %v4460
      %v4477 = vpack.c.bf16 %v4463, %v4462
      %v4478 = vpack.c.bf16 %v4465, %v4464
      %v4479 = vpack.c.bf16 %v4467, %v4466
      %v4480 = vpack.c.bf16 %v4469, %v4468
      %v4481 = vpack.c.bf16 %v4471, %v4470
      %v4482 = vpack.c.bf16 %v4473, %v4472
      %v4483 = vpack.c.bf16 %v4475, %v4474
      %v4492 = vunpack.c.l.b16 %v4476
      %v4493 = vunpack.c.h.b16 %v4476
      %v4494 = vunpack.c.l.b16 %v4477
      %v4495 = vunpack.c.h.b16 %v4477
      %v4496 = vunpack.c.l.b16 %v4478
      %v4497 = vunpack.c.h.b16 %v4478
      %v4498 = vunpack.c.l.b16 %v4479
      %v4499 = vunpack.c.h.b16 %v4479
      %v4500 = vunpack.c.l.b16 %v4480
      %v4501 = vunpack.c.h.b16 %v4480
      %v4502 = vunpack.c.l.b16 %v4481
      %v4503 = vunpack.c.h.b16 %v4481
      %v4504 = vunpack.c.l.b16 %v4482
      %v4505 = vunpack.c.h.b16 %v4482
      %v4506 = vunpack.c.l.b16 %v4483
      %v4507 = vunpack.c.h.b16 %v4483
      %v4508 = vpack.c.b16 %v4492, %v4492
      %v4509 = vpack.c.b16 %v4493, %v4493
      %v4510 = vpack.c.b16 %v4494, %v4494
      %v4511 = vpack.c.b16 %v4495, %v4495
      %v4512 = vpack.c.b16 %v4496, %v4496
      %v4513 = vpack.c.b16 %v4497, %v4497
      %v4514 = vpack.c.b16 %v4498, %v4498
      %v4515 = vpack.c.b16 %v4499, %v4499
      %v4516 = vpack.c.b16 %v4500, %v4500
      %v4517 = vpack.c.b16 %v4501, %v4501
      %v4518 = vpack.c.b16 %v4502, %v4502
      %v4519 = vpack.c.b16 %v4503, %v4503
      %v4520 = vpack.c.b16 %v4504, %v4504
      %v4521 = vpack.c.b16 %v4505, %v4505
      %v4522 = vpack.c.b16 %v4506, %v4506
      %v4523 = vpack.c.b16 %v4507, %v4507
      %4540 = vst [vmem:[%s309] sm:$0xf] %v4508
      %4541 = vst [vmem:[%s309 + $0x4] sm:$0xf] %v4509
      %4542 = vst [vmem:[%s309 + $0x8] sm:$0xf] %v4510
      %4543 = vst [vmem:[%s309 + $0xc] sm:$0xf] %v4511
      %4544 = vst [vmem:[%s309 + $0x10] sm:$0xf] %v4512
      %4545 = vst [vmem:[%s309 + $0x14] sm:$0xf] %v4513
      %4546 = vst [vmem:[%s309 + $0x18] sm:$0xf] %v4514
      %4547 = vst [vmem:[%s309 + $0x1c] sm:$0xf] %v4515
      %4548 = vst [vmem:[%s309 + $0x20] sm:$0xf] %v4516
      %4549 = vst [vmem:[%s309 + $0x24] sm:$0xf] %v4517
      %4550 = vst [vmem:[%s309 + $0x28] sm:$0xf] %v4518
      %4551 = vst [vmem:[%s309 + $0x2c] sm:$0xf] %v4519
      %4552 = vst [vmem:[%s309 + $0x30] sm:$0xf] %v4520
      %4553 = vst [vmem:[%s309 + $0x34] sm:$0xf] %v4521
      %4554 = vst [vmem:[%s309 + $0x38] sm:$0xf] %v4522
      %4555 = vst [vmem:[%s309 + $0x3c] sm:$0xf] %v4523
      %v4556 = vadd.f32 %v4460, %v4461
      %v4557 = vadd.f32 %v4556, %v4462
      %v4558 = vadd.f32 %v4557, %v4463
      %v4559 = vadd.f32 %v4558, %v4464
      %v4560 = vadd.f32 %v4559, %v4465
      %v4561 = vadd.f32 %v4560, %v4466
      %v4562 = vadd.f32 %v4561, %v4467
      %v4563 = vadd.f32 %v4562, %v4468
      %v4564 = vadd.f32 %v4563, %v4469
      %v4565 = vadd.f32 %v4564, %v4470
      %v4566 = vadd.f32 %v4565, %v4471
      %v4567 = vadd.f32 %v4566, %v4472
      %v4568 = vadd.f32 %v4567, %v4473
      %v4569 = vadd.f32 %v4568, %v4474
      %v4570 = vadd.f32 %v4569, %v4475
      %v4571 = vrot.slane %v4570, 4
      %v4572 = vadd.f32 %v4570, %v4571
      %v4573 = vrot.slane %v4572, 2
      %v4574 = vadd.f32 %v4572, %v4573
      %v4575 = vrot.slane %v4574, 1
      %v4576 = vadd.f32 %v4574, %v4575
      %v4577 = vmul.f32 %v4460, %v4460
      %v4578 = vmul.f32 %v4461, %v4461
      %v4579 = vmul.f32 %v4462, %v4462
      %v4580 = vmul.f32 %v4463, %v4463
      %v4581 = vmul.f32 %v4464, %v4464
      %v4582 = vmul.f32 %v4465, %v4465
      %v4583 = vmul.f32 %v4466, %v4466
      %v4584 = vmul.f32 %v4467, %v4467
      %v4585 = vmul.f32 %v4468, %v4468
      %v4586 = vmul.f32 %v4469, %v4469
      %v4587 = vmul.f32 %v4470, %v4470
      %v4588 = vmul.f32 %v4471, %v4471
      %v4589 = vmul.f32 %v4472, %v4472
      %v4590 = vmul.f32 %v4473, %v4473
      %v4591 = vmul.f32 %v4474, %v4474
      %v4592 = vmul.f32 %v4475, %v4475
      %v4593 = vadd.f32 %v4577, %v4578
      %v4594 = vadd.f32 %v4593, %v4579
      %v4595 = vadd.f32 %v4594, %v4580
      %v4596 = vadd.f32 %v4595, %v4581
      %v4597 = vadd.f32 %v4596, %v4582
      %v4598 = vadd.f32 %v4597, %v4583
      %v4599 = vadd.f32 %v4598, %v4584
      %v4600 = vadd.f32 %v4599, %v4585
      %v4601 = vadd.f32 %v4600, %v4586
      %v4602 = vadd.f32 %v4601, %v4587
      %v4603 = vadd.f32 %v4602, %v4588
      %v4604 = vadd.f32 %v4603, %v4589
      %v4605 = vadd.f32 %v4604, %v4590
      %v4606 = vadd.f32 %v4605, %v4591
      %v4607 = vadd.f32 %v4606, %v4592
      %v4608 = vrot.slane %v4607, 4
      %v4609 = vadd.f32 %v4607, %v4608
      %v4610 = vrot.slane %v4609, 2
      %v4611 = vadd.f32 %v4609, %v4610
      %v4612 = vrot.slane %v4611, 1
      %v4613 = vadd.f32 %v4611, %v4612
      %vm4614 = vcmask 1040384
      %v4615 = vsel %vm4614, %v4576, %v4613
      %4616 = vst [vmem:[%s318] sm:$0x3] %v4615
      %s4617 = smul.u32 8, %s22
      %p4618 = scmp.lt.s32.totalorder %s21, 1
      %s4619 = scalar_select %p4618, %s21, 1
      %p4620 = scmp.lt.s32.totalorder %s4617, 15
      %s4621 = scalar_select %p4620, %s4617, 15
      %s4622 = smul.addr %s4621, 2
      %s4623 = smul.addr %s4619, 32
      %s4624 = sadd.s32 %s4622, %s4623
      %s4625 = smul.addr %s4624, 4
      %s4626 = scalar_lea.vmem %s4, %s4625
      %p4627 = scmp.lt.s32.totalorder %s21, 1
      %s4628 = scalar_select %p4627, %s21, 1
      %p4629 = scmp.lt.s32.totalorder %s22, 1
      %s4630 = scalar_select %p4629, %s22, 1
      %s4631 = smul.addr %s4628, 2
      %s4632 = sadd.s32 %s4630, %s4631
      %s4633 = smul.addr %s4632, 2
      %s4634 = scalar_lea.vmem %s5, %s4633
      // Predicated region
      $region37: #{decoder_block_forward.3} parent=35 // pred_check
        %p4635 = pneg %p147
      $region38: #{decoder_block_forward.3} parent=35 // pred_check_branch
        %4637 = sbr.rel (%p4635) target = $region40
      $region39: #{decoder_block_forward.3} parent=35 // pred_region
        %s4638 = smul.u32 8, %s22
      $region40: #{decoder_block_forward.3} parent=35 // pred_fallthru
        _
      // Predicated region
      $region41: #{decoder_block_forward.3} parent=35 // pred_check
        %p4639 = pneg %p175
      $region42: #{decoder_block_forward.3} parent=35 // pred_check_branch
        %4641 = sbr.rel (%p4639) target = $region44
      $region43: #{decoder_block_forward.3} parent=35 // pred_region
        _
      $region44: #{decoder_block_forward.3} parent=35 // pred_fallthru
        _
    $region36: #{decoder_block_forward.3} parent=5 // pred_fallthru
      _
    %p4642 = scmp.le.s32.totalorder 2, %s12
    // Predicated region
    $region45: #{decoder_block_forward.3} parent=5 // pred_check
      %p4643 = pneg %p4642
    $region46: #{decoder_block_forward.3} parent=5 // pred_check_branch
      %4645 = sbr.rel (%p4643) target = $region48
    $region47: #{decoder_block_forward.3} parent=5 // pred_region
      %s4646 = ssub.s32 %s12, 2
      // Predicated region
      $region49: #{decoder_block_forward.3} parent=47 // pred_check
        %p4647 = pneg %p153
      $region50: #{decoder_block_forward.3} parent=47 // pred_check_branch
        %4649 = sbr.rel (%p4647) target = $region52
      $region51: #{decoder_block_forward.3} parent=47 // pred_region
        %s4650 = smul.u32 8, %s24
        %p4651 = scmp.lt.s32.totalorder %s23, 1
        %s4652 = scalar_select %p4651, %s23, 1
        %p4653 = scmp.lt.s32.totalorder %s4650, 15
        %s4654 = scalar_select %p4653, %s4650, 15
        %s4655 = smul.addr %s4654, 2
        %s4656 = smul.addr %s4652, 32
        %s4657 = sadd.s32 %s4655, %s4656
        %s4658 = smul.addr %s4657, 4
        %s4659 = scalar_lea.vmem %s4, %s4658
      $region52: #{decoder_block_forward.3} parent=47 // pred_fallthru
        _
      // Predicated region
      $region53: #{decoder_block_forward.3} parent=47 // pred_check
        %p4660 = pneg %p181
      $region54: #{decoder_block_forward.3} parent=47 // pred_check_branch
        %4662 = sbr.rel (%p4660) target = $region56
      $region55: #{decoder_block_forward.3} parent=47 // pred_region
        %p4663 = scmp.lt.s32.totalorder %s23, 1
        %s4664 = scalar_select %p4663, %s23, 1
        %p4665 = scmp.lt.s32.totalorder %s24, 1
        %s4666 = scalar_select %p4665, %s24, 1
        %s4667 = smul.addr %s4664, 2
        %s4668 = sadd.s32 %s4666, %s4667
        %s4669 = smul.addr %s4668, 2
        %s4670 = scalar_lea.vmem %s5, %s4669
      $region56: #{decoder_block_forward.3} parent=47 // pred_fallthru
        _
    $region48: #{decoder_block_forward.3} parent=5 // pred_fallthru
      _
  $region6: #{decoder_block_forward.3} parent=0 // loop_footer
    %s16 = sadd.s32 1, %s12
  $region7: #{decoder_block_forward.3} parent=0 // loop_footer_branch
    %11 = sbr.rel target = $region3
  $region8: #{decoder_block_forward.3} parent=0 // loop_exit
    _

</llo_original>
